<compile_context>
chip_gen: v7x
topology: tpu7x:2x2x1
jax: 0.10.0
libtpu: 0.0.40
codegen_flags: <defaults>
</compile_context>

<pallas_src>
import functools

import jax
import jax.numpy as jnp
from jax.experimental import pallas as pl
from jax.experimental.pallas import tpu as pltpu

TASKS = ("segmentation", "depth", "normal")
NUM_CLASSES = (13, 1, 3)          # segmentation / depth / normal
ASPP_DILATE = (12, 24, 36)

IMG_C = 3
CLOW, CIN = 32, 64                # scaled-down stand-ins for 256 / 2048
PROJ_C, ASPP_C, CLS_C = 32, 64, 64  # scaled-down stand-ins for 48 / 256 / 256
NC_PAD = 128                      # lane-dense padding of the class axis
BN_SCALE = float((1.0 + 1e-5) ** -0.5)  # eval BN: gamma=1, beta=0, mean=0, var=1
# TODO(synk): real checkpoints need per-channel folded BN scale AND bias; the
# fresh-init module (gamma=1, beta=0, mean=0, var=1) only needs BN_SCALE.


def _nbytes(a):
    return int(a.size) * a.dtype.itemsize


# ----------------------------- static tap helpers -----------------------------

def _valid_taps(h, w, dilation):
    """Static list of 3x3 taps whose receptive field intersects the image."""
    taps = []
    for kh in range(3):
        for kw in range(3):
            dy, dx = (kh - 1) * dilation, (kw - 1) * dilation
            oh0, oh1 = max(0, -dy), min(h, h - dy)
            ow0, ow1 = max(0, -dx), min(w, w - dx)
            if oh0 < oh1 and ow0 < ow1:
                taps.append((kh * 3 + kw, dy, dx, oh0, oh1, ow0, ow1))
    return taps


def _pad_hw(x, top, bottom, left, right):
    """Zero-pad a (h, w, c) value on the two spatial axes via concatenation
    (static amounts) -- keeps the classifier-conv accumulation in registers,
    no masked partial stores into a VMEM scratch."""
    hh, ww, c = x.shape
    if left or right:
        parts = []
        if left:
            parts.append(jnp.zeros((hh, left, c), x.dtype))
        parts.append(x)
        if right:
            parts.append(jnp.zeros((hh, right, c), x.dtype))
        x = jnp.concatenate(parts, axis=1)
        ww = ww + left + right
    if top or bottom:
        parts = []
        if top:
            parts.append(jnp.zeros((top, ww, c), x.dtype))
        parts.append(x)
        if bottom:
            parts.append(jnp.zeros((bottom, ww, c), x.dtype))
        x = jnp.concatenate(parts, axis=0)
    return x


# ----------------------------- Pallas kernels -----------------------------

def _backbone_kernel(x4_ref, x8_ref, wlow_ref, wout_ref, low_ref, out_ref):
    # TODO(synk): the pretrained torchvision ResNet-50/101 backbone
    # (IntermediateLayerGetter) is external; it is replaced by a deterministic
    # stand-in (strided subsample + 1x1 conv with folded eval-BN + ReLU)
    # producing the same {'low_level': stride 4, 'out': stride 8} structure.
    def conv1x1_vpu(x_ref, w_ref, o_ref):
        # K = IMG_C = 3: three broadcast-FMAs on the VPU, do not waste the MXU.
        b, h, w, c = x_ref.shape
        cout = w_ref.shape[-1]
        x = x_ref[...].reshape(b * h * w, c)
        acc = x[:, 0:1] * w_ref[0:1, :]
        for ci in range(1, c):
            acc = acc + x[:, ci:ci + 1] * w_ref[ci:ci + 1, :]
        o_ref[...] = jnp.maximum(acc, 0.0).astype(o_ref.dtype).reshape(b, h, w, cout)

    conv1x1_vpu(x4_ref, wlow_ref, low_ref)
    conv1x1_vpu(x8_ref, wout_ref, out_ref)


def _decoder_head_kernel(low_ref, feat_ref, proj_ref, aspp_ctr_ref, *rest,
                         dilations, normal_idx, eps, off_taps):
    f32, bf16 = jnp.float32, jnp.bfloat16
    if off_taps:
        aspp_off_ref = rest[0]
        (pool_ref, aproj_ref, cls0_ref, cls1_ref, cls1b_ref,
         upmid_ref, upfin_ref, o_ref, aspp_acc) = rest[1:]
    else:
        (pool_ref, aproj_ref, cls0_ref, cls1_ref, cls1b_ref,
         upmid_ref, upfin_ref, o_ref) = rest

    hl, wl, clow = low_ref.shape[1:]
    ho, wo, cin = feat_ref.shape[1:]
    proj_c = proj_ref.shape[-1]
    naspp = aspp_ctr_ref.shape[-1]          # 4 * aspp_c
    aspp_c = naspp // 4
    cls_c = cls0_ref.shape[-1]
    cc = proj_c + aspp_c

    low = low_ref[0].reshape(hl * wl, clow)                       # bf16
    feat = feat_ref[0]                                            # (ho, wo, cin) bf16
    feat_flat = feat.reshape(ho * wo, cin)

    # ---- low-level 1x1 projection (folded BN) + ReLU -----------------------
    low_p = jnp.maximum(
        jnp.dot(low, proj_ref[0], preferred_element_type=f32), 0.0).astype(bf16)

    # ---- ASPP: fused [1x1 branch, d12 ctr, d24 ctr, d36 ctr] -> one matmul
    # ---- of width 4*aspp_c, then one matmul against the stacked projection.
    branches = jnp.dot(feat_flat, aspp_ctr_ref[0], preferred_element_type=f32)

    if off_taps:
        # General path (large feature maps): accumulate off-centre dilated taps
        # of each branch into its channel slab before the shared ReLU.
        aspp_acc[...] = branches.reshape(ho, wo, naspp)
        for j, d in enumerate(dilations):
            for (k, dy, dx, oh0, oh1, ow0, ow1) in _valid_taps(ho, wo, d):
                if dy == 0 and dx == 0:
                    continue
                hh, ww = oh1 - oh0, ow1 - ow0
                patch = feat[oh0 + dy:oh0 + dy + hh, ow0 + dx:ow0 + dx + ww, :]
                w_tap = aspp_off_ref[0, k, :, j * aspp_c:(j + 1) * aspp_c]
                contrib = jnp.dot(patch.reshape(hh * ww, cin), w_tap,
                                  preferred_element_type=f32)
                aspp_acc[oh0:oh1, ow0:ow1,
                         (j + 1) * aspp_c:(j + 2) * aspp_c] += contrib.reshape(
                             hh, ww, aspp_c)
        branches = aspp_acc[...].reshape(ho * wo, naspp)

    branches = jnp.maximum(branches, 0.0).astype(bf16)
    aspp = jnp.dot(branches, aproj_ref[0, :naspp, :], preferred_element_type=f32)

    # ---- global-average-pool branch; bilinear upsample from 1x1 == broadcast
    mean = jnp.mean(feat_flat.astype(f32), axis=0, keepdims=True)       # (1, cin)
    pooled = jnp.maximum(
        jnp.dot(mean.astype(bf16), pool_ref[0], preferred_element_type=f32), 0.0)
    pooled = jnp.dot(pooled.astype(bf16), aproj_ref[0, naspp:, :],
                     preferred_element_type=f32)                        # (1, aspp_c)
    # ASPP projection ReLU; Dropout(0.1) == identity in eval mode
    aspp = jnp.maximum(aspp + pooled, 0.0).astype(bf16)                 # (ho*wo, aspp_c)

    # ---- mid bilinear upsample (ho,wo)->(hl,wl): ONE matmul ----------------
    up = jnp.dot(upmid_ref[...], aspp,
                 preferred_element_type=f32).astype(bf16)               # (hl*wl, aspp_c)

    # ---- classifier: 3x3 conv over concat([low_p, up]) channels; per-tap
    # ---- contributions are zero-padded and summed in registers (no scratch).
    cat = jnp.concatenate([low_p, up], axis=-1).reshape(hl, wl, cc)
    hid = None
    for (k, dy, dx, oh0, oh1, ow0, ow1) in _valid_taps(hl, wl, 1):
        hh, ww = oh1 - oh0, ow1 - ow0
        patch = cat[oh0 + dy:oh0 + dy + hh, ow0 + dx:ow0 + dx + ww, :]
        contrib = jnp.dot(patch.reshape(hh * ww, cc), cls0_ref[0, k],
                          preferred_element_type=f32).reshape(hh, ww, cls_c)
        contrib = _pad_hw(contrib, oh0, hl - oh1, ow0, wl - ow1)
        hid = contrib if hid is None else hid + contrib
    hid = jnp.maximum(hid, 0.0).astype(bf16).reshape(hl * wl, cls_c)

    logits = jnp.dot(hid, cls1_ref[0],
                     preferred_element_type=f32) + cls1b_ref[0]         # (hl*wl, ncp)

    # ---- task 'normal': L2-normalize over channels (padded lanes are zero) -
    # TODO(synk): PyTorch divides by the raw norm (NaN for an all-zero pixel);
    # eps only guards that degenerate case.
    is_norm = (pl.program_id(0) == normal_idx).astype(f32)
    inv = jax.lax.rsqrt(jnp.sum(logits * logits, axis=-1, keepdims=True) + eps)
    logits = logits * (is_norm * inv + (1.0 - is_norm))

    # ---- final bilinear upsample (hl,wl)->(hout,wout): ONE matmul, bf16 store
    # TODO(synk): at production resolutions use the separable two-matmul form
    # (row then column matrices) instead of this kron'd matrix (v7x VMEM), and
    # share one 17-class lane slab across all three tasks.
    out = jnp.dot(upfin_ref[...], logits.astype(bf16),
                  preferred_element_type=f32)
    o_ref[0, 0] = out.astype(o_ref.dtype)


# ----------------------------- kernel wrappers -----------------------------

def backbone_forward(x4, x8, low_w, out_w):
    b, hl, wl, c = x4.shape
    _, ho, wo, _ = x8.shape
    clow, cin = low_w.shape[-1], out_w.shape[-1]
    flops = int(2 * (b * hl * wl * c * clow + b * ho * wo * c * cin))
    bytes_acc = int(_nbytes(x4) + _nbytes(x8) + _nbytes(low_w) + _nbytes(out_w)
                    + b * hl * wl * clow * 2 + b * ho * wo * cin * 2)
    return pl.pallas_call(
        _backbone_kernel,
        out_shape=(jax.ShapeDtypeStruct((b, hl, wl, clow), jnp.bfloat16),
                   jax.ShapeDtypeStruct((b, ho, wo, cin), jnp.bfloat16)),
        grid=(1,),
        in_specs=[
            pl.BlockSpec((b, hl, wl, c), lambda i: (0, 0, 0, 0)),
            pl.BlockSpec((b, ho, wo, c), lambda i: (0, 0, 0, 0)),
            pl.BlockSpec((c, clow), lambda i: (0, 0)),
            pl.BlockSpec((c, cin), lambda i: (0, 0)),
        ],
        out_specs=(pl.BlockSpec((b, hl, wl, clow), lambda i: (0, 0, 0, 0)),
                   pl.BlockSpec((b, ho, wo, cin), lambda i: (0, 0, 0, 0))),
        compiler_params=pltpu.CompilerParams(
            dimension_semantics=("arbitrary",)),
        cost_estimate=pl.CostEstimate(flops=flops, transcendentals=0,
                                      bytes_accessed=bytes_acc),
    )(x4, x8, low_w, out_w)


def decoder_forward(low, feat, dec, up_mid, up_fin, hout, wout):
    """All three DeepLabHeadV3Plus decoders fused into one pallas_call.

    grid = (num_tasks, batch), both axes parallel (megacore on v7x).  Per-task
    weights are streamed by the BlockSpec pipeline; each step writes one
    lane-dense (hout*wout, NC_PAD) bf16 slab for its (task, batch) pair.
    """
    t_dim = dec["proj_w"].shape[0]
    bsz, hl, wl, clow = low.shape
    _, ho, wo, cin = feat.shape
    proj_c = dec["proj_w"].shape[-1]
    naspp = dec["aspp_ctr_w"].shape[-1]
    aspp_c = naspp // 4
    cls_c = dec["cls_w0"].shape[-1]
    nc_pad = dec["cls_w1"].shape[-1]
    cc = proj_c + aspp_c

    # Do the dilated branches' off-centre taps see anything but zero padding?
    off_taps = not all(d >= ho and d >= wo for d in ASPP_DILATE)

    kern = functools.partial(_decoder_head_kernel, dilations=ASPP_DILATE,
                             normal_idx=TASKS.index("normal"), eps=1e-12,
                             off_taps=off_taps)

    amap = lambda t, b: (b, 0, 0, 0)      # activations: block over batch
    w3 = lambda t, b: (t, 0, 0)           # per-task weights
    w4 = lambda t, b: (t, 0, 0, 0)
    m2 = lambda t, b: (0, 0)              # shared interpolation matrices

    in_specs = [
        pl.BlockSpec((1, hl, wl, clow), amap),            # low-level feature
        pl.BlockSpec((1, ho, wo, cin), amap),             # 'out' feature
        pl.BlockSpec((1, clow, proj_c), w3),              # proj_w
        pl.BlockSpec((1, cin, naspp), w3),                # fused ASPP centre weight
    ]
    args = [low, feat, dec["proj_w"], dec["aspp_ctr_w"]]
    scratch = []
    if off_taps:
        in_specs.append(pl.BlockSpec((1, 9, cin, 3 * aspp_c), w4))
        args.append(dec["aspp_off_w"])
        scratch.append(pltpu.VMEM((ho, wo, naspp), jnp.float32))
    in_specs += [
        pl.BlockSpec((1, cin, aspp_c), w3),               # aspp pool 1x1
        pl.BlockSpec((1, 5 * aspp_c, aspp_c), w3),        # aspp projection
        pl.BlockSpec((1, 9, cc, cls_c), w4),              # classifier 3x3 (fused groups)
        pl.BlockSpec((1, cls_c, nc_pad), w3),             # classifier 1x1
        pl.BlockSpec((1, 1, nc_pad), w3),                 # classifier bias
        pl.BlockSpec((hl * wl, ho * wo), m2),             # mid bilinear matrix
        pl.BlockSpec((hout * wout, hl * wl), m2),         # final bilinear matrix
    ]
    args += [dec["pool_w"], dec["aspp_proj_w"], dec["cls_w0"], dec["cls_w1"],
             dec["cls_b1"], up_mid, up_fin]

    per_step_flops = 2 * (hl * wl * clow * proj_c
                          + ho * wo * cin * naspp
                          + ho * wo * naspp * aspp_c
                          + cin * aspp_c + aspp_c * aspp_c
                          + hl * wl * ho * wo * aspp_c
                          + 9 * hl * wl * cc * cls_c
                          + hl * wl * cls_c * nc_pad
                          + hout * wout * hl * wl * nc_pad)
    flops = int(t_dim * bsz * per_step_flops)
    transcendentals = int(t_dim * bsz * hl * wl)
    bytes_acc = int(t_dim * (_nbytes(low) + _nbytes(feat))
                    + sum(_nbytes(a) for a in args[2:])
                    + t_dim * bsz * hout * wout * nc_pad * 2)

    return pl.pallas_call(
        kern,
        out_shape=jax.ShapeDtypeStruct((t_dim, bsz, hout * wout, nc_pad),
                                       jnp.bfloat16),
        grid=(t_dim, bsz),
        in_specs=in_specs,
        out_specs=pl.BlockSpec((1, 1, hout * wout, nc_pad),
                               lambda t, b: (t, b, 0, 0)),
        scratch_shapes=scratch,
        compiler_params=pltpu.CompilerParams(
            dimension_semantics=("parallel", "parallel"),
            vmem_limit_bytes=32 * 1024 * 1024),
        cost_estimate=pl.CostEstimate(flops=flops,
                                      transcendentals=transcendentals,
                                      bytes_accessed=bytes_acc),
    )(*args)


# ----------------------------- parameters -----------------------------

def _kaiming(key, taps, cin, cout):
    std = (2.0 / (cin * taps)) ** 0.5
    return std * jax.random.normal(key, (taps, cin, cout), jnp.float32)


def _interp_matrix(out_size, in_size):
    """Row-interpolation matrix matching F.interpolate(mode='bilinear',
    align_corners=False)."""
    scale = in_size / out_size
    dst = jnp.arange(out_size, dtype=jnp.float32)
    src = jnp.clip((dst + 0.5) * scale - 0.5, 0.0, float(in_size - 1))
    lo = jnp.floor(src)
    hi = jnp.minimum(lo + 1.0, float(in_size - 1))
    frac = src - lo
    oh_lo = jax.nn.one_hot(lo.astype(jnp.int32), in_size, dtype=jnp.float32)
    oh_hi = jax.nn.one_hot(hi.astype(jnp.int32), in_size, dtype=jnp.float32)
    return (1.0 - frac)[:, None] * oh_lo + frac[:, None] * oh_hi


def _bilinear_matrix(hout, wout, hin, win):
    """kron(wy, wx): maps a flattened (hin*win, C) map to (hout*wout, C)."""
    wy = _interp_matrix(hout, hin)
    wx = _interp_matrix(wout, win)
    return jnp.einsum("oh,pw->ophw", wy, wx).reshape(hout * wout, hin * win)


def init_head(key, nc):
    """DeepLabHeadV3Plus params (channels scaled down from 48/256/2048/304/256),
    eval-mode BatchNorm folded into the conv weights, stored bf16 for the MXU."""
    ks = jax.random.split(key, 9)
    s = BN_SCALE
    bf = jnp.bfloat16
    aspp0 = _kaiming(ks[1], 1, CIN, ASPP_C)[0]
    a1 = _kaiming(ks[2], 9, CIN, ASPP_C)
    a2 = _kaiming(ks[3], 9, CIN, ASPP_C)
    a3 = _kaiming(ks[4], 9, CIN, ASPP_C)
    p = {}
    p["proj_w"] = (_kaiming(ks[0], 1, CLOW, PROJ_C)[0] * s).astype(bf)
    # fused ASPP "centre" weight: [1x1 branch, d12 centre, d24 centre, d36 centre]
    p["aspp_ctr_w"] = (jnp.concatenate([aspp0, a1[4], a2[4], a3[4]], axis=-1)
                       * s).astype(bf)
    # full 9-tap weights of the three dilated branches (streamed only when the
    # feature map is large enough that off-centre taps are not all padding)
    p["aspp_off_w"] = (jnp.concatenate([a1, a2, a3], axis=-1) * s).astype(bf)
    p["pool_w"] = (_kaiming(ks[5], 1, CIN, ASPP_C)[0] * s).astype(bf)
    p["aspp_proj_w"] = (_kaiming(ks[6], 1, 5 * ASPP_C, ASPP_C)[0] * s).astype(bf)
    p["cls_w0"] = (_kaiming(ks[7], 9, PROJ_C + ASPP_C, CLS_C) * s).astype(bf)
    w1 = _kaiming(ks[8], 1, CLS_C, nc)[0]
    # pad the class axis to NC_PAD lanes; zero weights + zero bias keep the
    # padded output channels exactly zero (so the L2 norm is unaffected).
    p["cls_w1"] = jnp.zeros((CLS_C, NC_PAD), bf).at[:, :nc].set(w1.astype(bf))
    p["cls_b1"] = jnp.zeros((1, NC_PAD), jnp.float32)
    return p


def init_params(key, h, w):
    kb1, kb2, k1, k2, k3 = jax.random.split(key, 5)
    backbone = {"low_w": _kaiming(kb1, 1, IMG_C, CLOW)[0] * BN_SCALE,
                "out_w": _kaiming(kb2, 1, IMG_C, CIN)[0] * BN_SCALE}
    heads = [init_head(k, nc) for k, nc in zip((k1, k2, k3), NUM_CLASSES)]
    decoder = {name: jnp.stack([hd[name] for hd in heads], axis=0)
               for name in heads[0]}
    hl, wl, ho, wo = h // 4, w // 4, h // 8, w // 8
    return {
        "backbone": backbone,
        "decoder": decoder,
        # bilinear (align_corners=False) interpolation matrices, built once, bf16.
        "up_mid": _bilinear_matrix(hl, wl, ho, wo).astype(jnp.bfloat16),
        "up_fin": _bilinear_matrix(h, w, hl, wl).astype(jnp.bfloat16),
        "loss_scale": jnp.full((len(TASKS),), -0.5, jnp.float32),  # weighting 'UW'
    }


# ----------------------------- forward pass -----------------------------

def deeplabv3_forward(params, x_nchw):
    bsz, _, h, w = x_nchw.shape
    x = jnp.transpose(x_nchw, (0, 2, 3, 1)).astype(jnp.float32)   # NCHW -> NHWC
    x4 = x[:, ::4, ::4, :]     # stride-4 'low_level' stand-in input
    x8 = x[:, ::8, ::8, :]     # stride-8 'out' stand-in input

    bb = params["backbone"]
    low, feat = backbone_forward(x4, x8, bb["low_w"], bb["out_w"])

    preds_all = decoder_forward(low, feat, params["decoder"],
                                params["up_mid"], params["up_fin"], h, w)
    pa = preds_all.reshape(len(TASKS), bsz, h, w, NC_PAD)

    preds = {}
    for ti, task in enumerate(TASKS):
        nc = NUM_CLASSES[ti]
        # drop the lane padding of the class axis; NHWC -> NCHW like the reference
        preds[task] = jnp.transpose(pa[ti, :, :, :, :nc],
                                    (0, 3, 1, 2)).astype(jnp.float32)
    return preds, params["loss_scale"]


# ----------------------------- main -----------------------------

if __name__ == "__main__":
    key = jax.random.PRNGKey(0)
    k_img, k_par = jax.random.split(key)

    B, H, W = 2, 32, 32
    x = jax.random.normal(k_img, (B, IMG_C, H, W), jnp.float32)
    params = init_params(k_par, H, W)

    fwd = jax.jit(deeplabv3_forward)
    preds, loss_scale = fwd(params, x)
    jax.block_until_ready(preds)
    jax.block_until_ready(loss_scale)

    assert preds["segmentation"].shape == (B, NUM_CLASSES[0], H, W)
    assert preds["depth"].shape == (B, NUM_CLASSES[1], H, W)
    assert preds["normal"].shape == (B, NUM_CLASSES[2], H, W)
    assert loss_scale.shape == (len(TASKS),)
    for v in preds.values():
        assert bool(jnp.all(jnp.isfinite(v)))
    print("KERNEL_OK")
</pallas_src>

<mosaic_0001>
module attributes {stable_mosaic.version = 11 : i64} {
  func.func @_backbone_kernel(%arg0: i32, %arg1: memref<2x8x8x3xf32, #tpu.memory_space<vmem>>, %arg2: memref<2x4x4x3xf32, #tpu.memory_space<vmem>>, %arg3: memref<3x32xf32, #tpu.memory_space<vmem>>, %arg4: memref<3x64xf32, #tpu.memory_space<vmem>>, %arg5: memref<2x8x8x32xbf16, #tpu.memory_space<vmem>>, %arg6: memref<2x4x4x64xbf16, #tpu.memory_space<vmem>>) attributes {dimension_semantics = [#tpu.dimension_semantics<arbitrary>], iteration_bounds = array<i64: 1>, scalar_prefetch = 0 : i64, scratch_operands = 0 : i64, tpu.core_type = #tpu.core_type<tc>, window_params = [{pipeline_mode = #tpu.pipeline_mode<synchronous>, transform_indices = @transform_0, window_bounds = array<i64: 2, 8, 8, 3>}, {pipeline_mode = #tpu.pipeline_mode<synchronous>, transform_indices = @transform_1, window_bounds = array<i64: 2, 4, 4, 3>}, {pipeline_mode = #tpu.pipeline_mode<synchronous>, transform_indices = @transform_2, window_bounds = array<i64: 3, 32>}, {pipeline_mode = #tpu.pipeline_mode<synchronous>, transform_indices = @transform_3, window_bounds = array<i64: 3, 64>}, {pipeline_mode = #tpu.pipeline_mode<synchronous>, transform_indices = @transform_4, window_bounds = array<i64: 2, 8, 8, 32>}, {pipeline_mode = #tpu.pipeline_mode<synchronous>, transform_indices = @transform_5, window_bounds = array<i64: 2, 4, 4, 64>}]} {
    %c0 = arith.constant 0 : index
    %c0_0 = arith.constant 0 : index
    %c0_1 = arith.constant 0 : index
    %c0_2 = arith.constant 0 : index
    %0 = vector.load %arg1[%c0, %c0_0, %c0_1, %c0_2] : memref<2x8x8x3xf32, #tpu.memory_space<vmem>>, vector<2x8x8x3xf32>
    %1 = vector.shape_cast %0 : vector<2x8x8x3xf32> to vector<128x3xf32>
    %2 = vector.extract_strided_slice %1 {offsets = [0, 0], sizes = [128, 1], strides = [1, 1]} : vector<128x3xf32> to vector<128x1xf32>
    %c0_3 = arith.constant 0 : index
    %c0_4 = arith.constant 0 : index
    %3 = vector.load %arg3[%c0_3, %c0_4] : memref<3x32xf32, #tpu.memory_space<vmem>>, vector<1x32xf32>
    %4 = vector.broadcast %2 : vector<128x1xf32> to vector<128x32xf32>
    %5 = vector.broadcast %3 : vector<1x32xf32> to vector<128x32xf32>
    %6 = arith.mulf %4, %5 : vector<128x32xf32>
    %7 = vector.extract_strided_slice %1 {offsets = [0, 1], sizes = [128, 1], strides = [1, 1]} : vector<128x3xf32> to vector<128x1xf32>
    %c1 = arith.constant 1 : index
    %c0_5 = arith.constant 0 : index
    %8 = vector.load %arg3[%c1, %c0_5] : memref<3x32xf32, #tpu.memory_space<vmem>>, vector<1x32xf32>
    %9 = vector.broadcast %7 : vector<128x1xf32> to vector<128x32xf32>
    %10 = vector.broadcast %8 : vector<1x32xf32> to vector<128x32xf32>
    %11 = arith.mulf %9, %10 : vector<128x32xf32>
    %12 = arith.addf %6, %11 : vector<128x32xf32>
    %13 = vector.extract_strided_slice %1 {offsets = [0, 2], sizes = [128, 1], strides = [1, 1]} : vector<128x3xf32> to vector<128x1xf32>
    %c2 = arith.constant 2 : index
    %c0_6 = arith.constant 0 : index
    %14 = vector.load %arg3[%c2, %c0_6] : memref<3x32xf32, #tpu.memory_space<vmem>>, vector<1x32xf32>
    %15 = vector.broadcast %13 : vector<128x1xf32> to vector<128x32xf32>
    %16 = vector.broadcast %14 : vector<1x32xf32> to vector<128x32xf32>
    %17 = arith.mulf %15, %16 : vector<128x32xf32>
    %18 = arith.addf %12, %17 : vector<128x32xf32>
    %cst = arith.constant 0.000000e+00 : f32
    %19 = vector.broadcast %cst : f32 to vector<128x32xf32>
    %20 = arith.maximumf %18, %19 : vector<128x32xf32>
    %21 = arith.truncf %20 : vector<128x32xf32> to vector<128x32xbf16>
    %22 = vector.shape_cast %21 : vector<128x32xbf16> to vector<2x8x8x32xbf16>
    %c0_7 = arith.constant 0 : index
    %c0_8 = arith.constant 0 : index
    %c0_9 = arith.constant 0 : index
    %c0_10 = arith.constant 0 : index
    %23 = vector.load %arg5[%c0_7, %c0_8, %c0_9, %c0_10] : memref<2x8x8x32xbf16, #tpu.memory_space<vmem>>, vector<2x8x8x32xbf16>
    tpu.vector_store %arg5[%c0_7, %c0_8, %c0_9, %c0_10], %22 {strides = array<i32>} : memref<2x8x8x32xbf16, #tpu.memory_space<vmem>>, vector<2x8x8x32xbf16>,
    %c0_11 = arith.constant 0 : index
    %c0_12 = arith.constant 0 : index
    %c0_13 = arith.constant 0 : index
    %c0_14 = arith.constant 0 : index
    %24 = vector.load %arg2[%c0_11, %c0_12, %c0_13, %c0_14] : memref<2x4x4x3xf32, #tpu.memory_space<vmem>>, vector<2x4x4x3xf32>
    %25 = vector.shape_cast %24 : vector<2x4x4x3xf32> to vector<32x3xf32>
    %26 = vector.extract_strided_slice %25 {offsets = [0, 0], sizes = [32, 1], strides = [1, 1]} : vector<32x3xf32> to vector<32x1xf32>
    %c0_15 = arith.constant 0 : index
    %c0_16 = arith.constant 0 : index
    %27 = vector.load %arg4[%c0_15, %c0_16] : memref<3x64xf32, #tpu.memory_space<vmem>>, vector<1x64xf32>
    %28 = vector.broadcast %26 : vector<32x1xf32> to vector<32x64xf32>
    %29 = vector.broadcast %27 : vector<1x64xf32> to vector<32x64xf32>
    %30 = arith.mulf %28, %29 : vector<32x64xf32>
    %31 = vector.extract_strided_slice %25 {offsets = [0, 1], sizes = [32, 1], strides = [1, 1]} : vector<32x3xf32> to vector<32x1xf32>
    %c1_17 = arith.constant 1 : index
    %c0_18 = arith.constant 0 : index
    %32 = vector.load %arg4[%c1_17, %c0_18] : memref<3x64xf32, #tpu.memory_space<vmem>>, vector<1x64xf32>
    %33 = vector.broadcast %31 : vector<32x1xf32> to vector<32x64xf32>
    %34 = vector.broadcast %32 : vector<1x64xf32> to vector<32x64xf32>
    %35 = arith.mulf %33, %34 : vector<32x64xf32>
    %36 = arith.addf %30, %35 : vector<32x64xf32>
    %37 = vector.extract_strided_slice %25 {offsets = [0, 2], sizes = [32, 1], strides = [1, 1]} : vector<32x3xf32> to vector<32x1xf32>
    %c2_19 = arith.constant 2 : index
    %c0_20 = arith.constant 0 : index
    %38 = vector.load %arg4[%c2_19, %c0_20] : memref<3x64xf32, #tpu.memory_space<vmem>>, vector<1x64xf32>
    %39 = vector.broadcast %37 : vector<32x1xf32> to vector<32x64xf32>
    %40 = vector.broadcast %38 : vector<1x64xf32> to vector<32x64xf32>
    %41 = arith.mulf %39, %40 : vector<32x64xf32>
    %42 = arith.addf %36, %41 : vector<32x64xf32>
    %cst_21 = arith.constant 0.000000e+00 : f32
    %43 = vector.broadcast %cst_21 : f32 to vector<32x64xf32>
    %44 = arith.maximumf %42, %43 : vector<32x64xf32>
    %45 = arith.truncf %44 : vector<32x64xf32> to vector<32x64xbf16>
    %46 = vector.shape_cast %45 : vector<32x64xbf16> to vector<2x4x4x64xbf16>
    %c0_22 = arith.constant 0 : index
    %c0_23 = arith.constant 0 : index
    %c0_24 = arith.constant 0 : index
    %c0_25 = arith.constant 0 : index
    %47 = vector.load %arg6[%c0_22, %c0_23, %c0_24, %c0_25] : memref<2x4x4x64xbf16, #tpu.memory_space<vmem>>, vector<2x4x4x64xbf16>
    tpu.vector_store %arg6[%c0_22, %c0_23, %c0_24, %c0_25], %46 {strides = array<i32>} : memref<2x4x4x64xbf16, #tpu.memory_space<vmem>>, vector<2x4x4x64xbf16>,
    return
  }
  func.func @transform_0(%arg0: i32) -> (i32, i32, i32, i32) {
    %c0_i32 = arith.constant 0 : i32
    %c0_i32_0 = arith.constant 0 : i32
    %c0_i32_1 = arith.constant 0 : i32
    %c0_i32_2 = arith.constant 0 : i32
    %c0_i32_3 = arith.constant 0 : i32
    return %c0_i32, %c0_i32_0, %c0_i32_1, %c0_i32_2 : i32, i32, i32, i32
  }
  func.func @transform_1(%arg0: i32) -> (i32, i32, i32, i32) {
    %c0_i32 = arith.constant 0 : i32
    %c0_i32_0 = arith.constant 0 : i32
    %c0_i32_1 = arith.constant 0 : i32
    %c0_i32_2 = arith.constant 0 : i32
    %c0_i32_3 = arith.constant 0 : i32
    return %c0_i32, %c0_i32_0, %c0_i32_1, %c0_i32_2 : i32, i32, i32, i32
  }
  func.func @transform_2(%arg0: i32) -> (i32, i32) {
    %c0_i32 = arith.constant 0 : i32
    %c0_i32_0 = arith.constant 0 : i32
    %c0_i32_1 = arith.constant 0 : i32
    return %c0_i32, %c0_i32_0 : i32, i32
  }
  func.func @transform_3(%arg0: i32) -> (i32, i32) {
    %c0_i32 = arith.constant 0 : i32
    %c0_i32_0 = arith.constant 0 : i32
    %c0_i32_1 = arith.constant 0 : i32
    return %c0_i32, %c0_i32_0 : i32, i32
  }
  func.func @transform_4(%arg0: i32) -> (i32, i32, i32, i32) {
    %c0_i32 = arith.constant 0 : i32
    %c0_i32_0 = arith.constant 0 : i32
    %c0_i32_1 = arith.constant 0 : i32
    %c0_i32_2 = arith.constant 0 : i32
    %c0_i32_3 = arith.constant 0 : i32
    return %c0_i32, %c0_i32_0, %c0_i32_1, %c0_i32_2 : i32, i32, i32, i32
  }
  func.func @transform_5(%arg0: i32) -> (i32, i32, i32, i32) {
    %c0_i32 = arith.constant 0 : i32
    %c0_i32_0 = arith.constant 0 : i32
    %c0_i32_1 = arith.constant 0 : i32
    %c0_i32_2 = arith.constant 0 : i32
    %c0_i32_3 = arith.constant 0 : i32
    return %c0_i32, %c0_i32_0, %c0_i32_1, %c0_i32_2 : i32, i32, i32, i32
  }
}

module attributes {stable_mosaic.version = 11 : i64} {
  func.func @_decoder_head_kernel(%arg0: i32, %arg1: i32, %arg2: memref<1x8x8x32xbf16, #tpu.memory_space<vmem>>, %arg3: memref<1x4x4x64xbf16, #tpu.memory_space<vmem>>, %arg4: memref<1x32x32xbf16, #tpu.memory_space<vmem>>, %arg5: memref<1x64x256xbf16, #tpu.memory_space<vmem>>, %arg6: memref<1x64x64xbf16, #tpu.memory_space<vmem>>, %arg7: memref<1x320x64xbf16, #tpu.memory_space<vmem>>, %arg8: memref<1x9x96x64xbf16, #tpu.memory_space<vmem>>, %arg9: memref<1x64x128xbf16, #tpu.memory_space<vmem>>, %arg10: memref<1x1x128xf32, #tpu.memory_space<vmem>>, %arg11: memref<64x16xbf16, #tpu.memory_space<vmem>>, %arg12: memref<1024x64xbf16, #tpu.memory_space<vmem>>, %arg13: memref<1x1x1024x128xbf16, #tpu.memory_space<vmem>>) attributes {dimension_semantics = [#tpu.dimension_semantics<parallel>, #tpu.dimension_semantics<parallel>], iteration_bounds = array<i64: 3, 2>, scalar_prefetch = 0 : i64, scratch_operands = 0 : i64, tpu.core_type = #tpu.core_type<tc>, window_params = [{transform_indices = @transform_0, window_bounds = array<i64: 1, 8, 8, 32>}, {transform_indices = @transform_1, window_bounds = array<i64: 1, 4, 4, 64>}, {transform_indices = @transform_2, window_bounds = array<i64: 1, 32, 32>}, {transform_indices = @transform_3, window_bounds = array<i64: 1, 64, 256>}, {transform_indices = @transform_4, window_bounds = array<i64: 1, 64, 64>}, {transform_indices = @transform_5, window_bounds = array<i64: 1, 320, 64>}, {transform_indices = @transform_6, window_bounds = array<i64: 1, 9, 96, 64>}, {transform_indices = @transform_7, window_bounds = array<i64: 1, 64, 128>}, {transform_indices = @transform_8, window_bounds = array<i64: 1, 1, 128>}, {pipeline_mode = #tpu.pipeline_mode<synchronous>, transform_indices = @transform_9, window_bounds = array<i64: 64, 16>}, {pipeline_mode = #tpu.pipeline_mode<synchronous>, transform_indices = @transform_10, window_bounds = array<i64: 1024, 64>}, {transform_indices = @transform_11, window_bounds = array<i64: 1, 1, 1024, 128>}]} {
    %c0 = arith.constant 0 : index
    %c0_0 = arith.constant 0 : index
    %c0_1 = arith.constant 0 : index
    %c0_2 = arith.constant 0 : index
    %0 = vector.load %arg2[%c0, %c0_0, %c0_1, %c0_2] : memref<1x8x8x32xbf16, #tpu.memory_space<vmem>>, vector<1x8x8x32xbf16>
    %1 = vector.shape_cast %0 : vector<1x8x8x32xbf16> to vector<8x8x32xbf16>
    %2 = vector.shape_cast %1 : vector<8x8x32xbf16> to vector<64x32xbf16>
    %c0_3 = arith.constant 0 : index
    %c0_4 = arith.constant 0 : index
    %c0_5 = arith.constant 0 : index
    %c0_6 = arith.constant 0 : index
    %3 = vector.load %arg3[%c0_3, %c0_4, %c0_5, %c0_6] : memref<1x4x4x64xbf16, #tpu.memory_space<vmem>>, vector<1x4x4x64xbf16>
    %4 = vector.shape_cast %3 : vector<1x4x4x64xbf16> to vector<4x4x64xbf16>
    %5 = vector.shape_cast %4 : vector<4x4x64xbf16> to vector<16x64xbf16>
    %c0_7 = arith.constant 0 : index
    %c0_8 = arith.constant 0 : index
    %c0_9 = arith.constant 0 : index
    %6 = vector.load %arg4[%c0_7, %c0_8, %c0_9] : memref<1x32x32xbf16, #tpu.memory_space<vmem>>, vector<1x32x32xbf16>
    %7 = vector.shape_cast %6 : vector<1x32x32xbf16> to vector<32x32xbf16>
    %cst = arith.constant dense<0.000000e+00> : vector<64x32xf32>
    %8 = tpu.matmul %2, %7, %cst {dimension_numbers = #tpu.dot_dimension_numbers<[1], [0], [0], [1], [0, 0, 1, 1], [], []>} : vector<64x32xbf16>, vector<32x32xbf16>, vector<64x32xf32> -> vector<64x32xf32>
    %cst_10 = arith.constant 0.000000e+00 : f32
    %9 = vector.broadcast %cst_10 : f32 to vector<64x32xf32>
    %10 = arith.maximumf %8, %9 : vector<64x32xf32>
    %11 = arith.truncf %10 : vector<64x32xf32> to vector<64x32xbf16>
    %c0_11 = arith.constant 0 : index
    %c0_12 = arith.constant 0 : index
    %c0_13 = arith.constant 0 : index
    %12 = vector.load %arg5[%c0_11, %c0_12, %c0_13] : memref<1x64x256xbf16, #tpu.memory_space<vmem>>, vector<1x64x256xbf16>
    %13 = vector.shape_cast %12 : vector<1x64x256xbf16> to vector<64x256xbf16>
    %cst_14 = arith.constant dense<0.000000e+00> : vector<16x256xf32>
    %14 = tpu.matmul %5, %13, %cst_14 {dimension_numbers = #tpu.dot_dimension_numbers<[1], [0], [0], [1], [0, 0, 1, 1], [], []>} : vector<16x64xbf16>, vector<64x256xbf16>, vector<16x256xf32> -> vector<16x256xf32>
    %cst_15 = arith.constant 0.000000e+00 : f32
    %15 = vector.broadcast %cst_15 : f32 to vector<16x256xf32>
    %16 = arith.maximumf %14, %15 : vector<16x256xf32>
    %17 = arith.truncf %16 : vector<16x256xf32> to vector<16x256xbf16>
    %c0_16 = arith.constant 0 : index
    %c0_17 = arith.constant 0 : index
    %c0_18 = arith.constant 0 : index
    %18 = vector.load %arg7[%c0_16, %c0_17, %c0_18] : memref<1x320x64xbf16, #tpu.memory_space<vmem>>, vector<1x256x64xbf16>
    %19 = vector.shape_cast %18 : vector<1x256x64xbf16> to vector<256x64xbf16>
    %cst_19 = arith.constant dense<0.000000e+00> : vector<16x64xf32>
    %20 = tpu.matmul %17, %19, %cst_19 {dimension_numbers = #tpu.dot_dimension_numbers<[1], [0], [0], [1], [0, 0, 1, 1], [], []>} : vector<16x256xbf16>, vector<256x64xbf16>, vector<16x64xf32> -> vector<16x64xf32>
    %21 = arith.extf %5 : vector<16x64xbf16> to vector<16x64xf32>
    %cst_20 = arith.constant dense<0.000000e+00> : vector<64xf32>
    %22 = vector.multi_reduction <add>, %21, %cst_20 [0] : vector<16x64xf32> to vector<64xf32>
    %23 = vector.shape_cast %22 : vector<64xf32> to vector<1x64xf32>
    %cst_21 = arith.constant 1.600000e+01 : f32
    %24 = vector.broadcast %cst_21 : f32 to vector<1x64xf32>
    %25 = arith.divf %23, %24 : vector<1x64xf32>
    %26 = arith.truncf %25 : vector<1x64xf32> to vector<1x64xbf16>
    %c0_22 = arith.constant 0 : index
    %c0_23 = arith.constant 0 : index
    %c0_24 = arith.constant 0 : index
    %27 = vector.load %arg6[%c0_22, %c0_23, %c0_24] : memref<1x64x64xbf16, #tpu.memory_space<vmem>>, vector<1x64x64xbf16>
    %28 = vector.shape_cast %27 : vector<1x64x64xbf16> to vector<64x64xbf16>
    %cst_25 = arith.constant dense<0.000000e+00> : vector<1x64xf32>
    %29 = tpu.matmul %26, %28, %cst_25 {dimension_numbers = #tpu.dot_dimension_numbers<[1], [0], [0], [1], [0, 0, 1, 1], [], []>} : vector<1x64xbf16>, vector<64x64xbf16>, vector<1x64xf32> -> vector<1x64xf32>
    %cst_26 = arith.constant 0.000000e+00 : f32
    %30 = vector.broadcast %cst_26 : f32 to vector<1x64xf32>
    %31 = arith.maximumf %29, %30 : vector<1x64xf32>
    %32 = arith.truncf %31 : vector<1x64xf32> to vector<1x64xbf16>
    %c0_27 = arith.constant 0 : index
    %c256 = arith.constant 256 : index
    %c0_28 = arith.constant 0 : index
    %33 = vector.load %arg7[%c0_27, %c256, %c0_28] : memref<1x320x64xbf16, #tpu.memory_space<vmem>>, vector<1x64x64xbf16>
    %34 = vector.shape_cast %33 : vector<1x64x64xbf16> to vector<64x64xbf16>
    %cst_29 = arith.constant dense<0.000000e+00> : vector<1x64xf32>
    %35 = tpu.matmul %32, %34, %cst_29 {dimension_numbers = #tpu.dot_dimension_numbers<[1], [0], [0], [1], [0, 0, 1, 1], [], []>} : vector<1x64xbf16>, vector<64x64xbf16>, vector<1x64xf32> -> vector<1x64xf32>
    %36 = vector.broadcast %35 : vector<1x64xf32> to vector<16x64xf32>
    %37 = arith.addf %20, %36 : vector<16x64xf32>
    %cst_30 = arith.constant 0.000000e+00 : f32
    %38 = vector.broadcast %cst_30 : f32 to vector<16x64xf32>
    %39 = arith.maximumf %37, %38 : vector<16x64xf32>
    %40 = arith.truncf %39 : vector<16x64xf32> to vector<16x64xbf16>
    %c0_31 = arith.constant 0 : index
    %c0_32 = arith.constant 0 : index
    %41 = vector.load %arg11[%c0_31, %c0_32] : memref<64x16xbf16, #tpu.memory_space<vmem>>, vector<64x16xbf16>
    %cst_33 = arith.constant dense<0.000000e+00> : vector<64x64xf32>
    %42 = tpu.matmul %41, %40, %cst_33 {dimension_numbers = #tpu.dot_dimension_numbers<[1], [0], [0], [1], [0, 0, 1, 1], [], []>} : vector<64x16xbf16>, vector<16x64xbf16>, vector<64x64xf32> -> vector<64x64xf32>
    %43 = arith.truncf %42 : vector<64x64xf32> to vector<64x64xbf16>
    %44 = tpu.concatenate %11, %43 in 1 : vector<64x32xbf16>, vector<64x64xbf16> -> vector<64x96xbf16>
    %45 = vector.shape_cast %44 : vector<64x96xbf16> to vector<8x8x96xbf16>
    %46 = vector.extract_strided_slice %45 {offsets = [0, 0, 0], sizes = [7, 7, 96], strides = [1, 1, 1]} : vector<8x8x96xbf16> to vector<7x7x96xbf16>
    %47 = vector.shape_cast %46 : vector<7x7x96xbf16> to vector<49x96xbf16>
    %c0_34 = arith.constant 0 : index
    %c0_35 = arith.constant 0 : index
    %c0_36 = arith.constant 0 : index
    %c0_37 = arith.constant 0 : index
    %48 = vector.load %arg8[%c0_34, %c0_35, %c0_36, %c0_37] : memref<1x9x96x64xbf16, #tpu.memory_space<vmem>>, vector<1x1x96x64xbf16>
    %49 = vector.shape_cast %48 : vector<1x1x96x64xbf16> to vector<96x64xbf16>
    %cst_38 = arith.constant dense<0.000000e+00> : vector<49x64xf32>
    %50 = tpu.matmul %47, %49, %cst_38 {dimension_numbers = #tpu.dot_dimension_numbers<[1], [0], [0], [1], [0, 0, 1, 1], [], []>} : vector<49x96xbf16>, vector<96x64xbf16>, vector<49x64xf32> -> vector<49x64xf32>
    %51 = vector.shape_cast %50 : vector<49x64xf32> to vector<7x7x64xf32>
    %cst_39 = arith.constant 0.000000e+00 : f32
    %52 = vector.broadcast %cst_39 : f32 to vector<7x1x64xf32>
    %53 = tpu.concatenate %52, %51 in 1 : vector<7x1x64xf32>, vector<7x7x64xf32> -> vector<7x8x64xf32>
    %cst_40 = arith.constant 0.000000e+00 : f32
    %54 = vector.broadcast %cst_40 : f32 to vector<1x8x64xf32>
    %55 = tpu.concatenate %54, %53 in 0 : vector<1x8x64xf32>, vector<7x8x64xf32> -> vector<8x8x64xf32>
    %56 = vector.extract_strided_slice %45 {offsets = [0, 0, 0], sizes = [7, 8, 96], strides = [1, 1, 1]} : vector<8x8x96xbf16> to vector<7x8x96xbf16>
    %57 = vector.shape_cast %56 : vector<7x8x96xbf16> to vector<56x96xbf16>
    %c0_41 = arith.constant 0 : index
    %c1 = arith.constant 1 : index
    %c0_42 = arith.constant 0 : index
    %c0_43 = arith.constant 0 : index
    %58 = vector.load %arg8[%c0_41, %c1, %c0_42, %c0_43] : memref<1x9x96x64xbf16, #tpu.memory_space<vmem>>, vector<1x1x96x64xbf16>
    %59 = vector.shape_cast %58 : vector<1x1x96x64xbf16> to vector<96x64xbf16>
    %cst_44 = arith.constant dense<0.000000e+00> : vector<56x64xf32>
    %60 = tpu.matmul %57, %59, %cst_44 {dimension_numbers = #tpu.dot_dimension_numbers<[1], [0], [0], [1], [0, 0, 1, 1], [], []>} : vector<56x96xbf16>, vector<96x64xbf16>, vector<56x64xf32> -> vector<56x64xf32>
    %61 = vector.shape_cast %60 : vector<56x64xf32> to vector<7x8x64xf32>
    %cst_45 = arith.constant 0.000000e+00 : f32
    %62 = vector.broadcast %cst_45 : f32 to vector<1x8x64xf32>
    %63 = tpu.concatenate %62, %61 in 0 : vector<1x8x64xf32>, vector<7x8x64xf32> -> vector<8x8x64xf32>
    %64 = arith.addf %55, %63 : vector<8x8x64xf32>
    %65 = vector.extract_strided_slice %45 {offsets = [0, 1, 0], sizes = [7, 7, 96], strides = [1, 1, 1]} : vector<8x8x96xbf16> to vector<7x7x96xbf16>
    %66 = vector.shape_cast %65 : vector<7x7x96xbf16> to vector<49x96xbf16>
    %c0_46 = arith.constant 0 : index
    %c2 = arith.constant 2 : index
    %c0_47 = arith.constant 0 : index
    %c0_48 = arith.constant 0 : index
    %67 = vector.load %arg8[%c0_46, %c2, %c0_47, %c0_48] : memref<1x9x96x64xbf16, #tpu.memory_space<vmem>>, vector<1x1x96x64xbf16>
    %68 = vector.shape_cast %67 : vector<1x1x96x64xbf16> to vector<96x64xbf16>
    %cst_49 = arith.constant dense<0.000000e+00> : vector<49x64xf32>
    %69 = tpu.matmul %66, %68, %cst_49 {dimension_numbers = #tpu.dot_dimension_numbers<[1], [0], [0], [1], [0, 0, 1, 1], [], []>} : vector<49x96xbf16>, vector<96x64xbf16>, vector<49x64xf32> -> vector<49x64xf32>
    %70 = vector.shape_cast %69 : vector<49x64xf32> to vector<7x7x64xf32>
    %cst_50 = arith.constant 0.000000e+00 : f32
    %71 = vector.broadcast %cst_50 : f32 to vector<7x1x64xf32>
    %72 = tpu.concatenate %70, %71 in 1 : vector<7x7x64xf32>, vector<7x1x64xf32> -> vector<7x8x64xf32>
    %cst_51 = arith.constant 0.000000e+00 : f32
    %73 = vector.broadcast %cst_51 : f32 to vector<1x8x64xf32>
    %74 = tpu.concatenate %73, %72 in 0 : vector<1x8x64xf32>, vector<7x8x64xf32> -> vector<8x8x64xf32>
    %75 = arith.addf %64, %74 : vector<8x8x64xf32>
    %76 = vector.extract_strided_slice %45 {offsets = [0, 0, 0], sizes = [8, 7, 96], strides = [1, 1, 1]} : vector<8x8x96xbf16> to vector<8x7x96xbf16>
    %77 = vector.shape_cast %76 : vector<8x7x96xbf16> to vector<56x96xbf16>
    %c0_52 = arith.constant 0 : index
    %c3 = arith.constant 3 : index
    %c0_53 = arith.constant 0 : index
    %c0_54 = arith.constant 0 : index
    %78 = vector.load %arg8[%c0_52, %c3, %c0_53, %c0_54] : memref<1x9x96x64xbf16, #tpu.memory_space<vmem>>, vector<1x1x96x64xbf16>
    %79 = vector.shape_cast %78 : vector<1x1x96x64xbf16> to vector<96x64xbf16>
    %cst_55 = arith.constant dense<0.000000e+00> : vector<56x64xf32>
    %80 = tpu.matmul %77, %79, %cst_55 {dimension_numbers = #tpu.dot_dimension_numbers<[1], [0], [0], [1], [0, 0, 1, 1], [], []>} : vector<56x96xbf16>, vector<96x64xbf16>, vector<56x64xf32> -> vector<56x64xf32>
    %81 = vector.shape_cast %80 : vector<56x64xf32> to vector<8x7x64xf32>
    %cst_56 = arith.constant 0.000000e+00 : f32
    %82 = vector.broadcast %cst_56 : f32 to vector<8x1x64xf32>
    %83 = tpu.concatenate %82, %81 in 1 : vector<8x1x64xf32>, vector<8x7x64xf32> -> vector<8x8x64xf32>
    %84 = arith.addf %75, %83 : vector<8x8x64xf32>
    %85 = vector.shape_cast %45 : vector<8x8x96xbf16> to vector<64x96xbf16>
    %c0_57 = arith.constant 0 : index
    %c4 = arith.constant 4 : index
    %c0_58 = arith.constant 0 : index
    %c0_59 = arith.constant 0 : index
    %86 = vector.load %arg8[%c0_57, %c4, %c0_58, %c0_59] : memref<1x9x96x64xbf16, #tpu.memory_space<vmem>>, vector<1x1x96x64xbf16>
    %87 = vector.shape_cast %86 : vector<1x1x96x64xbf16> to vector<96x64xbf16>
    %cst_60 = arith.constant dense<0.000000e+00> : vector<64x64xf32>
    %88 = tpu.matmul %85, %87, %cst_60 {dimension_numbers = #tpu.dot_dimension_numbers<[1], [0], [0], [1], [0, 0, 1, 1], [], []>} : vector<64x96xbf16>, vector<96x64xbf16>, vector<64x64xf32> -> vector<64x64xf32>
    %89 = vector.shape_cast %88 : vector<64x64xf32> to vector<8x8x64xf32>
    %90 = arith.addf %84, %89 : vector<8x8x64xf32>
    %91 = vector.extract_strided_slice %45 {offsets = [0, 1, 0], sizes = [8, 7, 96], strides = [1, 1, 1]} : vector<8x8x96xbf16> to vector<8x7x96xbf16>
    %92 = vector.shape_cast %91 : vector<8x7x96xbf16> to vector<56x96xbf16>
    %c0_61 = arith.constant 0 : index
    %c5 = arith.constant 5 : index
    %c0_62 = arith.constant 0 : index
    %c0_63 = arith.constant 0 : index
    %93 = vector.load %arg8[%c0_61, %c5, %c0_62, %c0_63] : memref<1x9x96x64xbf16, #tpu.memory_space<vmem>>, vector<1x1x96x64xbf16>
    %94 = vector.shape_cast %93 : vector<1x1x96x64xbf16> to vector<96x64xbf16>
    %cst_64 = arith.constant dense<0.000000e+00> : vector<56x64xf32>
    %95 = tpu.matmul %92, %94, %cst_64 {dimension_numbers = #tpu.dot_dimension_numbers<[1], [0], [0], [1], [0, 0, 1, 1], [], []>} : vector<56x96xbf16>, vector<96x64xbf16>, vector<56x64xf32> -> vector<56x64xf32>
    %96 = vector.shape_cast %95 : vector<56x64xf32> to vector<8x7x64xf32>
    %cst_65 = arith.constant 0.000000e+00 : f32
    %97 = vector.broadcast %cst_65 : f32 to vector<8x1x64xf32>
    %98 = tpu.concatenate %96, %97 in 1 : vector<8x7x64xf32>, vector<8x1x64xf32> -> vector<8x8x64xf32>
    %99 = arith.addf %90, %98 : vector<8x8x64xf32>
    %100 = vector.extract_strided_slice %45 {offsets = [1, 0, 0], sizes = [7, 7, 96], strides = [1, 1, 1]} : vector<8x8x96xbf16> to vector<7x7x96xbf16>
    %101 = vector.shape_cast %100 : vector<7x7x96xbf16> to vector<49x96xbf16>
    %c0_66 = arith.constant 0 : index
    %c6 = arith.constant 6 : index
    %c0_67 = arith.constant 0 : index
    %c0_68 = arith.constant 0 : index
    %102 = vector.load %arg8[%c0_66, %c6, %c0_67, %c0_68] : memref<1x9x96x64xbf16, #tpu.memory_space<vmem>>, vector<1x1x96x64xbf16>
    %103 = vector.shape_cast %102 : vector<1x1x96x64xbf16> to vector<96x64xbf16>
    %cst_69 = arith.constant dense<0.000000e+00> : vector<49x64xf32>
    %104 = tpu.matmul %101, %103, %cst_69 {dimension_numbers = #tpu.dot_dimension_numbers<[1], [0], [0], [1], [0, 0, 1, 1], [], []>} : vector<49x96xbf16>, vector<96x64xbf16>, vector<49x64xf32> -> vector<49x64xf32>
    %105 = vector.shape_cast %104 : vector<49x64xf32> to vector<7x7x64xf32>
    %cst_70 = arith.constant 0.000000e+00 : f32
    %106 = vector.broadcast %cst_70 : f32 to vector<7x1x64xf32>
    %107 = tpu.concatenate %106, %105 in 1 : vector<7x1x64xf32>, vector<7x7x64xf32> -> vector<7x8x64xf32>
    %cst_71 = arith.constant 0.000000e+00 : f32
    %108 = vector.broadcast %cst_71 : f32 to vector<1x8x64xf32>
    %109 = tpu.concatenate %107, %108 in 0 : vector<7x8x64xf32>, vector<1x8x64xf32> -> vector<8x8x64xf32>
    %110 = arith.addf %99, %109 : vector<8x8x64xf32>
    %111 = vector.extract_strided_slice %45 {offsets = [1, 0, 0], sizes = [7, 8, 96], strides = [1, 1, 1]} : vector<8x8x96xbf16> to vector<7x8x96xbf16>
    %112 = vector.shape_cast %111 : vector<7x8x96xbf16> to vector<56x96xbf16>
    %c0_72 = arith.constant 0 : index
    %c7 = arith.constant 7 : index
    %c0_73 = arith.constant 0 : index
    %c0_74 = arith.constant 0 : index
    %113 = vector.load %arg8[%c0_72, %c7, %c0_73, %c0_74] : memref<1x9x96x64xbf16, #tpu.memory_space<vmem>>, vector<1x1x96x64xbf16>
    %114 = vector.shape_cast %113 : vector<1x1x96x64xbf16> to vector<96x64xbf16>
    %cst_75 = arith.constant dense<0.000000e+00> : vector<56x64xf32>
    %115 = tpu.matmul %112, %114, %cst_75 {dimension_numbers = #tpu.dot_dimension_numbers<[1], [0], [0], [1], [0, 0, 1, 1], [], []>} : vector<56x96xbf16>, vector<96x64xbf16>, vector<56x64xf32> -> vector<56x64xf32>
    %116 = vector.shape_cast %115 : vector<56x64xf32> to vector<7x8x64xf32>
    %cst_76 = arith.constant 0.000000e+00 : f32
    %117 = vector.broadcast %cst_76 : f32 to vector<1x8x64xf32>
    %118 = tpu.concatenate %116, %117 in 0 : vector<7x8x64xf32>, vector<1x8x64xf32> -> vector<8x8x64xf32>
    %119 = arith.addf %110, %118 : vector<8x8x64xf32>
    %120 = vector.extract_strided_slice %45 {offsets = [1, 1, 0], sizes = [7, 7, 96], strides = [1, 1, 1]} : vector<8x8x96xbf16> to vector<7x7x96xbf16>
    %121 = vector.shape_cast %120 : vector<7x7x96xbf16> to vector<49x96xbf16>
    %c0_77 = arith.constant 0 : index
    %c8 = arith.constant 8 : index
    %c0_78 = arith.constant 0 : index
    %c0_79 = arith.constant 0 : index
    %122 = vector.load %arg8[%c0_77, %c8, %c0_78, %c0_79] : memref<1x9x96x64xbf16, #tpu.memory_space<vmem>>, vector<1x1x96x64xbf16>
    %123 = vector.shape_cast %122 : vector<1x1x96x64xbf16> to vector<96x64xbf16>
    %cst_80 = arith.constant dense<0.000000e+00> : vector<49x64xf32>
    %124 = tpu.matmul %121, %123, %cst_80 {dimension_numbers = #tpu.dot_dimension_numbers<[1], [0], [0], [1], [0, 0, 1, 1], [], []>} : vector<49x96xbf16>, vector<96x64xbf16>, vector<49x64xf32> -> vector<49x64xf32>
    %125 = vector.shape_cast %124 : vector<49x64xf32> to vector<7x7x64xf32>
    %cst_81 = arith.constant 0.000000e+00 : f32
    %126 = vector.broadcast %cst_81 : f32 to vector<7x1x64xf32>
    %127 = tpu.concatenate %125, %126 in 1 : vector<7x7x64xf32>, vector<7x1x64xf32> -> vector<7x8x64xf32>
    %cst_82 = arith.constant 0.000000e+00 : f32
    %128 = vector.broadcast %cst_82 : f32 to vector<1x8x64xf32>
    %129 = tpu.concatenate %127, %128 in 0 : vector<7x8x64xf32>, vector<1x8x64xf32> -> vector<8x8x64xf32>
    %130 = arith.addf %119, %129 : vector<8x8x64xf32>
    %cst_83 = arith.constant 0.000000e+00 : f32
    %131 = vector.broadcast %cst_83 : f32 to vector<8x8x64xf32>
    %132 = arith.maximumf %130, %131 : vector<8x8x64xf32>
    %133 = arith.truncf %132 : vector<8x8x64xf32> to vector<8x8x64xbf16>
    %134 = vector.shape_cast %133 : vector<8x8x64xbf16> to vector<64x64xbf16>
    %c0_84 = arith.constant 0 : index
    %c0_85 = arith.constant 0 : index
    %c0_86 = arith.constant 0 : index
    %135 = vector.load %arg9[%c0_84, %c0_85, %c0_86] : memref<1x64x128xbf16, #tpu.memory_space<vmem>>, vector<1x64x128xbf16>
    %136 = vector.shape_cast %135 : vector<1x64x128xbf16> to vector<64x128xbf16>
    %cst_87 = arith.constant dense<0.000000e+00> : vector<64x128xf32>
    %137 = tpu.matmul %134, %136, %cst_87 {dimension_numbers = #tpu.dot_dimension_numbers<[1], [0], [0], [1], [0, 0, 1, 1], [], []>} : vector<64x64xbf16>, vector<64x128xbf16>, vector<64x128xf32> -> vector<64x128xf32>
    %c0_88 = arith.constant 0 : index
    %c0_89 = arith.constant 0 : index
    %c0_90 = arith.constant 0 : index
    %138 = vector.load %arg10[%c0_88, %c0_89, %c0_90] : memref<1x1x128xf32, #tpu.memory_space<vmem>>, vector<1x1x128xf32>
    %139 = vector.shape_cast %138 : vector<1x1x128xf32> to vector<1x128xf32>
    %140 = vector.broadcast %139 : vector<1x128xf32> to vector<64x128xf32>
    %141 = arith.addf %137, %140 : vector<64x128xf32>
    %c2_i32 = arith.constant 2 : i32
    %142 = arith.cmpi eq, %arg0, %c2_i32 : i32
    %143 = arith.extui %142 : i1 to i32
    %144 = arith.sitofp %143 : i32 to f32
    %145 = arith.mulf %141, %141 : vector<64x128xf32>
    %cst_91 = arith.constant dense<0.000000e+00> : vector<64xf32>
    %146 = vector.multi_reduction <add>, %145, %cst_91 [1] : vector<64x128xf32> to vector<64xf32>
    %147 = vector.shape_cast %146 : vector<64xf32> to vector<64x1xf32>
    %cst_92 = arith.constant 9.99999996E-13 : f32
    %148 = vector.broadcast %cst_92 : f32 to vector<64x1xf32>
    %149 = arith.addf %147, %148 : vector<64x1xf32>
    %150 = math.rsqrt %149 : vector<64x1xf32>
    %151 = vector.broadcast %144 : f32 to vector<64x1xf32>
    %152 = arith.mulf %151, %150 : vector<64x1xf32>
    %cst_93 = arith.constant 1.000000e+00 : f32
    %153 = arith.subf %cst_93, %144 : f32
    %154 = vector.broadcast %153 : f32 to vector<64x1xf32>
    %155 = arith.addf %152, %154 : vector<64x1xf32>
    %156 = vector.broadcast %155 : vector<64x1xf32> to vector<64x128xf32>
    %157 = arith.mulf %141, %156 : vector<64x128xf32>
    %c0_94 = arith.constant 0 : index
    %c0_95 = arith.constant 0 : index
    %158 = vector.load %arg12[%c0_94, %c0_95] : memref<1024x64xbf16, #tpu.memory_space<vmem>>, vector<1024x64xbf16>
    %159 = arith.truncf %157 : vector<64x128xf32> to vector<64x128xbf16>
    %cst_96 = arith.constant dense<0.000000e+00> : vector<1024x128xf32>
    %160 = tpu.matmul %158, %159, %cst_96 {dimension_numbers = #tpu.dot_dimension_numbers<[1], [0], [0], [1], [0, 0, 1, 1], [], []>} : vector<1024x64xbf16>, vector<64x128xbf16>, vector<1024x128xf32> -> vector<1024x128xf32>
    %161 = arith.truncf %160 : vector<1024x128xf32> to vector<1024x128xbf16>
    %c0_97 = arith.constant 0 : index
    %c0_98 = arith.constant 0 : index
    %c0_99 = arith.constant 0 : index
    %c0_100 = arith.constant 0 : index
    %162 = vector.load %arg13[%c0_97, %c0_98, %c0_99, %c0_100] : memref<1x1x1024x128xbf16, #tpu.memory_space<vmem>>, vector<1x1x1024x128xbf16>
    %163 = vector.shape_cast %162 : vector<1x1x1024x128xbf16> to vector<1024x128xbf16>
    %164 = vector.shape_cast %161 : vector<1024x128xbf16> to vector<1x1x1024x128xbf16>
    tpu.vector_store %arg13[%c0_97, %c0_98, %c0_99, %c0_100], %164 {strides = array<i32>} : memref<1x1x1024x128xbf16, #tpu.memory_space<vmem>>, vector<1x1x1024x128xbf16>,
    return
  }
  func.func @transform_0(%arg0: i32, %arg1: i32) -> (i32, i32, i32, i32) {
    %c0_i32 = arith.constant 0 : i32
    %c0_i32_0 = arith.constant 0 : i32
    %c0_i32_1 = arith.constant 0 : i32
    %c0_i32_2 = arith.constant 0 : i32
    return %arg1, %c0_i32, %c0_i32_0, %c0_i32_1 : i32, i32, i32, i32
  }
  func.func @transform_1(%arg0: i32, %arg1: i32) -> (i32, i32, i32, i32) {
    %c0_i32 = arith.constant 0 : i32
    %c0_i32_0 = arith.constant 0 : i32
    %c0_i32_1 = arith.constant 0 : i32
    %c0_i32_2 = arith.constant 0 : i32
    return %arg1, %c0_i32, %c0_i32_0, %c0_i32_1 : i32, i32, i32, i32
  }
  func.func @transform_2(%arg0: i32, %arg1: i32) -> (i32, i32, i32) {
    %c0_i32 = arith.constant 0 : i32
    %c0_i32_0 = arith.constant 0 : i32
    %c0_i32_1 = arith.constant 0 : i32
    return %arg0, %c0_i32, %c0_i32_0 : i32, i32, i32
  }
  func.func @transform_3(%arg0: i32, %arg1: i32) -> (i32, i32, i32) {
    %c0_i32 = arith.constant 0 : i32
    %c0_i32_0 = arith.constant 0 : i32
    %c0_i32_1 = arith.constant 0 : i32
    return %arg0, %c0_i32, %c0_i32_0 : i32, i32, i32
  }
  func.func @transform_4(%arg0: i32, %arg1: i32) -> (i32, i32, i32) {
    %c0_i32 = arith.constant 0 : i32
    %c0_i32_0 = arith.constant 0 : i32
    %c0_i32_1 = arith.constant 0 : i32
    return %arg0, %c0_i32, %c0_i32_0 : i32, i32, i32
  }
  func.func @transform_5(%arg0: i32, %arg1: i32) -> (i32, i32, i32) {
    %c0_i32 = arith.constant 0 : i32
    %c0_i32_0 = arith.constant 0 : i32
    %c0_i32_1 = arith.constant 0 : i32
    return %arg0, %c0_i32, %c0_i32_0 : i32, i32, i32
  }
  func.func @transform_6(%arg0: i32, %arg1: i32) -> (i32, i32, i32, i32) {
    %c0_i32 = arith.constant 0 : i32
    %c0_i32_0 = arith.constant 0 : i32
    %c0_i32_1 = arith.constant 0 : i32
    %c0_i32_2 = arith.constant 0 : i32
    return %arg0, %c0_i32, %c0_i32_0, %c0_i32_1 : i32, i32, i32, i32
  }
  func.func @transform_7(%arg0: i32, %arg1: i32) -> (i32, i32, i32) {
    %c0_i32 = arith.constant 0 : i32
    %c0_i32_0 = arith.constant 0 : i32
    %c0_i32_1 = arith.constant 0 : i32
    return %arg0, %c0_i32, %c0_i32_0 : i32, i32, i32
  }
  func.func @transform_8(%arg0: i32, %arg1: i32) -> (i32, i32, i32) {
    %c0_i32 = arith.constant 0 : i32
    %c0_i32_0 = arith.constant 0 : i32
    %c0_i32_1 = arith.constant 0 : i32
    return %arg0, %c0_i32, %c0_i32_0 : i32, i32, i32
  }
  func.func @transform_9(%arg0: i32, %arg1: i32) -> (i32, i32) {
    %c0_i32 = arith.constant 0 : i32
    %c0_i32_0 = arith.constant 0 : i32
    %c0_i32_1 = arith.constant 0 : i32
    return %c0_i32, %c0_i32_0 : i32, i32
  }
  func.func @transform_10(%arg0: i32, %arg1: i32) -> (i32, i32) {
    %c0_i32 = arith.constant 0 : i32
    %c0_i32_0 = arith.constant 0 : i32
    %c0_i32_1 = arith.constant 0 : i32
    return %c0_i32, %c0_i32_0 : i32, i32
  }
  func.func @transform_11(%arg0: i32, %arg1: i32) -> (i32, i32, i32, i32) {
    %c0_i32 = arith.constant 0 : i32
    %c0_i32_0 = arith.constant 0 : i32
    %c0_i32_1 = arith.constant 0 : i32
    return %arg0, %arg1, %c0_i32, %c0_i32_0 : i32, i32, i32, i32
  }
}

</mosaic_0001>

<llo_original>
// kernel: deeplabv3_forward.2
$region0: #{deeplabv3_forward.2}
  #allocation0 [shape = 'u32[]', space=smem, size = 0x4, offset = 0x4, fixed_abs, tag = 'smem constant byte address 0x4 - core index']
  #allocation1 [shape = 'u32[144,128]{1,0:T(1,128)}', space=vmem, size = 0x12000, scoped, tag = 'internal scratch']
  %s0 = inlined_call_operand.vmem [shape: f32[2,8,8,3], index: 0, kind: input, shape index: {}]
  %s1 = inlined_call_operand.vmem [shape: f32[2,4,4,3], index: 1, kind: input, shape index: {}]
  %s2 = inlined_call_operand.hbm [shape: f32[3,32], index: 2, kind: input, shape index: {}]
  %s3 = inlined_call_operand.hbm [shape: f32[3,64], index: 3, kind: input, shape index: {}]
  %s4 = inlined_call_operand.vmem [shape: bf16[2,8,8,32], index: 4, kind: output, shape index: {0}]
  %s5 = inlined_call_operand.vmem [shape: bf16[2,4,4,64], index: 5, kind: output, shape index: {1}]
  %6 = xla_tuple %s4, %s5
  %s7 = sld [smem:[#allocation0]]
  $region42: #{deeplabv3_forward.2} parent=0
    _
  %s9 = ssub.s32 1, %s7
  %s10 = scalar_select 0, %s9, %s7
  $region1: #{deeplabv3_forward.2} parent=0
    #allocation2 [shape = 'u8[2048]{0}', space=vmem, size = 0x800, scoped, tag = 'input window, operand 2, single buffered']
    #allocation3 [shape = 's32[1]{0}', space=sflag, size = 0x4, scoped, tag = 'scoped memory for deeplabv3_forward.2']
    #allocation4 [shape = 'u8[2048]{0}', space=vmem, size = 0x800, scoped, tag = 'input window, operand 3, single buffered']
    #allocation5 [shape = 's32[1]{0}', space=sflag, size = 0x4, scoped, tag = 'scoped memory for deeplabv3_forward.2']
    %11 = vsyncpa [#allocation3], 0
    %12 = vsyncpa [#allocation5], 0
    // Predicated region
    $region2: #{deeplabv3_forward.2} parent=1 // pred_check
      _
    $region3: #{deeplabv3_forward.2} parent=1 // pred_check_branch
      %14 = sbr.rel (0) target = $region5
    $region4: #{deeplabv3_forward.2} parent=1 // pred_region
      _
    $region5: #{deeplabv3_forward.2} parent=1 // pred_fallthru
      _
    // Predicated region
    $region6: #{deeplabv3_forward.2} parent=1 // pred_check
      _
    $region7: #{deeplabv3_forward.2} parent=1 // pred_check_branch
      %16 = sbr.rel (0) target = $region9
    $region8: #{deeplabv3_forward.2} parent=1 // pred_region
      _
    $region9: #{deeplabv3_forward.2} parent=1 // pred_fallthru
      _
    // Predicated region
    $region10: #{deeplabv3_forward.2} parent=1 // pred_check
      _
    $region11: #{deeplabv3_forward.2} parent=1 // pred_check_branch
      %18 = sbr.rel (0) target = $region13
    $region12: #{deeplabv3_forward.2} parent=1 // pred_region
      %s20 = ssub.s32 64, 64
      %21 = vsyncadd [#allocation3], %s20
      %s23 = sshll.u32 [#allocation2], 4
      %s24 = int_to_ptr.vmem [resolvable:$true] %s23
      %26 = dma.hbm_to_vmem [thread:$0]  %s2, 64, %s24, [#allocation3]
    $region13: #{deeplabv3_forward.2} parent=1 // pred_fallthru
      _
    // Predicated region
    $region14: #{deeplabv3_forward.2} parent=1 // pred_check
      _
    $region15: #{deeplabv3_forward.2} parent=1 // pred_check_branch
      %28 = sbr.rel (0) target = $region17
    $region16: #{deeplabv3_forward.2} parent=1 // pred_region
      %s30 = ssub.s32 64, 64
      %31 = vsyncadd [#allocation5], %s30
      %s33 = sshll.u32 [#allocation4], 4
      %s34 = int_to_ptr.vmem [resolvable:$true] %s33
      %36 = dma.hbm_to_vmem [thread:$0]  %s3, 64, %s34, [#allocation5]
    $region17: #{deeplabv3_forward.2} parent=1 // pred_fallthru
      _
    // Predicated region
    $region18: #{deeplabv3_forward.2} parent=1 // pred_check
      _
    $region19: #{deeplabv3_forward.2} parent=1 // pred_check_branch
      %38 = sbr.rel (0) target = $region21
    $region20: #{deeplabv3_forward.2} parent=1 // pred_region
      %39 = dma.done [#allocation3], 64
    $region21: #{deeplabv3_forward.2} parent=1 // pred_fallthru
      _
    // Predicated region
    $region22: #{deeplabv3_forward.2} parent=1 // pred_check
      _
    $region23: #{deeplabv3_forward.2} parent=1 // pred_check_branch
      %41 = sbr.rel (0) target = $region25
    $region24: #{deeplabv3_forward.2} parent=1 // pred_region
      %42 = dma.done [#allocation5], 64
    $region25: #{deeplabv3_forward.2} parent=1 // pred_fallthru
      _
    %v43 = vld [vmem:[%s0] sm:$0xff]
    %v44 = vld [vmem:[%s0 + $0x8] sm:$0xff]
    %v45 = vld [vmem:[%s0 + $0x10] sm:$0xff]
    %v46 = vld [vmem:[%s0 + $0x18] sm:$0xff]
    %v47 = vld [vmem:[%s0 + $0x20] sm:$0xff]
    %v48 = vld [vmem:[%s0 + $0x28] sm:$0xff]
    %v49 = vld [vmem:[%s0 + $0x30] sm:$0xff]
    %v50 = vld [vmem:[%s0 + $0x38] sm:$0xff]
    %v51 = vld [vmem:[%s0 + $0x40] sm:$0xff]
    %v52 = vld [vmem:[%s0 + $0x48] sm:$0xff]
    %v53 = vld [vmem:[%s0 + $0x50] sm:$0xff]
    %v54 = vld [vmem:[%s0 + $0x58] sm:$0xff]
    %v55 = vld [vmem:[%s0 + $0x60] sm:$0xff]
    %v56 = vld [vmem:[%s0 + $0x68] sm:$0xff]
    %v57 = vld [vmem:[%s0 + $0x70] sm:$0xff]
    %v58 = vld [vmem:[%s0 + $0x78] sm:$0xff]
    %v59 = vld [vmem:[#allocation2] sm:$0x1]
    %61 = vset.pattern.permute.xlu0 0
    %62 = vperm.xlu0 %61, %v43
    %v63 = vpop.permute.xlu0 %62
    %66 = vset.pattern.permute.xlu0 0
    %67 = vperm.xlu0 %66, %v44
    %v68 = vpop.permute.xlu0 %67
    %71 = vset.pattern.permute.xlu0 0
    %72 = vperm.xlu0 %71, %v45
    %v73 = vpop.permute.xlu0 %72
    %76 = vset.pattern.permute.xlu0 0
    %77 = vperm.xlu0 %76, %v46
    %v78 = vpop.permute.xlu0 %77
    %81 = vset.pattern.permute.xlu0 0
    %82 = vperm.xlu0 %81, %v47
    %v83 = vpop.permute.xlu0 %82
    %86 = vset.pattern.permute.xlu0 0
    %87 = vperm.xlu0 %86, %v48
    %v88 = vpop.permute.xlu0 %87
    %91 = vset.pattern.permute.xlu0 0
    %92 = vperm.xlu0 %91, %v49
    %v93 = vpop.permute.xlu0 %92
    %96 = vset.pattern.permute.xlu0 0
    %97 = vperm.xlu0 %96, %v50
    %v98 = vpop.permute.xlu0 %97
    %101 = vset.pattern.permute.xlu0 0
    %102 = vperm.xlu0 %101, %v51
    %v103 = vpop.permute.xlu0 %102
    %106 = vset.pattern.permute.xlu0 0
    %107 = vperm.xlu0 %106, %v52
    %v108 = vpop.permute.xlu0 %107
    %111 = vset.pattern.permute.xlu0 0
    %112 = vperm.xlu0 %111, %v53
    %v113 = vpop.permute.xlu0 %112
    %116 = vset.pattern.permute.xlu0 0
    %117 = vperm.xlu0 %116, %v54
    %v118 = vpop.permute.xlu0 %117
    %121 = vset.pattern.permute.xlu0 0
    %122 = vperm.xlu0 %121, %v55
    %v123 = vpop.permute.xlu0 %122
    %126 = vset.pattern.permute.xlu0 0
    %127 = vperm.xlu0 %126, %v56
    %v128 = vpop.permute.xlu0 %127
    %131 = vset.pattern.permute.xlu0 0
    %132 = vperm.xlu0 %131, %v57
    %v133 = vpop.permute.xlu0 %132
    %136 = vset.pattern.permute.xlu0 0
    %137 = vperm.xlu0 %136, %v58
    %v138 = vpop.permute.xlu0 %137
    %v140 = vlaneseq
    %v141 = vshrl.u32 %v140, 7
    %v142 = vsub.s32 0, %v141
    %v143 = vrot.slane %v59, %v142
    %v144 = vmul.f32 %v63, %v143
    %v145 = vmul.f32 %v68, %v143
    %v146 = vmul.f32 %v73, %v143
    %v147 = vmul.f32 %v78, %v143
    %v148 = vmul.f32 %v83, %v143
    %v149 = vmul.f32 %v88, %v143
    %v150 = vmul.f32 %v93, %v143
    %v151 = vmul.f32 %v98, %v143
    %v152 = vmul.f32 %v103, %v143
    %v153 = vmul.f32 %v108, %v143
    %v154 = vmul.f32 %v113, %v143
    %v155 = vmul.f32 %v118, %v143
    %v156 = vmul.f32 %v123, %v143
    %v157 = vmul.f32 %v128, %v143
    %v158 = vmul.f32 %v133, %v143
    %v159 = vmul.f32 %v138, %v143
    %v160 = vld [vmem:[#allocation2 + $0x1] sm:$0x1]
    %161 = vset.pattern.permute.xlu0 1
    %162 = vperm.xlu0 %161, %v43
    %v163 = vpop.permute.xlu0 %162
    %165 = vset.pattern.permute.xlu0 1
    %166 = vperm.xlu0 %165, %v44
    %v167 = vpop.permute.xlu0 %166
    %169 = vset.pattern.permute.xlu0 1
    %170 = vperm.xlu0 %169, %v45
    %v171 = vpop.permute.xlu0 %170
    %173 = vset.pattern.permute.xlu0 1
    %174 = vperm.xlu0 %173, %v46
    %v175 = vpop.permute.xlu0 %174
    %177 = vset.pattern.permute.xlu0 1
    %178 = vperm.xlu0 %177, %v47
    %v179 = vpop.permute.xlu0 %178
    %181 = vset.pattern.permute.xlu0 1
    %182 = vperm.xlu0 %181, %v48
    %v183 = vpop.permute.xlu0 %182
    %185 = vset.pattern.permute.xlu0 1
    %186 = vperm.xlu0 %185, %v49
    %v187 = vpop.permute.xlu0 %186
    %189 = vset.pattern.permute.xlu0 1
    %190 = vperm.xlu0 %189, %v50
    %v191 = vpop.permute.xlu0 %190
    %193 = vset.pattern.permute.xlu0 1
    %194 = vperm.xlu0 %193, %v51
    %v195 = vpop.permute.xlu0 %194
    %197 = vset.pattern.permute.xlu0 1
    %198 = vperm.xlu0 %197, %v52
    %v199 = vpop.permute.xlu0 %198
    %201 = vset.pattern.permute.xlu0 1
    %202 = vperm.xlu0 %201, %v53
    %v203 = vpop.permute.xlu0 %202
    %205 = vset.pattern.permute.xlu0 1
    %206 = vperm.xlu0 %205, %v54
    %v207 = vpop.permute.xlu0 %206
    %209 = vset.pattern.permute.xlu0 1
    %210 = vperm.xlu0 %209, %v55
    %v211 = vpop.permute.xlu0 %210
    %213 = vset.pattern.permute.xlu0 1
    %214 = vperm.xlu0 %213, %v56
    %v215 = vpop.permute.xlu0 %214
    %217 = vset.pattern.permute.xlu0 1
    %218 = vperm.xlu0 %217, %v57
    %v219 = vpop.permute.xlu0 %218
    %221 = vset.pattern.permute.xlu0 1
    %222 = vperm.xlu0 %221, %v58
    %v223 = vpop.permute.xlu0 %222
    %v225 = vlaneseq
    %v226 = vshrl.u32 %v225, 7
    %v227 = vsub.s32 0, %v226
    %v228 = vrot.slane %v160, %v227
    %v229 = vmul.f32 %v163, %v228
    %v230 = vmul.f32 %v167, %v228
    %v231 = vmul.f32 %v171, %v228
    %v232 = vmul.f32 %v175, %v228
    %v233 = vmul.f32 %v179, %v228
    %v234 = vmul.f32 %v183, %v228
    %v235 = vmul.f32 %v187, %v228
    %v236 = vmul.f32 %v191, %v228
    %v237 = vmul.f32 %v195, %v228
    %v238 = vmul.f32 %v199, %v228
    %v239 = vmul.f32 %v203, %v228
    %v240 = vmul.f32 %v207, %v228
    %v241 = vmul.f32 %v211, %v228
    %v242 = vmul.f32 %v215, %v228
    %v243 = vmul.f32 %v219, %v228
    %v244 = vmul.f32 %v223, %v228
    %v245 = vadd.f32 %v144, %v229
    %v246 = vadd.f32 %v145, %v230
    %v247 = vadd.f32 %v146, %v231
    %v248 = vadd.f32 %v147, %v232
    %v249 = vadd.f32 %v148, %v233
    %v250 = vadd.f32 %v149, %v234
    %v251 = vadd.f32 %v150, %v235
    %v252 = vadd.f32 %v151, %v236
    %v253 = vadd.f32 %v152, %v237
    %v254 = vadd.f32 %v153, %v238
    %v255 = vadd.f32 %v154, %v239
    %v256 = vadd.f32 %v155, %v240
    %v257 = vadd.f32 %v156, %v241
    %v258 = vadd.f32 %v157, %v242
    %v259 = vadd.f32 %v158, %v243
    %v260 = vadd.f32 %v159, %v244
    %v261 = vld [vmem:[#allocation2 + $0x2] sm:$0x1]
    %262 = vset.pattern.permute.xlu0 2
    %263 = vperm.xlu0 %262, %v43
    %v264 = vpop.permute.xlu0 %263
    %266 = vset.pattern.permute.xlu0 2
    %267 = vperm.xlu0 %266, %v44
    %v268 = vpop.permute.xlu0 %267
    %270 = vset.pattern.permute.xlu0 2
    %271 = vperm.xlu0 %270, %v45
    %v272 = vpop.permute.xlu0 %271
    %274 = vset.pattern.permute.xlu0 2
    %275 = vperm.xlu0 %274, %v46
    %v276 = vpop.permute.xlu0 %275
    %278 = vset.pattern.permute.xlu0 2
    %279 = vperm.xlu0 %278, %v47
    %v280 = vpop.permute.xlu0 %279
    %282 = vset.pattern.permute.xlu0 2
    %283 = vperm.xlu0 %282, %v48
    %v284 = vpop.permute.xlu0 %283
    %286 = vset.pattern.permute.xlu0 2
    %287 = vperm.xlu0 %286, %v49
    %v288 = vpop.permute.xlu0 %287
    %290 = vset.pattern.permute.xlu0 2
    %291 = vperm.xlu0 %290, %v50
    %v292 = vpop.permute.xlu0 %291
    %294 = vset.pattern.permute.xlu0 2
    %295 = vperm.xlu0 %294, %v51
    %v296 = vpop.permute.xlu0 %295
    %298 = vset.pattern.permute.xlu0 2
    %299 = vperm.xlu0 %298, %v52
    %v300 = vpop.permute.xlu0 %299
    %302 = vset.pattern.permute.xlu0 2
    %303 = vperm.xlu0 %302, %v53
    %v304 = vpop.permute.xlu0 %303
    %306 = vset.pattern.permute.xlu0 2
    %307 = vperm.xlu0 %306, %v54
    %v308 = vpop.permute.xlu0 %307
    %310 = vset.pattern.permute.xlu0 2
    %311 = vperm.xlu0 %310, %v55
    %v312 = vpop.permute.xlu0 %311
    %314 = vset.pattern.permute.xlu0 2
    %315 = vperm.xlu0 %314, %v56
    %v316 = vpop.permute.xlu0 %315
    %318 = vset.pattern.permute.xlu0 2
    %319 = vperm.xlu0 %318, %v57
    %v320 = vpop.permute.xlu0 %319
    %322 = vset.pattern.permute.xlu0 2
    %323 = vperm.xlu0 %322, %v58
    %v324 = vpop.permute.xlu0 %323
    %v326 = vlaneseq
    %v327 = vshrl.u32 %v326, 7
    %v328 = vsub.s32 0, %v327
    %v329 = vrot.slane %v261, %v328
    %v330 = vmul.f32 %v264, %v329
    %v331 = vmul.f32 %v268, %v329
    %v332 = vmul.f32 %v272, %v329
    %v333 = vmul.f32 %v276, %v329
    %v334 = vmul.f32 %v280, %v329
    %v335 = vmul.f32 %v284, %v329
    %v336 = vmul.f32 %v288, %v329
    %v337 = vmul.f32 %v292, %v329
    %v338 = vmul.f32 %v296, %v329
    %v339 = vmul.f32 %v300, %v329
    %v340 = vmul.f32 %v304, %v329
    %v341 = vmul.f32 %v308, %v329
    %v342 = vmul.f32 %v312, %v329
    %v343 = vmul.f32 %v316, %v329
    %v344 = vmul.f32 %v320, %v329
    %v345 = vmul.f32 %v324, %v329
    %v346 = vadd.f32 %v245, %v330
    %v347 = vadd.f32 %v246, %v331
    %v348 = vadd.f32 %v247, %v332
    %v349 = vadd.f32 %v248, %v333
    %v350 = vadd.f32 %v249, %v334
    %v351 = vadd.f32 %v250, %v335
    %v352 = vadd.f32 %v251, %v336
    %v353 = vadd.f32 %v252, %v337
    %v354 = vadd.f32 %v253, %v338
    %v355 = vadd.f32 %v254, %v339
    %v356 = vadd.f32 %v255, %v340
    %v357 = vadd.f32 %v256, %v341
    %v358 = vadd.f32 %v257, %v342
    %v359 = vadd.f32 %v258, %v343
    %v360 = vadd.f32 %v259, %v344
    %v361 = vadd.f32 %v260, %v345
    %v362 = vmax.f32 %v346, 0.0
    %v363 = vmax.f32 %v347, 0.0
    %v364 = vmax.f32 %v348, 0.0
    %v365 = vmax.f32 %v349, 0.0
    %v366 = vmax.f32 %v350, 0.0
    %v367 = vmax.f32 %v351, 0.0
    %v368 = vmax.f32 %v352, 0.0
    %v369 = vmax.f32 %v353, 0.0
    %v370 = vmax.f32 %v354, 0.0
    %v371 = vmax.f32 %v355, 0.0
    %v372 = vmax.f32 %v356, 0.0
    %v373 = vmax.f32 %v357, 0.0
    %v374 = vmax.f32 %v358, 0.0
    %v375 = vmax.f32 %v359, 0.0
    %v376 = vmax.f32 %v360, 0.0
    %v377 = vmax.f32 %v361, 0.0
    %v378 = vpack.c.bf16 %v363, %v362
    %v379 = vpack.c.bf16 %v365, %v364
    %v380 = vpack.c.bf16 %v367, %v366
    %v381 = vpack.c.bf16 %v369, %v368
    %v382 = vpack.c.bf16 %v371, %v370
    %v383 = vpack.c.bf16 %v373, %v372
    %v384 = vpack.c.bf16 %v375, %v374
    %v385 = vpack.c.bf16 %v377, %v376
    %v394 = vunpack.c.l.b16 %v378
    %v395 = vunpack.c.h.b16 %v378
    %v396 = vunpack.c.l.b16 %v379
    %v397 = vunpack.c.h.b16 %v379
    %v398 = vunpack.c.l.b16 %v380
    %v399 = vunpack.c.h.b16 %v380
    %v400 = vunpack.c.l.b16 %v381
    %v401 = vunpack.c.h.b16 %v381
    %v402 = vunpack.c.l.b16 %v382
    %v403 = vunpack.c.h.b16 %v382
    %v404 = vunpack.c.l.b16 %v383
    %v405 = vunpack.c.h.b16 %v383
    %v406 = vunpack.c.l.b16 %v384
    %v407 = vunpack.c.h.b16 %v384
    %v408 = vunpack.c.l.b16 %v385
    %v409 = vunpack.c.h.b16 %v385
    %v410 = vpack.c.b16 %v394, %v394
    %v411 = vpack.c.b16 %v395, %v395
    %v412 = vpack.c.b16 %v396, %v396
    %v413 = vpack.c.b16 %v397, %v397
    %v414 = vpack.c.b16 %v398, %v398
    %v415 = vpack.c.b16 %v399, %v399
    %v416 = vpack.c.b16 %v400, %v400
    %v417 = vpack.c.b16 %v401, %v401
    %v418 = vpack.c.b16 %v402, %v402
    %v419 = vpack.c.b16 %v403, %v403
    %v420 = vpack.c.b16 %v404, %v404
    %v421 = vpack.c.b16 %v405, %v405
    %v422 = vpack.c.b16 %v406, %v406
    %v423 = vpack.c.b16 %v407, %v407
    %v424 = vpack.c.b16 %v408, %v408
    %v425 = vpack.c.b16 %v409, %v409
    %vm442 = vcmask 257024
    %443 = vst.msk [vmem:[%s4] sm:$0xf] %vm442, %v410
    %444 = vst.msk [vmem:[%s4 + $0x4] sm:$0xf] %vm442, %v411
    %445 = vst.msk [vmem:[%s4 + $0x8] sm:$0xf] %vm442, %v412
    %446 = vst.msk [vmem:[%s4 + $0xc] sm:$0xf] %vm442, %v413
    %447 = vst.msk [vmem:[%s4 + $0x10] sm:$0xf] %vm442, %v414
    %448 = vst.msk [vmem:[%s4 + $0x14] sm:$0xf] %vm442, %v415
    %449 = vst.msk [vmem:[%s4 + $0x18] sm:$0xf] %vm442, %v416
    %450 = vst.msk [vmem:[%s4 + $0x1c] sm:$0xf] %vm442, %v417
    %451 = vst.msk [vmem:[%s4 + $0x20] sm:$0xf] %vm442, %v418
    %452 = vst.msk [vmem:[%s4 + $0x24] sm:$0xf] %vm442, %v419
    %453 = vst.msk [vmem:[%s4 + $0x28] sm:$0xf] %vm442, %v420
    %454 = vst.msk [vmem:[%s4 + $0x2c] sm:$0xf] %vm442, %v421
    %455 = vst.msk [vmem:[%s4 + $0x30] sm:$0xf] %vm442, %v422
    %456 = vst.msk [vmem:[%s4 + $0x34] sm:$0xf] %vm442, %v423
    %457 = vst.msk [vmem:[%s4 + $0x38] sm:$0xf] %vm442, %v424
    %458 = vst.msk [vmem:[%s4 + $0x3c] sm:$0xf] %vm442, %v425
    %v459 = vld [vmem:[%s1] sm:$0xf]
    %v460 = vld [vmem:[%s1 + $0x4] sm:$0xf]
    %v461 = vld [vmem:[%s1 + $0x8] sm:$0xf]
    %v462 = vld [vmem:[%s1 + $0xc] sm:$0xf]
    %v463 = vld [vmem:[%s1 + $0x10] sm:$0xf]
    %v464 = vld [vmem:[%s1 + $0x14] sm:$0xf]
    %v465 = vld [vmem:[%s1 + $0x18] sm:$0xf]
    %v466 = vld [vmem:[%s1 + $0x1c] sm:$0xf]
    %v467 = vld [vmem:[#allocation4] sm:$0x1]
    %469 = vset.pattern.permute.xlu0 0
    %470 = vperm.xlu0 %469, %v459
    %v471 = vpop.permute.xlu0 %470
    %v474 = vunpack.c.l.s4 839922192
    %v475 = vunpack.c.0.s8 %v474
    %v476 = vlaneseq
    %v477 = vshrl.u32 %v476, 7
    %v478 = vsub.s32 %v475, %v477
    %v479 = vrot.slane %v471, %v478
    %481 = vset.pattern.permute.xlu0 0
    %482 = vperm.xlu0 %481, %v460
    %v483 = vpop.permute.xlu0 %482
    %v486 = vunpack.c.l.s4 839922192
    %v487 = vunpack.c.0.s8 %v486
    %v488 = vlaneseq
    %v489 = vshrl.u32 %v488, 7
    %v490 = vsub.s32 %v487, %v489
    %v491 = vrot.slane %v483, %v490
    %493 = vset.pattern.permute.xlu0 0
    %494 = vperm.xlu0 %493, %v461
    %v495 = vpop.permute.xlu0 %494
    %v498 = vunpack.c.l.s4 839922192
    %v499 = vunpack.c.0.s8 %v498
    %v500 = vlaneseq
    %v501 = vshrl.u32 %v500, 7
    %v502 = vsub.s32 %v499, %v501
    %v503 = vrot.slane %v495, %v502
    %505 = vset.pattern.permute.xlu0 0
    %506 = vperm.xlu0 %505, %v462
    %v507 = vpop.permute.xlu0 %506
    %v510 = vunpack.c.l.s4 839922192
    %v511 = vunpack.c.0.s8 %v510
    %v512 = vlaneseq
    %v513 = vshrl.u32 %v512, 7
    %v514 = vsub.s32 %v511, %v513
    %v515 = vrot.slane %v507, %v514
    %517 = vset.pattern.permute.xlu0 0
    %518 = vperm.xlu0 %517, %v463
    %v519 = vpop.permute.xlu0 %518
    %v522 = vunpack.c.l.s4 839922192
    %v523 = vunpack.c.0.s8 %v522
    %v524 = vlaneseq
    %v525 = vshrl.u32 %v524, 7
    %v526 = vsub.s32 %v523, %v525
    %v527 = vrot.slane %v519, %v526
    %529 = vset.pattern.permute.xlu0 0
    %530 = vperm.xlu0 %529, %v464
    %v531 = vpop.permute.xlu0 %530
    %v534 = vunpack.c.l.s4 839922192
    %v535 = vunpack.c.0.s8 %v534
    %v536 = vlaneseq
    %v537 = vshrl.u32 %v536, 7
    %v538 = vsub.s32 %v535, %v537
    %v539 = vrot.slane %v531, %v538
    %541 = vset.pattern.permute.xlu0 0
    %542 = vperm.xlu0 %541, %v465
    %v543 = vpop.permute.xlu0 %542
    %v546 = vunpack.c.l.s4 839922192
    %v547 = vunpack.c.0.s8 %v546
    %v548 = vlaneseq
    %v549 = vshrl.u32 %v548, 7
    %v550 = vsub.s32 %v547, %v549
    %v551 = vrot.slane %v543, %v550
    %553 = vset.pattern.permute.xlu0 0
    %554 = vperm.xlu0 %553, %v466
    %v555 = vpop.permute.xlu0 %554
    %v558 = vunpack.c.l.s4 839922192
    %v559 = vunpack.c.0.s8 %v558
    %v560 = vlaneseq
    %v561 = vshrl.u32 %v560, 7
    %v562 = vsub.s32 %v559, %v561
    %v563 = vrot.slane %v555, %v562
    %v564 = vlaneseq
    %v565 = vshrl.u32 %v564, 7
    %v566 = vsub.s32 0, %v565
    %v567 = vrot.slane %v467, %v566
    %v569 = vcombine.high %v567, %v567
    %v571 = vmul.f32 %v479, %v567
    %v572 = vmul.f32 %v491, %v569
    %v573 = vmul.f32 %v503, %v567
    %v574 = vmul.f32 %v515, %v569
    %v575 = vmul.f32 %v527, %v567
    %v576 = vmul.f32 %v539, %v569
    %v577 = vmul.f32 %v551, %v567
    %v578 = vmul.f32 %v563, %v569
    %v579 = vld [vmem:[#allocation4 + $0x1] sm:$0x1]
    %580 = vset.pattern.permute.xlu0 1
    %581 = vperm.xlu0 %580, %v459
    %v582 = vpop.permute.xlu0 %581
    %v585 = vunpack.c.l.s4 839922192
    %v586 = vunpack.c.0.s8 %v585
    %v587 = vlaneseq
    %v588 = vshrl.u32 %v587, 7
    %v589 = vsub.s32 %v586, %v588
    %v590 = vrot.slane %v582, %v589
    %591 = vset.pattern.permute.xlu0 1
    %592 = vperm.xlu0 %591, %v460
    %v593 = vpop.permute.xlu0 %592
    %v596 = vunpack.c.l.s4 839922192
    %v597 = vunpack.c.0.s8 %v596
    %v598 = vlaneseq
    %v599 = vshrl.u32 %v598, 7
    %v600 = vsub.s32 %v597, %v599
    %v601 = vrot.slane %v593, %v600
    %602 = vset.pattern.permute.xlu0 1
    %603 = vperm.xlu0 %602, %v461
    %v604 = vpop.permute.xlu0 %603
    %v607 = vunpack.c.l.s4 839922192
    %v608 = vunpack.c.0.s8 %v607
    %v609 = vlaneseq
    %v610 = vshrl.u32 %v609, 7
    %v611 = vsub.s32 %v608, %v610
    %v612 = vrot.slane %v604, %v611
    %613 = vset.pattern.permute.xlu0 1
    %614 = vperm.xlu0 %613, %v462
    %v615 = vpop.permute.xlu0 %614
    %v618 = vunpack.c.l.s4 839922192
    %v619 = vunpack.c.0.s8 %v618
    %v620 = vlaneseq
    %v621 = vshrl.u32 %v620, 7
    %v622 = vsub.s32 %v619, %v621
    %v623 = vrot.slane %v615, %v622
    %624 = vset.pattern.permute.xlu0 1
    %625 = vperm.xlu0 %624, %v463
    %v626 = vpop.permute.xlu0 %625
    %v629 = vunpack.c.l.s4 839922192
    %v630 = vunpack.c.0.s8 %v629
    %v631 = vlaneseq
    %v632 = vshrl.u32 %v631, 7
    %v633 = vsub.s32 %v630, %v632
    %v634 = vrot.slane %v626, %v633
    %635 = vset.pattern.permute.xlu0 1
    %636 = vperm.xlu0 %635, %v464
    %v637 = vpop.permute.xlu0 %636
    %v640 = vunpack.c.l.s4 839922192
    %v641 = vunpack.c.0.s8 %v640
    %v642 = vlaneseq
    %v643 = vshrl.u32 %v642, 7
    %v644 = vsub.s32 %v641, %v643
    %v645 = vrot.slane %v637, %v644
    %646 = vset.pattern.permute.xlu0 1
    %647 = vperm.xlu0 %646, %v465
    %v648 = vpop.permute.xlu0 %647
    %v651 = vunpack.c.l.s4 839922192
    %v652 = vunpack.c.0.s8 %v651
    %v653 = vlaneseq
    %v654 = vshrl.u32 %v653, 7
    %v655 = vsub.s32 %v652, %v654
    %v656 = vrot.slane %v648, %v655
    %657 = vset.pattern.permute.xlu0 1
    %658 = vperm.xlu0 %657, %v466
    %v659 = vpop.permute.xlu0 %658
    %v662 = vunpack.c.l.s4 839922192
    %v663 = vunpack.c.0.s8 %v662
    %v664 = vlaneseq
    %v665 = vshrl.u32 %v664, 7
    %v666 = vsub.s32 %v663, %v665
    %v667 = vrot.slane %v659, %v666
    %v668 = vlaneseq
    %v669 = vshrl.u32 %v668, 7
    %v670 = vsub.s32 0, %v669
    %v671 = vrot.slane %v579, %v670
    %v673 = vcombine.high %v671, %v671
    %v675 = vmul.f32 %v590, %v671
    %v676 = vmul.f32 %v601, %v673
    %v677 = vmul.f32 %v612, %v671
    %v678 = vmul.f32 %v623, %v673
    %v679 = vmul.f32 %v634, %v671
    %v680 = vmul.f32 %v645, %v673
    %v681 = vmul.f32 %v656, %v671
    %v682 = vmul.f32 %v667, %v673
    %v683 = vadd.f32 %v571, %v675
    %v684 = vadd.f32 %v572, %v676
    %v685 = vadd.f32 %v573, %v677
    %v686 = vadd.f32 %v574, %v678
    %v687 = vadd.f32 %v575, %v679
    %v688 = vadd.f32 %v576, %v680
    %v689 = vadd.f32 %v577, %v681
    %v690 = vadd.f32 %v578, %v682
    %v691 = vld [vmem:[#allocation4 + $0x2] sm:$0x1]
    %692 = vset.pattern.permute.xlu0 2
    %693 = vperm.xlu0 %692, %v459
    %v694 = vpop.permute.xlu0 %693
    %v697 = vunpack.c.l.s4 839922192
    %v698 = vunpack.c.0.s8 %v697
    %v699 = vlaneseq
    %v700 = vshrl.u32 %v699, 7
    %v701 = vsub.s32 %v698, %v700
    %v702 = vrot.slane %v694, %v701
    %703 = vset.pattern.permute.xlu0 2
    %704 = vperm.xlu0 %703, %v460
    %v705 = vpop.permute.xlu0 %704
    %v708 = vunpack.c.l.s4 839922192
    %v709 = vunpack.c.0.s8 %v708
    %v710 = vlaneseq
    %v711 = vshrl.u32 %v710, 7
    %v712 = vsub.s32 %v709, %v711
    %v713 = vrot.slane %v705, %v712
    %714 = vset.pattern.permute.xlu0 2
    %715 = vperm.xlu0 %714, %v461
    %v716 = vpop.permute.xlu0 %715
    %v719 = vunpack.c.l.s4 839922192
    %v720 = vunpack.c.0.s8 %v719
    %v721 = vlaneseq
    %v722 = vshrl.u32 %v721, 7
    %v723 = vsub.s32 %v720, %v722
    %v724 = vrot.slane %v716, %v723
    %725 = vset.pattern.permute.xlu0 2
    %726 = vperm.xlu0 %725, %v462
    %v727 = vpop.permute.xlu0 %726
    %v730 = vunpack.c.l.s4 839922192
    %v731 = vunpack.c.0.s8 %v730
    %v732 = vlaneseq
    %v733 = vshrl.u32 %v732, 7
    %v734 = vsub.s32 %v731, %v733
    %v735 = vrot.slane %v727, %v734
    %736 = vset.pattern.permute.xlu0 2
    %737 = vperm.xlu0 %736, %v463
    %v738 = vpop.permute.xlu0 %737
    %v741 = vunpack.c.l.s4 839922192
    %v742 = vunpack.c.0.s8 %v741
    %v743 = vlaneseq
    %v744 = vshrl.u32 %v743, 7
    %v745 = vsub.s32 %v742, %v744
    %v746 = vrot.slane %v738, %v745
    %747 = vset.pattern.permute.xlu0 2
    %748 = vperm.xlu0 %747, %v464
    %v749 = vpop.permute.xlu0 %748
    %v752 = vunpack.c.l.s4 839922192
    %v753 = vunpack.c.0.s8 %v752
    %v754 = vlaneseq
    %v755 = vshrl.u32 %v754, 7
    %v756 = vsub.s32 %v753, %v755
    %v757 = vrot.slane %v749, %v756
    %758 = vset.pattern.permute.xlu0 2
    %759 = vperm.xlu0 %758, %v465
    %v760 = vpop.permute.xlu0 %759
    %v763 = vunpack.c.l.s4 839922192
    %v764 = vunpack.c.0.s8 %v763
    %v765 = vlaneseq
    %v766 = vshrl.u32 %v765, 7
    %v767 = vsub.s32 %v764, %v766
    %v768 = vrot.slane %v760, %v767
    %769 = vset.pattern.permute.xlu0 2
    %770 = vperm.xlu0 %769, %v466
    %v771 = vpop.permute.xlu0 %770
    %v774 = vunpack.c.l.s4 839922192
    %v775 = vunpack.c.0.s8 %v774
    %v776 = vlaneseq
    %v777 = vshrl.u32 %v776, 7
    %v778 = vsub.s32 %v775, %v777
    %v779 = vrot.slane %v771, %v778
    %v780 = vlaneseq
    %v781 = vshrl.u32 %v780, 7
    %v782 = vsub.s32 0, %v781
    %v783 = vrot.slane %v691, %v782
    %v785 = vcombine.high %v783, %v783
    %v787 = vmul.f32 %v702, %v783
    %v788 = vmul.f32 %v713, %v785
    %v789 = vmul.f32 %v724, %v783
    %v790 = vmul.f32 %v735, %v785
    %v791 = vmul.f32 %v746, %v783
    %v792 = vmul.f32 %v757, %v785
    %v793 = vmul.f32 %v768, %v783
    %v794 = vmul.f32 %v779, %v785
    %v795 = vadd.f32 %v683, %v787
    %v796 = vadd.f32 %v684, %v788
    %v797 = vadd.f32 %v685, %v789
    %v798 = vadd.f32 %v686, %v790
    %v799 = vadd.f32 %v687, %v791
    %v800 = vadd.f32 %v688, %v792
    %v801 = vadd.f32 %v689, %v793
    %v802 = vadd.f32 %v690, %v794
    %v803 = vmax.f32 %v795, 0.0
    %v804 = vmax.f32 %v796, 0.0
    %v805 = vmax.f32 %v797, 0.0
    %v806 = vmax.f32 %v798, 0.0
    %v807 = vmax.f32 %v799, 0.0
    %v808 = vmax.f32 %v800, 0.0
    %v809 = vmax.f32 %v801, 0.0
    %v810 = vmax.f32 %v802, 0.0
    %v819 = vcombine.low %v803, %v804
    %v820 = vcombine.low %v805, %v806
    %v821 = vcombine.low %v807, %v808
    %v822 = vcombine.low %v809, %v810
    %v827 = vpack.c.bf16 %v820, %v819
    %v828 = vpack.c.bf16 %v822, %v821
    %v831 = vcombine.high %v827, %v827
    %v833 = vunpack.c.l.s4 1983009808
    %v834 = vunpack.c.0.s8 %v833
    %v835 = vlaneseq
    %v836 = vshrl.u32 %v835, 7
    %v837 = vsub.s32 %v834, %v836
    %v838 = vrot.slane %v827, %v837
    %v840 = vunpack.c.l.s4 1983009808
    %v841 = vunpack.c.0.s8 %v840
    %v842 = vlaneseq
    %v843 = vshrl.u32 %v842, 7
    %v844 = vsub.s32 %v841, %v843
    %v845 = vrot.slane %v831, %v844
    %v846 = vcombine.high %v838, %v838
    %v847 = vcombine.high %v845, %v845
    %v848 = vcombine.high %v828, %v828
    %v850 = vunpack.c.l.s4 1983009808
    %v851 = vunpack.c.0.s8 %v850
    %v852 = vlaneseq
    %v853 = vshrl.u32 %v852, 7
    %v854 = vsub.s32 %v851, %v853
    %v855 = vrot.slane %v828, %v854
    %v857 = vunpack.c.l.s4 1983009808
    %v858 = vunpack.c.0.s8 %v857
    %v859 = vlaneseq
    %v860 = vshrl.u32 %v859, 7
    %v861 = vsub.s32 %v858, %v860
    %v862 = vrot.slane %v848, %v861
    %v863 = vcombine.high %v855, %v855
    %v864 = vcombine.high %v862, %v862
    %vm873 = vcmask 517120
    %874 = vst.msk [vmem:[%s5] sm:$0x3] %vm873, %v838
    %875 = vst.msk [vmem:[%s5 + $0x2] sm:$0x3] %vm873, %v846
    %876 = vst.msk [vmem:[%s5 + $0x4] sm:$0x3] %vm873, %v845
    %877 = vst.msk [vmem:[%s5 + $0x6] sm:$0x3] %vm873, %v847
    %878 = vst.msk [vmem:[%s5 + $0x8] sm:$0x3] %vm873, %v855
    %879 = vst.msk [vmem:[%s5 + $0xa] sm:$0x3] %vm873, %v863
    %880 = vst.msk [vmem:[%s5 + $0xc] sm:$0x3] %vm873, %v862
    %881 = vst.msk [vmem:[%s5 + $0xe] sm:$0x3] %vm873, %v864
    // Predicated region
    $region26: #{deeplabv3_forward.2} parent=1 // pred_check
      _
    $region27: #{deeplabv3_forward.2} parent=1 // pred_check_branch
      %883 = sbr.rel (0) target = $region29
    $region28: #{deeplabv3_forward.2} parent=1 // pred_region
      _
    $region29: #{deeplabv3_forward.2} parent=1 // pred_fallthru
      _
    // Predicated region
    $region30: #{deeplabv3_forward.2} parent=1 // pred_check
      _
    $region31: #{deeplabv3_forward.2} parent=1 // pred_check_branch
      %885 = sbr.rel (0) target = $region33
    $region32: #{deeplabv3_forward.2} parent=1 // pred_region
      _
    $region33: #{deeplabv3_forward.2} parent=1 // pred_fallthru
      _
    // Predicated region
    $region34: #{deeplabv3_forward.2} parent=1 // pred_check
      _
    $region35: #{deeplabv3_forward.2} parent=1 // pred_check_branch
      %887 = sbr.rel (0) target = $region37
    $region36: #{deeplabv3_forward.2} parent=1 // pred_region
      _
    $region37: #{deeplabv3_forward.2} parent=1 // pred_fallthru
      _
    // Predicated region
    $region38: #{deeplabv3_forward.2} parent=1 // pred_check
      _
    $region39: #{deeplabv3_forward.2} parent=1 // pred_check_branch
      %889 = sbr.rel (0) target = $region41
    $region40: #{deeplabv3_forward.2} parent=1 // pred_region
      _
    $region41: #{deeplabv3_forward.2} parent=1 // pred_fallthru
      _
    %890 = vsyncpa [#allocation3], 1
    %891 = vsyncpa [#allocation5], 1

// kernel: deeplabv3_forward.3
$region0: #{deeplabv3_forward.3}
  #allocation0 [shape = 'u32[]', space=smem, size = 0x4, offset = 0x4, fixed_abs, tag = 'smem constant byte address 0x4 - core index']
  #allocation1 [shape = 'u32[144,128]{1,0:T(1,128)}', space=vmem, size = 0x12000, scoped, tag = 'internal scratch']
  %s0 = inlined_call_operand.vmem [shape: bf16[2,8,8,32], index: 0, kind: input, shape index: {}]
  %s1 = inlined_call_operand.vmem [shape: bf16[2,4,4,64], index: 1, kind: input, shape index: {}]
  %s2 = inlined_call_operand.vmem [shape: bf16[3,32,32], index: 2, kind: input, shape index: {}]
  %s3 = inlined_call_operand.vmem [shape: bf16[3,64,256], index: 3, kind: input, shape index: {}]
  %s4 = inlined_call_operand.vmem [shape: bf16[3,64,64], index: 4, kind: input, shape index: {}]
  %s5 = inlined_call_operand.vmem [shape: bf16[3,320,64], index: 5, kind: input, shape index: {}]
  %s6 = inlined_call_operand.vmem [shape: bf16[3,9,96,64], index: 6, kind: input, shape index: {}]
  %s7 = inlined_call_operand.vmem [shape: bf16[3,64,128], index: 7, kind: input, shape index: {}]
  %s8 = inlined_call_operand.vmem [shape: f32[3,1,128], index: 8, kind: input, shape index: {}]
  %s9 = inlined_call_operand.vmem [shape: bf16[64,16], index: 9, kind: input, shape index: {}]
  %s10 = inlined_call_operand.vmem [shape: bf16[1024,64], index: 10, kind: input, shape index: {}]
  %s11 = inlined_call_operand.vmem [shape: bf16[3,2,1024,128], index: 11, kind: output, shape index: {}]
  %s12 = sld [smem:[#allocation0]]
  $region77: #{deeplabv3_forward.3} parent=0
    _
  %s14 = ssub.s32 1, %s12
  %s15 = scalar_select 0, %s14, %s12
  loop: start=0, step=1, limit=8
  $region2: #{deeplabv3_forward.3} parent=0 // loop_pre_header
    _
  $region3: #{deeplabv3_forward.3} parent=0 // loop_header
    %s17 = sphi 0, %s21
    %p18 = scmp.ge.s32.totalorder %s17, 8
    %s24 = sphi 0, %s36
    %s25 = sphi 0, %s32
    %s26 = sphi 0, %s24
    %s27 = sphi 0, %s25
    %s28 = sphi 0, %s26
    %s29 = sphi 0, %s27
    %s39 = sphi 0, %s41
    %s42 = sphi 0, %s39
    %s43 = sphi 0, %s42
    %s59 = sphi 0, %s43
    %s65 = sphi 0, %s67
    %s68 = sphi 0, %s65
    %s69 = sphi 0, %s68
    %s85 = sphi 0, %s69
    %s91 = sphi 0, %s93
    %s94 = sphi 0, %s91
    %s95 = sphi 0, %s94
    %s111 = sphi 0, %s95
    %s117 = sphi 0, %s119
    %s120 = sphi 0, %s117
    %s121 = sphi 0, %s120
    %s137 = sphi 0, %s121
    %s143 = sphi 0, %s145
    %s146 = sphi 0, %s143
    %s147 = sphi 0, %s146
    %s163 = sphi 0, %s147
    %s169 = sphi 0, %s171
    %s172 = sphi 0, %s169
    %s173 = sphi 0, %s172
    %s189 = sphi 0, %s173
    %s195 = sphi 0, %s197
    %s198 = sphi 0, %s195
    %s199 = sphi 0, %s198
    %s215 = sphi 0, %s199
    %s221 = sphi 0, %s223
    %s224 = sphi 0, %s221
    %s225 = sphi 0, %s224
    %s241 = sphi 0, %s225
    %s247 = sphi 0, %s249
    %s250 = sphi 0, %s247
    %s251 = sphi 0, %s250
    %s267 = sphi 0, %s251
    %s271 = sphi 0, %s271
    %s273 = sphi 0, %s271
    %s274 = sphi 0, %s273
    %s288 = sphi 0, %s274
    %s292 = sphi 0, %s292
    %s294 = sphi 0, %s292
    %s295 = sphi 0, %s294
    %s309 = sphi 0, %s295
    %s317 = sphi 0, %s319
    %s320 = sphi 0, %s317
    %s321 = sphi 0, %s320
    %s337 = sphi 0, %s321
  $region4: #{deeplabv3_forward.3} parent=0 // loop_header_branch
    %20 = sbr.rel (%p18) target = $region8
  $region5: #{deeplabv3_forward.3} parent=0 // loop_body
    %s22 = ssub.s32 %s17, 1
    %s23 = ssub.s32 %s17, 2
    %s30 = sadd.s32 1, %s25
    %p31 = scmp.ge.s32.totalorder %s30, 2
    %s32 = scalar_select %p31, 0, %s30
    %s33 = sadd.s32 1, %s24
    %s34 = scalar_select %p31, %s33, %s24
    %p35 = scmp.ge.s32.totalorder %s34, 3
    %s36 = scalar_select %p35, 0, %s34
    %s37 = ssub.s32 %s25, %s32
    %p38 = scmp.eq.s32.totalorder %s37, 0
    %s40 = sadd.s32 %s39, 1
    %s41 = scalar_select %p38, %s39, %s40
    %p44 = pneg %p38
    %p45 = scmp.eq.s32.totalorder %s17, 5
    %p46 = por %p44, %p45
    %p47 = scmp.ne.s32.totalorder %s39, %s42
    %p48 = scmp.eq.s32.totalorder %s17, 0
    %p49 = por %p47, %p48
    %p50 = scmp.ne.s32.totalorder %s39, %s42
    %p51 = scmp.eq.s32.totalorder %s22, 5
    %p52 = por %p50, %p51
    %p53 = scmp.ne.s32.totalorder %s42, %s43
    %p54 = scmp.eq.s32.totalorder %s22, 0
    %p55 = por %p53, %p54
    %p56 = scmp.ne.s32.totalorder %s42, %s43
    %p57 = scmp.eq.s32.totalorder %s23, 5
    %p58 = por %p56, %p57
    %p60 = scmp.ne.s32.totalorder %s43, %s59
    %p61 = scmp.eq.s32.totalorder %s23, 0
    %p62 = por %p60, %p61
    %s63 = ssub.s32 %s25, %s32
    %p64 = scmp.eq.s32.totalorder %s63, 0
    %s66 = sadd.s32 %s65, 1
    %s67 = scalar_select %p64, %s65, %s66
    %p70 = pneg %p64
    %p71 = scmp.eq.s32.totalorder %s17, 5
    %p72 = por %p70, %p71
    %p73 = scmp.ne.s32.totalorder %s65, %s68
    %p74 = scmp.eq.s32.totalorder %s17, 0
    %p75 = por %p73, %p74
    %p76 = scmp.ne.s32.totalorder %s65, %s68
    %p77 = scmp.eq.s32.totalorder %s22, 5
    %p78 = por %p76, %p77
    %p79 = scmp.ne.s32.totalorder %s68, %s69
    %p80 = scmp.eq.s32.totalorder %s22, 0
    %p81 = por %p79, %p80
    %p82 = scmp.ne.s32.totalorder %s68, %s69
    %p83 = scmp.eq.s32.totalorder %s23, 5
    %p84 = por %p82, %p83
    %p86 = scmp.ne.s32.totalorder %s69, %s85
    %p87 = scmp.eq.s32.totalorder %s23, 0
    %p88 = por %p86, %p87
    %s89 = ssub.s32 %s24, %s36
    %p90 = scmp.eq.s32.totalorder %s89, 0
    %s92 = sadd.s32 %s91, 1
    %s93 = scalar_select %p90, %s91, %s92
    %p96 = pneg %p90
    %p97 = scmp.eq.s32.totalorder %s17, 5
    %p98 = por %p96, %p97
    %p99 = scmp.ne.s32.totalorder %s91, %s94
    %p100 = scmp.eq.s32.totalorder %s17, 0
    %p101 = por %p99, %p100
    %p102 = scmp.ne.s32.totalorder %s91, %s94
    %p103 = scmp.eq.s32.totalorder %s22, 5
    %p104 = por %p102, %p103
    %p105 = scmp.ne.s32.totalorder %s94, %s95
    %p106 = scmp.eq.s32.totalorder %s22, 0
    %p107 = por %p105, %p106
    %p108 = scmp.ne.s32.totalorder %s94, %s95
    %p109 = scmp.eq.s32.totalorder %s23, 5
    %p110 = por %p108, %p109
    %p112 = scmp.ne.s32.totalorder %s95, %s111
    %p113 = scmp.eq.s32.totalorder %s23, 0
    %p114 = por %p112, %p113
    %s115 = ssub.s32 %s24, %s36
    %p116 = scmp.eq.s32.totalorder %s115, 0
    %s118 = sadd.s32 %s117, 1
    %s119 = scalar_select %p116, %s117, %s118
    %p122 = pneg %p116
    %p123 = scmp.eq.s32.totalorder %s17, 5
    %p124 = por %p122, %p123
    %p125 = scmp.ne.s32.totalorder %s117, %s120
    %p126 = scmp.eq.s32.totalorder %s17, 0
    %p127 = por %p125, %p126
    %p128 = scmp.ne.s32.totalorder %s117, %s120
    %p129 = scmp.eq.s32.totalorder %s22, 5
    %p130 = por %p128, %p129
    %p131 = scmp.ne.s32.totalorder %s120, %s121
    %p132 = scmp.eq.s32.totalorder %s22, 0
    %p133 = por %p131, %p132
    %p134 = scmp.ne.s32.totalorder %s120, %s121
    %p135 = scmp.eq.s32.totalorder %s23, 5
    %p136 = por %p134, %p135
    %p138 = scmp.ne.s32.totalorder %s121, %s137
    %p139 = scmp.eq.s32.totalorder %s23, 0
    %p140 = por %p138, %p139
    %s141 = ssub.s32 %s24, %s36
    %p142 = scmp.eq.s32.totalorder %s141, 0
    %s144 = sadd.s32 %s143, 1
    %s145 = scalar_select %p142, %s143, %s144
    %p148 = pneg %p142
    %p149 = scmp.eq.s32.totalorder %s17, 5
    %p150 = por %p148, %p149
    %p151 = scmp.ne.s32.totalorder %s143, %s146
    %p152 = scmp.eq.s32.totalorder %s17, 0
    %p153 = por %p151, %p152
    %p154 = scmp.ne.s32.totalorder %s143, %s146
    %p155 = scmp.eq.s32.totalorder %s22, 5
    %p156 = por %p154, %p155
    %p157 = scmp.ne.s32.totalorder %s146, %s147
    %p158 = scmp.eq.s32.totalorder %s22, 0
    %p159 = por %p157, %p158
    %p160 = scmp.ne.s32.totalorder %s146, %s147
    %p161 = scmp.eq.s32.totalorder %s23, 5
    %p162 = por %p160, %p161
    %p164 = scmp.ne.s32.totalorder %s147, %s163
    %p165 = scmp.eq.s32.totalorder %s23, 0
    %p166 = por %p164, %p165
    %s167 = ssub.s32 %s24, %s36
    %p168 = scmp.eq.s32.totalorder %s167, 0
    %s170 = sadd.s32 %s169, 1
    %s171 = scalar_select %p168, %s169, %s170
    %p174 = pneg %p168
    %p175 = scmp.eq.s32.totalorder %s17, 5
    %p176 = por %p174, %p175
    %p177 = scmp.ne.s32.totalorder %s169, %s172
    %p178 = scmp.eq.s32.totalorder %s17, 0
    %p179 = por %p177, %p178
    %p180 = scmp.ne.s32.totalorder %s169, %s172
    %p181 = scmp.eq.s32.totalorder %s22, 5
    %p182 = por %p180, %p181
    %p183 = scmp.ne.s32.totalorder %s172, %s173
    %p184 = scmp.eq.s32.totalorder %s22, 0
    %p185 = por %p183, %p184
    %p186 = scmp.ne.s32.totalorder %s172, %s173
    %p187 = scmp.eq.s32.totalorder %s23, 5
    %p188 = por %p186, %p187
    %p190 = scmp.ne.s32.totalorder %s173, %s189
    %p191 = scmp.eq.s32.totalorder %s23, 0
    %p192 = por %p190, %p191
    %s193 = ssub.s32 %s24, %s36
    %p194 = scmp.eq.s32.totalorder %s193, 0
    %s196 = sadd.s32 %s195, 1
    %s197 = scalar_select %p194, %s195, %s196
    %p200 = pneg %p194
    %p201 = scmp.eq.s32.totalorder %s17, 5
    %p202 = por %p200, %p201
    %p203 = scmp.ne.s32.totalorder %s195, %s198
    %p204 = scmp.eq.s32.totalorder %s17, 0
    %p205 = por %p203, %p204
    %p206 = scmp.ne.s32.totalorder %s195, %s198
    %p207 = scmp.eq.s32.totalorder %s22, 5
    %p208 = por %p206, %p207
    %p209 = scmp.ne.s32.totalorder %s198, %s199
    %p210 = scmp.eq.s32.totalorder %s22, 0
    %p211 = por %p209, %p210
    %p212 = scmp.ne.s32.totalorder %s198, %s199
    %p213 = scmp.eq.s32.totalorder %s23, 5
    %p214 = por %p212, %p213
    %p216 = scmp.ne.s32.totalorder %s199, %s215
    %p217 = scmp.eq.s32.totalorder %s23, 0
    %p218 = por %p216, %p217
    %s219 = ssub.s32 %s24, %s36
    %p220 = scmp.eq.s32.totalorder %s219, 0
    %s222 = sadd.s32 %s221, 1
    %s223 = scalar_select %p220, %s221, %s222
    %p226 = pneg %p220
    %p227 = scmp.eq.s32.totalorder %s17, 5
    %p228 = por %p226, %p227
    %p229 = scmp.ne.s32.totalorder %s221, %s224
    %p230 = scmp.eq.s32.totalorder %s17, 0
    %p231 = por %p229, %p230
    %p232 = scmp.ne.s32.totalorder %s221, %s224
    %p233 = scmp.eq.s32.totalorder %s22, 5
    %p234 = por %p232, %p233
    %p235 = scmp.ne.s32.totalorder %s224, %s225
    %p236 = scmp.eq.s32.totalorder %s22, 0
    %p237 = por %p235, %p236
    %p238 = scmp.ne.s32.totalorder %s224, %s225
    %p239 = scmp.eq.s32.totalorder %s23, 5
    %p240 = por %p238, %p239
    %p242 = scmp.ne.s32.totalorder %s225, %s241
    %p243 = scmp.eq.s32.totalorder %s23, 0
    %p244 = por %p242, %p243
    %s245 = ssub.s32 %s24, %s36
    %p246 = scmp.eq.s32.totalorder %s245, 0
    %s248 = sadd.s32 %s247, 1
    %s249 = scalar_select %p246, %s247, %s248
    %p252 = pneg %p246
    %p253 = scmp.eq.s32.totalorder %s17, 5
    %p254 = por %p252, %p253
    %p255 = scmp.ne.s32.totalorder %s247, %s250
    %p256 = scmp.eq.s32.totalorder %s17, 0
    %p257 = por %p255, %p256
    %p258 = scmp.ne.s32.totalorder %s247, %s250
    %p259 = scmp.eq.s32.totalorder %s22, 5
    %p260 = por %p258, %p259
    %p261 = scmp.ne.s32.totalorder %s250, %s251
    %p262 = scmp.eq.s32.totalorder %s22, 0
    %p263 = por %p261, %p262
    %p264 = scmp.ne.s32.totalorder %s250, %s251
    %p265 = scmp.eq.s32.totalorder %s23, 5
    %p266 = por %p264, %p265
    %p268 = scmp.ne.s32.totalorder %s251, %s267
    %p269 = scmp.eq.s32.totalorder %s23, 0
    %p270 = por %p268, %p269
    %s272 = sadd.s32 %s271, 1
    %p275 = scmp.eq.s32.totalorder %s17, 5
    %p276 = scmp.ne.s32.totalorder %s271, %s273
    %p277 = scmp.eq.s32.totalorder %s17, 0
    %p278 = por %p276, %p277
    %p279 = scmp.ne.s32.totalorder %s271, %s273
    %p280 = scmp.eq.s32.totalorder %s22, 5
    %p281 = por %p279, %p280
    %p282 = scmp.ne.s32.totalorder %s273, %s274
    %p283 = scmp.eq.s32.totalorder %s22, 0
    %p284 = por %p282, %p283
    %p285 = scmp.ne.s32.totalorder %s273, %s274
    %p286 = scmp.eq.s32.totalorder %s23, 5
    %p287 = por %p285, %p286
    %p289 = scmp.ne.s32.totalorder %s274, %s288
    %p290 = scmp.eq.s32.totalorder %s23, 0
    %p291 = por %p289, %p290
    %s293 = sadd.s32 %s292, 1
    %p296 = scmp.eq.s32.totalorder %s17, 5
    %p297 = scmp.ne.s32.totalorder %s292, %s294
    %p298 = scmp.eq.s32.totalorder %s17, 0
    %p299 = por %p297, %p298
    %p300 = scmp.ne.s32.totalorder %s292, %s294
    %p301 = scmp.eq.s32.totalorder %s22, 5
    %p302 = por %p300, %p301
    %p303 = scmp.ne.s32.totalorder %s294, %s295
    %p304 = scmp.eq.s32.totalorder %s22, 0
    %p305 = por %p303, %p304
    %p306 = scmp.ne.s32.totalorder %s294, %s295
    %p307 = scmp.eq.s32.totalorder %s23, 5
    %p308 = por %p306, %p307
    %p310 = scmp.ne.s32.totalorder %s295, %s309
    %p311 = scmp.eq.s32.totalorder %s23, 0
    %p312 = por %p310, %p311
    %s313 = ssub.s32 %s24, %s36
    %s314 = ssub.s32 %s25, %s32
    %s315 = sor.u32 %s313, %s314
    %p316 = scmp.eq.s32.totalorder %s315, 0
    %s318 = sadd.s32 %s317, 1
    %s319 = scalar_select %p316, %s317, %s318
    %p322 = pneg %p316
    %p323 = scmp.eq.s32.totalorder %s17, 5
    %p324 = por %p322, %p323
    %p325 = scmp.ne.s32.totalorder %s317, %s320
    %p326 = scmp.eq.s32.totalorder %s17, 0
    %p327 = por %p325, %p326
    %p328 = scmp.ne.s32.totalorder %s317, %s320
    %p329 = scmp.eq.s32.totalorder %s22, 5
    %p330 = por %p328, %p329
    %p331 = scmp.ne.s32.totalorder %s320, %s321
    %p332 = scmp.eq.s32.totalorder %s22, 0
    %p333 = por %p331, %p332
    %p334 = scmp.ne.s32.totalorder %s320, %s321
    %p335 = scmp.eq.s32.totalorder %s23, 5
    %p336 = por %p334, %p335
    %p338 = scmp.ne.s32.totalorder %s321, %s337
    %p339 = scmp.eq.s32.totalorder %s23, 0
    %p340 = por %p338, %p339
    %p341 = scmp.le.s32.totalorder 1, %s17
    %p342 = scmp.lt.s32.totalorder %s17, 7
    %p343 = pnand %p341, %p342
    %p344 = pneg %p343
    // Predicated region
    $region9: #{deeplabv3_forward.3} parent=5 // pred_check
      _
    $region10: #{deeplabv3_forward.3} parent=5 // pred_check_branch
      %346 = sbr.rel (%p343) target = $region12
    $region11: #{deeplabv3_forward.3} parent=5 // pred_region
      %s347 = ssub.s32 %s17, 1
      // Predicated region
      $region13: #{deeplabv3_forward.3} parent=11 // pred_check
        %p348 = pneg %p284
      $region14: #{deeplabv3_forward.3} parent=11 // pred_check_branch
        %350 = sbr.rel (%p348) target = $region16
      $region15: #{deeplabv3_forward.3} parent=11 // pred_region
        _
      $region16: #{deeplabv3_forward.3} parent=11 // pred_fallthru
        _
      // Predicated region
      $region17: #{deeplabv3_forward.3} parent=11 // pred_check
        %p351 = pneg %p305
      $region18: #{deeplabv3_forward.3} parent=11 // pred_check_branch
        %353 = sbr.rel (%p351) target = $region20
      $region19: #{deeplabv3_forward.3} parent=11 // pred_region
        _
      $region20: #{deeplabv3_forward.3} parent=11 // pred_fallthru
        _
    $region12: #{deeplabv3_forward.3} parent=5 // pred_fallthru
      _
    %p354 = scmp.lt.s32.totalorder %s17, 6
    // Predicated region
    $region21: #{deeplabv3_forward.3} parent=5 // pred_check
      %p355 = pneg %p354
    $region22: #{deeplabv3_forward.3} parent=5 // pred_check_branch
      %357 = sbr.rel (%p355) target = $region24
    $region23: #{deeplabv3_forward.3} parent=5 // pred_region
      // Predicated region
      $region25: #{deeplabv3_forward.3} parent=23 // pred_check
        %p358 = pneg %p49
      $region26: #{deeplabv3_forward.3} parent=23 // pred_check_branch
        %360 = sbr.rel (%p358) target = $region28
      $region27: #{deeplabv3_forward.3} parent=23 // pred_region
        %p361 = scmp.lt.s32.totalorder %s25, 1
        %s362 = scalar_select %p361, %s25, 1
        %s363 = smul.addr %s362, 8
        %s364 = smul.addr %s363, 4
        %s365 = scalar_lea.vmem %s0, %s364
      $region28: #{deeplabv3_forward.3} parent=23 // pred_fallthru
        _
      // Predicated region
      $region29: #{deeplabv3_forward.3} parent=23 // pred_check
        %p366 = pneg %p75
      $region30: #{deeplabv3_forward.3} parent=23 // pred_check_branch
        %368 = sbr.rel (%p366) target = $region32
      $region31: #{deeplabv3_forward.3} parent=23 // pred_region
        %p369 = scmp.lt.s32.totalorder %s25, 1
        %s370 = scalar_select %p369, %s25, 1
        %s371 = smul.addr %s370, 4
        %s372 = smul.addr %s371, 2
        %s373 = scalar_lea.vmem %s1, %s372
      $region32: #{deeplabv3_forward.3} parent=23 // pred_fallthru
        _
      // Predicated region
      $region33: #{deeplabv3_forward.3} parent=23 // pred_check
        %p374 = pneg %p101
      $region34: #{deeplabv3_forward.3} parent=23 // pred_check_branch
        %376 = sbr.rel (%p374) target = $region36
      $region35: #{deeplabv3_forward.3} parent=23 // pred_region
        %p377 = scmp.lt.s32.totalorder %s24, 2
        %s378 = scalar_select %p377, %s24, 2
        %s379 = smul.addr %s378, 4
        %s380 = smul.addr %s379, 4
        %s381 = scalar_lea.vmem %s2, %s380
      $region36: #{deeplabv3_forward.3} parent=23 // pred_fallthru
        _
      // Predicated region
      $region37: #{deeplabv3_forward.3} parent=23 // pred_check
        %p382 = pneg %p127
      $region38: #{deeplabv3_forward.3} parent=23 // pred_check_branch
        %384 = sbr.rel (%p382) target = $region40
      $region39: #{deeplabv3_forward.3} parent=23 // pred_region
        %p385 = scmp.lt.s32.totalorder %s24, 2
        %s386 = scalar_select %p385, %s24, 2
        %s387 = smul.addr %s386, 16
        %s388 = smul.addr %s387, 4
        %s389 = scalar_lea.vmem %s3, %s388
      $region40: #{deeplabv3_forward.3} parent=23 // pred_fallthru
        _
      // Predicated region
      $region41: #{deeplabv3_forward.3} parent=23 // pred_check
        %p390 = pneg %p153
      $region42: #{deeplabv3_forward.3} parent=23 // pred_check_branch
        %392 = sbr.rel (%p390) target = $region44
      $region43: #{deeplabv3_forward.3} parent=23 // pred_region
        %p393 = scmp.lt.s32.totalorder %s24, 2
        %s394 = scalar_select %p393, %s24, 2
        %s395 = smul.addr %s394, 8
        %s396 = smul.addr %s395, 4
        %s397 = scalar_lea.vmem %s4, %s396
      $region44: #{deeplabv3_forward.3} parent=23 // pred_fallthru
        _
      // Predicated region
      $region45: #{deeplabv3_forward.3} parent=23 // pred_check
        %p398 = pneg %p179
      $region46: #{deeplabv3_forward.3} parent=23 // pred_check_branch
        %400 = sbr.rel (%p398) target = $region48
      $region47: #{deeplabv3_forward.3} parent=23 // pred_region
        %p401 = scmp.lt.s32.totalorder %s24, 2
        %s402 = scalar_select %p401, %s24, 2
        %s403 = smul.addr %s402, 40
        %s404 = smul.addr %s403, 4
        %s405 = scalar_lea.vmem %s5, %s404
      $region48: #{deeplabv3_forward.3} parent=23 // pred_fallthru
        _
      // Predicated region
      $region49: #{deeplabv3_forward.3} parent=23 // pred_check
        %p406 = pneg %p205
      $region50: #{deeplabv3_forward.3} parent=23 // pred_check_branch
        %408 = sbr.rel (%p406) target = $region52
      $region51: #{deeplabv3_forward.3} parent=23 // pred_region
        %p409 = scmp.lt.s32.totalorder %s24, 2
        %s410 = scalar_select %p409, %s24, 2
        %s411 = smul.addr %s410, 108
        %s412 = smul.addr %s411, 4
        %s413 = scalar_lea.vmem %s6, %s412
      $region52: #{deeplabv3_forward.3} parent=23 // pred_fallthru
        _
      // Predicated region
      $region53: #{deeplabv3_forward.3} parent=23 // pred_check
        %p414 = pneg %p231
      $region54: #{deeplabv3_forward.3} parent=23 // pred_check_branch
        %416 = sbr.rel (%p414) target = $region56
      $region55: #{deeplabv3_forward.3} parent=23 // pred_region
        %p417 = scmp.lt.s32.totalorder %s24, 2
        %s418 = scalar_select %p417, %s24, 2
        %s419 = smul.addr %s418, 8
        %s420 = smul.addr %s419, 4
        %s421 = scalar_lea.vmem %s7, %s420
      $region56: #{deeplabv3_forward.3} parent=23 // pred_fallthru
        _
      // Predicated region
      $region57: #{deeplabv3_forward.3} parent=23 // pred_check
        %p422 = pneg %p257
      $region58: #{deeplabv3_forward.3} parent=23 // pred_check_branch
        %424 = sbr.rel (%p422) target = $region60
      $region59: #{deeplabv3_forward.3} parent=23 // pred_region
        %p425 = scmp.lt.s32.totalorder %s24, 2
        %s426 = scalar_select %p425, %s24, 2
        %s427 = scalar_lea.vmem %s8, %s426
      $region60: #{deeplabv3_forward.3} parent=23 // pred_fallthru
        _
    $region24: #{deeplabv3_forward.3} parent=5 // pred_fallthru
      _
    %p428 = scmp.le.s32.totalorder 1, %s17
    %p429 = scmp.lt.s32.totalorder %s17, 7
    %p430 = pnand %p428, %p429
    %p431 = pneg %p430
    // Predicated region
    $region61: #{deeplabv3_forward.3} parent=5 // pred_check
      _
    $region62: #{deeplabv3_forward.3} parent=5 // pred_check_branch
      %433 = sbr.rel (%p430) target = $region64
    $region63: #{deeplabv3_forward.3} parent=5 // pred_region
      %s434 = ssub.s32 %s17, 1
      %p435 = scmp.lt.s32.totalorder %s27, 1
      %s436 = scalar_select %p435, %s27, 1
      %s437 = smul.addr %s436, 8
      %s438 = smul.addr %s437, 4
      %s439 = scalar_lea.vmem %s0, %s438
      %p440 = pneg %p55
      %p441 = pneg %p52
      %p442 = scmp.lt.s32.totalorder %s27, 1
      %s443 = scalar_select %p442, %s27, 1
      %s444 = smul.addr %s443, 4
      %s445 = smul.addr %s444, 2
      %s446 = scalar_lea.vmem %s1, %s445
      %p447 = pneg %p81
      %p448 = pneg %p78
      %p449 = scmp.lt.s32.totalorder %s26, 2
      %s450 = scalar_select %p449, %s26, 2
      %s451 = smul.addr %s450, 4
      %s452 = smul.addr %s451, 4
      %s453 = scalar_lea.vmem %s2, %s452
      %p454 = pneg %p107
      %p455 = pneg %p104
      %p456 = scmp.lt.s32.totalorder %s26, 2
      %s457 = scalar_select %p456, %s26, 2
      %s458 = smul.addr %s457, 16
      %s459 = smul.addr %s458, 4
      %s460 = scalar_lea.vmem %s3, %s459
      %p461 = pneg %p133
      %p462 = pneg %p130
      %p463 = scmp.lt.s32.totalorder %s26, 2
      %s464 = scalar_select %p463, %s26, 2
      %s465 = smul.addr %s464, 8
      %s466 = smul.addr %s465, 4
      %s467 = scalar_lea.vmem %s4, %s466
      %p468 = pneg %p159
      %p469 = pneg %p156
      %p470 = scmp.lt.s32.totalorder %s26, 2
      %s471 = scalar_select %p470, %s26, 2
      %s472 = smul.addr %s471, 40
      %s473 = smul.addr %s472, 4
      %s474 = scalar_lea.vmem %s5, %s473
      %p475 = pneg %p185
      %p476 = pneg %p182
      %p477 = scmp.lt.s32.totalorder %s26, 2
      %s478 = scalar_select %p477, %s26, 2
      %s479 = smul.addr %s478, 108
      %s480 = smul.addr %s479, 4
      %s481 = scalar_lea.vmem %s6, %s480
      %p482 = pneg %p211
      %p483 = pneg %p208
      %p484 = scmp.lt.s32.totalorder %s26, 2
      %s485 = scalar_select %p484, %s26, 2
      %s486 = smul.addr %s485, 8
      %s487 = smul.addr %s486, 4
      %s488 = scalar_lea.vmem %s7, %s487
      %p489 = pneg %p237
      %p490 = pneg %p234
      %p491 = scmp.lt.s32.totalorder %s26, 2
      %s492 = scalar_select %p491, %s26, 2
      %s493 = scalar_lea.vmem %s8, %s492
      %p494 = pneg %p263
      %p495 = pneg %p260
      %p496 = pneg %p284
      %p497 = pneg %p281
      %p498 = pneg %p305
      %p499 = pneg %p302
      %p500 = pneg %p333
      %p501 = pneg %p330
      %p502 = scmp.lt.s32.totalorder %s26, 2
      %s503 = scalar_select %p502, %s26, 2
      %p504 = scmp.lt.s32.totalorder %s27, 1
      %s505 = scalar_select %p504, %s27, 1
      %s506 = smul.addr %s505, 128
      %s507 = smul.addr %s503, 256
      %s508 = sadd.s32 %s506, %s507
      %s509 = smul.addr %s508, 4
      %s510 = scalar_lea.vmem %s11, %s509
      %p511 = scmp.lt.s32.totalorder %s27, 1
      %s512 = scalar_select %p511, %s27, 1
      %s513 = smul.addr %s512, 8
      %s514 = smul.addr %s513, 4
      %s515 = scalar_lea.vmem %s0, %s514
      %p516 = scmp.lt.s32.totalorder %s27, 1
      %s517 = scalar_select %p516, %s27, 1
      %s518 = smul.addr %s517, 4
      %s519 = smul.addr %s518, 2
      %s520 = scalar_lea.vmem %s1, %s519
      %p521 = scmp.lt.s32.totalorder %s26, 2
      %s522 = scalar_select %p521, %s26, 2
      %s523 = smul.addr %s522, 4
      %s524 = smul.addr %s523, 4
      %s525 = scalar_lea.vmem %s2, %s524
      %p526 = scmp.lt.s32.totalorder %s26, 2
      %s527 = scalar_select %p526, %s26, 2
      %s528 = smul.addr %s527, 16
      %s529 = smul.addr %s528, 4
      %s530 = scalar_lea.vmem %s3, %s529
      %p531 = scmp.lt.s32.totalorder %s26, 2
      %s532 = scalar_select %p531, %s26, 2
      %s533 = smul.addr %s532, 8
      %s534 = smul.addr %s533, 4
      %s535 = scalar_lea.vmem %s4, %s534
      %p536 = scmp.lt.s32.totalorder %s26, 2
      %s537 = scalar_select %p536, %s26, 2
      %s538 = smul.addr %s537, 40
      %s539 = smul.addr %s538, 4
      %s540 = scalar_lea.vmem %s5, %s539
      %p541 = scmp.lt.s32.totalorder %s26, 2
      %s542 = scalar_select %p541, %s26, 2
      %s543 = smul.addr %s542, 108
      %s544 = smul.addr %s543, 4
      %s545 = scalar_lea.vmem %s6, %s544
      %p546 = scmp.lt.s32.totalorder %s26, 2
      %s547 = scalar_select %p546, %s26, 2
      %s548 = smul.addr %s547, 8
      %s549 = smul.addr %s548, 4
      %s550 = scalar_lea.vmem %s7, %s549
      %p551 = scmp.lt.s32.totalorder %s26, 2
      %s552 = scalar_select %p551, %s26, 2
      %s553 = scalar_lea.vmem %s8, %s552
      %p554 = scmp.lt.s32.totalorder %s26, 2
      %s555 = scalar_select %p554, %s26, 2
      %p556 = scmp.lt.s32.totalorder %s27, 1
      %s557 = scalar_select %p556, %s27, 1
      %s558 = smul.addr %s557, 128
      %s559 = smul.addr %s555, 256
      %s560 = sadd.s32 %s558, %s559
      %s561 = smul.addr %s560, 4
      %s562 = scalar_lea.vmem %s11, %s561
      %v564 = vld [vmem:[%s515] sm:$0xf]
      %v565 = vld [vmem:[%s515 + $0x4] sm:$0xf]
      %v566 = vld [vmem:[%s515 + $0x8] sm:$0xf]
      %v567 = vld [vmem:[%s515 + $0xc] sm:$0xf]
      %v568 = vld [vmem:[%s515 + $0x10] sm:$0xf]
      %v569 = vld [vmem:[%s515 + $0x14] sm:$0xf]
      %v570 = vld [vmem:[%s515 + $0x18] sm:$0xf]
      %v571 = vld [vmem:[%s515 + $0x1c] sm:$0xf]
      %v572 = vld [vmem:[%s520] sm:$0x3]
      %v573 = vld [vmem:[%s520 + $0x2] sm:$0x3]
      %v574 = vld [vmem:[%s520 + $0x4] sm:$0x3]
      %v575 = vld [vmem:[%s520 + $0x6] sm:$0x3]
      %v576 = vld [vmem:[%s525] sm:$0xf]
      %v577 = vld [vmem:[%s525 + $0x4] sm:$0xf]
      %v578 = vld [vmem:[%s525 + $0x8] sm:$0xf]
      %v579 = vld [vmem:[%s525 + $0xc] sm:$0xf]
      %v588 = vunpack.c.l.b16 %v564
      %v589 = vunpack.c.l.b16 %v565
      %v590 = vunpack.c.l.b16 %v566
      %v591 = vunpack.c.l.b16 %v567
      %v592 = vunpack.c.l.b16 %v568
      %v593 = vunpack.c.l.b16 %v569
      %v594 = vunpack.c.l.b16 %v570
      %v595 = vunpack.c.l.b16 %v571
      %v596 = vpack.c.b16 %v589, %v588
      %v597 = vpack.c.b16 %v591, %v590
      %v598 = vpack.c.b16 %v593, %v592
      %v599 = vpack.c.b16 %v595, %v594
      %v604 = vunpack.c.l.b16 %v576
      %v605 = vunpack.c.l.b16 %v577
      %v606 = vunpack.c.l.b16 %v578
      %v607 = vunpack.c.l.b16 %v579
      %v608 = vpack.c.b16 %v605, %v604
      %v609 = vpack.c.b16 %v607, %v606
      %vm612 = vcmask 261120
      %v614 = vsel %vm612, %v596, 0
      %v617 = vsel %vm612, %v597, 0
      %v620 = vsel %vm612, %v598, 0
      %v623 = vsel %vm612, %v599, 0
      %625 = vmatprep.subr.bf16.mxu0 0
      %626 = vmatpush1.bf16.msra.mxu0 %v608
      %627 = vmatprep.subr.bf16.mxu0 0
      %628 = vmatpush1.bf16.msra.mxu0 %v609
      %629 = vmatprep.subr.bf16.mxu0 0
      %630 = vmatpush1.bf16.msra.mxu0 0
      %631 = vmatprep.subr.bf16.mxu0 0
      %632 = vmatpush1.bf16.msra.mxu0 0
      %633 = vmatprep.subr.bf16.mxu0 0
      %634 = vmatpush1.bf16.msra.mxu0 0
      %635 = vmatprep.subr.bf16.mxu0 0
      %636 = vmatpush1.bf16.msra.mxu0 0
      %637 = vmatprep.subr.bf16.mxu0 0
      %638 = vmatpush1.bf16.msra.mxu0 0
      %639 = vmatprep.subr.bf16.mxu0 0
      %640 = vmatpush1.bf16.msra.mxu0 0
      %641 = vmatprep.subr.bf16.mxu0 0
      %642 = vmatpush1.bf16.msra.mxu0 0
      %643 = vmatprep.subr.bf16.mxu0 0
      %644 = vmatpush1.bf16.msra.mxu0 0
      %645 = vmatprep.subr.bf16.mxu0 0
      %646 = vmatpush1.bf16.msra.mxu0 0
      %647 = vmatprep.subr.bf16.mxu0 0
      %648 = vmatpush1.bf16.msra.mxu0 0
      %649 = vmatprep.subr.bf16.mxu0 0
      %650 = vmatpush1.bf16.msra.mxu0 0
      %651 = vmatprep.subr.bf16.mxu0 0
      %652 = vmatpush1.bf16.msra.mxu0 0
      %653 = vmatprep.subr.bf16.mxu0 0
      %654 = vmatpush1.bf16.msra.mxu0 0
      %655 = vmatprep.subr.bf16.mxu0 0
      %656 = vmatpush1.bf16.msra.mxu0 0
      %657 = vmatprep.mubr.bf16.mxu0 0
      %658 = vmatmul.mubr.bf16.gmra.mrb[0].mxu0 %v614
      %v659 = vpop.f32.mrb[0].mxu0
      %v660 = vadd.f32 0.0, %v659
      %v661 = vpop.f32.mrb[0].mxu0
      %v662 = vpop.f32.mrb[0].mxu0
      %v663 = vadd.f32 0.0, %v662
      %v664 = vpop.f32.mrb[0].mxu0
      %665 = vmatprep.mubr.bf16.mxu0 0
      %666 = vmatmul.mubr.bf16.gmra.mrb[0].mxu0 %v617
      %v667 = vpop.f32.mrb[0].mxu0
      %v668 = vadd.f32 0.0, %v667
      %v669 = vpop.f32.mrb[0].mxu0
      %v670 = vpop.f32.mrb[0].mxu0
      %v671 = vadd.f32 0.0, %v670
      %v672 = vpop.f32.mrb[0].mxu0
      %673 = vmatprep.mubr.bf16.mxu0 0
      %674 = vmatmul.mubr.bf16.gmra.mrb[0].mxu0 %v620
      %v675 = vpop.f32.mrb[0].mxu0
      %v676 = vadd.f32 0.0, %v675
      %v677 = vpop.f32.mrb[0].mxu0
      %v678 = vpop.f32.mrb[0].mxu0
      %v679 = vadd.f32 0.0, %v678
      %v680 = vpop.f32.mrb[0].mxu0
      %681 = vmatprep.mubr.bf16.mxu0 0
      %682 = vmatmul.mubr.bf16.gmra.mrb[0].mxu0 %v623
      %v683 = vpop.f32.mrb[0].mxu0
      %v684 = vadd.f32 0.0, %v683
      %v685 = vpop.f32.mrb[0].mxu0
      %v686 = vpop.f32.mrb[0].mxu0
      %v687 = vadd.f32 0.0, %v686
      %v688 = vpop.f32.mrb[0].mxu0
      %689 = vdwg.mxu0
      %v690 = vmax.f32 %v660, 0.0
      %v691 = vmax.f32 %v663, 0.0
      %v692 = vmax.f32 %v668, 0.0
      %v693 = vmax.f32 %v671, 0.0
      %v694 = vmax.f32 %v676, 0.0
      %v695 = vmax.f32 %v679, 0.0
      %v696 = vmax.f32 %v684, 0.0
      %v697 = vmax.f32 %v687, 0.0
      %v698 = vpack.c.bf16 %v691, %v690
      %v699 = vpack.c.bf16 %v693, %v692
      %v700 = vpack.c.bf16 %v695, %v694
      %v701 = vpack.c.bf16 %v697, %v696
      %v702 = vld [vmem:[%s530] sm:$0xff]
      %v703 = vld [vmem:[%s530 + $0x8] sm:$0xff]
      %v704 = vld [vmem:[%s530 + $0x10] sm:$0xff]
      %v705 = vld [vmem:[%s530 + $0x18] sm:$0xff]
      %v706 = vld [vmem:[%s530 + $0x20] sm:$0xff]
      %v707 = vld [vmem:[%s530 + $0x28] sm:$0xff]
      %v708 = vld [vmem:[%s530 + $0x30] sm:$0xff]
      %v709 = vld [vmem:[%s530 + $0x38] sm:$0xff]
      %v714 = vcombine.low %v572, %v573
      %v715 = vcombine.low %v574, %v575
      %v717 = vunpack.c.l.s4 1983009808
      %v718 = vunpack.c.0.s8 %v717
      %v719 = vlaneseq
      %v720 = vshrl.u32 %v719, 7
      %v721 = vsub.s32 %v718, %v720
      %v722 = vrot.slane %v714, %v721
      %v724 = vunpack.c.l.s4 1983009808
      %v725 = vunpack.c.0.s8 %v724
      %v726 = vlaneseq
      %v727 = vshrl.u32 %v726, 7
      %v728 = vsub.s32 %v725, %v727
      %v729 = vrot.slane %v715, %v728
      %v730 = vcombine.low %v722, %v729
      %v739 = vunpack.c.l.b16 %v702
      %v740 = vunpack.c.h.b16 %v702
      %v741 = vunpack.c.l.b16 %v703
      %v742 = vunpack.c.h.b16 %v703
      %v743 = vunpack.c.l.b16 %v704
      %v744 = vunpack.c.h.b16 %v704
      %v745 = vunpack.c.l.b16 %v705
      %v746 = vunpack.c.h.b16 %v705
      %v747 = vunpack.c.l.b16 %v706
      %v748 = vunpack.c.h.b16 %v706
      %v749 = vunpack.c.l.b16 %v707
      %v750 = vunpack.c.h.b16 %v707
      %v751 = vunpack.c.l.b16 %v708
      %v752 = vunpack.c.h.b16 %v708
      %v753 = vunpack.c.l.b16 %v709
      %v754 = vunpack.c.h.b16 %v709
      %v755 = vpack.c.b16 %v741, %v739
      %v756 = vpack.c.b16 %v742, %v740
      %v757 = vpack.c.b16 %v745, %v743
      %v758 = vpack.c.b16 %v746, %v744
      %v759 = vpack.c.b16 %v749, %v747
      %v760 = vpack.c.b16 %v750, %v748
      %v761 = vpack.c.b16 %v753, %v751
      %v762 = vpack.c.b16 %v754, %v752
      %vm771 = vcmask 523264
      %v773 = vsel %vm771, %v730, 0
      %775 = vmatprep.subr.bf16.mxu0 %v756
      %776 = vmatpush1.bf16.msra.mxu0 %v755
      %777 = vmatprep.subr.bf16.mxu0 %v758
      %778 = vmatpush1.bf16.msra.mxu0 %v757
      %779 = vmatprep.subr.bf16.mxu0 %v760
      %780 = vmatpush1.bf16.msra.mxu0 %v759
      %781 = vmatprep.subr.bf16.mxu0 %v762
      %782 = vmatpush1.bf16.msra.mxu0 %v761
      %783 = vmatprep.subr.bf16.mxu0 0
      %784 = vmatpush1.bf16.msra.mxu0 0
      %785 = vmatprep.subr.bf16.mxu0 0
      %786 = vmatpush1.bf16.msra.mxu0 0
      %787 = vmatprep.subr.bf16.mxu0 0
      %788 = vmatpush1.bf16.msra.mxu0 0
      %789 = vmatprep.subr.bf16.mxu0 0
      %790 = vmatpush1.bf16.msra.mxu0 0
      %791 = vmatprep.subr.bf16.mxu0 0
      %792 = vmatpush1.bf16.msra.mxu0 0
      %793 = vmatprep.subr.bf16.mxu0 0
      %794 = vmatpush1.bf16.msra.mxu0 0
      %795 = vmatprep.subr.bf16.mxu0 0
      %796 = vmatpush1.bf16.msra.mxu0 0
      %797 = vmatprep.subr.bf16.mxu0 0
      %798 = vmatpush1.bf16.msra.mxu0 0
      %799 = vmatprep.subr.bf16.mxu0 0
      %800 = vmatpush1.bf16.msra.mxu0 0
      %801 = vmatprep.subr.bf16.mxu0 0
      %802 = vmatpush1.bf16.msra.mxu0 0
      %803 = vmatprep.subr.bf16.mxu0 0
      %804 = vmatpush1.bf16.msra.mxu0 0
      %805 = vmatprep.subr.bf16.mxu0 0
      %806 = vmatpush1.bf16.msra.mxu0 0
      %807 = vmatprep.mubr.bf16.mxu0 0
      %808 = vmatmul.mubr.bf16.gmra.mrb[0].mxu0 %v773
      %v809 = vpop.f32.mrb[0].mxu0
      %v810 = vadd.f32 0.0, %v809
      %v811 = vpop.f32.mrb[0].mxu0
      %v812 = vadd.f32 0.0, %v811
      %v813 = vpop.f32.mrb[0].mxu0
      %v814 = vadd.f32 0.0, %v813
      %v815 = vpop.f32.mrb[0].mxu0
      %v816 = vadd.f32 0.0, %v815
      %817 = vdwg.mxu0
      %v818 = vmax.f32 %v810, 0.0
      %v819 = vmax.f32 %v812, 0.0
      %v820 = vmax.f32 %v814, 0.0
      %v821 = vmax.f32 %v816, 0.0
      %v822 = vpack.c.bf16 %v820, %v818
      %v823 = vpack.c.bf16 %v821, %v819
      %v824 = vld [vmem:[%s540] sm:$0xf]
      %v825 = vld [vmem:[%s540 + $0x4] sm:$0xf]
      %v826 = vld [vmem:[%s540 + $0x8] sm:$0xf]
      %v827 = vld [vmem:[%s540 + $0xc] sm:$0xf]
      %v828 = vld [vmem:[%s540 + $0x10] sm:$0xf]
      %v829 = vld [vmem:[%s540 + $0x14] sm:$0xf]
      %v830 = vld [vmem:[%s540 + $0x18] sm:$0xf]
      %v831 = vld [vmem:[%s540 + $0x1c] sm:$0xf]
      %v832 = vld [vmem:[%s540 + $0x20] sm:$0xf]
      %v833 = vld [vmem:[%s540 + $0x24] sm:$0xf]
      %v834 = vld [vmem:[%s540 + $0x28] sm:$0xf]
      %v835 = vld [vmem:[%s540 + $0x2c] sm:$0xf]
      %v836 = vld [vmem:[%s540 + $0x30] sm:$0xf]
      %v837 = vld [vmem:[%s540 + $0x34] sm:$0xf]
      %v838 = vld [vmem:[%s540 + $0x38] sm:$0xf]
      %v839 = vld [vmem:[%s540 + $0x3c] sm:$0xf]
      %v840 = vld [vmem:[%s540 + $0x40] sm:$0xf]
      %v841 = vld [vmem:[%s540 + $0x44] sm:$0xf]
      %v842 = vld [vmem:[%s540 + $0x48] sm:$0xf]
      %v843 = vld [vmem:[%s540 + $0x4c] sm:$0xf]
      %v844 = vld [vmem:[%s540 + $0x50] sm:$0xf]
      %v845 = vld [vmem:[%s540 + $0x54] sm:$0xf]
      %v846 = vld [vmem:[%s540 + $0x58] sm:$0xf]
      %v847 = vld [vmem:[%s540 + $0x5c] sm:$0xf]
      %v848 = vld [vmem:[%s540 + $0x60] sm:$0xf]
      %v849 = vld [vmem:[%s540 + $0x64] sm:$0xf]
      %v850 = vld [vmem:[%s540 + $0x68] sm:$0xf]
      %v851 = vld [vmem:[%s540 + $0x6c] sm:$0xf]
      %v852 = vld [vmem:[%s540 + $0x70] sm:$0xf]
      %v853 = vld [vmem:[%s540 + $0x74] sm:$0xf]
      %v854 = vld [vmem:[%s540 + $0x78] sm:$0xf]
      %v855 = vld [vmem:[%s540 + $0x7c] sm:$0xf]
      %v856 = vunpack.c.l.bf16 %v572
      %v857 = vunpack.c.l.bf16 %v573
      %v858 = vunpack.c.l.bf16 %v574
      %v859 = vunpack.c.l.bf16 %v575
      %v864 = vcombine.low %v856, %v857
      %v865 = vcombine.low %v858, %v859
      %v868 = vsel %vm771, %v864, 0.0
      %v869 = vsel %vm771, %v865, 0.0
      %v870 = vadd.f32 %v868, %v869
      %v871 = vrot.slane %v870, 4
      %v872 = vadd.f32 %v870, %v871
      %v873 = vrot.slane %v872, 2
      %v874 = vadd.f32 %v872, %v873
      %v875 = vrot.slane %v874, 1
      %v876 = vadd.f32 %v874, %v875
      %v877 = vrcp.pop 16.0
      %v878 = vmul.f32 %v876, %v877
      %v879 = vpack.c.bf16 %v878, %v878
      %v880 = vld [vmem:[%s535] sm:$0xf]
      %v881 = vld [vmem:[%s535 + $0x4] sm:$0xf]
      %v882 = vld [vmem:[%s535 + $0x8] sm:$0xf]
      %v883 = vld [vmem:[%s535 + $0xc] sm:$0xf]
      %v884 = vld [vmem:[%s535 + $0x10] sm:$0xf]
      %v885 = vld [vmem:[%s535 + $0x14] sm:$0xf]
      %v886 = vld [vmem:[%s535 + $0x18] sm:$0xf]
      %v887 = vld [vmem:[%s535 + $0x1c] sm:$0xf]
      %v896 = vunpack.c.l.b16 %v880
      %v897 = vunpack.c.l.b16 %v881
      %v898 = vunpack.c.l.b16 %v882
      %v899 = vunpack.c.l.b16 %v883
      %v900 = vunpack.c.l.b16 %v884
      %v901 = vunpack.c.l.b16 %v885
      %v902 = vunpack.c.l.b16 %v886
      %v903 = vunpack.c.l.b16 %v887
      %v904 = vpack.c.b16 %v897, %v896
      %v905 = vpack.c.b16 %v899, %v898
      %v906 = vpack.c.b16 %v901, %v900
      %v907 = vpack.c.b16 %v903, %v902
      %v913 = vsel %vm771, %v879, 0
      %915 = vmatprep.subr.bf16.mxu0 0
      %916 = vmatpush1.bf16.msra.mxu0 %v904
      %917 = vmatprep.subr.bf16.mxu0 0
      %918 = vmatpush1.bf16.msra.mxu0 %v905
      %919 = vmatprep.subr.bf16.mxu0 0
      %920 = vmatpush1.bf16.msra.mxu0 %v906
      %921 = vmatprep.subr.bf16.mxu0 0
      %922 = vmatpush1.bf16.msra.mxu0 %v907
      %923 = vmatprep.subr.bf16.mxu0 0
      %924 = vmatpush1.bf16.msra.mxu0 0
      %925 = vmatprep.subr.bf16.mxu0 0
      %926 = vmatpush1.bf16.msra.mxu0 0
      %927 = vmatprep.subr.bf16.mxu0 0
      %928 = vmatpush1.bf16.msra.mxu0 0
      %929 = vmatprep.subr.bf16.mxu0 0
      %930 = vmatpush1.bf16.msra.mxu0 0
      %931 = vmatprep.subr.bf16.mxu0 0
      %932 = vmatpush1.bf16.msra.mxu0 0
      %933 = vmatprep.subr.bf16.mxu0 0
      %934 = vmatpush1.bf16.msra.mxu0 0
      %935 = vmatprep.subr.bf16.mxu0 0
      %936 = vmatpush1.bf16.msra.mxu0 0
      %937 = vmatprep.subr.bf16.mxu0 0
      %938 = vmatpush1.bf16.msra.mxu0 0
      %939 = vmatprep.subr.bf16.mxu0 0
      %940 = vmatpush1.bf16.msra.mxu0 0
      %941 = vmatprep.subr.bf16.mxu0 0
      %942 = vmatpush1.bf16.msra.mxu0 0
      %943 = vmatprep.subr.bf16.mxu0 0
      %944 = vmatpush1.bf16.msra.mxu0 0
      %945 = vmatprep.subr.bf16.mxu0 0
      %946 = vmatpush1.bf16.msra.mxu0 0
      %947 = vmatprep.mubr.bf16.mxu0 0
      %948 = vmatmul.mubr.bf16.gmra.mrb[0].mxu0 %v913
      %v949 = vpop.f32.mrb[0].mxu0
      %v950 = vadd.f32 0.0, %v949
      %v951 = vpop.f32.mrb[0].mxu0
      %v952 = vpop.f32.mrb[0].mxu0
      %v953 = vpop.f32.mrb[0].mxu0
      %954 = vdwg.mxu0
      %v955 = vmax.f32 %v950, 0.0
      %v956 = vpack.c.bf16 %v955, %v955
      %v957 = vld [vmem:[%s540 + $0x80] sm:$0xf]
      %v958 = vld [vmem:[%s540 + $0x84] sm:$0xf]
      %v959 = vld [vmem:[%s540 + $0x88] sm:$0xf]
      %v960 = vld [vmem:[%s540 + $0x8c] sm:$0xf]
      %v961 = vld [vmem:[%s540 + $0x90] sm:$0xf]
      %v962 = vld [vmem:[%s540 + $0x94] sm:$0xf]
      %v963 = vld [vmem:[%s540 + $0x98] sm:$0xf]
      %v964 = vld [vmem:[%s540 + $0x9c] sm:$0xf]
      %v973 = vunpack.c.l.b16 %v957
      %v974 = vunpack.c.l.b16 %v958
      %v975 = vunpack.c.l.b16 %v959
      %v976 = vunpack.c.l.b16 %v960
      %v977 = vunpack.c.l.b16 %v961
      %v978 = vunpack.c.l.b16 %v962
      %v979 = vunpack.c.l.b16 %v963
      %v980 = vunpack.c.l.b16 %v964
      %v981 = vpack.c.b16 %v974, %v973
      %v982 = vpack.c.b16 %v976, %v975
      %v983 = vpack.c.b16 %v978, %v977
      %v984 = vpack.c.b16 %v980, %v979
      %v990 = vsel %vm771, %v956, 0
      %992 = vmatprep.subr.bf16.mxu0 0
      %993 = vmatpush1.bf16.msra.mxu0 %v981
      %994 = vmatprep.subr.bf16.mxu0 0
      %995 = vmatpush1.bf16.msra.mxu0 %v982
      %996 = vmatprep.subr.bf16.mxu0 0
      %997 = vmatpush1.bf16.msra.mxu0 %v983
      %998 = vmatprep.subr.bf16.mxu0 0
      %999 = vmatpush1.bf16.msra.mxu0 %v984
      %1000 = vmatprep.subr.bf16.mxu0 0
      %1001 = vmatpush1.bf16.msra.mxu0 0
      %1002 = vmatprep.subr.bf16.mxu0 0
      %1003 = vmatpush1.bf16.msra.mxu0 0
      %1004 = vmatprep.subr.bf16.mxu0 0
      %1005 = vmatpush1.bf16.msra.mxu0 0
      %1006 = vmatprep.subr.bf16.mxu0 0
      %1007 = vmatpush1.bf16.msra.mxu0 0
      %1008 = vmatprep.subr.bf16.mxu0 0
      %1009 = vmatpush1.bf16.msra.mxu0 0
      %1010 = vmatprep.subr.bf16.mxu0 0
      %1011 = vmatpush1.bf16.msra.mxu0 0
      %1012 = vmatprep.subr.bf16.mxu0 0
      %1013 = vmatpush1.bf16.msra.mxu0 0
      %1014 = vmatprep.subr.bf16.mxu0 0
      %1015 = vmatpush1.bf16.msra.mxu0 0
      %1016 = vmatprep.subr.bf16.mxu0 0
      %1017 = vmatpush1.bf16.msra.mxu0 0
      %1018 = vmatprep.subr.bf16.mxu0 0
      %1019 = vmatpush1.bf16.msra.mxu0 0
      %1020 = vmatprep.subr.bf16.mxu0 0
      %1021 = vmatpush1.bf16.msra.mxu0 0
      %1022 = vmatprep.subr.bf16.mxu0 0
      %1023 = vmatpush1.bf16.msra.mxu0 0
      %1024 = vmatprep.mubr.bf16.mxu0 0
      %1025 = vmatmul.mubr.bf16.gmra.mrb[0].mxu0 %v990
      %v1026 = vpop.f32.mrb[0].mxu0
      %v1027 = vadd.f32 0.0, %v1026
      %v1028 = vpop.f32.mrb[0].mxu0
      %v1029 = vpop.f32.mrb[0].mxu0
      %v1030 = vpop.f32.mrb[0].mxu0
      %1031 = vdwg.mxu0
      %v1032 = vlaneseq
      %v1033 = vshrl.u32 %v1032, 7
      %v1034 = vsub.s32 0, %v1033
      %v1035 = vrot.slane %v1027, %v1034
      %v1068 = vunpack.c.l.b16 %v824
      %v1069 = vunpack.c.l.b16 %v825
      %v1070 = vunpack.c.l.b16 %v826
      %v1071 = vunpack.c.l.b16 %v827
      %v1072 = vunpack.c.l.b16 %v828
      %v1073 = vunpack.c.l.b16 %v829
      %v1074 = vunpack.c.l.b16 %v830
      %v1075 = vunpack.c.l.b16 %v831
      %v1076 = vunpack.c.l.b16 %v832
      %v1077 = vunpack.c.l.b16 %v833
      %v1078 = vunpack.c.l.b16 %v834
      %v1079 = vunpack.c.l.b16 %v835
      %v1080 = vunpack.c.l.b16 %v836
      %v1081 = vunpack.c.l.b16 %v837
      %v1082 = vunpack.c.l.b16 %v838
      %v1083 = vunpack.c.l.b16 %v839
      %v1084 = vunpack.c.l.b16 %v840
      %v1085 = vunpack.c.l.b16 %v841
      %v1086 = vunpack.c.l.b16 %v842
      %v1087 = vunpack.c.l.b16 %v843
      %v1088 = vunpack.c.l.b16 %v844
      %v1089 = vunpack.c.l.b16 %v845
      %v1090 = vunpack.c.l.b16 %v846
      %v1091 = vunpack.c.l.b16 %v847
      %v1092 = vunpack.c.l.b16 %v848
      %v1093 = vunpack.c.l.b16 %v849
      %v1094 = vunpack.c.l.b16 %v850
      %v1095 = vunpack.c.l.b16 %v851
      %v1096 = vunpack.c.l.b16 %v852
      %v1097 = vunpack.c.l.b16 %v853
      %v1098 = vunpack.c.l.b16 %v854
      %v1099 = vunpack.c.l.b16 %v855
      %v1100 = vpack.c.b16 %v1069, %v1068
      %v1101 = vpack.c.b16 %v1071, %v1070
      %v1102 = vpack.c.b16 %v1073, %v1072
      %v1103 = vpack.c.b16 %v1075, %v1074
      %v1104 = vpack.c.b16 %v1077, %v1076
      %v1105 = vpack.c.b16 %v1079, %v1078
      %v1106 = vpack.c.b16 %v1081, %v1080
      %v1107 = vpack.c.b16 %v1083, %v1082
      %v1108 = vpack.c.b16 %v1085, %v1084
      %v1109 = vpack.c.b16 %v1087, %v1086
      %v1110 = vpack.c.b16 %v1089, %v1088
      %v1111 = vpack.c.b16 %v1091, %v1090
      %v1112 = vpack.c.b16 %v1093, %v1092
      %v1113 = vpack.c.b16 %v1095, %v1094
      %v1114 = vpack.c.b16 %v1097, %v1096
      %v1115 = vpack.c.b16 %v1099, %v1098
      %1132 = vmatprep.subr.bf16.mxu0 0
      %1133 = vmatpush1.bf16.msra.mxu0 %v1100
      %1134 = vmatprep.subr.bf16.mxu0 0
      %1135 = vmatpush1.bf16.msra.mxu0 %v1101
      %1136 = vmatprep.subr.bf16.mxu0 0
      %1137 = vmatpush1.bf16.msra.mxu0 %v1102
      %1138 = vmatprep.subr.bf16.mxu0 0
      %1139 = vmatpush1.bf16.msra.mxu0 %v1103
      %1140 = vmatprep.subr.bf16.mxu0 0
      %1141 = vmatpush1.bf16.msra.mxu0 %v1104
      %1142 = vmatprep.subr.bf16.mxu0 0
      %1143 = vmatpush1.bf16.msra.mxu0 %v1105
      %1144 = vmatprep.subr.bf16.mxu0 0
      %1145 = vmatpush1.bf16.msra.mxu0 %v1106
      %1146 = vmatprep.subr.bf16.mxu0 0
      %1147 = vmatpush1.bf16.msra.mxu0 %v1107
      %1148 = vmatprep.subr.bf16.mxu0 0
      %1149 = vmatpush1.bf16.msra.mxu0 %v1108
      %1150 = vmatprep.subr.bf16.mxu0 0
      %1151 = vmatpush1.bf16.msra.mxu0 %v1109
      %1152 = vmatprep.subr.bf16.mxu0 0
      %1153 = vmatpush1.bf16.msra.mxu0 %v1110
      %1154 = vmatprep.subr.bf16.mxu0 0
      %1155 = vmatpush1.bf16.msra.mxu0 %v1111
      %1156 = vmatprep.subr.bf16.mxu0 0
      %1157 = vmatpush1.bf16.msra.mxu0 %v1112
      %1158 = vmatprep.subr.bf16.mxu0 0
      %1159 = vmatpush1.bf16.msra.mxu0 %v1113
      %1160 = vmatprep.subr.bf16.mxu0 0
      %1161 = vmatpush1.bf16.msra.mxu0 %v1114
      %1162 = vmatprep.subr.bf16.mxu0 0
      %1163 = vmatpush1.bf16.msra.mxu0 %v1115
      %1164 = vmatprep.mubr.bf16.mxu0 %v823
      %1165 = vmatmul.mubr.bf16.gmra.mrb[0].mxu0 %v822
      %v1166 = vpop.f32.mrb[0].mxu0
      %v1167 = vadd.f32 %v1035, %v1166
      %v1168 = vpop.f32.mrb[0].mxu0
      %v1169 = vpop.f32.mrb[0].mxu0
      %v1170 = vadd.f32 %v1035, %v1169
      %v1171 = vpop.f32.mrb[0].mxu0
      %1172 = vdwg.mxu0
      %v1173 = vmax.f32 %v1167, 0.0
      %v1174 = vmax.f32 %v1170, 0.0
      %v1175 = vpack.c.bf16 %v1174, %v1173
      %v1176 = vld [vmem:[%s9] sm:$0xf]
      %v1177 = vld [vmem:[%s9 + $0x4] sm:$0xf]
      %v1178 = vld [vmem:[%s9 + $0x8] sm:$0xf]
      %v1179 = vld [vmem:[%s9 + $0xc] sm:$0xf]
      %v1180 = vld [vmem:[%s9 + $0x10] sm:$0xf]
      %v1181 = vld [vmem:[%s9 + $0x14] sm:$0xf]
      %v1182 = vld [vmem:[%s9 + $0x18] sm:$0xf]
      %v1183 = vld [vmem:[%s9 + $0x1c] sm:$0xf]
      %v1192 = vunpack.c.l.b16 %v1176
      %v1193 = vunpack.c.l.b16 %v1177
      %v1194 = vunpack.c.l.b16 %v1178
      %v1195 = vunpack.c.l.b16 %v1179
      %v1196 = vunpack.c.l.b16 %v1180
      %v1197 = vunpack.c.l.b16 %v1181
      %v1198 = vunpack.c.l.b16 %v1182
      %v1199 = vunpack.c.l.b16 %v1183
      %v1200 = vpack.c.b16 %v1193, %v1192
      %v1201 = vpack.c.b16 %v1195, %v1194
      %v1202 = vpack.c.b16 %v1197, %v1196
      %v1203 = vpack.c.b16 %v1199, %v1198
      %vm1204 = vcmask 130048
      %v1206 = vsel %vm1204, %v1200, 0
      %v1209 = vsel %vm1204, %v1201, 0
      %v1212 = vsel %vm1204, %v1202, 0
      %v1215 = vsel %vm1204, %v1203, 0
      %1217 = vmatprep.subr.bf16.mxu0 0
      %1218 = vmatpush1.bf16.msra.mxu0 %v1175
      %1219 = vmatprep.subr.bf16.mxu0 0
      %1220 = vmatpush1.bf16.msra.mxu0 0
      %1221 = vmatprep.subr.bf16.mxu0 0
      %1222 = vmatpush1.bf16.msra.mxu0 0
      %1223 = vmatprep.subr.bf16.mxu0 0
      %1224 = vmatpush1.bf16.msra.mxu0 0
      %1225 = vmatprep.subr.bf16.mxu0 0
      %1226 = vmatpush1.bf16.msra.mxu0 0
      %1227 = vmatprep.subr.bf16.mxu0 0
      %1228 = vmatpush1.bf16.msra.mxu0 0
      %1229 = vmatprep.subr.bf16.mxu0 0
      %1230 = vmatpush1.bf16.msra.mxu0 0
      %1231 = vmatprep.subr.bf16.mxu0 0
      %1232 = vmatpush1.bf16.msra.mxu0 0
      %1233 = vmatprep.subr.bf16.mxu0 0
      %1234 = vmatpush1.bf16.msra.mxu0 0
      %1235 = vmatprep.subr.bf16.mxu0 0
      %1236 = vmatpush1.bf16.msra.mxu0 0
      %1237 = vmatprep.subr.bf16.mxu0 0
      %1238 = vmatpush1.bf16.msra.mxu0 0
      %1239 = vmatprep.subr.bf16.mxu0 0
      %1240 = vmatpush1.bf16.msra.mxu0 0
      %1241 = vmatprep.subr.bf16.mxu0 0
      %1242 = vmatpush1.bf16.msra.mxu0 0
      %1243 = vmatprep.subr.bf16.mxu0 0
      %1244 = vmatpush1.bf16.msra.mxu0 0
      %1245 = vmatprep.subr.bf16.mxu0 0
      %1246 = vmatpush1.bf16.msra.mxu0 0
      %1247 = vmatprep.subr.bf16.mxu0 0
      %1248 = vmatpush1.bf16.msra.mxu0 0
      %1249 = vmatprep.mubr.bf16.mxu0 0
      %1250 = vmatmul.mubr.bf16.gmra.mrb[0].mxu0 %v1206
      %v1251 = vpop.f32.mrb[0].mxu0
      %v1252 = vadd.f32 0.0, %v1251
      %v1253 = vpop.f32.mrb[0].mxu0
      %v1254 = vpop.f32.mrb[0].mxu0
      %v1255 = vadd.f32 0.0, %v1254
      %v1256 = vpop.f32.mrb[0].mxu0
      %1257 = vmatprep.mubr.bf16.mxu0 0
      %1258 = vmatmul.mubr.bf16.gmra.mrb[0].mxu0 %v1209
      %v1259 = vpop.f32.mrb[0].mxu0
      %v1260 = vadd.f32 0.0, %v1259
      %v1261 = vpop.f32.mrb[0].mxu0
      %v1262 = vpop.f32.mrb[0].mxu0
      %v1263 = vadd.f32 0.0, %v1262
      %v1264 = vpop.f32.mrb[0].mxu0
      %1265 = vmatprep.mubr.bf16.mxu0 0
      %1266 = vmatmul.mubr.bf16.gmra.mrb[0].mxu0 %v1212
      %v1267 = vpop.f32.mrb[0].mxu0
      %v1268 = vadd.f32 0.0, %v1267
      %v1269 = vpop.f32.mrb[0].mxu0
      %v1270 = vpop.f32.mrb[0].mxu0
      %v1271 = vadd.f32 0.0, %v1270
      %v1272 = vpop.f32.mrb[0].mxu0
      %1273 = vmatprep.mubr.bf16.mxu0 0
      %1274 = vmatmul.mubr.bf16.gmra.mrb[0].mxu0 %v1215
      %v1275 = vpop.f32.mrb[0].mxu0
      %v1276 = vadd.f32 0.0, %v1275
      %v1277 = vpop.f32.mrb[0].mxu0
      %v1278 = vpop.f32.mrb[0].mxu0
      %v1279 = vadd.f32 0.0, %v1278
      %v1280 = vpop.f32.mrb[0].mxu0
      %1281 = vdwg.mxu0
      %v1282 = vpack.c.bf16 %v1255, %v1252
      %v1283 = vpack.c.bf16 %v1263, %v1260
      %v1284 = vpack.c.bf16 %v1271, %v1268
      %v1285 = vpack.c.bf16 %v1279, %v1276
      %1290 = vrot.lane.b32.xlu0 %v1282, 32
      %v1291 = vpop.permute.xlu0 %1290
      %1292 = vrot.lane.b32.xlu0 %v1283, 32
      %v1293 = vpop.permute.xlu0 %1292
      %1294 = vrot.lane.b32.xlu0 %v1284, 32
      %v1295 = vpop.permute.xlu0 %1294
      %1296 = vrot.lane.b32.xlu0 %v1285, 32
      %v1297 = vpop.permute.xlu0 %1296
      %v1300 = vsel %vm612, %v698, %v1291
      %v1303 = vsel %vm612, %v699, %v1293
      %v1306 = vsel %vm612, %v700, %v1295
      %v1309 = vsel %vm612, %v701, %v1297
      %v1314 = vunpack.c.l.b16 %v1300
      %v1315 = vunpack.c.h.b16 %v1300
      %v1316 = vunpack.c.l.b16 %v1303
      %v1317 = vunpack.c.h.b16 %v1303
      %v1318 = vunpack.c.l.b16 %v1306
      %v1319 = vunpack.c.h.b16 %v1306
      %v1320 = vunpack.c.l.b16 %v1309
      %v1321 = vunpack.c.h.b16 %v1309
      %v1322 = vpack.c.b16 %v1314, %v1314
      %v1323 = vpack.c.b16 %v1315, %v1315
      %v1324 = vpack.c.b16 %v1316, %v1316
      %v1325 = vpack.c.b16 %v1317, %v1317
      %v1326 = vpack.c.b16 %v1318, %v1318
      %v1327 = vpack.c.b16 %v1319, %v1319
      %v1328 = vpack.c.b16 %v1320, %v1320
      %v1329 = vpack.c.b16 %v1321, %v1321
      %v1331 = vunpack.c.l.s4 1966171168
      %v1332 = vunpack.c.0.s8 %v1331
      %v1333 = vlaneseq
      %v1334 = vshrl.u32 %v1333, 7
      %v1335 = vsub.s32 %v1332, %v1334
      %v1336 = vrot.slane %v1322, %v1335
      %v1337 = vcombine.high %v1336, %v1336
      %v1339 = vunpack.c.l.s4 1966171168
      %v1340 = vunpack.c.0.s8 %v1339
      %v1341 = vlaneseq
      %v1342 = vshrl.u32 %v1341, 7
      %v1343 = vsub.s32 %v1340, %v1342
      %v1344 = vrot.slane %v1336, %v1343
      %v1346 = vunpack.c.l.s4 1966171168
      %v1347 = vunpack.c.0.s8 %v1346
      %v1348 = vlaneseq
      %v1349 = vshrl.u32 %v1348, 7
      %v1350 = vsub.s32 %v1347, %v1349
      %v1351 = vrot.slane %v1337, %v1350
      %v1352 = vcombine.high %v1344, %v1344
      %v1353 = vcombine.high %v1351, %v1351
      %v1355 = vunpack.c.l.s4 1966171168
      %v1356 = vunpack.c.0.s8 %v1355
      %v1357 = vlaneseq
      %v1358 = vshrl.u32 %v1357, 7
      %v1359 = vsub.s32 %v1356, %v1358
      %v1360 = vrot.slane %v1323, %v1359
      %v1361 = vcombine.high %v1360, %v1360
      %v1363 = vunpack.c.l.s4 1966171168
      %v1364 = vunpack.c.0.s8 %v1363
      %v1365 = vlaneseq
      %v1366 = vshrl.u32 %v1365, 7
      %v1367 = vsub.s32 %v1364, %v1366
      %v1368 = vrot.slane %v1360, %v1367
      %v1370 = vunpack.c.l.s4 1966171168
      %v1371 = vunpack.c.0.s8 %v1370
      %v1372 = vlaneseq
      %v1373 = vshrl.u32 %v1372, 7
      %v1374 = vsub.s32 %v1371, %v1373
      %v1375 = vrot.slane %v1361, %v1374
      %v1376 = vcombine.high %v1368, %v1368
      %v1377 = vcombine.high %v1375, %v1375
      %v1379 = vunpack.c.l.s4 1966171168
      %v1380 = vunpack.c.0.s8 %v1379
      %v1381 = vlaneseq
      %v1382 = vshrl.u32 %v1381, 7
      %v1383 = vsub.s32 %v1380, %v1382
      %v1384 = vrot.slane %v1324, %v1383
      %v1385 = vcombine.high %v1384, %v1384
      %v1387 = vunpack.c.l.s4 1966171168
      %v1388 = vunpack.c.0.s8 %v1387
      %v1389 = vlaneseq
      %v1390 = vshrl.u32 %v1389, 7
      %v1391 = vsub.s32 %v1388, %v1390
      %v1392 = vrot.slane %v1384, %v1391
      %v1394 = vunpack.c.l.s4 1966171168
      %v1395 = vunpack.c.0.s8 %v1394
      %v1396 = vlaneseq
      %v1397 = vshrl.u32 %v1396, 7
      %v1398 = vsub.s32 %v1395, %v1397
      %v1399 = vrot.slane %v1385, %v1398
      %v1400 = vcombine.high %v1392, %v1392
      %v1401 = vcombine.high %v1399, %v1399
      %v1403 = vunpack.c.l.s4 1966171168
      %v1404 = vunpack.c.0.s8 %v1403
      %v1405 = vlaneseq
      %v1406 = vshrl.u32 %v1405, 7
      %v1407 = vsub.s32 %v1404, %v1406
      %v1408 = vrot.slane %v1325, %v1407
      %v1409 = vcombine.high %v1408, %v1408
      %v1411 = vunpack.c.l.s4 1966171168
      %v1412 = vunpack.c.0.s8 %v1411
      %v1413 = vlaneseq
      %v1414 = vshrl.u32 %v1413, 7
      %v1415 = vsub.s32 %v1412, %v1414
      %v1416 = vrot.slane %v1408, %v1415
      %v1418 = vunpack.c.l.s4 1966171168
      %v1419 = vunpack.c.0.s8 %v1418
      %v1420 = vlaneseq
      %v1421 = vshrl.u32 %v1420, 7
      %v1422 = vsub.s32 %v1419, %v1421
      %v1423 = vrot.slane %v1409, %v1422
      %v1424 = vcombine.high %v1416, %v1416
      %v1425 = vcombine.high %v1423, %v1423
      %v1427 = vunpack.c.l.s4 1966171168
      %v1428 = vunpack.c.0.s8 %v1427
      %v1429 = vlaneseq
      %v1430 = vshrl.u32 %v1429, 7
      %v1431 = vsub.s32 %v1428, %v1430
      %v1432 = vrot.slane %v1326, %v1431
      %v1433 = vcombine.high %v1432, %v1432
      %v1435 = vunpack.c.l.s4 1966171168
      %v1436 = vunpack.c.0.s8 %v1435
      %v1437 = vlaneseq
      %v1438 = vshrl.u32 %v1437, 7
      %v1439 = vsub.s32 %v1436, %v1438
      %v1440 = vrot.slane %v1432, %v1439
      %v1442 = vunpack.c.l.s4 1966171168
      %v1443 = vunpack.c.0.s8 %v1442
      %v1444 = vlaneseq
      %v1445 = vshrl.u32 %v1444, 7
      %v1446 = vsub.s32 %v1443, %v1445
      %v1447 = vrot.slane %v1433, %v1446
      %v1448 = vcombine.high %v1440, %v1440
      %v1449 = vcombine.high %v1447, %v1447
      %v1451 = vunpack.c.l.s4 1966171168
      %v1452 = vunpack.c.0.s8 %v1451
      %v1453 = vlaneseq
      %v1454 = vshrl.u32 %v1453, 7
      %v1455 = vsub.s32 %v1452, %v1454
      %v1456 = vrot.slane %v1327, %v1455
      %v1457 = vcombine.high %v1456, %v1456
      %v1459 = vunpack.c.l.s4 1966171168
      %v1460 = vunpack.c.0.s8 %v1459
      %v1461 = vlaneseq
      %v1462 = vshrl.u32 %v1461, 7
      %v1463 = vsub.s32 %v1460, %v1462
      %v1464 = vrot.slane %v1456, %v1463
      %v1466 = vunpack.c.l.s4 1966171168
      %v1467 = vunpack.c.0.s8 %v1466
      %v1468 = vlaneseq
      %v1469 = vshrl.u32 %v1468, 7
      %v1470 = vsub.s32 %v1467, %v1469
      %v1471 = vrot.slane %v1457, %v1470
      %v1472 = vcombine.high %v1464, %v1464
      %v1473 = vcombine.high %v1471, %v1471
      %v1475 = vunpack.c.l.s4 1966171168
      %v1476 = vunpack.c.0.s8 %v1475
      %v1477 = vlaneseq
      %v1478 = vshrl.u32 %v1477, 7
      %v1479 = vsub.s32 %v1476, %v1478
      %v1480 = vrot.slane %v1328, %v1479
      %v1481 = vcombine.high %v1480, %v1480
      %v1483 = vunpack.c.l.s4 1966171168
      %v1484 = vunpack.c.0.s8 %v1483
      %v1485 = vlaneseq
      %v1486 = vshrl.u32 %v1485, 7
      %v1487 = vsub.s32 %v1484, %v1486
      %v1488 = vrot.slane %v1480, %v1487
      %v1490 = vunpack.c.l.s4 1966171168
      %v1491 = vunpack.c.0.s8 %v1490
      %v1492 = vlaneseq
      %v1493 = vshrl.u32 %v1492, 7
      %v1494 = vsub.s32 %v1491, %v1493
      %v1495 = vrot.slane %v1481, %v1494
      %v1496 = vcombine.high %v1488, %v1488
      %v1497 = vcombine.high %v1495, %v1495
      %v1498 = vunpack.i.l.s16 %v1344
      %v1499 = vunpack.i.h.s16 %v1344
      %v1500 = vunpack.i.l.s16 %v1351
      %v1501 = vunpack.i.h.s16 %v1351
      %v1502 = vunpack.i.l.s16 %v1352
      %v1503 = vunpack.i.h.s16 %v1352
      %v1504 = vunpack.i.l.s16 %v1353
      %v1505 = vunpack.i.l.s16 %v1368
      %v1506 = vunpack.i.h.s16 %v1368
      %v1507 = vunpack.i.l.s16 %v1375
      %v1508 = vunpack.i.h.s16 %v1375
      %v1509 = vunpack.i.l.s16 %v1376
      %v1510 = vunpack.i.h.s16 %v1376
      %v1511 = vunpack.i.l.s16 %v1377
      %v1512 = vunpack.i.l.s16 %v1392
      %v1513 = vunpack.i.h.s16 %v1392
      %v1514 = vunpack.i.l.s16 %v1399
      %v1515 = vunpack.i.h.s16 %v1399
      %v1516 = vunpack.i.l.s16 %v1400
      %v1517 = vunpack.i.h.s16 %v1400
      %v1518 = vunpack.i.l.s16 %v1401
      %v1519 = vunpack.i.l.s16 %v1416
      %v1520 = vunpack.i.h.s16 %v1416
      %v1521 = vunpack.i.l.s16 %v1423
      %v1522 = vunpack.i.h.s16 %v1423
      %v1523 = vunpack.i.l.s16 %v1424
      %v1524 = vunpack.i.h.s16 %v1424
      %v1525 = vunpack.i.l.s16 %v1425
      %v1526 = vunpack.i.l.s16 %v1440
      %v1527 = vunpack.i.h.s16 %v1440
      %v1528 = vunpack.i.l.s16 %v1447
      %v1529 = vunpack.i.h.s16 %v1447
      %v1530 = vunpack.i.l.s16 %v1448
      %v1531 = vunpack.i.h.s16 %v1448
      %v1532 = vunpack.i.l.s16 %v1449
      %v1533 = vunpack.i.l.s16 %v1464
      %v1534 = vunpack.i.h.s16 %v1464
      %v1535 = vunpack.i.l.s16 %v1471
      %v1536 = vunpack.i.h.s16 %v1471
      %v1537 = vunpack.i.l.s16 %v1472
      %v1538 = vunpack.i.h.s16 %v1472
      %v1539 = vunpack.i.l.s16 %v1473
      %v1540 = vunpack.i.l.s16 %v1488
      %v1541 = vunpack.i.h.s16 %v1488
      %v1542 = vunpack.i.l.s16 %v1495
      %v1543 = vunpack.i.h.s16 %v1495
      %v1544 = vunpack.i.l.s16 %v1496
      %v1545 = vunpack.i.h.s16 %v1496
      %v1546 = vunpack.i.l.s16 %v1497
      %v1547 = vld [vmem:[%s545] sm:$0xf]
      %v1548 = vld [vmem:[%s545 + $0x4] sm:$0xf]
      %v1549 = vld [vmem:[%s545 + $0x8] sm:$0xf]
      %v1550 = vld [vmem:[%s545 + $0xc] sm:$0xf]
      %v1551 = vld [vmem:[%s545 + $0x10] sm:$0xf]
      %v1552 = vld [vmem:[%s545 + $0x14] sm:$0xf]
      %v1553 = vld [vmem:[%s545 + $0x18] sm:$0xf]
      %v1554 = vld [vmem:[%s545 + $0x1c] sm:$0xf]
      %v1555 = vld [vmem:[%s545 + $0x20] sm:$0xf]
      %v1556 = vld [vmem:[%s545 + $0x24] sm:$0xf]
      %v1557 = vld [vmem:[%s545 + $0x28] sm:$0xf]
      %v1558 = vld [vmem:[%s545 + $0x2c] sm:$0xf]
      %v1559 = vpack.i.b16 %v1499, %v1498
      %v1560 = vpack.i.b16 %v1501, %v1500
      %v1561 = vpack.i.b16 %v1503, %v1502
      %v1562 = vpack.i.b16 %v1505, %v1504
      %v1563 = vpack.i.b16 %v1507, %v1506
      %v1564 = vpack.i.b16 %v1509, %v1508
      %v1565 = vpack.i.b16 %v1511, %v1510
      %v1566 = vpack.i.b16 %v1513, %v1512
      %v1567 = vpack.i.b16 %v1515, %v1514
      %v1568 = vpack.i.b16 %v1517, %v1516
      %v1569 = vpack.i.b16 %v1519, %v1518
      %v1570 = vpack.i.b16 %v1521, %v1520
      %v1571 = vpack.i.b16 %v1523, %v1522
      %v1572 = vpack.i.b16 %v1525, %v1524
      %v1573 = vpack.i.b16 %v1527, %v1526
      %v1574 = vpack.i.b16 %v1529, %v1528
      %v1575 = vpack.i.b16 %v1531, %v1530
      %v1576 = vpack.i.b16 %v1533, %v1532
      %v1577 = vpack.i.b16 %v1535, %v1534
      %v1578 = vpack.i.b16 %v1537, %v1536
      %v1579 = vpack.i.b16 %v1539, %v1538
      %v1580 = vpack.i.b16 %v1541, %v1540
      %v1581 = vpack.i.b16 %v1543, %v1542
      %v1582 = vpack.i.b16 %v1545, %v1544
      %v1584 = vcombine.low %v1559, %v1560
      %v1585 = vcombine.low %v1561, %v1562
      %v1586 = vcombine.low %v1563, %v1564
      %v1587 = vcombine.low %v1565, %v1566
      %v1589 = vunpack.c.l.s4 1966171168
      %v1590 = vunpack.c.0.s8 %v1589
      %v1591 = vlaneseq
      %v1592 = vshrl.u32 %v1591, 7
      %v1593 = vsub.s32 %v1590, %v1592
      %v1594 = vrot.slane %v1584, %v1593
      %v1596 = vunpack.c.l.s4 1966171168
      %v1597 = vunpack.c.0.s8 %v1596
      %v1598 = vlaneseq
      %v1599 = vshrl.u32 %v1598, 7
      %v1600 = vsub.s32 %v1597, %v1599
      %v1601 = vrot.slane %v1585, %v1600
      %v1603 = vunpack.c.l.s4 1966171168
      %v1604 = vunpack.c.0.s8 %v1603
      %v1605 = vlaneseq
      %v1606 = vshrl.u32 %v1605, 7
      %v1607 = vsub.s32 %v1604, %v1606
      %v1608 = vrot.slane %v1586, %v1607
      %v1610 = vunpack.c.l.s4 1966171168
      %v1611 = vunpack.c.0.s8 %v1610
      %v1612 = vlaneseq
      %v1613 = vshrl.u32 %v1612, 7
      %v1614 = vsub.s32 %v1611, %v1613
      %v1615 = vrot.slane %v1587, %v1614
      %v1616 = vcombine.low %v1594, %v1601
      %v1617 = vcombine.low %v1608, %v1615
      %v1619 = vunpack.c.l.s4 1966171168
      %v1620 = vunpack.c.0.s8 %v1619
      %v1621 = vlaneseq
      %v1622 = vshrl.u32 %v1621, 7
      %v1623 = vsub.s32 %v1620, %v1622
      %v1624 = vrot.slane %v1616, %v1623
      %v1626 = vunpack.c.l.s4 1966171168
      %v1627 = vunpack.c.0.s8 %v1626
      %v1628 = vlaneseq
      %v1629 = vshrl.u32 %v1628, 7
      %v1630 = vsub.s32 %v1627, %v1629
      %v1631 = vrot.slane %v1617, %v1630
      %v1632 = vcombine.low %v1624, %v1631
      %v1633 = vcombine.low %v1567, %v1568
      %v1634 = vcombine.low %v1569, %v1570
      %v1635 = vcombine.low %v1571, %v1572
      %v1636 = vcombine.low %v1573, %v1574
      %v1638 = vunpack.c.l.s4 1966171168
      %v1639 = vunpack.c.0.s8 %v1638
      %v1640 = vlaneseq
      %v1641 = vshrl.u32 %v1640, 7
      %v1642 = vsub.s32 %v1639, %v1641
      %v1643 = vrot.slane %v1633, %v1642
      %v1645 = vunpack.c.l.s4 1966171168
      %v1646 = vunpack.c.0.s8 %v1645
      %v1647 = vlaneseq
      %v1648 = vshrl.u32 %v1647, 7
      %v1649 = vsub.s32 %v1646, %v1648
      %v1650 = vrot.slane %v1634, %v1649
      %v1652 = vunpack.c.l.s4 1966171168
      %v1653 = vunpack.c.0.s8 %v1652
      %v1654 = vlaneseq
      %v1655 = vshrl.u32 %v1654, 7
      %v1656 = vsub.s32 %v1653, %v1655
      %v1657 = vrot.slane %v1635, %v1656
      %v1659 = vunpack.c.l.s4 1966171168
      %v1660 = vunpack.c.0.s8 %v1659
      %v1661 = vlaneseq
      %v1662 = vshrl.u32 %v1661, 7
      %v1663 = vsub.s32 %v1660, %v1662
      %v1664 = vrot.slane %v1636, %v1663
      %v1665 = vcombine.low %v1643, %v1650
      %v1666 = vcombine.low %v1657, %v1664
      %v1668 = vunpack.c.l.s4 1966171168
      %v1669 = vunpack.c.0.s8 %v1668
      %v1670 = vlaneseq
      %v1671 = vshrl.u32 %v1670, 7
      %v1672 = vsub.s32 %v1669, %v1671
      %v1673 = vrot.slane %v1665, %v1672
      %v1675 = vunpack.c.l.s4 1966171168
      %v1676 = vunpack.c.0.s8 %v1675
      %v1677 = vlaneseq
      %v1678 = vshrl.u32 %v1677, 7
      %v1679 = vsub.s32 %v1676, %v1678
      %v1680 = vrot.slane %v1666, %v1679
      %v1681 = vcombine.low %v1673, %v1680
      %v1682 = vcombine.low %v1575, %v1576
      %v1683 = vcombine.low %v1577, %v1578
      %v1684 = vcombine.low %v1579, %v1580
      %v1685 = vcombine.low %v1581, %v1582
      %v1687 = vunpack.c.l.s4 1966171168
      %v1688 = vunpack.c.0.s8 %v1687
      %v1689 = vlaneseq
      %v1690 = vshrl.u32 %v1689, 7
      %v1691 = vsub.s32 %v1688, %v1690
      %v1692 = vrot.slane %v1682, %v1691
      %v1694 = vunpack.c.l.s4 1966171168
      %v1695 = vunpack.c.0.s8 %v1694
      %v1696 = vlaneseq
      %v1697 = vshrl.u32 %v1696, 7
      %v1698 = vsub.s32 %v1695, %v1697
      %v1699 = vrot.slane %v1683, %v1698
      %v1701 = vunpack.c.l.s4 1966171168
      %v1702 = vunpack.c.0.s8 %v1701
      %v1703 = vlaneseq
      %v1704 = vshrl.u32 %v1703, 7
      %v1705 = vsub.s32 %v1702, %v1704
      %v1706 = vrot.slane %v1684, %v1705
      %v1708 = vunpack.c.l.s4 1966171168
      %v1709 = vunpack.c.0.s8 %v1708
      %v1710 = vlaneseq
      %v1711 = vshrl.u32 %v1710, 7
      %v1712 = vsub.s32 %v1709, %v1711
      %v1713 = vrot.slane %v1685, %v1712
      %v1714 = vcombine.low %v1692, %v1699
      %v1715 = vcombine.low %v1706, %v1713
      %v1717 = vunpack.c.l.s4 1966171168
      %v1718 = vunpack.c.0.s8 %v1717
      %v1719 = vlaneseq
      %v1720 = vshrl.u32 %v1719, 7
      %v1721 = vsub.s32 %v1718, %v1720
      %v1722 = vrot.slane %v1714, %v1721
      %v1724 = vunpack.c.l.s4 1966171168
      %v1725 = vunpack.c.0.s8 %v1724
      %v1726 = vlaneseq
      %v1727 = vshrl.u32 %v1726, 7
      %v1728 = vsub.s32 %v1725, %v1727
      %v1729 = vrot.slane %v1715, %v1728
      %v1730 = vcombine.low %v1722, %v1729
      %v1732 = vunpack.c.l.s4 1966171168
      %v1733 = vunpack.c.0.s8 %v1732
      %v1734 = vlaneseq
      %v1735 = vshrl.u32 %v1734, 7
      %v1736 = vsub.s32 %v1733, %v1735
      %v1737 = vrot.slane %v1546, %v1736
      %v1739 = vunpack.c.l.s4 1966171168
      %v1740 = vunpack.c.0.s8 %v1739
      %v1741 = vlaneseq
      %v1742 = vshrl.u32 %v1741, 7
      %v1743 = vsub.s32 %v1740, %v1742
      %v1744 = vrot.slane %v1737, %v1743
      %v1757 = vunpack.c.l.b16 %v1547
      %v1758 = vunpack.c.l.b16 %v1548
      %v1759 = vunpack.c.l.b16 %v1549
      %v1760 = vunpack.c.l.b16 %v1550
      %v1761 = vunpack.c.l.b16 %v1551
      %v1762 = vunpack.c.l.b16 %v1552
      %v1763 = vunpack.c.l.b16 %v1553
      %v1764 = vunpack.c.l.b16 %v1554
      %v1765 = vunpack.c.l.b16 %v1555
      %v1766 = vunpack.c.l.b16 %v1556
      %v1767 = vunpack.c.l.b16 %v1557
      %v1768 = vunpack.c.l.b16 %v1558
      %v1769 = vpack.c.b16 %v1758, %v1757
      %v1770 = vpack.c.b16 %v1760, %v1759
      %v1771 = vpack.c.b16 %v1762, %v1761
      %v1772 = vpack.c.b16 %v1764, %v1763
      %v1773 = vpack.c.b16 %v1766, %v1765
      %v1774 = vpack.c.b16 %v1768, %v1767
      %vm1781 = vcmask 785408
      %v1783 = vsel %vm1781, %v1632, 0
      %v1786 = vsel %vm1781, %v1681, 0
      %v1789 = vsel %vm1781, %v1730, 0
      %v1792 = vsel %vm1781, %v1744, 0
      %1794 = vmatprep.subr.bf16.mxu0 0
      %1795 = vmatpush1.bf16.msra.mxu0 %v1769
      %1796 = vmatprep.subr.bf16.mxu0 0
      %1797 = vmatpush1.bf16.msra.mxu0 %v1770
      %1798 = vmatprep.subr.bf16.mxu0 0
      %1799 = vmatpush1.bf16.msra.mxu0 %v1771
      %1800 = vmatprep.subr.bf16.mxu0 0
      %1801 = vmatpush1.bf16.msra.mxu0 %v1772
      %1802 = vmatprep.subr.bf16.mxu0 0
      %1803 = vmatpush1.bf16.msra.mxu0 %v1773
      %1804 = vmatprep.subr.bf16.mxu0 0
      %1805 = vmatpush1.bf16.msra.mxu0 %v1774
      %1806 = vmatprep.subr.bf16.mxu0 0
      %1807 = vmatpush1.bf16.msra.mxu0 0
      %1808 = vmatprep.subr.bf16.mxu0 0
      %1809 = vmatpush1.bf16.msra.mxu0 0
      %1810 = vmatprep.subr.bf16.mxu0 0
      %1811 = vmatpush1.bf16.msra.mxu0 0
      %1812 = vmatprep.subr.bf16.mxu0 0
      %1813 = vmatpush1.bf16.msra.mxu0 0
      %1814 = vmatprep.subr.bf16.mxu0 0
      %1815 = vmatpush1.bf16.msra.mxu0 0
      %1816 = vmatprep.subr.bf16.mxu0 0
      %1817 = vmatpush1.bf16.msra.mxu0 0
      %1818 = vmatprep.subr.bf16.mxu0 0
      %1819 = vmatpush1.bf16.msra.mxu0 0
      %1820 = vmatprep.subr.bf16.mxu0 0
      %1821 = vmatpush1.bf16.msra.mxu0 0
      %1822 = vmatprep.subr.bf16.mxu0 0
      %1823 = vmatpush1.bf16.msra.mxu0 0
      %1824 = vmatprep.subr.bf16.mxu0 0
      %1825 = vmatpush1.bf16.msra.mxu0 0
      %1826 = vmatprep.mubr.bf16.mxu0 0
      %1827 = vmatmul.mubr.bf16.gmra.mrb[0].mxu0 %v1783
      %v1828 = vpop.f32.mrb[0].mxu0
      %v1829 = vadd.f32 0.0, %v1828
      %v1830 = vpop.f32.mrb[0].mxu0
      %v1831 = vpop.f32.mrb[0].mxu0
      %v1832 = vadd.f32 0.0, %v1831
      %v1833 = vpop.f32.mrb[0].mxu0
      %1834 = vmatprep.mubr.bf16.mxu0 0
      %1835 = vmatmul.mubr.bf16.gmra.mrb[0].mxu0 %v1786
      %v1836 = vpop.f32.mrb[0].mxu0
      %v1837 = vadd.f32 0.0, %v1836
      %v1838 = vpop.f32.mrb[0].mxu0
      %v1839 = vpop.f32.mrb[0].mxu0
      %v1840 = vadd.f32 0.0, %v1839
      %v1841 = vpop.f32.mrb[0].mxu0
      %1842 = vmatprep.mubr.bf16.mxu0 0
      %1843 = vmatmul.mubr.bf16.gmra.mrb[0].mxu0 %v1789
      %v1844 = vpop.f32.mrb[0].mxu0
      %v1845 = vadd.f32 0.0, %v1844
      %v1846 = vpop.f32.mrb[0].mxu0
      %v1847 = vpop.f32.mrb[0].mxu0
      %v1848 = vadd.f32 0.0, %v1847
      %v1849 = vpop.f32.mrb[0].mxu0
      %1850 = vmatprep.mubr.bf16.mxu0 0
      %1851 = vmatmul.mubr.bf16.gmra.mrb[0].mxu0 %v1792
      %v1852 = vpop.f32.mrb[0].mxu0
      %v1853 = vadd.f32 0.0, %v1852
      %v1854 = vpop.f32.mrb[0].mxu0
      %v1855 = vpop.f32.mrb[0].mxu0
      %v1856 = vpop.f32.mrb[0].mxu0
      %1857 = vdwg.mxu0
      %v1865 = vcombine.high %v1829, %v1829
      %v1867 = vunpack.c.l.s4 1966171168
      %v1868 = vunpack.c.0.s8 %v1867
      %v1869 = vlaneseq
      %v1870 = vshrl.u32 %v1869, 7
      %v1871 = vsub.s32 %v1868, %v1870
      %v1872 = vrot.slane %v1829, %v1871
      %v1874 = vunpack.c.l.s4 1966171168
      %v1875 = vunpack.c.0.s8 %v1874
      %v1876 = vlaneseq
      %v1877 = vshrl.u32 %v1876, 7
      %v1878 = vsub.s32 %v1875, %v1877
      %v1879 = vrot.slane %v1865, %v1878
      %v1880 = vcombine.high %v1872, %v1872
      %v1881 = vcombine.high %v1879, %v1879
      %v1883 = vunpack.c.l.s4 1966171168
      %v1884 = vunpack.c.0.s8 %v1883
      %v1885 = vlaneseq
      %v1886 = vshrl.u32 %v1885, 7
      %v1887 = vsub.s32 %v1884, %v1886
      %v1888 = vrot.slane %v1872, %v1887
      %v1890 = vunpack.c.l.s4 1966171168
      %v1891 = vunpack.c.0.s8 %v1890
      %v1892 = vlaneseq
      %v1893 = vshrl.u32 %v1892, 7
      %v1894 = vsub.s32 %v1891, %v1893
      %v1895 = vrot.slane %v1879, %v1894
      %v1897 = vunpack.c.l.s4 1966171168
      %v1898 = vunpack.c.0.s8 %v1897
      %v1899 = vlaneseq
      %v1900 = vshrl.u32 %v1899, 7
      %v1901 = vsub.s32 %v1898, %v1900
      %v1902 = vrot.slane %v1880, %v1901
      %v1904 = vunpack.c.l.s4 1966171168
      %v1905 = vunpack.c.0.s8 %v1904
      %v1906 = vlaneseq
      %v1907 = vshrl.u32 %v1906, 7
      %v1908 = vsub.s32 %v1905, %v1907
      %v1909 = vrot.slane %v1881, %v1908
      %v1910 = vcombine.high %v1888, %v1888
      %v1911 = vcombine.high %v1895, %v1895
      %v1912 = vcombine.high %v1902, %v1902
      %v1913 = vcombine.high %v1909, %v1909
      %v1914 = vcombine.high %v1832, %v1832
      %v1916 = vunpack.c.l.s4 1966171168
      %v1917 = vunpack.c.0.s8 %v1916
      %v1918 = vlaneseq
      %v1919 = vshrl.u32 %v1918, 7
      %v1920 = vsub.s32 %v1917, %v1919
      %v1921 = vrot.slane %v1832, %v1920
      %v1923 = vunpack.c.l.s4 1966171168
      %v1924 = vunpack.c.0.s8 %v1923
      %v1925 = vlaneseq
      %v1926 = vshrl.u32 %v1925, 7
      %v1927 = vsub.s32 %v1924, %v1926
      %v1928 = vrot.slane %v1914, %v1927
      %v1929 = vcombine.high %v1921, %v1921
      %v1930 = vcombine.high %v1928, %v1928
      %v1932 = vunpack.c.l.s4 1966171168
      %v1933 = vunpack.c.0.s8 %v1932
      %v1934 = vlaneseq
      %v1935 = vshrl.u32 %v1934, 7
      %v1936 = vsub.s32 %v1933, %v1935
      %v1937 = vrot.slane %v1921, %v1936
      %v1939 = vunpack.c.l.s4 1966171168
      %v1940 = vunpack.c.0.s8 %v1939
      %v1941 = vlaneseq
      %v1942 = vshrl.u32 %v1941, 7
      %v1943 = vsub.s32 %v1940, %v1942
      %v1944 = vrot.slane %v1928, %v1943
      %v1946 = vunpack.c.l.s4 1966171168
      %v1947 = vunpack.c.0.s8 %v1946
      %v1948 = vlaneseq
      %v1949 = vshrl.u32 %v1948, 7
      %v1950 = vsub.s32 %v1947, %v1949
      %v1951 = vrot.slane %v1929, %v1950
      %v1953 = vunpack.c.l.s4 1966171168
      %v1954 = vunpack.c.0.s8 %v1953
      %v1955 = vlaneseq
      %v1956 = vshrl.u32 %v1955, 7
      %v1957 = vsub.s32 %v1954, %v1956
      %v1958 = vrot.slane %v1930, %v1957
      %v1959 = vcombine.high %v1937, %v1937
      %v1960 = vcombine.high %v1944, %v1944
      %v1961 = vcombine.high %v1951, %v1951
      %v1962 = vcombine.high %v1958, %v1958
      %v1963 = vcombine.high %v1837, %v1837
      %v1965 = vunpack.c.l.s4 1966171168
      %v1966 = vunpack.c.0.s8 %v1965
      %v1967 = vlaneseq
      %v1968 = vshrl.u32 %v1967, 7
      %v1969 = vsub.s32 %v1966, %v1968
      %v1970 = vrot.slane %v1837, %v1969
      %v1972 = vunpack.c.l.s4 1966171168
      %v1973 = vunpack.c.0.s8 %v1972
      %v1974 = vlaneseq
      %v1975 = vshrl.u32 %v1974, 7
      %v1976 = vsub.s32 %v1973, %v1975
      %v1977 = vrot.slane %v1963, %v1976
      %v1978 = vcombine.high %v1970, %v1970
      %v1979 = vcombine.high %v1977, %v1977
      %v1981 = vunpack.c.l.s4 1966171168
      %v1982 = vunpack.c.0.s8 %v1981
      %v1983 = vlaneseq
      %v1984 = vshrl.u32 %v1983, 7
      %v1985 = vsub.s32 %v1982, %v1984
      %v1986 = vrot.slane %v1970, %v1985
      %v1988 = vunpack.c.l.s4 1966171168
      %v1989 = vunpack.c.0.s8 %v1988
      %v1990 = vlaneseq
      %v1991 = vshrl.u32 %v1990, 7
      %v1992 = vsub.s32 %v1989, %v1991
      %v1993 = vrot.slane %v1977, %v1992
      %v1995 = vunpack.c.l.s4 1966171168
      %v1996 = vunpack.c.0.s8 %v1995
      %v1997 = vlaneseq
      %v1998 = vshrl.u32 %v1997, 7
      %v1999 = vsub.s32 %v1996, %v1998
      %v2000 = vrot.slane %v1978, %v1999
      %v2002 = vunpack.c.l.s4 1966171168
      %v2003 = vunpack.c.0.s8 %v2002
      %v2004 = vlaneseq
      %v2005 = vshrl.u32 %v2004, 7
      %v2006 = vsub.s32 %v2003, %v2005
      %v2007 = vrot.slane %v1979, %v2006
      %v2008 = vcombine.high %v1986, %v1986
      %v2009 = vcombine.high %v1993, %v1993
      %v2010 = vcombine.high %v2000, %v2000
      %v2011 = vcombine.high %v2007, %v2007
      %v2012 = vcombine.high %v1840, %v1840
      %v2014 = vunpack.c.l.s4 1966171168
      %v2015 = vunpack.c.0.s8 %v2014
      %v2016 = vlaneseq
      %v2017 = vshrl.u32 %v2016, 7
      %v2018 = vsub.s32 %v2015, %v2017
      %v2019 = vrot.slane %v1840, %v2018
      %v2021 = vunpack.c.l.s4 1966171168
      %v2022 = vunpack.c.0.s8 %v2021
      %v2023 = vlaneseq
      %v2024 = vshrl.u32 %v2023, 7
      %v2025 = vsub.s32 %v2022, %v2024
      %v2026 = vrot.slane %v2012, %v2025
      %v2027 = vcombine.high %v2019, %v2019
      %v2028 = vcombine.high %v2026, %v2026
      %v2030 = vunpack.c.l.s4 1966171168
      %v2031 = vunpack.c.0.s8 %v2030
      %v2032 = vlaneseq
      %v2033 = vshrl.u32 %v2032, 7
      %v2034 = vsub.s32 %v2031, %v2033
      %v2035 = vrot.slane %v2019, %v2034
      %v2037 = vunpack.c.l.s4 1966171168
      %v2038 = vunpack.c.0.s8 %v2037
      %v2039 = vlaneseq
      %v2040 = vshrl.u32 %v2039, 7
      %v2041 = vsub.s32 %v2038, %v2040
      %v2042 = vrot.slane %v2026, %v2041
      %v2044 = vunpack.c.l.s4 1966171168
      %v2045 = vunpack.c.0.s8 %v2044
      %v2046 = vlaneseq
      %v2047 = vshrl.u32 %v2046, 7
      %v2048 = vsub.s32 %v2045, %v2047
      %v2049 = vrot.slane %v2027, %v2048
      %v2051 = vunpack.c.l.s4 1966171168
      %v2052 = vunpack.c.0.s8 %v2051
      %v2053 = vlaneseq
      %v2054 = vshrl.u32 %v2053, 7
      %v2055 = vsub.s32 %v2052, %v2054
      %v2056 = vrot.slane %v2028, %v2055
      %v2057 = vcombine.high %v2035, %v2035
      %v2058 = vcombine.high %v2042, %v2042
      %v2059 = vcombine.high %v2049, %v2049
      %v2060 = vcombine.high %v2056, %v2056
      %v2061 = vcombine.high %v1845, %v1845
      %v2063 = vunpack.c.l.s4 1966171168
      %v2064 = vunpack.c.0.s8 %v2063
      %v2065 = vlaneseq
      %v2066 = vshrl.u32 %v2065, 7
      %v2067 = vsub.s32 %v2064, %v2066
      %v2068 = vrot.slane %v1845, %v2067
      %v2070 = vunpack.c.l.s4 1966171168
      %v2071 = vunpack.c.0.s8 %v2070
      %v2072 = vlaneseq
      %v2073 = vshrl.u32 %v2072, 7
      %v2074 = vsub.s32 %v2071, %v2073
      %v2075 = vrot.slane %v2061, %v2074
      %v2076 = vcombine.high %v2068, %v2068
      %v2077 = vcombine.high %v2075, %v2075
      %v2079 = vunpack.c.l.s4 1966171168
      %v2080 = vunpack.c.0.s8 %v2079
      %v2081 = vlaneseq
      %v2082 = vshrl.u32 %v2081, 7
      %v2083 = vsub.s32 %v2080, %v2082
      %v2084 = vrot.slane %v2068, %v2083
      %v2086 = vunpack.c.l.s4 1966171168
      %v2087 = vunpack.c.0.s8 %v2086
      %v2088 = vlaneseq
      %v2089 = vshrl.u32 %v2088, 7
      %v2090 = vsub.s32 %v2087, %v2089
      %v2091 = vrot.slane %v2075, %v2090
      %v2093 = vunpack.c.l.s4 1966171168
      %v2094 = vunpack.c.0.s8 %v2093
      %v2095 = vlaneseq
      %v2096 = vshrl.u32 %v2095, 7
      %v2097 = vsub.s32 %v2094, %v2096
      %v2098 = vrot.slane %v2076, %v2097
      %v2100 = vunpack.c.l.s4 1966171168
      %v2101 = vunpack.c.0.s8 %v2100
      %v2102 = vlaneseq
      %v2103 = vshrl.u32 %v2102, 7
      %v2104 = vsub.s32 %v2101, %v2103
      %v2105 = vrot.slane %v2077, %v2104
      %v2106 = vcombine.high %v2084, %v2084
      %v2107 = vcombine.high %v2091, %v2091
      %v2108 = vcombine.high %v2098, %v2098
      %v2109 = vcombine.high %v2105, %v2105
      %v2110 = vcombine.high %v1848, %v1848
      %v2112 = vunpack.c.l.s4 1966171168
      %v2113 = vunpack.c.0.s8 %v2112
      %v2114 = vlaneseq
      %v2115 = vshrl.u32 %v2114, 7
      %v2116 = vsub.s32 %v2113, %v2115
      %v2117 = vrot.slane %v1848, %v2116
      %v2119 = vunpack.c.l.s4 1966171168
      %v2120 = vunpack.c.0.s8 %v2119
      %v2121 = vlaneseq
      %v2122 = vshrl.u32 %v2121, 7
      %v2123 = vsub.s32 %v2120, %v2122
      %v2124 = vrot.slane %v2110, %v2123
      %v2125 = vcombine.high %v2117, %v2117
      %v2126 = vcombine.high %v2124, %v2124
      %v2128 = vunpack.c.l.s4 1966171168
      %v2129 = vunpack.c.0.s8 %v2128
      %v2130 = vlaneseq
      %v2131 = vshrl.u32 %v2130, 7
      %v2132 = vsub.s32 %v2129, %v2131
      %v2133 = vrot.slane %v2117, %v2132
      %v2135 = vunpack.c.l.s4 1966171168
      %v2136 = vunpack.c.0.s8 %v2135
      %v2137 = vlaneseq
      %v2138 = vshrl.u32 %v2137, 7
      %v2139 = vsub.s32 %v2136, %v2138
      %v2140 = vrot.slane %v2124, %v2139
      %v2142 = vunpack.c.l.s4 1966171168
      %v2143 = vunpack.c.0.s8 %v2142
      %v2144 = vlaneseq
      %v2145 = vshrl.u32 %v2144, 7
      %v2146 = vsub.s32 %v2143, %v2145
      %v2147 = vrot.slane %v2125, %v2146
      %v2149 = vunpack.c.l.s4 1966171168
      %v2150 = vunpack.c.0.s8 %v2149
      %v2151 = vlaneseq
      %v2152 = vshrl.u32 %v2151, 7
      %v2153 = vsub.s32 %v2150, %v2152
      %v2154 = vrot.slane %v2126, %v2153
      %v2155 = vcombine.high %v2133, %v2133
      %v2156 = vcombine.high %v2140, %v2140
      %v2157 = vcombine.high %v2147, %v2147
      %v2158 = vcombine.high %v2154, %v2154
      %v2160 = vunpack.c.l.s4 1966171168
      %v2161 = vunpack.c.0.s8 %v2160
      %v2162 = vlaneseq
      %v2163 = vshrl.u32 %v2162, 7
      %v2164 = vsub.s32 %v2161, %v2163
      %v2165 = vrot.slane %v1853, %v2164
      %v2167 = vunpack.c.l.s4 1966171168
      %v2168 = vunpack.c.0.s8 %v2167
      %v2169 = vlaneseq
      %v2170 = vshrl.u32 %v2169, 7
      %v2171 = vsub.s32 %v2168, %v2170
      %v2172 = vrot.slane %v2165, %v2171
      %v2173 = vcombine.low %v1888, %v1888
      %v2174 = vcombine.low %v1902, %v1910
      %v2175 = vcombine.low %v1912, %v1895
      %v2176 = vcombine.low %v1909, %v1911
      %v2178 = vunpack.c.l.s4 1966171168
      %v2179 = vunpack.c.0.s8 %v2178
      %v2180 = vlaneseq
      %v2181 = vshrl.u32 %v2180, 7
      %v2182 = vsub.s32 %v2179, %v2181
      %v2183 = vrot.slane %v2173, %v2182
      %v2185 = vunpack.c.l.s4 1966171168
      %v2186 = vunpack.c.0.s8 %v2185
      %v2187 = vlaneseq
      %v2188 = vshrl.u32 %v2187, 7
      %v2189 = vsub.s32 %v2186, %v2188
      %v2190 = vrot.slane %v2174, %v2189
      %v2192 = vunpack.c.l.s4 1966171168
      %v2193 = vunpack.c.0.s8 %v2192
      %v2194 = vlaneseq
      %v2195 = vshrl.u32 %v2194, 7
      %v2196 = vsub.s32 %v2193, %v2195
      %v2197 = vrot.slane %v2175, %v2196
      %v2199 = vunpack.c.l.s4 1966171168
      %v2200 = vunpack.c.0.s8 %v2199
      %v2201 = vlaneseq
      %v2202 = vshrl.u32 %v2201, 7
      %v2203 = vsub.s32 %v2200, %v2202
      %v2204 = vrot.slane %v2176, %v2203
      %v2205 = vcombine.low %v2183, %v2190
      %v2206 = vcombine.low %v2197, %v2204
      %v2208 = vunpack.c.l.s4 1966171168
      %v2209 = vunpack.c.0.s8 %v2208
      %v2210 = vlaneseq
      %v2211 = vshrl.u32 %v2210, 7
      %v2212 = vsub.s32 %v2209, %v2211
      %v2213 = vrot.slane %v2205, %v2212
      %v2215 = vunpack.c.l.s4 1966171168
      %v2216 = vunpack.c.0.s8 %v2215
      %v2217 = vlaneseq
      %v2218 = vshrl.u32 %v2217, 7
      %v2219 = vsub.s32 %v2216, %v2218
      %v2220 = vrot.slane %v2206, %v2219
      %v2221 = vcombine.low %v2213, %v2220
      %v2222 = vcombine.low %v1913, %v1913
      %v2223 = vcombine.low %v1937, %v1951
      %v2224 = vcombine.low %v1959, %v1961
      %v2225 = vcombine.low %v1944, %v1958
      %v2227 = vunpack.c.l.s4 1966171168
      %v2228 = vunpack.c.0.s8 %v2227
      %v2229 = vlaneseq
      %v2230 = vshrl.u32 %v2229, 7
      %v2231 = vsub.s32 %v2228, %v2230
      %v2232 = vrot.slane %v2222, %v2231
      %v2234 = vunpack.c.l.s4 1966171168
      %v2235 = vunpack.c.0.s8 %v2234
      %v2236 = vlaneseq
      %v2237 = vshrl.u32 %v2236, 7
      %v2238 = vsub.s32 %v2235, %v2237
      %v2239 = vrot.slane %v2223, %v2238
      %v2241 = vunpack.c.l.s4 1966171168
      %v2242 = vunpack.c.0.s8 %v2241
      %v2243 = vlaneseq
      %v2244 = vshrl.u32 %v2243, 7
      %v2245 = vsub.s32 %v2242, %v2244
      %v2246 = vrot.slane %v2224, %v2245
      %v2248 = vunpack.c.l.s4 1966171168
      %v2249 = vunpack.c.0.s8 %v2248
      %v2250 = vlaneseq
      %v2251 = vshrl.u32 %v2250, 7
      %v2252 = vsub.s32 %v2249, %v2251
      %v2253 = vrot.slane %v2225, %v2252
      %v2254 = vcombine.low %v2232, %v2239
      %v2255 = vcombine.low %v2246, %v2253
      %v2257 = vunpack.c.l.s4 1966171168
      %v2258 = vunpack.c.0.s8 %v2257
      %v2259 = vlaneseq
      %v2260 = vshrl.u32 %v2259, 7
      %v2261 = vsub.s32 %v2258, %v2260
      %v2262 = vrot.slane %v2254, %v2261
      %v2264 = vunpack.c.l.s4 1966171168
      %v2265 = vunpack.c.0.s8 %v2264
      %v2266 = vlaneseq
      %v2267 = vshrl.u32 %v2266, 7
      %v2268 = vsub.s32 %v2265, %v2267
      %v2269 = vrot.slane %v2255, %v2268
      %v2270 = vcombine.low %v2262, %v2269
      %v2271 = vcombine.low %v1960, %v1960
      %v2272 = vcombine.low %v1962, %v1986
      %v2273 = vcombine.low %v2000, %v2008
      %v2274 = vcombine.low %v2010, %v1993
      %v2276 = vunpack.c.l.s4 1966171168
      %v2277 = vunpack.c.0.s8 %v2276
      %v2278 = vlaneseq
      %v2279 = vshrl.u32 %v2278, 7
      %v2280 = vsub.s32 %v2277, %v2279
      %v2281 = vrot.slane %v2271, %v2280
      %v2283 = vunpack.c.l.s4 1966171168
      %v2284 = vunpack.c.0.s8 %v2283
      %v2285 = vlaneseq
      %v2286 = vshrl.u32 %v2285, 7
      %v2287 = vsub.s32 %v2284, %v2286
      %v2288 = vrot.slane %v2272, %v2287
      %v2290 = vunpack.c.l.s4 1966171168
      %v2291 = vunpack.c.0.s8 %v2290
      %v2292 = vlaneseq
      %v2293 = vshrl.u32 %v2292, 7
      %v2294 = vsub.s32 %v2291, %v2293
      %v2295 = vrot.slane %v2273, %v2294
      %v2297 = vunpack.c.l.s4 1966171168
      %v2298 = vunpack.c.0.s8 %v2297
      %v2299 = vlaneseq
      %v2300 = vshrl.u32 %v2299, 7
      %v2301 = vsub.s32 %v2298, %v2300
      %v2302 = vrot.slane %v2274, %v2301
      %v2303 = vcombine.low %v2281, %v2288
      %v2304 = vcombine.low %v2295, %v2302
      %v2306 = vunpack.c.l.s4 1966171168
      %v2307 = vunpack.c.0.s8 %v2306
      %v2308 = vlaneseq
      %v2309 = vshrl.u32 %v2308, 7
      %v2310 = vsub.s32 %v2307, %v2309
      %v2311 = vrot.slane %v2303, %v2310
      %v2313 = vunpack.c.l.s4 1966171168
      %v2314 = vunpack.c.0.s8 %v2313
      %v2315 = vlaneseq
      %v2316 = vshrl.u32 %v2315, 7
      %v2317 = vsub.s32 %v2314, %v2316
      %v2318 = vrot.slane %v2304, %v2317
      %v2319 = vcombine.low %v2311, %v2318
      %v2320 = vcombine.low %v2007, %v2007
      %v2321 = vcombine.low %v2009, %v2011
      %v2322 = vcombine.low %v2035, %v2049
      %v2323 = vcombine.low %v2057, %v2059
      %v2325 = vunpack.c.l.s4 1966171168
      %v2326 = vunpack.c.0.s8 %v2325
      %v2327 = vlaneseq
      %v2328 = vshrl.u32 %v2327, 7
      %v2329 = vsub.s32 %v2326, %v2328
      %v2330 = vrot.slane %v2320, %v2329
      %v2332 = vunpack.c.l.s4 1966171168
      %v2333 = vunpack.c.0.s8 %v2332
      %v2334 = vlaneseq
      %v2335 = vshrl.u32 %v2334, 7
      %v2336 = vsub.s32 %v2333, %v2335
      %v2337 = vrot.slane %v2321, %v2336
      %v2339 = vunpack.c.l.s4 1966171168
      %v2340 = vunpack.c.0.s8 %v2339
      %v2341 = vlaneseq
      %v2342 = vshrl.u32 %v2341, 7
      %v2343 = vsub.s32 %v2340, %v2342
      %v2344 = vrot.slane %v2322, %v2343
      %v2346 = vunpack.c.l.s4 1966171168
      %v2347 = vunpack.c.0.s8 %v2346
      %v2348 = vlaneseq
      %v2349 = vshrl.u32 %v2348, 7
      %v2350 = vsub.s32 %v2347, %v2349
      %v2351 = vrot.slane %v2323, %v2350
      %v2352 = vcombine.low %v2330, %v2337
      %v2353 = vcombine.low %v2344, %v2351
      %v2355 = vunpack.c.l.s4 1966171168
      %v2356 = vunpack.c.0.s8 %v2355
      %v2357 = vlaneseq
      %v2358 = vshrl.u32 %v2357, 7
      %v2359 = vsub.s32 %v2356, %v2358
      %v2360 = vrot.slane %v2352, %v2359
      %v2362 = vunpack.c.l.s4 1966171168
      %v2363 = vunpack.c.0.s8 %v2362
      %v2364 = vlaneseq
      %v2365 = vshrl.u32 %v2364, 7
      %v2366 = vsub.s32 %v2363, %v2365
      %v2367 = vrot.slane %v2353, %v2366
      %v2368 = vcombine.low %v2360, %v2367
      %v2369 = vcombine.low %v2042, %v2042
      %v2370 = vcombine.low %v2056, %v2058
      %v2371 = vcombine.low %v2060, %v2084
      %v2372 = vcombine.low %v2098, %v2106
      %v2374 = vunpack.c.l.s4 1966171168
      %v2375 = vunpack.c.0.s8 %v2374
      %v2376 = vlaneseq
      %v2377 = vshrl.u32 %v2376, 7
      %v2378 = vsub.s32 %v2375, %v2377
      %v2379 = vrot.slane %v2369, %v2378
      %v2381 = vunpack.c.l.s4 1966171168
      %v2382 = vunpack.c.0.s8 %v2381
      %v2383 = vlaneseq
      %v2384 = vshrl.u32 %v2383, 7
      %v2385 = vsub.s32 %v2382, %v2384
      %v2386 = vrot.slane %v2370, %v2385
      %v2388 = vunpack.c.l.s4 1966171168
      %v2389 = vunpack.c.0.s8 %v2388
      %v2390 = vlaneseq
      %v2391 = vshrl.u32 %v2390, 7
      %v2392 = vsub.s32 %v2389, %v2391
      %v2393 = vrot.slane %v2371, %v2392
      %v2395 = vunpack.c.l.s4 1966171168
      %v2396 = vunpack.c.0.s8 %v2395
      %v2397 = vlaneseq
      %v2398 = vshrl.u32 %v2397, 7
      %v2399 = vsub.s32 %v2396, %v2398
      %v2400 = vrot.slane %v2372, %v2399
      %v2401 = vcombine.low %v2379, %v2386
      %v2402 = vcombine.low %v2393, %v2400
      %v2404 = vunpack.c.l.s4 1966171168
      %v2405 = vunpack.c.0.s8 %v2404
      %v2406 = vlaneseq
      %v2407 = vshrl.u32 %v2406, 7
      %v2408 = vsub.s32 %v2405, %v2407
      %v2409 = vrot.slane %v2401, %v2408
      %v2411 = vunpack.c.l.s4 1966171168
      %v2412 = vunpack.c.0.s8 %v2411
      %v2413 = vlaneseq
      %v2414 = vshrl.u32 %v2413, 7
      %v2415 = vsub.s32 %v2412, %v2414
      %v2416 = vrot.slane %v2402, %v2415
      %v2417 = vcombine.low %v2409, %v2416
      %v2418 = vcombine.low %v2108, %v2108
      %v2419 = vcombine.low %v2091, %v2105
      %v2420 = vcombine.low %v2107, %v2109
      %v2421 = vcombine.low %v2133, %v2147
      %v2423 = vunpack.c.l.s4 1966171168
      %v2424 = vunpack.c.0.s8 %v2423
      %v2425 = vlaneseq
      %v2426 = vshrl.u32 %v2425, 7
      %v2427 = vsub.s32 %v2424, %v2426
      %v2428 = vrot.slane %v2418, %v2427
      %v2430 = vunpack.c.l.s4 1966171168
      %v2431 = vunpack.c.0.s8 %v2430
      %v2432 = vlaneseq
      %v2433 = vshrl.u32 %v2432, 7
      %v2434 = vsub.s32 %v2431, %v2433
      %v2435 = vrot.slane %v2419, %v2434
      %v2437 = vunpack.c.l.s4 1966171168
      %v2438 = vunpack.c.0.s8 %v2437
      %v2439 = vlaneseq
      %v2440 = vshrl.u32 %v2439, 7
      %v2441 = vsub.s32 %v2438, %v2440
      %v2442 = vrot.slane %v2420, %v2441
      %v2444 = vunpack.c.l.s4 1966171168
      %v2445 = vunpack.c.0.s8 %v2444
      %v2446 = vlaneseq
      %v2447 = vshrl.u32 %v2446, 7
      %v2448 = vsub.s32 %v2445, %v2447
      %v2449 = vrot.slane %v2421, %v2448
      %v2450 = vcombine.low %v2428, %v2435
      %v2451 = vcombine.low %v2442, %v2449
      %v2453 = vunpack.c.l.s4 1966171168
      %v2454 = vunpack.c.0.s8 %v2453
      %v2455 = vlaneseq
      %v2456 = vshrl.u32 %v2455, 7
      %v2457 = vsub.s32 %v2454, %v2456
      %v2458 = vrot.slane %v2450, %v2457
      %v2460 = vunpack.c.l.s4 1966171168
      %v2461 = vunpack.c.0.s8 %v2460
      %v2462 = vlaneseq
      %v2463 = vshrl.u32 %v2462, 7
      %v2464 = vsub.s32 %v2461, %v2463
      %v2465 = vrot.slane %v2451, %v2464
      %v2466 = vcombine.low %v2458, %v2465
      %v2467 = vcombine.low %v2155, %v2155
      %v2468 = vcombine.low %v2157, %v2140
      %v2469 = vcombine.low %v2154, %v2156
      %v2470 = vcombine.low %v2158, %v2172
      %v2472 = vunpack.c.l.s4 1966171168
      %v2473 = vunpack.c.0.s8 %v2472
      %v2474 = vlaneseq
      %v2475 = vshrl.u32 %v2474, 7
      %v2476 = vsub.s32 %v2473, %v2475
      %v2477 = vrot.slane %v2467, %v2476
      %v2479 = vunpack.c.l.s4 1966171168
      %v2480 = vunpack.c.0.s8 %v2479
      %v2481 = vlaneseq
      %v2482 = vshrl.u32 %v2481, 7
      %v2483 = vsub.s32 %v2480, %v2482
      %v2484 = vrot.slane %v2468, %v2483
      %v2486 = vunpack.c.l.s4 1966171168
      %v2487 = vunpack.c.0.s8 %v2486
      %v2488 = vlaneseq
      %v2489 = vshrl.u32 %v2488, 7
      %v2490 = vsub.s32 %v2487, %v2489
      %v2491 = vrot.slane %v2469, %v2490
      %v2493 = vunpack.c.l.s4 1966171168
      %v2494 = vunpack.c.0.s8 %v2493
      %v2495 = vlaneseq
      %v2496 = vshrl.u32 %v2495, 7
      %v2497 = vsub.s32 %v2494, %v2496
      %v2498 = vrot.slane %v2470, %v2497
      %v2499 = vcombine.low %v2477, %v2484
      %v2500 = vcombine.low %v2491, %v2498
      %v2502 = vunpack.c.l.s4 1966171168
      %v2503 = vunpack.c.0.s8 %v2502
      %v2504 = vlaneseq
      %v2505 = vshrl.u32 %v2504, 7
      %v2506 = vsub.s32 %v2503, %v2505
      %v2507 = vrot.slane %v2499, %v2506
      %v2509 = vunpack.c.l.s4 1966171168
      %v2510 = vunpack.c.0.s8 %v2509
      %v2511 = vlaneseq
      %v2512 = vshrl.u32 %v2511, 7
      %v2513 = vsub.s32 %v2510, %v2512
      %v2514 = vrot.slane %v2500, %v2513
      %v2515 = vcombine.low %v2507, %v2514
      %vm2523 = vcmask 1040384
      %v2524 = vsel %vm2523, 0.0, %v2221
      %v2525 = vsel %vm2523, 0.0, %v2270
      %v2526 = vsel %vm2523, 0.0, %v2319
      %v2527 = vsel %vm2523, 0.0, %v2368
      %v2528 = vsel %vm2523, 0.0, %v2417
      %v2529 = vsel %vm2523, 0.0, %v2466
      %v2530 = vsel %vm2523, 0.0, %v2515
      %s2531 = scalar_lea.vmem %s545, 48
      %v2532 = vld [vmem:[%s2531] sm:$0xf]
      %v2533 = vld [vmem:[%s2531 + $0x4] sm:$0xf]
      %v2534 = vld [vmem:[%s2531 + $0x8] sm:$0xf]
      %v2535 = vld [vmem:[%s2531 + $0xc] sm:$0xf]
      %v2536 = vld [vmem:[%s2531 + $0x10] sm:$0xf]
      %v2537 = vld [vmem:[%s2531 + $0x14] sm:$0xf]
      %v2538 = vld [vmem:[%s2531 + $0x18] sm:$0xf]
      %v2539 = vld [vmem:[%s2531 + $0x1c] sm:$0xf]
      %v2540 = vld [vmem:[%s2531 + $0x20] sm:$0xf]
      %v2541 = vld [vmem:[%s2531 + $0x24] sm:$0xf]
      %v2542 = vld [vmem:[%s2531 + $0x28] sm:$0xf]
      %v2543 = vld [vmem:[%s2531 + $0x2c] sm:$0xf]
      %v2544 = vpack.c.b16 %v1315, %v1314
      %v2545 = vpack.c.b16 %v1317, %v1316
      %v2546 = vpack.c.b16 %v1319, %v1318
      %v2559 = vunpack.c.l.b16 %v2532
      %v2560 = vunpack.c.l.b16 %v2533
      %v2561 = vunpack.c.l.b16 %v2534
      %v2562 = vunpack.c.l.b16 %v2535
      %v2563 = vunpack.c.l.b16 %v2536
      %v2564 = vunpack.c.l.b16 %v2537
      %v2565 = vunpack.c.l.b16 %v2538
      %v2566 = vunpack.c.l.b16 %v2539
      %v2567 = vunpack.c.l.b16 %v2540
      %v2568 = vunpack.c.l.b16 %v2541
      %v2569 = vunpack.c.l.b16 %v2542
      %v2570 = vunpack.c.l.b16 %v2543
      %v2571 = vpack.c.b16 %v2560, %v2559
      %v2572 = vpack.c.b16 %v2562, %v2561
      %v2573 = vpack.c.b16 %v2564, %v2563
      %v2574 = vpack.c.b16 %v2566, %v2565
      %v2575 = vpack.c.b16 %v2568, %v2567
      %v2576 = vpack.c.b16 %v2570, %v2569
      %v2584 = vsel %vm1781, %v2544, 0
      %v2587 = vsel %vm1781, %v2545, 0
      %v2590 = vsel %vm1781, %v2546, 0
      %v2593 = vsel %vm1781, %v1328, 0
      %2595 = vmatprep.subr.bf16.mxu0 0
      %2596 = vmatpush1.bf16.msra.mxu0 %v2571
      %2597 = vmatprep.subr.bf16.mxu0 0
      %2598 = vmatpush1.bf16.msra.mxu0 %v2572
      %2599 = vmatprep.subr.bf16.mxu0 0
      %2600 = vmatpush1.bf16.msra.mxu0 %v2573
      %2601 = vmatprep.subr.bf16.mxu0 0
      %2602 = vmatpush1.bf16.msra.mxu0 %v2574
      %2603 = vmatprep.subr.bf16.mxu0 0
      %2604 = vmatpush1.bf16.msra.mxu0 %v2575
      %2605 = vmatprep.subr.bf16.mxu0 0
      %2606 = vmatpush1.bf16.msra.mxu0 %v2576
      %2607 = vmatprep.subr.bf16.mxu0 0
      %2608 = vmatpush1.bf16.msra.mxu0 0
      %2609 = vmatprep.subr.bf16.mxu0 0
      %2610 = vmatpush1.bf16.msra.mxu0 0
      %2611 = vmatprep.subr.bf16.mxu0 0
      %2612 = vmatpush1.bf16.msra.mxu0 0
      %2613 = vmatprep.subr.bf16.mxu0 0
      %2614 = vmatpush1.bf16.msra.mxu0 0
      %2615 = vmatprep.subr.bf16.mxu0 0
      %2616 = vmatpush1.bf16.msra.mxu0 0
      %2617 = vmatprep.subr.bf16.mxu0 0
      %2618 = vmatpush1.bf16.msra.mxu0 0
      %2619 = vmatprep.subr.bf16.mxu0 0
      %2620 = vmatpush1.bf16.msra.mxu0 0
      %2621 = vmatprep.subr.bf16.mxu0 0
      %2622 = vmatpush1.bf16.msra.mxu0 0
      %2623 = vmatprep.subr.bf16.mxu0 0
      %2624 = vmatpush1.bf16.msra.mxu0 0
      %2625 = vmatprep.subr.bf16.mxu0 0
      %2626 = vmatpush1.bf16.msra.mxu0 0
      %2627 = vmatprep.mubr.bf16.mxu0 0
      %2628 = vmatmul.mubr.bf16.gmra.mrb[0].mxu0 %v2584
      %v2629 = vpop.f32.mrb[0].mxu0
      %v2630 = vadd.f32 0.0, %v2629
      %v2631 = vpop.f32.mrb[0].mxu0
      %v2632 = vpop.f32.mrb[0].mxu0
      %v2633 = vadd.f32 0.0, %v2632
      %v2634 = vpop.f32.mrb[0].mxu0
      %2635 = vmatprep.mubr.bf16.mxu0 0
      %2636 = vmatmul.mubr.bf16.gmra.mrb[0].mxu0 %v2587
      %v2637 = vpop.f32.mrb[0].mxu0
      %v2638 = vadd.f32 0.0, %v2637
      %v2639 = vpop.f32.mrb[0].mxu0
      %v2640 = vpop.f32.mrb[0].mxu0
      %v2641 = vadd.f32 0.0, %v2640
      %v2642 = vpop.f32.mrb[0].mxu0
      %2643 = vmatprep.mubr.bf16.mxu0 0
      %2644 = vmatmul.mubr.bf16.gmra.mrb[0].mxu0 %v2590
      %v2645 = vpop.f32.mrb[0].mxu0
      %v2646 = vadd.f32 0.0, %v2645
      %v2647 = vpop.f32.mrb[0].mxu0
      %v2648 = vpop.f32.mrb[0].mxu0
      %v2649 = vadd.f32 0.0, %v2648
      %v2650 = vpop.f32.mrb[0].mxu0
      %2651 = vmatprep.mubr.bf16.mxu0 0
      %2652 = vmatmul.mubr.bf16.gmra.mrb[0].mxu0 %v2593
      %v2653 = vpop.f32.mrb[0].mxu0
      %v2654 = vadd.f32 0.0, %v2653
      %v2655 = vpop.f32.mrb[0].mxu0
      %v2656 = vpop.f32.mrb[0].mxu0
      %v2657 = vpop.f32.mrb[0].mxu0
      %2658 = vdwg.mxu0
      %v2659 = vadd.f32 %v2524, %v2630
      %v2660 = vadd.f32 %v2525, %v2633
      %v2661 = vadd.f32 %v2526, %v2638
      %v2662 = vadd.f32 %v2527, %v2641
      %v2663 = vadd.f32 %v2528, %v2646
      %v2664 = vadd.f32 %v2529, %v2649
      %v2665 = vadd.f32 %v2530, %v2654
      %v2666 = vunpack.i.h.s16 %v1353
      %v2667 = vunpack.i.h.s16 %v1377
      %v2668 = vunpack.i.h.s16 %v1401
      %v2669 = vunpack.i.h.s16 %v1425
      %v2670 = vunpack.i.h.s16 %v1449
      %v2671 = vunpack.i.h.s16 %v1473
      %v2672 = vunpack.i.h.s16 %v1497
      %s2673 = scalar_lea.vmem %s545, 96
      %v2674 = vld [vmem:[%s2673] sm:$0xf]
      %v2675 = vld [vmem:[%s2673 + $0x4] sm:$0xf]
      %v2676 = vld [vmem:[%s2673 + $0x8] sm:$0xf]
      %v2677 = vld [vmem:[%s2673 + $0xc] sm:$0xf]
      %v2678 = vld [vmem:[%s2673 + $0x10] sm:$0xf]
      %v2679 = vld [vmem:[%s2673 + $0x14] sm:$0xf]
      %v2680 = vld [vmem:[%s2673 + $0x18] sm:$0xf]
      %v2681 = vld [vmem:[%s2673 + $0x1c] sm:$0xf]
      %v2682 = vld [vmem:[%s2673 + $0x20] sm:$0xf]
      %v2683 = vld [vmem:[%s2673 + $0x24] sm:$0xf]
      %v2684 = vld [vmem:[%s2673 + $0x28] sm:$0xf]
      %v2685 = vld [vmem:[%s2673 + $0x2c] sm:$0xf]
      %v2686 = vpack.i.b16 %v1500, %v1499
      %v2687 = vpack.i.b16 %v1502, %v1501
      %v2688 = vpack.i.b16 %v1504, %v1503
      %v2689 = vpack.i.b16 %v1506, %v2666
      %v2690 = vpack.i.b16 %v1508, %v1507
      %v2691 = vpack.i.b16 %v1510, %v1509
      %v2692 = vpack.i.b16 %v2667, %v1511
      %v2693 = vpack.i.b16 %v1514, %v1513
      %v2694 = vpack.i.b16 %v1516, %v1515
      %v2695 = vpack.i.b16 %v1518, %v1517
      %v2696 = vpack.i.b16 %v1520, %v2668
      %v2697 = vpack.i.b16 %v1522, %v1521
      %v2698 = vpack.i.b16 %v1524, %v1523
      %v2699 = vpack.i.b16 %v2669, %v1525
      %v2700 = vpack.i.b16 %v1528, %v1527
      %v2701 = vpack.i.b16 %v1530, %v1529
      %v2702 = vpack.i.b16 %v1532, %v1531
      %v2703 = vpack.i.b16 %v1534, %v2670
      %v2704 = vpack.i.b16 %v1536, %v1535
      %v2705 = vpack.i.b16 %v1538, %v1537
      %v2706 = vpack.i.b16 %v2671, %v1539
      %v2707 = vpack.i.b16 %v1542, %v1541
      %v2708 = vpack.i.b16 %v1544, %v1543
      %v2709 = vpack.i.b16 %v1546, %v1545
      %v2711 = vcombine.low %v2686, %v2687
      %v2712 = vcombine.low %v2688, %v2689
      %v2713 = vcombine.low %v2690, %v2691
      %v2714 = vcombine.low %v2692, %v2693
      %v2716 = vunpack.c.l.s4 1966171168
      %v2717 = vunpack.c.0.s8 %v2716
      %v2718 = vlaneseq
      %v2719 = vshrl.u32 %v2718, 7
      %v2720 = vsub.s32 %v2717, %v2719
      %v2721 = vrot.slane %v2711, %v2720
      %v2723 = vunpack.c.l.s4 1966171168
      %v2724 = vunpack.c.0.s8 %v2723
      %v2725 = vlaneseq
      %v2726 = vshrl.u32 %v2725, 7
      %v2727 = vsub.s32 %v2724, %v2726
      %v2728 = vrot.slane %v2712, %v2727
      %v2730 = vunpack.c.l.s4 1966171168
      %v2731 = vunpack.c.0.s8 %v2730
      %v2732 = vlaneseq
      %v2733 = vshrl.u32 %v2732, 7
      %v2734 = vsub.s32 %v2731, %v2733
      %v2735 = vrot.slane %v2713, %v2734
      %v2737 = vunpack.c.l.s4 1966171168
      %v2738 = vunpack.c.0.s8 %v2737
      %v2739 = vlaneseq
      %v2740 = vshrl.u32 %v2739, 7
      %v2741 = vsub.s32 %v2738, %v2740
      %v2742 = vrot.slane %v2714, %v2741
      %v2743 = vcombine.low %v2721, %v2728
      %v2744 = vcombine.low %v2735, %v2742
      %v2746 = vunpack.c.l.s4 1966171168
      %v2747 = vunpack.c.0.s8 %v2746
      %v2748 = vlaneseq
      %v2749 = vshrl.u32 %v2748, 7
      %v2750 = vsub.s32 %v2747, %v2749
      %v2751 = vrot.slane %v2743, %v2750
      %v2753 = vunpack.c.l.s4 1966171168
      %v2754 = vunpack.c.0.s8 %v2753
      %v2755 = vlaneseq
      %v2756 = vshrl.u32 %v2755, 7
      %v2757 = vsub.s32 %v2754, %v2756
      %v2758 = vrot.slane %v2744, %v2757
      %v2759 = vcombine.low %v2751, %v2758
      %v2760 = vcombine.low %v2694, %v2695
      %v2761 = vcombine.low %v2696, %v2697
      %v2762 = vcombine.low %v2698, %v2699
      %v2763 = vcombine.low %v2700, %v2701
      %v2765 = vunpack.c.l.s4 1966171168
      %v2766 = vunpack.c.0.s8 %v2765
      %v2767 = vlaneseq
      %v2768 = vshrl.u32 %v2767, 7
      %v2769 = vsub.s32 %v2766, %v2768
      %v2770 = vrot.slane %v2760, %v2769
      %v2772 = vunpack.c.l.s4 1966171168
      %v2773 = vunpack.c.0.s8 %v2772
      %v2774 = vlaneseq
      %v2775 = vshrl.u32 %v2774, 7
      %v2776 = vsub.s32 %v2773, %v2775
      %v2777 = vrot.slane %v2761, %v2776
      %v2779 = vunpack.c.l.s4 1966171168
      %v2780 = vunpack.c.0.s8 %v2779
      %v2781 = vlaneseq
      %v2782 = vshrl.u32 %v2781, 7
      %v2783 = vsub.s32 %v2780, %v2782
      %v2784 = vrot.slane %v2762, %v2783
      %v2786 = vunpack.c.l.s4 1966171168
      %v2787 = vunpack.c.0.s8 %v2786
      %v2788 = vlaneseq
      %v2789 = vshrl.u32 %v2788, 7
      %v2790 = vsub.s32 %v2787, %v2789
      %v2791 = vrot.slane %v2763, %v2790
      %v2792 = vcombine.low %v2770, %v2777
      %v2793 = vcombine.low %v2784, %v2791
      %v2795 = vunpack.c.l.s4 1966171168
      %v2796 = vunpack.c.0.s8 %v2795
      %v2797 = vlaneseq
      %v2798 = vshrl.u32 %v2797, 7
      %v2799 = vsub.s32 %v2796, %v2798
      %v2800 = vrot.slane %v2792, %v2799
      %v2802 = vunpack.c.l.s4 1966171168
      %v2803 = vunpack.c.0.s8 %v2802
      %v2804 = vlaneseq
      %v2805 = vshrl.u32 %v2804, 7
      %v2806 = vsub.s32 %v2803, %v2805
      %v2807 = vrot.slane %v2793, %v2806
      %v2808 = vcombine.low %v2800, %v2807
      %v2809 = vcombine.low %v2702, %v2703
      %v2810 = vcombine.low %v2704, %v2705
      %v2811 = vcombine.low %v2706, %v2707
      %v2812 = vcombine.low %v2708, %v2709
      %v2814 = vunpack.c.l.s4 1966171168
      %v2815 = vunpack.c.0.s8 %v2814
      %v2816 = vlaneseq
      %v2817 = vshrl.u32 %v2816, 7
      %v2818 = vsub.s32 %v2815, %v2817
      %v2819 = vrot.slane %v2809, %v2818
      %v2821 = vunpack.c.l.s4 1966171168
      %v2822 = vunpack.c.0.s8 %v2821
      %v2823 = vlaneseq
      %v2824 = vshrl.u32 %v2823, 7
      %v2825 = vsub.s32 %v2822, %v2824
      %v2826 = vrot.slane %v2810, %v2825
      %v2828 = vunpack.c.l.s4 1966171168
      %v2829 = vunpack.c.0.s8 %v2828
      %v2830 = vlaneseq
      %v2831 = vshrl.u32 %v2830, 7
      %v2832 = vsub.s32 %v2829, %v2831
      %v2833 = vrot.slane %v2811, %v2832
      %v2835 = vunpack.c.l.s4 1966171168
      %v2836 = vunpack.c.0.s8 %v2835
      %v2837 = vlaneseq
      %v2838 = vshrl.u32 %v2837, 7
      %v2839 = vsub.s32 %v2836, %v2838
      %v2840 = vrot.slane %v2812, %v2839
      %v2841 = vcombine.low %v2819, %v2826
      %v2842 = vcombine.low %v2833, %v2840
      %v2844 = vunpack.c.l.s4 1966171168
      %v2845 = vunpack.c.0.s8 %v2844
      %v2846 = vlaneseq
      %v2847 = vshrl.u32 %v2846, 7
      %v2848 = vsub.s32 %v2845, %v2847
      %v2849 = vrot.slane %v2841, %v2848
      %v2851 = vunpack.c.l.s4 1966171168
      %v2852 = vunpack.c.0.s8 %v2851
      %v2853 = vlaneseq
      %v2854 = vshrl.u32 %v2853, 7
      %v2855 = vsub.s32 %v2852, %v2854
      %v2856 = vrot.slane %v2842, %v2855
      %v2857 = vcombine.low %v2849, %v2856
      %v2859 = vunpack.c.l.s4 1966171168
      %v2860 = vunpack.c.0.s8 %v2859
      %v2861 = vlaneseq
      %v2862 = vshrl.u32 %v2861, 7
      %v2863 = vsub.s32 %v2860, %v2862
      %v2864 = vrot.slane %v2672, %v2863
      %v2866 = vunpack.c.l.s4 1966171168
      %v2867 = vunpack.c.0.s8 %v2866
      %v2868 = vlaneseq
      %v2869 = vshrl.u32 %v2868, 7
      %v2870 = vsub.s32 %v2867, %v2869
      %v2871 = vrot.slane %v2864, %v2870
      %v2884 = vunpack.c.l.b16 %v2674
      %v2885 = vunpack.c.l.b16 %v2675
      %v2886 = vunpack.c.l.b16 %v2676
      %v2887 = vunpack.c.l.b16 %v2677
      %v2888 = vunpack.c.l.b16 %v2678
      %v2889 = vunpack.c.l.b16 %v2679
      %v2890 = vunpack.c.l.b16 %v2680
      %v2891 = vunpack.c.l.b16 %v2681
      %v2892 = vunpack.c.l.b16 %v2682
      %v2893 = vunpack.c.l.b16 %v2683
      %v2894 = vunpack.c.l.b16 %v2684
      %v2895 = vunpack.c.l.b16 %v2685
      %v2896 = vpack.c.b16 %v2885, %v2884
      %v2897 = vpack.c.b16 %v2887, %v2886
      %v2898 = vpack.c.b16 %v2889, %v2888
      %v2899 = vpack.c.b16 %v2891, %v2890
      %v2900 = vpack.c.b16 %v2893, %v2892
      %v2901 = vpack.c.b16 %v2895, %v2894
      %v2909 = vsel %vm1781, %v2759, 0
      %v2912 = vsel %vm1781, %v2808, 0
      %v2915 = vsel %vm1781, %v2857, 0
      %v2918 = vsel %vm1781, %v2871, 0
      %2920 = vmatprep.subr.bf16.mxu0 0
      %2921 = vmatpush1.bf16.msra.mxu0 %v2896
      %2922 = vmatprep.subr.bf16.mxu0 0
      %2923 = vmatpush1.bf16.msra.mxu0 %v2897
      %2924 = vmatprep.subr.bf16.mxu0 0
      %2925 = vmatpush1.bf16.msra.mxu0 %v2898
      %2926 = vmatprep.subr.bf16.mxu0 0
      %2927 = vmatpush1.bf16.msra.mxu0 %v2899
      %2928 = vmatprep.subr.bf16.mxu0 0
      %2929 = vmatpush1.bf16.msra.mxu0 %v2900
      %2930 = vmatprep.subr.bf16.mxu0 0
      %2931 = vmatpush1.bf16.msra.mxu0 %v2901
      %2932 = vmatprep.subr.bf16.mxu0 0
      %2933 = vmatpush1.bf16.msra.mxu0 0
      %2934 = vmatprep.subr.bf16.mxu0 0
      %2935 = vmatpush1.bf16.msra.mxu0 0
      %2936 = vmatprep.subr.bf16.mxu0 0
      %2937 = vmatpush1.bf16.msra.mxu0 0
      %2938 = vmatprep.subr.bf16.mxu0 0
      %2939 = vmatpush1.bf16.msra.mxu0 0
      %2940 = vmatprep.subr.bf16.mxu0 0
      %2941 = vmatpush1.bf16.msra.mxu0 0
      %2942 = vmatprep.subr.bf16.mxu0 0
      %2943 = vmatpush1.bf16.msra.mxu0 0
      %2944 = vmatprep.subr.bf16.mxu0 0
      %2945 = vmatpush1.bf16.msra.mxu0 0
      %2946 = vmatprep.subr.bf16.mxu0 0
      %2947 = vmatpush1.bf16.msra.mxu0 0
      %2948 = vmatprep.subr.bf16.mxu0 0
      %2949 = vmatpush1.bf16.msra.mxu0 0
      %2950 = vmatprep.subr.bf16.mxu0 0
      %2951 = vmatpush1.bf16.msra.mxu0 0
      %2952 = vmatprep.mubr.bf16.mxu0 0
      %2953 = vmatmul.mubr.bf16.gmra.mrb[0].mxu0 %v2909
      %v2954 = vpop.f32.mrb[0].mxu0
      %v2955 = vadd.f32 0.0, %v2954
      %v2956 = vpop.f32.mrb[0].mxu0
      %v2957 = vpop.f32.mrb[0].mxu0
      %v2958 = vadd.f32 0.0, %v2957
      %v2959 = vpop.f32.mrb[0].mxu0
      %2960 = vmatprep.mubr.bf16.mxu0 0
      %2961 = vmatmul.mubr.bf16.gmra.mrb[0].mxu0 %v2912
      %v2962 = vpop.f32.mrb[0].mxu0
      %v2963 = vadd.f32 0.0, %v2962
      %v2964 = vpop.f32.mrb[0].mxu0
      %v2965 = vpop.f32.mrb[0].mxu0
      %v2966 = vadd.f32 0.0, %v2965
      %v2967 = vpop.f32.mrb[0].mxu0
      %2968 = vmatprep.mubr.bf16.mxu0 0
      %2969 = vmatmul.mubr.bf16.gmra.mrb[0].mxu0 %v2915
      %v2970 = vpop.f32.mrb[0].mxu0
      %v2971 = vadd.f32 0.0, %v2970
      %v2972 = vpop.f32.mrb[0].mxu0
      %v2973 = vpop.f32.mrb[0].mxu0
      %v2974 = vadd.f32 0.0, %v2973
      %v2975 = vpop.f32.mrb[0].mxu0
      %2976 = vmatprep.mubr.bf16.mxu0 0
      %2977 = vmatmul.mubr.bf16.gmra.mrb[0].mxu0 %v2918
      %v2978 = vpop.f32.mrb[0].mxu0
      %v2979 = vadd.f32 0.0, %v2978
      %v2980 = vpop.f32.mrb[0].mxu0
      %v2981 = vpop.f32.mrb[0].mxu0
      %v2982 = vpop.f32.mrb[0].mxu0
      %2983 = vdwg.mxu0
      %v2991 = vcombine.high %v2955, %v2955
      %v2993 = vunpack.c.l.s4 1966171168
      %v2994 = vunpack.c.0.s8 %v2993
      %v2995 = vlaneseq
      %v2996 = vshrl.u32 %v2995, 7
      %v2997 = vsub.s32 %v2994, %v2996
      %v2998 = vrot.slane %v2955, %v2997
      %v3000 = vunpack.c.l.s4 1966171168
      %v3001 = vunpack.c.0.s8 %v3000
      %v3002 = vlaneseq
      %v3003 = vshrl.u32 %v3002, 7
      %v3004 = vsub.s32 %v3001, %v3003
      %v3005 = vrot.slane %v2991, %v3004
      %v3006 = vcombine.high %v2998, %v2998
      %v3007 = vcombine.high %v3005, %v3005
      %v3009 = vunpack.c.l.s4 1966171168
      %v3010 = vunpack.c.0.s8 %v3009
      %v3011 = vlaneseq
      %v3012 = vshrl.u32 %v3011, 7
      %v3013 = vsub.s32 %v3010, %v3012
      %v3014 = vrot.slane %v2998, %v3013
      %v3016 = vunpack.c.l.s4 1966171168
      %v3017 = vunpack.c.0.s8 %v3016
      %v3018 = vlaneseq
      %v3019 = vshrl.u32 %v3018, 7
      %v3020 = vsub.s32 %v3017, %v3019
      %v3021 = vrot.slane %v3005, %v3020
      %v3023 = vunpack.c.l.s4 1966171168
      %v3024 = vunpack.c.0.s8 %v3023
      %v3025 = vlaneseq
      %v3026 = vshrl.u32 %v3025, 7
      %v3027 = vsub.s32 %v3024, %v3026
      %v3028 = vrot.slane %v3006, %v3027
      %v3030 = vunpack.c.l.s4 1966171168
      %v3031 = vunpack.c.0.s8 %v3030
      %v3032 = vlaneseq
      %v3033 = vshrl.u32 %v3032, 7
      %v3034 = vsub.s32 %v3031, %v3033
      %v3035 = vrot.slane %v3007, %v3034
      %v3036 = vcombine.high %v3014, %v3014
      %v3037 = vcombine.high %v3021, %v3021
      %v3038 = vcombine.high %v3028, %v3028
      %v3039 = vcombine.high %v3035, %v3035
      %v3040 = vcombine.high %v2958, %v2958
      %v3042 = vunpack.c.l.s4 1966171168
      %v3043 = vunpack.c.0.s8 %v3042
      %v3044 = vlaneseq
      %v3045 = vshrl.u32 %v3044, 7
      %v3046 = vsub.s32 %v3043, %v3045
      %v3047 = vrot.slane %v2958, %v3046
      %v3049 = vunpack.c.l.s4 1966171168
      %v3050 = vunpack.c.0.s8 %v3049
      %v3051 = vlaneseq
      %v3052 = vshrl.u32 %v3051, 7
      %v3053 = vsub.s32 %v3050, %v3052
      %v3054 = vrot.slane %v3040, %v3053
      %v3055 = vcombine.high %v3047, %v3047
      %v3056 = vcombine.high %v3054, %v3054
      %v3058 = vunpack.c.l.s4 1966171168
      %v3059 = vunpack.c.0.s8 %v3058
      %v3060 = vlaneseq
      %v3061 = vshrl.u32 %v3060, 7
      %v3062 = vsub.s32 %v3059, %v3061
      %v3063 = vrot.slane %v3047, %v3062
      %v3065 = vunpack.c.l.s4 1966171168
      %v3066 = vunpack.c.0.s8 %v3065
      %v3067 = vlaneseq
      %v3068 = vshrl.u32 %v3067, 7
      %v3069 = vsub.s32 %v3066, %v3068
      %v3070 = vrot.slane %v3054, %v3069
      %v3072 = vunpack.c.l.s4 1966171168
      %v3073 = vunpack.c.0.s8 %v3072
      %v3074 = vlaneseq
      %v3075 = vshrl.u32 %v3074, 7
      %v3076 = vsub.s32 %v3073, %v3075
      %v3077 = vrot.slane %v3055, %v3076
      %v3079 = vunpack.c.l.s4 1966171168
      %v3080 = vunpack.c.0.s8 %v3079
      %v3081 = vlaneseq
      %v3082 = vshrl.u32 %v3081, 7
      %v3083 = vsub.s32 %v3080, %v3082
      %v3084 = vrot.slane %v3056, %v3083
      %v3085 = vcombine.high %v3063, %v3063
      %v3086 = vcombine.high %v3070, %v3070
      %v3087 = vcombine.high %v3077, %v3077
      %v3088 = vcombine.high %v3084, %v3084
      %v3089 = vcombine.high %v2963, %v2963
      %v3091 = vunpack.c.l.s4 1966171168
      %v3092 = vunpack.c.0.s8 %v3091
      %v3093 = vlaneseq
      %v3094 = vshrl.u32 %v3093, 7
      %v3095 = vsub.s32 %v3092, %v3094
      %v3096 = vrot.slane %v2963, %v3095
      %v3098 = vunpack.c.l.s4 1966171168
      %v3099 = vunpack.c.0.s8 %v3098
      %v3100 = vlaneseq
      %v3101 = vshrl.u32 %v3100, 7
      %v3102 = vsub.s32 %v3099, %v3101
      %v3103 = vrot.slane %v3089, %v3102
      %v3104 = vcombine.high %v3096, %v3096
      %v3105 = vcombine.high %v3103, %v3103
      %v3107 = vunpack.c.l.s4 1966171168
      %v3108 = vunpack.c.0.s8 %v3107
      %v3109 = vlaneseq
      %v3110 = vshrl.u32 %v3109, 7
      %v3111 = vsub.s32 %v3108, %v3110
      %v3112 = vrot.slane %v3096, %v3111
      %v3114 = vunpack.c.l.s4 1966171168
      %v3115 = vunpack.c.0.s8 %v3114
      %v3116 = vlaneseq
      %v3117 = vshrl.u32 %v3116, 7
      %v3118 = vsub.s32 %v3115, %v3117
      %v3119 = vrot.slane %v3103, %v3118
      %v3121 = vunpack.c.l.s4 1966171168
      %v3122 = vunpack.c.0.s8 %v3121
      %v3123 = vlaneseq
      %v3124 = vshrl.u32 %v3123, 7
      %v3125 = vsub.s32 %v3122, %v3124
      %v3126 = vrot.slane %v3104, %v3125
      %v3128 = vunpack.c.l.s4 1966171168
      %v3129 = vunpack.c.0.s8 %v3128
      %v3130 = vlaneseq
      %v3131 = vshrl.u32 %v3130, 7
      %v3132 = vsub.s32 %v3129, %v3131
      %v3133 = vrot.slane %v3105, %v3132
      %v3134 = vcombine.high %v3112, %v3112
      %v3135 = vcombine.high %v3119, %v3119
      %v3136 = vcombine.high %v3126, %v3126
      %v3137 = vcombine.high %v3133, %v3133
      %v3138 = vcombine.high %v2966, %v2966
      %v3140 = vunpack.c.l.s4 1966171168
      %v3141 = vunpack.c.0.s8 %v3140
      %v3142 = vlaneseq
      %v3143 = vshrl.u32 %v3142, 7
      %v3144 = vsub.s32 %v3141, %v3143
      %v3145 = vrot.slane %v2966, %v3144
      %v3147 = vunpack.c.l.s4 1966171168
      %v3148 = vunpack.c.0.s8 %v3147
      %v3149 = vlaneseq
      %v3150 = vshrl.u32 %v3149, 7
      %v3151 = vsub.s32 %v3148, %v3150
      %v3152 = vrot.slane %v3138, %v3151
      %v3153 = vcombine.high %v3145, %v3145
      %v3154 = vcombine.high %v3152, %v3152
      %v3156 = vunpack.c.l.s4 1966171168
      %v3157 = vunpack.c.0.s8 %v3156
      %v3158 = vlaneseq
      %v3159 = vshrl.u32 %v3158, 7
      %v3160 = vsub.s32 %v3157, %v3159
      %v3161 = vrot.slane %v3145, %v3160
      %v3163 = vunpack.c.l.s4 1966171168
      %v3164 = vunpack.c.0.s8 %v3163
      %v3165 = vlaneseq
      %v3166 = vshrl.u32 %v3165, 7
      %v3167 = vsub.s32 %v3164, %v3166
      %v3168 = vrot.slane %v3152, %v3167
      %v3170 = vunpack.c.l.s4 1966171168
      %v3171 = vunpack.c.0.s8 %v3170
      %v3172 = vlaneseq
      %v3173 = vshrl.u32 %v3172, 7
      %v3174 = vsub.s32 %v3171, %v3173
      %v3175 = vrot.slane %v3153, %v3174
      %v3177 = vunpack.c.l.s4 1966171168
      %v3178 = vunpack.c.0.s8 %v3177
      %v3179 = vlaneseq
      %v3180 = vshrl.u32 %v3179, 7
      %v3181 = vsub.s32 %v3178, %v3180
      %v3182 = vrot.slane %v3154, %v3181
      %v3183 = vcombine.high %v3161, %v3161
      %v3184 = vcombine.high %v3168, %v3168
      %v3185 = vcombine.high %v3175, %v3175
      %v3186 = vcombine.high %v3182, %v3182
      %v3187 = vcombine.high %v2971, %v2971
      %v3189 = vunpack.c.l.s4 1966171168
      %v3190 = vunpack.c.0.s8 %v3189
      %v3191 = vlaneseq
      %v3192 = vshrl.u32 %v3191, 7
      %v3193 = vsub.s32 %v3190, %v3192
      %v3194 = vrot.slane %v2971, %v3193
      %v3196 = vunpack.c.l.s4 1966171168
      %v3197 = vunpack.c.0.s8 %v3196
      %v3198 = vlaneseq
      %v3199 = vshrl.u32 %v3198, 7
      %v3200 = vsub.s32 %v3197, %v3199
      %v3201 = vrot.slane %v3187, %v3200
      %v3202 = vcombine.high %v3194, %v3194
      %v3203 = vcombine.high %v3201, %v3201
      %v3205 = vunpack.c.l.s4 1966171168
      %v3206 = vunpack.c.0.s8 %v3205
      %v3207 = vlaneseq
      %v3208 = vshrl.u32 %v3207, 7
      %v3209 = vsub.s32 %v3206, %v3208
      %v3210 = vrot.slane %v3194, %v3209
      %v3212 = vunpack.c.l.s4 1966171168
      %v3213 = vunpack.c.0.s8 %v3212
      %v3214 = vlaneseq
      %v3215 = vshrl.u32 %v3214, 7
      %v3216 = vsub.s32 %v3213, %v3215
      %v3217 = vrot.slane %v3201, %v3216
      %v3219 = vunpack.c.l.s4 1966171168
      %v3220 = vunpack.c.0.s8 %v3219
      %v3221 = vlaneseq
      %v3222 = vshrl.u32 %v3221, 7
      %v3223 = vsub.s32 %v3220, %v3222
      %v3224 = vrot.slane %v3202, %v3223
      %v3226 = vunpack.c.l.s4 1966171168
      %v3227 = vunpack.c.0.s8 %v3226
      %v3228 = vlaneseq
      %v3229 = vshrl.u32 %v3228, 7
      %v3230 = vsub.s32 %v3227, %v3229
      %v3231 = vrot.slane %v3203, %v3230
      %v3232 = vcombine.high %v3210, %v3210
      %v3233 = vcombine.high %v3217, %v3217
      %v3234 = vcombine.high %v3224, %v3224
      %v3235 = vcombine.high %v3231, %v3231
      %v3236 = vcombine.high %v2974, %v2974
      %v3238 = vunpack.c.l.s4 1966171168
      %v3239 = vunpack.c.0.s8 %v3238
      %v3240 = vlaneseq
      %v3241 = vshrl.u32 %v3240, 7
      %v3242 = vsub.s32 %v3239, %v3241
      %v3243 = vrot.slane %v2974, %v3242
      %v3245 = vunpack.c.l.s4 1966171168
      %v3246 = vunpack.c.0.s8 %v3245
      %v3247 = vlaneseq
      %v3248 = vshrl.u32 %v3247, 7
      %v3249 = vsub.s32 %v3246, %v3248
      %v3250 = vrot.slane %v3236, %v3249
      %v3251 = vcombine.high %v3243, %v3243
      %v3252 = vcombine.high %v3250, %v3250
      %v3254 = vunpack.c.l.s4 1966171168
      %v3255 = vunpack.c.0.s8 %v3254
      %v3256 = vlaneseq
      %v3257 = vshrl.u32 %v3256, 7
      %v3258 = vsub.s32 %v3255, %v3257
      %v3259 = vrot.slane %v3243, %v3258
      %v3261 = vunpack.c.l.s4 1966171168
      %v3262 = vunpack.c.0.s8 %v3261
      %v3263 = vlaneseq
      %v3264 = vshrl.u32 %v3263, 7
      %v3265 = vsub.s32 %v3262, %v3264
      %v3266 = vrot.slane %v3250, %v3265
      %v3268 = vunpack.c.l.s4 1966171168
      %v3269 = vunpack.c.0.s8 %v3268
      %v3270 = vlaneseq
      %v3271 = vshrl.u32 %v3270, 7
      %v3272 = vsub.s32 %v3269, %v3271
      %v3273 = vrot.slane %v3251, %v3272
      %v3275 = vunpack.c.l.s4 1966171168
      %v3276 = vunpack.c.0.s8 %v3275
      %v3277 = vlaneseq
      %v3278 = vshrl.u32 %v3277, 7
      %v3279 = vsub.s32 %v3276, %v3278
      %v3280 = vrot.slane %v3252, %v3279
      %v3281 = vcombine.high %v3259, %v3259
      %v3282 = vcombine.high %v3266, %v3266
      %v3283 = vcombine.high %v3273, %v3273
      %v3284 = vcombine.high %v3280, %v3280
      %v3286 = vunpack.c.l.s4 1966171168
      %v3287 = vunpack.c.0.s8 %v3286
      %v3288 = vlaneseq
      %v3289 = vshrl.u32 %v3288, 7
      %v3290 = vsub.s32 %v3287, %v3289
      %v3291 = vrot.slane %v2979, %v3290
      %v3293 = vunpack.c.l.s4 1966171168
      %v3294 = vunpack.c.0.s8 %v3293
      %v3295 = vlaneseq
      %v3296 = vshrl.u32 %v3295, 7
      %v3297 = vsub.s32 %v3294, %v3296
      %v3298 = vrot.slane %v3291, %v3297
      %v3299 = vcombine.low %v3014, %v3028
      %v3300 = vcombine.low %v3036, %v3038
      %v3301 = vcombine.low %v3021, %v3035
      %v3303 = vunpack.c.l.s4 1966171168
      %v3304 = vunpack.c.0.s8 %v3303
      %v3305 = vlaneseq
      %v3306 = vshrl.u32 %v3305, 7
      %v3307 = vsub.s32 %v3304, %v3306
      %v3308 = vrot.slane %v3299, %v3307
      %v3310 = vunpack.c.l.s4 1966171168
      %v3311 = vunpack.c.0.s8 %v3310
      %v3312 = vlaneseq
      %v3313 = vshrl.u32 %v3312, 7
      %v3314 = vsub.s32 %v3311, %v3313
      %v3315 = vrot.slane %v3300, %v3314
      %v3317 = vunpack.c.l.s4 1966171168
      %v3318 = vunpack.c.0.s8 %v3317
      %v3319 = vlaneseq
      %v3320 = vshrl.u32 %v3319, 7
      %v3321 = vsub.s32 %v3318, %v3320
      %v3322 = vrot.slane %v3301, %v3321
      %v3324 = vunpack.c.l.s4 1966171168
      %v3325 = vunpack.c.0.s8 %v3324
      %v3326 = vlaneseq
      %v3327 = vshrl.u32 %v3326, 7
      %v3328 = vsub.s32 %v3325, %v3327
      %v3329 = vrot.slane %v3037, %v3328
      %v3330 = vcombine.low %v3308, %v3315
      %v3331 = vcombine.low %v3322, %v3329
      %v3333 = vunpack.c.l.s4 1966171168
      %v3334 = vunpack.c.0.s8 %v3333
      %v3335 = vlaneseq
      %v3336 = vshrl.u32 %v3335, 7
      %v3337 = vsub.s32 %v3334, %v3336
      %v3338 = vrot.slane %v3330, %v3337
      %v3340 = vunpack.c.l.s4 1966171168
      %v3341 = vunpack.c.0.s8 %v3340
      %v3342 = vlaneseq
      %v3343 = vshrl.u32 %v3342, 7
      %v3344 = vsub.s32 %v3341, %v3343
      %v3345 = vrot.slane %v3331, %v3344
      %v3346 = vcombine.low %v3338, %v3345
      %v3347 = vcombine.low %v3039, %v3063
      %v3348 = vcombine.low %v3077, %v3085
      %v3349 = vcombine.low %v3087, %v3070
      %v3351 = vunpack.c.l.s4 1966171168
      %v3352 = vunpack.c.0.s8 %v3351
      %v3353 = vlaneseq
      %v3354 = vshrl.u32 %v3353, 7
      %v3355 = vsub.s32 %v3352, %v3354
      %v3356 = vrot.slane %v3347, %v3355
      %v3358 = vunpack.c.l.s4 1966171168
      %v3359 = vunpack.c.0.s8 %v3358
      %v3360 = vlaneseq
      %v3361 = vshrl.u32 %v3360, 7
      %v3362 = vsub.s32 %v3359, %v3361
      %v3363 = vrot.slane %v3348, %v3362
      %v3365 = vunpack.c.l.s4 1966171168
      %v3366 = vunpack.c.0.s8 %v3365
      %v3367 = vlaneseq
      %v3368 = vshrl.u32 %v3367, 7
      %v3369 = vsub.s32 %v3366, %v3368
      %v3370 = vrot.slane %v3349, %v3369
      %v3372 = vunpack.c.l.s4 1966171168
      %v3373 = vunpack.c.0.s8 %v3372
      %v3374 = vlaneseq
      %v3375 = vshrl.u32 %v3374, 7
      %v3376 = vsub.s32 %v3373, %v3375
      %v3377 = vrot.slane %v3084, %v3376
      %v3378 = vcombine.low %v3356, %v3363
      %v3379 = vcombine.low %v3370, %v3377
      %v3381 = vunpack.c.l.s4 1966171168
      %v3382 = vunpack.c.0.s8 %v3381
      %v3383 = vlaneseq
      %v3384 = vshrl.u32 %v3383, 7
      %v3385 = vsub.s32 %v3382, %v3384
      %v3386 = vrot.slane %v3378, %v3385
      %v3388 = vunpack.c.l.s4 1966171168
      %v3389 = vunpack.c.0.s8 %v3388
      %v3390 = vlaneseq
      %v3391 = vshrl.u32 %v3390, 7
      %v3392 = vsub.s32 %v3389, %v3391
      %v3393 = vrot.slane %v3379, %v3392
      %v3394 = vcombine.low %v3386, %v3393
      %v3395 = vcombine.low %v3086, %v3088
      %v3396 = vcombine.low %v3112, %v3126
      %v3397 = vcombine.low %v3134, %v3136
      %v3399 = vunpack.c.l.s4 1966171168
      %v3400 = vunpack.c.0.s8 %v3399
      %v3401 = vlaneseq
      %v3402 = vshrl.u32 %v3401, 7
      %v3403 = vsub.s32 %v3400, %v3402
      %v3404 = vrot.slane %v3395, %v3403
      %v3406 = vunpack.c.l.s4 1966171168
      %v3407 = vunpack.c.0.s8 %v3406
      %v3408 = vlaneseq
      %v3409 = vshrl.u32 %v3408, 7
      %v3410 = vsub.s32 %v3407, %v3409
      %v3411 = vrot.slane %v3396, %v3410
      %v3413 = vunpack.c.l.s4 1966171168
      %v3414 = vunpack.c.0.s8 %v3413
      %v3415 = vlaneseq
      %v3416 = vshrl.u32 %v3415, 7
      %v3417 = vsub.s32 %v3414, %v3416
      %v3418 = vrot.slane %v3397, %v3417
      %v3420 = vunpack.c.l.s4 1966171168
      %v3421 = vunpack.c.0.s8 %v3420
      %v3422 = vlaneseq
      %v3423 = vshrl.u32 %v3422, 7
      %v3424 = vsub.s32 %v3421, %v3423
      %v3425 = vrot.slane %v3119, %v3424
      %v3426 = vcombine.low %v3404, %v3411
      %v3427 = vcombine.low %v3418, %v3425
      %v3429 = vunpack.c.l.s4 1966171168
      %v3430 = vunpack.c.0.s8 %v3429
      %v3431 = vlaneseq
      %v3432 = vshrl.u32 %v3431, 7
      %v3433 = vsub.s32 %v3430, %v3432
      %v3434 = vrot.slane %v3426, %v3433
      %v3436 = vunpack.c.l.s4 1966171168
      %v3437 = vunpack.c.0.s8 %v3436
      %v3438 = vlaneseq
      %v3439 = vshrl.u32 %v3438, 7
      %v3440 = vsub.s32 %v3437, %v3439
      %v3441 = vrot.slane %v3427, %v3440
      %v3442 = vcombine.low %v3434, %v3441
      %v3443 = vcombine.low %v3133, %v3135
      %v3444 = vcombine.low %v3137, %v3161
      %v3445 = vcombine.low %v3175, %v3183
      %v3447 = vunpack.c.l.s4 1966171168
      %v3448 = vunpack.c.0.s8 %v3447
      %v3449 = vlaneseq
      %v3450 = vshrl.u32 %v3449, 7
      %v3451 = vsub.s32 %v3448, %v3450
      %v3452 = vrot.slane %v3443, %v3451
      %v3454 = vunpack.c.l.s4 1966171168
      %v3455 = vunpack.c.0.s8 %v3454
      %v3456 = vlaneseq
      %v3457 = vshrl.u32 %v3456, 7
      %v3458 = vsub.s32 %v3455, %v3457
      %v3459 = vrot.slane %v3444, %v3458
      %v3461 = vunpack.c.l.s4 1966171168
      %v3462 = vunpack.c.0.s8 %v3461
      %v3463 = vlaneseq
      %v3464 = vshrl.u32 %v3463, 7
      %v3465 = vsub.s32 %v3462, %v3464
      %v3466 = vrot.slane %v3445, %v3465
      %v3468 = vunpack.c.l.s4 1966171168
      %v3469 = vunpack.c.0.s8 %v3468
      %v3470 = vlaneseq
      %v3471 = vshrl.u32 %v3470, 7
      %v3472 = vsub.s32 %v3469, %v3471
      %v3473 = vrot.slane %v3185, %v3472
      %v3474 = vcombine.low %v3452, %v3459
      %v3475 = vcombine.low %v3466, %v3473
      %v3477 = vunpack.c.l.s4 1966171168
      %v3478 = vunpack.c.0.s8 %v3477
      %v3479 = vlaneseq
      %v3480 = vshrl.u32 %v3479, 7
      %v3481 = vsub.s32 %v3478, %v3480
      %v3482 = vrot.slane %v3474, %v3481
      %v3484 = vunpack.c.l.s4 1966171168
      %v3485 = vunpack.c.0.s8 %v3484
      %v3486 = vlaneseq
      %v3487 = vshrl.u32 %v3486, 7
      %v3488 = vsub.s32 %v3485, %v3487
      %v3489 = vrot.slane %v3475, %v3488
      %v3490 = vcombine.low %v3482, %v3489
      %v3491 = vcombine.low %v3168, %v3182
      %v3492 = vcombine.low %v3184, %v3186
      %v3493 = vcombine.low %v3210, %v3224
      %v3495 = vunpack.c.l.s4 1966171168
      %v3496 = vunpack.c.0.s8 %v3495
      %v3497 = vlaneseq
      %v3498 = vshrl.u32 %v3497, 7
      %v3499 = vsub.s32 %v3496, %v3498
      %v3500 = vrot.slane %v3491, %v3499
      %v3502 = vunpack.c.l.s4 1966171168
      %v3503 = vunpack.c.0.s8 %v3502
      %v3504 = vlaneseq
      %v3505 = vshrl.u32 %v3504, 7
      %v3506 = vsub.s32 %v3503, %v3505
      %v3507 = vrot.slane %v3492, %v3506
      %v3509 = vunpack.c.l.s4 1966171168
      %v3510 = vunpack.c.0.s8 %v3509
      %v3511 = vlaneseq
      %v3512 = vshrl.u32 %v3511, 7
      %v3513 = vsub.s32 %v3510, %v3512
      %v3514 = vrot.slane %v3493, %v3513
      %v3516 = vunpack.c.l.s4 1966171168
      %v3517 = vunpack.c.0.s8 %v3516
      %v3518 = vlaneseq
      %v3519 = vshrl.u32 %v3518, 7
      %v3520 = vsub.s32 %v3517, %v3519
      %v3521 = vrot.slane %v3232, %v3520
      %v3522 = vcombine.low %v3500, %v3507
      %v3523 = vcombine.low %v3514, %v3521
      %v3525 = vunpack.c.l.s4 1966171168
      %v3526 = vunpack.c.0.s8 %v3525
      %v3527 = vlaneseq
      %v3528 = vshrl.u32 %v3527, 7
      %v3529 = vsub.s32 %v3526, %v3528
      %v3530 = vrot.slane %v3522, %v3529
      %v3532 = vunpack.c.l.s4 1966171168
      %v3533 = vunpack.c.0.s8 %v3532
      %v3534 = vlaneseq
      %v3535 = vshrl.u32 %v3534, 7
      %v3536 = vsub.s32 %v3533, %v3535
      %v3537 = vrot.slane %v3523, %v3536
      %v3538 = vcombine.low %v3530, %v3537
      %v3539 = vcombine.low %v3234, %v3217
      %v3540 = vcombine.low %v3231, %v3233
      %v3541 = vcombine.low %v3235, %v3259
      %v3543 = vunpack.c.l.s4 1966171168
      %v3544 = vunpack.c.0.s8 %v3543
      %v3545 = vlaneseq
      %v3546 = vshrl.u32 %v3545, 7
      %v3547 = vsub.s32 %v3544, %v3546
      %v3548 = vrot.slane %v3539, %v3547
      %v3550 = vunpack.c.l.s4 1966171168
      %v3551 = vunpack.c.0.s8 %v3550
      %v3552 = vlaneseq
      %v3553 = vshrl.u32 %v3552, 7
      %v3554 = vsub.s32 %v3551, %v3553
      %v3555 = vrot.slane %v3540, %v3554
      %v3557 = vunpack.c.l.s4 1966171168
      %v3558 = vunpack.c.0.s8 %v3557
      %v3559 = vlaneseq
      %v3560 = vshrl.u32 %v3559, 7
      %v3561 = vsub.s32 %v3558, %v3560
      %v3562 = vrot.slane %v3541, %v3561
      %v3564 = vunpack.c.l.s4 1966171168
      %v3565 = vunpack.c.0.s8 %v3564
      %v3566 = vlaneseq
      %v3567 = vshrl.u32 %v3566, 7
      %v3568 = vsub.s32 %v3565, %v3567
      %v3569 = vrot.slane %v3273, %v3568
      %v3570 = vcombine.low %v3548, %v3555
      %v3571 = vcombine.low %v3562, %v3569
      %v3573 = vunpack.c.l.s4 1966171168
      %v3574 = vunpack.c.0.s8 %v3573
      %v3575 = vlaneseq
      %v3576 = vshrl.u32 %v3575, 7
      %v3577 = vsub.s32 %v3574, %v3576
      %v3578 = vrot.slane %v3570, %v3577
      %v3580 = vunpack.c.l.s4 1966171168
      %v3581 = vunpack.c.0.s8 %v3580
      %v3582 = vlaneseq
      %v3583 = vshrl.u32 %v3582, 7
      %v3584 = vsub.s32 %v3581, %v3583
      %v3585 = vrot.slane %v3571, %v3584
      %v3586 = vcombine.low %v3578, %v3585
      %v3587 = vcombine.low %v3281, %v3283
      %v3588 = vcombine.low %v3266, %v3280
      %v3589 = vcombine.low %v3282, %v3284
      %v3591 = vunpack.c.l.s4 1966171168
      %v3592 = vunpack.c.0.s8 %v3591
      %v3593 = vlaneseq
      %v3594 = vshrl.u32 %v3593, 7
      %v3595 = vsub.s32 %v3592, %v3594
      %v3596 = vrot.slane %v3587, %v3595
      %v3598 = vunpack.c.l.s4 1966171168
      %v3599 = vunpack.c.0.s8 %v3598
      %v3600 = vlaneseq
      %v3601 = vshrl.u32 %v3600, 7
      %v3602 = vsub.s32 %v3599, %v3601
      %v3603 = vrot.slane %v3588, %v3602
      %v3605 = vunpack.c.l.s4 1966171168
      %v3606 = vunpack.c.0.s8 %v3605
      %v3607 = vlaneseq
      %v3608 = vshrl.u32 %v3607, 7
      %v3609 = vsub.s32 %v3606, %v3608
      %v3610 = vrot.slane %v3589, %v3609
      %v3612 = vunpack.c.l.s4 1966171168
      %v3613 = vunpack.c.0.s8 %v3612
      %v3614 = vlaneseq
      %v3615 = vshrl.u32 %v3614, 7
      %v3616 = vsub.s32 %v3613, %v3615
      %v3617 = vrot.slane %v3298, %v3616
      %v3618 = vcombine.low %v3596, %v3603
      %v3619 = vcombine.low %v3610, %v3617
      %v3621 = vunpack.c.l.s4 1966171168
      %v3622 = vunpack.c.0.s8 %v3621
      %v3623 = vlaneseq
      %v3624 = vshrl.u32 %v3623, 7
      %v3625 = vsub.s32 %v3622, %v3624
      %v3626 = vrot.slane %v3618, %v3625
      %v3628 = vunpack.c.l.s4 1966171168
      %v3629 = vunpack.c.0.s8 %v3628
      %v3630 = vlaneseq
      %v3631 = vshrl.u32 %v3630, 7
      %v3632 = vsub.s32 %v3629, %v3631
      %v3633 = vrot.slane %v3619, %v3632
      %v3634 = vcombine.low %v3626, %v3633
      %vm3642 = vcmask 1046528
      %v3643 = vsel %vm3642, %v3346, 0.0
      %v3644 = vsel %vm3642, %v3394, 0.0
      %v3645 = vsel %vm3642, %v3442, 0.0
      %v3646 = vsel %vm3642, %v3490, 0.0
      %v3647 = vsel %vm3642, %v3538, 0.0
      %v3648 = vsel %vm3642, %v3586, 0.0
      %v3649 = vsel %vm3642, %v3634, 0.0
      %v3650 = vadd.f32 %v2659, %v3643
      %v3651 = vadd.f32 %v2660, %v3644
      %v3652 = vadd.f32 %v2661, %v3645
      %v3653 = vadd.f32 %v2662, %v3646
      %v3654 = vadd.f32 %v2663, %v3647
      %v3655 = vadd.f32 %v2664, %v3648
      %v3656 = vadd.f32 %v2665, %v3649
      %v3658 = vunpack.c.l.s4 1966171168
      %v3659 = vunpack.c.0.s8 %v3658
      %v3660 = vlaneseq
      %v3661 = vshrl.u32 %v3660, 7
      %v3662 = vsub.s32 %v3659, %v3661
      %v3663 = vrot.slane %v1329, %v3662
      %v3664 = vcombine.high %v3663, %v3663
      %v3666 = vunpack.c.l.s4 1966171168
      %v3667 = vunpack.c.0.s8 %v3666
      %v3668 = vlaneseq
      %v3669 = vshrl.u32 %v3668, 7
      %v3670 = vsub.s32 %v3667, %v3669
      %v3671 = vrot.slane %v3663, %v3670
      %v3673 = vunpack.c.l.s4 1966171168
      %v3674 = vunpack.c.0.s8 %v3673
      %v3675 = vlaneseq
      %v3676 = vshrl.u32 %v3675, 7
      %v3677 = vsub.s32 %v3674, %v3676
      %v3678 = vrot.slane %v3664, %v3677
      %v3679 = vcombine.high %v3671, %v3671
      %v3680 = vcombine.high %v3678, %v3678
      %v3681 = vunpack.i.l.s16 %v3671
      %v3682 = vunpack.i.h.s16 %v3671
      %v3683 = vunpack.i.l.s16 %v3678
      %v3684 = vunpack.i.h.s16 %v3678
      %v3685 = vunpack.i.l.s16 %v3679
      %v3686 = vunpack.i.h.s16 %v3679
      %v3687 = vunpack.i.l.s16 %v3680
      %s3688 = scalar_lea.vmem %s545, 144
      %v3689 = vld [vmem:[%s3688] sm:$0xf]
      %v3690 = vld [vmem:[%s3688 + $0x4] sm:$0xf]
      %v3691 = vld [vmem:[%s3688 + $0x8] sm:$0xf]
      %v3692 = vld [vmem:[%s3688 + $0xc] sm:$0xf]
      %v3693 = vld [vmem:[%s3688 + $0x10] sm:$0xf]
      %v3694 = vld [vmem:[%s3688 + $0x14] sm:$0xf]
      %v3695 = vld [vmem:[%s3688 + $0x18] sm:$0xf]
      %v3696 = vld [vmem:[%s3688 + $0x1c] sm:$0xf]
      %v3697 = vld [vmem:[%s3688 + $0x20] sm:$0xf]
      %v3698 = vld [vmem:[%s3688 + $0x24] sm:$0xf]
      %v3699 = vld [vmem:[%s3688 + $0x28] sm:$0xf]
      %v3700 = vld [vmem:[%s3688 + $0x2c] sm:$0xf]
      %v3701 = vpack.i.b16 %v3681, %v1546
      %v3702 = vpack.i.b16 %v3683, %v3682
      %v3703 = vpack.i.b16 %v3685, %v3684
      %v3704 = vpack.i.b16 %v3687, %v3686
      %v3705 = vcombine.low %v3701, %v3702
      %v3706 = vcombine.low %v3703, %v3704
      %v3708 = vunpack.c.l.s4 1966171168
      %v3709 = vunpack.c.0.s8 %v3708
      %v3710 = vlaneseq
      %v3711 = vshrl.u32 %v3710, 7
      %v3712 = vsub.s32 %v3709, %v3711
      %v3713 = vrot.slane %v3705, %v3712
      %v3715 = vunpack.c.l.s4 1966171168
      %v3716 = vunpack.c.0.s8 %v3715
      %v3717 = vlaneseq
      %v3718 = vshrl.u32 %v3717, 7
      %v3719 = vsub.s32 %v3716, %v3718
      %v3720 = vrot.slane %v3706, %v3719
      %v3721 = vcombine.low %v3713, %v3720
      %v3723 = vunpack.c.l.s4 1966171168
      %v3724 = vunpack.c.0.s8 %v3723
      %v3725 = vlaneseq
      %v3726 = vshrl.u32 %v3725, 7
      %v3727 = vsub.s32 %v3724, %v3726
      %v3728 = vrot.slane %v3721, %v3727
      %v3741 = vunpack.c.l.b16 %v3689
      %v3742 = vunpack.c.l.b16 %v3690
      %v3743 = vunpack.c.l.b16 %v3691
      %v3744 = vunpack.c.l.b16 %v3692
      %v3745 = vunpack.c.l.b16 %v3693
      %v3746 = vunpack.c.l.b16 %v3694
      %v3747 = vunpack.c.l.b16 %v3695
      %v3748 = vunpack.c.l.b16 %v3696
      %v3749 = vunpack.c.l.b16 %v3697
      %v3750 = vunpack.c.l.b16 %v3698
      %v3751 = vunpack.c.l.b16 %v3699
      %v3752 = vunpack.c.l.b16 %v3700
      %v3753 = vpack.c.b16 %v3742, %v3741
      %v3754 = vpack.c.b16 %v3744, %v3743
      %v3755 = vpack.c.b16 %v3746, %v3745
      %v3756 = vpack.c.b16 %v3748, %v3747
      %v3757 = vpack.c.b16 %v3750, %v3749
      %v3758 = vpack.c.b16 %v3752, %v3751
      %v3766 = vsel %vm1781, %v3728, 0
      %3768 = vmatprep.subr.bf16.mxu0 0
      %3769 = vmatpush1.bf16.msra.mxu0 %v3753
      %3770 = vmatprep.subr.bf16.mxu0 0
      %3771 = vmatpush1.bf16.msra.mxu0 %v3754
      %3772 = vmatprep.subr.bf16.mxu0 0
      %3773 = vmatpush1.bf16.msra.mxu0 %v3755
      %3774 = vmatprep.subr.bf16.mxu0 0
      %3775 = vmatpush1.bf16.msra.mxu0 %v3756
      %3776 = vmatprep.subr.bf16.mxu0 0
      %3777 = vmatpush1.bf16.msra.mxu0 %v3757
      %3778 = vmatprep.subr.bf16.mxu0 0
      %3779 = vmatpush1.bf16.msra.mxu0 %v3758
      %3780 = vmatprep.subr.bf16.mxu0 0
      %3781 = vmatpush1.bf16.msra.mxu0 0
      %3782 = vmatprep.subr.bf16.mxu0 0
      %3783 = vmatpush1.bf16.msra.mxu0 0
      %3784 = vmatprep.subr.bf16.mxu0 0
      %3785 = vmatpush1.bf16.msra.mxu0 0
      %3786 = vmatprep.subr.bf16.mxu0 0
      %3787 = vmatpush1.bf16.msra.mxu0 0
      %3788 = vmatprep.subr.bf16.mxu0 0
      %3789 = vmatpush1.bf16.msra.mxu0 0
      %3790 = vmatprep.subr.bf16.mxu0 0
      %3791 = vmatpush1.bf16.msra.mxu0 0
      %3792 = vmatprep.subr.bf16.mxu0 0
      %3793 = vmatpush1.bf16.msra.mxu0 0
      %3794 = vmatprep.subr.bf16.mxu0 0
      %3795 = vmatpush1.bf16.msra.mxu0 0
      %3796 = vmatprep.subr.bf16.mxu0 0
      %3797 = vmatpush1.bf16.msra.mxu0 0
      %3798 = vmatprep.subr.bf16.mxu0 0
      %3799 = vmatpush1.bf16.msra.mxu0 0
      %3800 = vmatprep.mubr.bf16.mxu0 0
      %3801 = vmatmul.mubr.bf16.gmra.mrb[0].mxu0 %v1783
      %v3802 = vpop.f32.mrb[0].mxu0
      %v3803 = vadd.f32 0.0, %v3802
      %v3804 = vpop.f32.mrb[0].mxu0
      %v3805 = vpop.f32.mrb[0].mxu0
      %v3806 = vadd.f32 0.0, %v3805
      %v3807 = vpop.f32.mrb[0].mxu0
      %3808 = vmatprep.mubr.bf16.mxu0 0
      %3809 = vmatmul.mubr.bf16.gmra.mrb[0].mxu0 %v1786
      %v3810 = vpop.f32.mrb[0].mxu0
      %v3811 = vadd.f32 0.0, %v3810
      %v3812 = vpop.f32.mrb[0].mxu0
      %v3813 = vpop.f32.mrb[0].mxu0
      %v3814 = vadd.f32 0.0, %v3813
      %v3815 = vpop.f32.mrb[0].mxu0
      %3816 = vmatprep.mubr.bf16.mxu0 0
      %3817 = vmatmul.mubr.bf16.gmra.mrb[0].mxu0 %v1789
      %v3818 = vpop.f32.mrb[0].mxu0
      %v3819 = vadd.f32 0.0, %v3818
      %v3820 = vpop.f32.mrb[0].mxu0
      %v3821 = vpop.f32.mrb[0].mxu0
      %v3822 = vadd.f32 0.0, %v3821
      %v3823 = vpop.f32.mrb[0].mxu0
      %3824 = vmatprep.mubr.bf16.mxu0 0
      %3825 = vmatmul.mubr.bf16.gmra.mrb[0].mxu0 %v3766
      %v3826 = vpop.f32.mrb[0].mxu0
      %v3827 = vadd.f32 0.0, %v3826
      %v3828 = vpop.f32.mrb[0].mxu0
      %v3829 = vpop.f32.mrb[0].mxu0
      %v3830 = vpop.f32.mrb[0].mxu0
      %3831 = vdwg.mxu0
      %v3839 = vcombine.high %v3803, %v3803
      %v3841 = vunpack.c.l.s4 1966171168
      %v3842 = vunpack.c.0.s8 %v3841
      %v3843 = vlaneseq
      %v3844 = vshrl.u32 %v3843, 7
      %v3845 = vsub.s32 %v3842, %v3844
      %v3846 = vrot.slane %v3803, %v3845
      %v3848 = vunpack.c.l.s4 1966171168
      %v3849 = vunpack.c.0.s8 %v3848
      %v3850 = vlaneseq
      %v3851 = vshrl.u32 %v3850, 7
      %v3852 = vsub.s32 %v3849, %v3851
      %v3853 = vrot.slane %v3839, %v3852
      %v3854 = vcombine.high %v3846, %v3846
      %v3855 = vcombine.high %v3853, %v3853
      %v3857 = vunpack.c.l.s4 1966171168
      %v3858 = vunpack.c.0.s8 %v3857
      %v3859 = vlaneseq
      %v3860 = vshrl.u32 %v3859, 7
      %v3861 = vsub.s32 %v3858, %v3860
      %v3862 = vrot.slane %v3846, %v3861
      %v3864 = vunpack.c.l.s4 1966171168
      %v3865 = vunpack.c.0.s8 %v3864
      %v3866 = vlaneseq
      %v3867 = vshrl.u32 %v3866, 7
      %v3868 = vsub.s32 %v3865, %v3867
      %v3869 = vrot.slane %v3853, %v3868
      %v3871 = vunpack.c.l.s4 1966171168
      %v3872 = vunpack.c.0.s8 %v3871
      %v3873 = vlaneseq
      %v3874 = vshrl.u32 %v3873, 7
      %v3875 = vsub.s32 %v3872, %v3874
      %v3876 = vrot.slane %v3854, %v3875
      %v3878 = vunpack.c.l.s4 1966171168
      %v3879 = vunpack.c.0.s8 %v3878
      %v3880 = vlaneseq
      %v3881 = vshrl.u32 %v3880, 7
      %v3882 = vsub.s32 %v3879, %v3881
      %v3883 = vrot.slane %v3855, %v3882
      %v3884 = vcombine.high %v3862, %v3862
      %v3885 = vcombine.high %v3869, %v3869
      %v3886 = vcombine.high %v3876, %v3876
      %v3887 = vcombine.high %v3883, %v3883
      %v3888 = vcombine.high %v3806, %v3806
      %v3890 = vunpack.c.l.s4 1966171168
      %v3891 = vunpack.c.0.s8 %v3890
      %v3892 = vlaneseq
      %v3893 = vshrl.u32 %v3892, 7
      %v3894 = vsub.s32 %v3891, %v3893
      %v3895 = vrot.slane %v3806, %v3894
      %v3897 = vunpack.c.l.s4 1966171168
      %v3898 = vunpack.c.0.s8 %v3897
      %v3899 = vlaneseq
      %v3900 = vshrl.u32 %v3899, 7
      %v3901 = vsub.s32 %v3898, %v3900
      %v3902 = vrot.slane %v3888, %v3901
      %v3903 = vcombine.high %v3895, %v3895
      %v3904 = vcombine.high %v3902, %v3902
      %v3906 = vunpack.c.l.s4 1966171168
      %v3907 = vunpack.c.0.s8 %v3906
      %v3908 = vlaneseq
      %v3909 = vshrl.u32 %v3908, 7
      %v3910 = vsub.s32 %v3907, %v3909
      %v3911 = vrot.slane %v3895, %v3910
      %v3913 = vunpack.c.l.s4 1966171168
      %v3914 = vunpack.c.0.s8 %v3913
      %v3915 = vlaneseq
      %v3916 = vshrl.u32 %v3915, 7
      %v3917 = vsub.s32 %v3914, %v3916
      %v3918 = vrot.slane %v3902, %v3917
      %v3920 = vunpack.c.l.s4 1966171168
      %v3921 = vunpack.c.0.s8 %v3920
      %v3922 = vlaneseq
      %v3923 = vshrl.u32 %v3922, 7
      %v3924 = vsub.s32 %v3921, %v3923
      %v3925 = vrot.slane %v3903, %v3924
      %v3927 = vunpack.c.l.s4 1966171168
      %v3928 = vunpack.c.0.s8 %v3927
      %v3929 = vlaneseq
      %v3930 = vshrl.u32 %v3929, 7
      %v3931 = vsub.s32 %v3928, %v3930
      %v3932 = vrot.slane %v3904, %v3931
      %v3933 = vcombine.high %v3911, %v3911
      %v3934 = vcombine.high %v3918, %v3918
      %v3935 = vcombine.high %v3925, %v3925
      %v3936 = vcombine.high %v3932, %v3932
      %v3937 = vcombine.high %v3811, %v3811
      %v3939 = vunpack.c.l.s4 1966171168
      %v3940 = vunpack.c.0.s8 %v3939
      %v3941 = vlaneseq
      %v3942 = vshrl.u32 %v3941, 7
      %v3943 = vsub.s32 %v3940, %v3942
      %v3944 = vrot.slane %v3811, %v3943
      %v3946 = vunpack.c.l.s4 1966171168
      %v3947 = vunpack.c.0.s8 %v3946
      %v3948 = vlaneseq
      %v3949 = vshrl.u32 %v3948, 7
      %v3950 = vsub.s32 %v3947, %v3949
      %v3951 = vrot.slane %v3937, %v3950
      %v3952 = vcombine.high %v3944, %v3944
      %v3953 = vcombine.high %v3951, %v3951
      %v3955 = vunpack.c.l.s4 1966171168
      %v3956 = vunpack.c.0.s8 %v3955
      %v3957 = vlaneseq
      %v3958 = vshrl.u32 %v3957, 7
      %v3959 = vsub.s32 %v3956, %v3958
      %v3960 = vrot.slane %v3944, %v3959
      %v3962 = vunpack.c.l.s4 1966171168
      %v3963 = vunpack.c.0.s8 %v3962
      %v3964 = vlaneseq
      %v3965 = vshrl.u32 %v3964, 7
      %v3966 = vsub.s32 %v3963, %v3965
      %v3967 = vrot.slane %v3951, %v3966
      %v3969 = vunpack.c.l.s4 1966171168
      %v3970 = vunpack.c.0.s8 %v3969
      %v3971 = vlaneseq
      %v3972 = vshrl.u32 %v3971, 7
      %v3973 = vsub.s32 %v3970, %v3972
      %v3974 = vrot.slane %v3952, %v3973
      %v3976 = vunpack.c.l.s4 1966171168
      %v3977 = vunpack.c.0.s8 %v3976
      %v3978 = vlaneseq
      %v3979 = vshrl.u32 %v3978, 7
      %v3980 = vsub.s32 %v3977, %v3979
      %v3981 = vrot.slane %v3953, %v3980
      %v3982 = vcombine.high %v3960, %v3960
      %v3983 = vcombine.high %v3967, %v3967
      %v3984 = vcombine.high %v3974, %v3974
      %v3985 = vcombine.high %v3981, %v3981
      %v3986 = vcombine.high %v3814, %v3814
      %v3988 = vunpack.c.l.s4 1966171168
      %v3989 = vunpack.c.0.s8 %v3988
      %v3990 = vlaneseq
      %v3991 = vshrl.u32 %v3990, 7
      %v3992 = vsub.s32 %v3989, %v3991
      %v3993 = vrot.slane %v3814, %v3992
      %v3995 = vunpack.c.l.s4 1966171168
      %v3996 = vunpack.c.0.s8 %v3995
      %v3997 = vlaneseq
      %v3998 = vshrl.u32 %v3997, 7
      %v3999 = vsub.s32 %v3996, %v3998
      %v4000 = vrot.slane %v3986, %v3999
      %v4001 = vcombine.high %v3993, %v3993
      %v4002 = vcombine.high %v4000, %v4000
      %v4004 = vunpack.c.l.s4 1966171168
      %v4005 = vunpack.c.0.s8 %v4004
      %v4006 = vlaneseq
      %v4007 = vshrl.u32 %v4006, 7
      %v4008 = vsub.s32 %v4005, %v4007
      %v4009 = vrot.slane %v3993, %v4008
      %v4011 = vunpack.c.l.s4 1966171168
      %v4012 = vunpack.c.0.s8 %v4011
      %v4013 = vlaneseq
      %v4014 = vshrl.u32 %v4013, 7
      %v4015 = vsub.s32 %v4012, %v4014
      %v4016 = vrot.slane %v4000, %v4015
      %v4018 = vunpack.c.l.s4 1966171168
      %v4019 = vunpack.c.0.s8 %v4018
      %v4020 = vlaneseq
      %v4021 = vshrl.u32 %v4020, 7
      %v4022 = vsub.s32 %v4019, %v4021
      %v4023 = vrot.slane %v4001, %v4022
      %v4025 = vunpack.c.l.s4 1966171168
      %v4026 = vunpack.c.0.s8 %v4025
      %v4027 = vlaneseq
      %v4028 = vshrl.u32 %v4027, 7
      %v4029 = vsub.s32 %v4026, %v4028
      %v4030 = vrot.slane %v4002, %v4029
      %v4031 = vcombine.high %v4009, %v4009
      %v4032 = vcombine.high %v4016, %v4016
      %v4033 = vcombine.high %v4023, %v4023
      %v4034 = vcombine.high %v4030, %v4030
      %v4035 = vcombine.high %v3819, %v3819
      %v4037 = vunpack.c.l.s4 1966171168
      %v4038 = vunpack.c.0.s8 %v4037
      %v4039 = vlaneseq
      %v4040 = vshrl.u32 %v4039, 7
      %v4041 = vsub.s32 %v4038, %v4040
      %v4042 = vrot.slane %v3819, %v4041
      %v4044 = vunpack.c.l.s4 1966171168
      %v4045 = vunpack.c.0.s8 %v4044
      %v4046 = vlaneseq
      %v4047 = vshrl.u32 %v4046, 7
      %v4048 = vsub.s32 %v4045, %v4047
      %v4049 = vrot.slane %v4035, %v4048
      %v4050 = vcombine.high %v4042, %v4042
      %v4051 = vcombine.high %v4049, %v4049
      %v4053 = vunpack.c.l.s4 1966171168
      %v4054 = vunpack.c.0.s8 %v4053
      %v4055 = vlaneseq
      %v4056 = vshrl.u32 %v4055, 7
      %v4057 = vsub.s32 %v4054, %v4056
      %v4058 = vrot.slane %v4042, %v4057
      %v4060 = vunpack.c.l.s4 1966171168
      %v4061 = vunpack.c.0.s8 %v4060
      %v4062 = vlaneseq
      %v4063 = vshrl.u32 %v4062, 7
      %v4064 = vsub.s32 %v4061, %v4063
      %v4065 = vrot.slane %v4049, %v4064
      %v4067 = vunpack.c.l.s4 1966171168
      %v4068 = vunpack.c.0.s8 %v4067
      %v4069 = vlaneseq
      %v4070 = vshrl.u32 %v4069, 7
      %v4071 = vsub.s32 %v4068, %v4070
      %v4072 = vrot.slane %v4050, %v4071
      %v4074 = vunpack.c.l.s4 1966171168
      %v4075 = vunpack.c.0.s8 %v4074
      %v4076 = vlaneseq
      %v4077 = vshrl.u32 %v4076, 7
      %v4078 = vsub.s32 %v4075, %v4077
      %v4079 = vrot.slane %v4051, %v4078
      %v4080 = vcombine.high %v4058, %v4058
      %v4081 = vcombine.high %v4065, %v4065
      %v4082 = vcombine.high %v4072, %v4072
      %v4083 = vcombine.high %v4079, %v4079
      %v4084 = vcombine.high %v3822, %v3822
      %v4086 = vunpack.c.l.s4 1966171168
      %v4087 = vunpack.c.0.s8 %v4086
      %v4088 = vlaneseq
      %v4089 = vshrl.u32 %v4088, 7
      %v4090 = vsub.s32 %v4087, %v4089
      %v4091 = vrot.slane %v3822, %v4090
      %v4093 = vunpack.c.l.s4 1966171168
      %v4094 = vunpack.c.0.s8 %v4093
      %v4095 = vlaneseq
      %v4096 = vshrl.u32 %v4095, 7
      %v4097 = vsub.s32 %v4094, %v4096
      %v4098 = vrot.slane %v4084, %v4097
      %v4099 = vcombine.high %v4091, %v4091
      %v4100 = vcombine.high %v4098, %v4098
      %v4102 = vunpack.c.l.s4 1966171168
      %v4103 = vunpack.c.0.s8 %v4102
      %v4104 = vlaneseq
      %v4105 = vshrl.u32 %v4104, 7
      %v4106 = vsub.s32 %v4103, %v4105
      %v4107 = vrot.slane %v4091, %v4106
      %v4109 = vunpack.c.l.s4 1966171168
      %v4110 = vunpack.c.0.s8 %v4109
      %v4111 = vlaneseq
      %v4112 = vshrl.u32 %v4111, 7
      %v4113 = vsub.s32 %v4110, %v4112
      %v4114 = vrot.slane %v4098, %v4113
      %v4116 = vunpack.c.l.s4 1966171168
      %v4117 = vunpack.c.0.s8 %v4116
      %v4118 = vlaneseq
      %v4119 = vshrl.u32 %v4118, 7
      %v4120 = vsub.s32 %v4117, %v4119
      %v4121 = vrot.slane %v4099, %v4120
      %v4123 = vunpack.c.l.s4 1966171168
      %v4124 = vunpack.c.0.s8 %v4123
      %v4125 = vlaneseq
      %v4126 = vshrl.u32 %v4125, 7
      %v4127 = vsub.s32 %v4124, %v4126
      %v4128 = vrot.slane %v4100, %v4127
      %v4129 = vcombine.high %v4107, %v4107
      %v4130 = vcombine.high %v4114, %v4114
      %v4131 = vcombine.high %v4121, %v4121
      %v4132 = vcombine.high %v4128, %v4128
      %v4133 = vcombine.high %v3827, %v3827
      %v4135 = vunpack.c.l.s4 1966171168
      %v4136 = vunpack.c.0.s8 %v4135
      %v4137 = vlaneseq
      %v4138 = vshrl.u32 %v4137, 7
      %v4139 = vsub.s32 %v4136, %v4138
      %v4140 = vrot.slane %v3827, %v4139
      %v4142 = vunpack.c.l.s4 1966171168
      %v4143 = vunpack.c.0.s8 %v4142
      %v4144 = vlaneseq
      %v4145 = vshrl.u32 %v4144, 7
      %v4146 = vsub.s32 %v4143, %v4145
      %v4147 = vrot.slane %v4133, %v4146
      %v4148 = vcombine.high %v4140, %v4140
      %v4149 = vcombine.high %v4147, %v4147
      %v4151 = vunpack.c.l.s4 1966171168
      %v4152 = vunpack.c.0.s8 %v4151
      %v4153 = vlaneseq
      %v4154 = vshrl.u32 %v4153, 7
      %v4155 = vsub.s32 %v4152, %v4154
      %v4156 = vrot.slane %v4140, %v4155
      %v4158 = vunpack.c.l.s4 1966171168
      %v4159 = vunpack.c.0.s8 %v4158
      %v4160 = vlaneseq
      %v4161 = vshrl.u32 %v4160, 7
      %v4162 = vsub.s32 %v4159, %v4161
      %v4163 = vrot.slane %v4147, %v4162
      %v4165 = vunpack.c.l.s4 1966171168
      %v4166 = vunpack.c.0.s8 %v4165
      %v4167 = vlaneseq
      %v4168 = vshrl.u32 %v4167, 7
      %v4169 = vsub.s32 %v4166, %v4168
      %v4170 = vrot.slane %v4148, %v4169
      %v4172 = vunpack.c.l.s4 1966171168
      %v4173 = vunpack.c.0.s8 %v4172
      %v4174 = vlaneseq
      %v4175 = vshrl.u32 %v4174, 7
      %v4176 = vsub.s32 %v4173, %v4175
      %v4177 = vrot.slane %v4149, %v4176
      %v4178 = vcombine.high %v4156, %v4156
      %v4179 = vcombine.high %v4163, %v4163
      %v4180 = vcombine.high %v4170, %v4170
      %v4181 = vcombine.high %v4177, %v4177
      %v4182 = vcombine.low %v3862, %v3862
      %v4183 = vcombine.low %v3876, %v3884
      %v4184 = vcombine.low %v3886, %v3869
      %v4185 = vcombine.low %v3883, %v3885
      %v4187 = vunpack.c.l.s4 1966171168
      %v4188 = vunpack.c.0.s8 %v4187
      %v4189 = vlaneseq
      %v4190 = vshrl.u32 %v4189, 7
      %v4191 = vsub.s32 %v4188, %v4190
      %v4192 = vrot.slane %v4182, %v4191
      %v4194 = vunpack.c.l.s4 1966171168
      %v4195 = vunpack.c.0.s8 %v4194
      %v4196 = vlaneseq
      %v4197 = vshrl.u32 %v4196, 7
      %v4198 = vsub.s32 %v4195, %v4197
      %v4199 = vrot.slane %v4183, %v4198
      %v4201 = vunpack.c.l.s4 1966171168
      %v4202 = vunpack.c.0.s8 %v4201
      %v4203 = vlaneseq
      %v4204 = vshrl.u32 %v4203, 7
      %v4205 = vsub.s32 %v4202, %v4204
      %v4206 = vrot.slane %v4184, %v4205
      %v4208 = vunpack.c.l.s4 1966171168
      %v4209 = vunpack.c.0.s8 %v4208
      %v4210 = vlaneseq
      %v4211 = vshrl.u32 %v4210, 7
      %v4212 = vsub.s32 %v4209, %v4211
      %v4213 = vrot.slane %v4185, %v4212
      %v4214 = vcombine.low %v4192, %v4199
      %v4215 = vcombine.low %v4206, %v4213
      %v4217 = vunpack.c.l.s4 1966171168
      %v4218 = vunpack.c.0.s8 %v4217
      %v4219 = vlaneseq
      %v4220 = vshrl.u32 %v4219, 7
      %v4221 = vsub.s32 %v4218, %v4220
      %v4222 = vrot.slane %v4214, %v4221
      %v4224 = vunpack.c.l.s4 1966171168
      %v4225 = vunpack.c.0.s8 %v4224
      %v4226 = vlaneseq
      %v4227 = vshrl.u32 %v4226, 7
      %v4228 = vsub.s32 %v4225, %v4227
      %v4229 = vrot.slane %v4215, %v4228
      %v4230 = vcombine.low %v4222, %v4229
      %v4231 = vcombine.low %v3887, %v3887
      %v4232 = vcombine.low %v3911, %v3925
      %v4233 = vcombine.low %v3933, %v3935
      %v4234 = vcombine.low %v3918, %v3932
      %v4236 = vunpack.c.l.s4 1966171168
      %v4237 = vunpack.c.0.s8 %v4236
      %v4238 = vlaneseq
      %v4239 = vshrl.u32 %v4238, 7
      %v4240 = vsub.s32 %v4237, %v4239
      %v4241 = vrot.slane %v4231, %v4240
      %v4243 = vunpack.c.l.s4 1966171168
      %v4244 = vunpack.c.0.s8 %v4243
      %v4245 = vlaneseq
      %v4246 = vshrl.u32 %v4245, 7
      %v4247 = vsub.s32 %v4244, %v4246
      %v4248 = vrot.slane %v4232, %v4247
      %v4250 = vunpack.c.l.s4 1966171168
      %v4251 = vunpack.c.0.s8 %v4250
      %v4252 = vlaneseq
      %v4253 = vshrl.u32 %v4252, 7
      %v4254 = vsub.s32 %v4251, %v4253
      %v4255 = vrot.slane %v4233, %v4254
      %v4257 = vunpack.c.l.s4 1966171168
      %v4258 = vunpack.c.0.s8 %v4257
      %v4259 = vlaneseq
      %v4260 = vshrl.u32 %v4259, 7
      %v4261 = vsub.s32 %v4258, %v4260
      %v4262 = vrot.slane %v4234, %v4261
      %v4263 = vcombine.low %v4241, %v4248
      %v4264 = vcombine.low %v4255, %v4262
      %v4266 = vunpack.c.l.s4 1966171168
      %v4267 = vunpack.c.0.s8 %v4266
      %v4268 = vlaneseq
      %v4269 = vshrl.u32 %v4268, 7
      %v4270 = vsub.s32 %v4267, %v4269
      %v4271 = vrot.slane %v4263, %v4270
      %v4273 = vunpack.c.l.s4 1966171168
      %v4274 = vunpack.c.0.s8 %v4273
      %v4275 = vlaneseq
      %v4276 = vshrl.u32 %v4275, 7
      %v4277 = vsub.s32 %v4274, %v4276
      %v4278 = vrot.slane %v4264, %v4277
      %v4279 = vcombine.low %v4271, %v4278
      %v4280 = vcombine.low %v3934, %v3934
      %v4281 = vcombine.low %v3936, %v3960
      %v4282 = vcombine.low %v3974, %v3982
      %v4283 = vcombine.low %v3984, %v3967
      %v4285 = vunpack.c.l.s4 1966171168
      %v4286 = vunpack.c.0.s8 %v4285
      %v4287 = vlaneseq
      %v4288 = vshrl.u32 %v4287, 7
      %v4289 = vsub.s32 %v4286, %v4288
      %v4290 = vrot.slane %v4280, %v4289
      %v4292 = vunpack.c.l.s4 1966171168
      %v4293 = vunpack.c.0.s8 %v4292
      %v4294 = vlaneseq
      %v4295 = vshrl.u32 %v4294, 7
      %v4296 = vsub.s32 %v4293, %v4295
      %v4297 = vrot.slane %v4281, %v4296
      %v4299 = vunpack.c.l.s4 1966171168
      %v4300 = vunpack.c.0.s8 %v4299
      %v4301 = vlaneseq
      %v4302 = vshrl.u32 %v4301, 7
      %v4303 = vsub.s32 %v4300, %v4302
      %v4304 = vrot.slane %v4282, %v4303
      %v4306 = vunpack.c.l.s4 1966171168
      %v4307 = vunpack.c.0.s8 %v4306
      %v4308 = vlaneseq
      %v4309 = vshrl.u32 %v4308, 7
      %v4310 = vsub.s32 %v4307, %v4309
      %v4311 = vrot.slane %v4283, %v4310
      %v4312 = vcombine.low %v4290, %v4297
      %v4313 = vcombine.low %v4304, %v4311
      %v4315 = vunpack.c.l.s4 1966171168
      %v4316 = vunpack.c.0.s8 %v4315
      %v4317 = vlaneseq
      %v4318 = vshrl.u32 %v4317, 7
      %v4319 = vsub.s32 %v4316, %v4318
      %v4320 = vrot.slane %v4312, %v4319
      %v4322 = vunpack.c.l.s4 1966171168
      %v4323 = vunpack.c.0.s8 %v4322
      %v4324 = vlaneseq
      %v4325 = vshrl.u32 %v4324, 7
      %v4326 = vsub.s32 %v4323, %v4325
      %v4327 = vrot.slane %v4313, %v4326
      %v4328 = vcombine.low %v4320, %v4327
      %v4329 = vcombine.low %v3981, %v3981
      %v4330 = vcombine.low %v3983, %v3985
      %v4331 = vcombine.low %v4009, %v4023
      %v4332 = vcombine.low %v4031, %v4033
      %v4334 = vunpack.c.l.s4 1966171168
      %v4335 = vunpack.c.0.s8 %v4334
      %v4336 = vlaneseq
      %v4337 = vshrl.u32 %v4336, 7
      %v4338 = vsub.s32 %v4335, %v4337
      %v4339 = vrot.slane %v4329, %v4338
      %v4341 = vunpack.c.l.s4 1966171168
      %v4342 = vunpack.c.0.s8 %v4341
      %v4343 = vlaneseq
      %v4344 = vshrl.u32 %v4343, 7
      %v4345 = vsub.s32 %v4342, %v4344
      %v4346 = vrot.slane %v4330, %v4345
      %v4348 = vunpack.c.l.s4 1966171168
      %v4349 = vunpack.c.0.s8 %v4348
      %v4350 = vlaneseq
      %v4351 = vshrl.u32 %v4350, 7
      %v4352 = vsub.s32 %v4349, %v4351
      %v4353 = vrot.slane %v4331, %v4352
      %v4355 = vunpack.c.l.s4 1966171168
      %v4356 = vunpack.c.0.s8 %v4355
      %v4357 = vlaneseq
      %v4358 = vshrl.u32 %v4357, 7
      %v4359 = vsub.s32 %v4356, %v4358
      %v4360 = vrot.slane %v4332, %v4359
      %v4361 = vcombine.low %v4339, %v4346
      %v4362 = vcombine.low %v4353, %v4360
      %v4364 = vunpack.c.l.s4 1966171168
      %v4365 = vunpack.c.0.s8 %v4364
      %v4366 = vlaneseq
      %v4367 = vshrl.u32 %v4366, 7
      %v4368 = vsub.s32 %v4365, %v4367
      %v4369 = vrot.slane %v4361, %v4368
      %v4371 = vunpack.c.l.s4 1966171168
      %v4372 = vunpack.c.0.s8 %v4371
      %v4373 = vlaneseq
      %v4374 = vshrl.u32 %v4373, 7
      %v4375 = vsub.s32 %v4372, %v4374
      %v4376 = vrot.slane %v4362, %v4375
      %v4377 = vcombine.low %v4369, %v4376
      %v4378 = vcombine.low %v4016, %v4016
      %v4379 = vcombine.low %v4030, %v4032
      %v4380 = vcombine.low %v4034, %v4058
      %v4381 = vcombine.low %v4072, %v4080
      %v4383 = vunpack.c.l.s4 1966171168
      %v4384 = vunpack.c.0.s8 %v4383
      %v4385 = vlaneseq
      %v4386 = vshrl.u32 %v4385, 7
      %v4387 = vsub.s32 %v4384, %v4386
      %v4388 = vrot.slane %v4378, %v4387
      %v4390 = vunpack.c.l.s4 1966171168
      %v4391 = vunpack.c.0.s8 %v4390
      %v4392 = vlaneseq
      %v4393 = vshrl.u32 %v4392, 7
      %v4394 = vsub.s32 %v4391, %v4393
      %v4395 = vrot.slane %v4379, %v4394
      %v4397 = vunpack.c.l.s4 1966171168
      %v4398 = vunpack.c.0.s8 %v4397
      %v4399 = vlaneseq
      %v4400 = vshrl.u32 %v4399, 7
      %v4401 = vsub.s32 %v4398, %v4400
      %v4402 = vrot.slane %v4380, %v4401
      %v4404 = vunpack.c.l.s4 1966171168
      %v4405 = vunpack.c.0.s8 %v4404
      %v4406 = vlaneseq
      %v4407 = vshrl.u32 %v4406, 7
      %v4408 = vsub.s32 %v4405, %v4407
      %v4409 = vrot.slane %v4381, %v4408
      %v4410 = vcombine.low %v4388, %v4395
      %v4411 = vcombine.low %v4402, %v4409
      %v4413 = vunpack.c.l.s4 1966171168
      %v4414 = vunpack.c.0.s8 %v4413
      %v4415 = vlaneseq
      %v4416 = vshrl.u32 %v4415, 7
      %v4417 = vsub.s32 %v4414, %v4416
      %v4418 = vrot.slane %v4410, %v4417
      %v4420 = vunpack.c.l.s4 1966171168
      %v4421 = vunpack.c.0.s8 %v4420
      %v4422 = vlaneseq
      %v4423 = vshrl.u32 %v4422, 7
      %v4424 = vsub.s32 %v4421, %v4423
      %v4425 = vrot.slane %v4411, %v4424
      %v4426 = vcombine.low %v4418, %v4425
      %v4427 = vcombine.low %v4082, %v4082
      %v4428 = vcombine.low %v4065, %v4079
      %v4429 = vcombine.low %v4081, %v4083
      %v4430 = vcombine.low %v4107, %v4121
      %v4432 = vunpack.c.l.s4 1966171168
      %v4433 = vunpack.c.0.s8 %v4432
      %v4434 = vlaneseq
      %v4435 = vshrl.u32 %v4434, 7
      %v4436 = vsub.s32 %v4433, %v4435
      %v4437 = vrot.slane %v4427, %v4436
      %v4439 = vunpack.c.l.s4 1966171168
      %v4440 = vunpack.c.0.s8 %v4439
      %v4441 = vlaneseq
      %v4442 = vshrl.u32 %v4441, 7
      %v4443 = vsub.s32 %v4440, %v4442
      %v4444 = vrot.slane %v4428, %v4443
      %v4446 = vunpack.c.l.s4 1966171168
      %v4447 = vunpack.c.0.s8 %v4446
      %v4448 = vlaneseq
      %v4449 = vshrl.u32 %v4448, 7
      %v4450 = vsub.s32 %v4447, %v4449
      %v4451 = vrot.slane %v4429, %v4450
      %v4453 = vunpack.c.l.s4 1966171168
      %v4454 = vunpack.c.0.s8 %v4453
      %v4455 = vlaneseq
      %v4456 = vshrl.u32 %v4455, 7
      %v4457 = vsub.s32 %v4454, %v4456
      %v4458 = vrot.slane %v4430, %v4457
      %v4459 = vcombine.low %v4437, %v4444
      %v4460 = vcombine.low %v4451, %v4458
      %v4462 = vunpack.c.l.s4 1966171168
      %v4463 = vunpack.c.0.s8 %v4462
      %v4464 = vlaneseq
      %v4465 = vshrl.u32 %v4464, 7
      %v4466 = vsub.s32 %v4463, %v4465
      %v4467 = vrot.slane %v4459, %v4466
      %v4469 = vunpack.c.l.s4 1966171168
      %v4470 = vunpack.c.0.s8 %v4469
      %v4471 = vlaneseq
      %v4472 = vshrl.u32 %v4471, 7
      %v4473 = vsub.s32 %v4470, %v4472
      %v4474 = vrot.slane %v4460, %v4473
      %v4475 = vcombine.low %v4467, %v4474
      %v4476 = vcombine.low %v4129, %v4129
      %v4477 = vcombine.low %v4131, %v4114
      %v4478 = vcombine.low %v4128, %v4130
      %v4479 = vcombine.low %v4132, %v4156
      %v4481 = vunpack.c.l.s4 1966171168
      %v4482 = vunpack.c.0.s8 %v4481
      %v4483 = vlaneseq
      %v4484 = vshrl.u32 %v4483, 7
      %v4485 = vsub.s32 %v4482, %v4484
      %v4486 = vrot.slane %v4476, %v4485
      %v4488 = vunpack.c.l.s4 1966171168
      %v4489 = vunpack.c.0.s8 %v4488
      %v4490 = vlaneseq
      %v4491 = vshrl.u32 %v4490, 7
      %v4492 = vsub.s32 %v4489, %v4491
      %v4493 = vrot.slane %v4477, %v4492
      %v4495 = vunpack.c.l.s4 1966171168
      %v4496 = vunpack.c.0.s8 %v4495
      %v4497 = vlaneseq
      %v4498 = vshrl.u32 %v4497, 7
      %v4499 = vsub.s32 %v4496, %v4498
      %v4500 = vrot.slane %v4478, %v4499
      %v4502 = vunpack.c.l.s4 1966171168
      %v4503 = vunpack.c.0.s8 %v4502
      %v4504 = vlaneseq
      %v4505 = vshrl.u32 %v4504, 7
      %v4506 = vsub.s32 %v4503, %v4505
      %v4507 = vrot.slane %v4479, %v4506
      %v4508 = vcombine.low %v4486, %v4493
      %v4509 = vcombine.low %v4500, %v4507
      %v4511 = vunpack.c.l.s4 1966171168
      %v4512 = vunpack.c.0.s8 %v4511
      %v4513 = vlaneseq
      %v4514 = vshrl.u32 %v4513, 7
      %v4515 = vsub.s32 %v4512, %v4514
      %v4516 = vrot.slane %v4508, %v4515
      %v4518 = vunpack.c.l.s4 1966171168
      %v4519 = vunpack.c.0.s8 %v4518
      %v4520 = vlaneseq
      %v4521 = vshrl.u32 %v4520, 7
      %v4522 = vsub.s32 %v4519, %v4521
      %v4523 = vrot.slane %v4509, %v4522
      %v4524 = vcombine.low %v4516, %v4523
      %v4525 = vcombine.low %v4170, %v4170
      %v4526 = vcombine.low %v4178, %v4180
      %v4527 = vcombine.low %v4163, %v4177
      %v4528 = vcombine.low %v4179, %v4181
      %v4530 = vunpack.c.l.s4 1966171168
      %v4531 = vunpack.c.0.s8 %v4530
      %v4532 = vlaneseq
      %v4533 = vshrl.u32 %v4532, 7
      %v4534 = vsub.s32 %v4531, %v4533
      %v4535 = vrot.slane %v4525, %v4534
      %v4537 = vunpack.c.l.s4 1966171168
      %v4538 = vunpack.c.0.s8 %v4537
      %v4539 = vlaneseq
      %v4540 = vshrl.u32 %v4539, 7
      %v4541 = vsub.s32 %v4538, %v4540
      %v4542 = vrot.slane %v4526, %v4541
      %v4544 = vunpack.c.l.s4 1966171168
      %v4545 = vunpack.c.0.s8 %v4544
      %v4546 = vlaneseq
      %v4547 = vshrl.u32 %v4546, 7
      %v4548 = vsub.s32 %v4545, %v4547
      %v4549 = vrot.slane %v4527, %v4548
      %v4551 = vunpack.c.l.s4 1966171168
      %v4552 = vunpack.c.0.s8 %v4551
      %v4553 = vlaneseq
      %v4554 = vshrl.u32 %v4553, 7
      %v4555 = vsub.s32 %v4552, %v4554
      %v4556 = vrot.slane %v4528, %v4555
      %v4557 = vcombine.low %v4535, %v4542
      %v4558 = vcombine.low %v4549, %v4556
      %v4560 = vunpack.c.l.s4 1966171168
      %v4561 = vunpack.c.0.s8 %v4560
      %v4562 = vlaneseq
      %v4563 = vshrl.u32 %v4562, 7
      %v4564 = vsub.s32 %v4561, %v4563
      %v4565 = vrot.slane %v4557, %v4564
      %v4567 = vunpack.c.l.s4 1966171168
      %v4568 = vunpack.c.0.s8 %v4567
      %v4569 = vlaneseq
      %v4570 = vshrl.u32 %v4569, 7
      %v4571 = vsub.s32 %v4568, %v4570
      %v4572 = vrot.slane %v4558, %v4571
      %v4573 = vcombine.low %v4565, %v4572
      %v4582 = vsel %vm2523, 0.0, %v4230
      %v4583 = vsel %vm2523, 0.0, %v4279
      %v4584 = vsel %vm2523, 0.0, %v4328
      %v4585 = vsel %vm2523, 0.0, %v4377
      %v4586 = vsel %vm2523, 0.0, %v4426
      %v4587 = vsel %vm2523, 0.0, %v4475
      %v4588 = vsel %vm2523, 0.0, %v4524
      %v4589 = vsel %vm2523, 0.0, %v4573
      %v4590 = vadd.f32 %v4582, 0.0
      %v4591 = vadd.f32 %v3650, %v4583
      %v4592 = vadd.f32 %v3651, %v4584
      %v4593 = vadd.f32 %v3652, %v4585
      %v4594 = vadd.f32 %v3653, %v4586
      %v4595 = vadd.f32 %v3654, %v4587
      %v4596 = vadd.f32 %v3655, %v4588
      %v4597 = vadd.f32 %v3656, %v4589
      %s4598 = scalar_lea.vmem %s545, 192
      %v4599 = vld [vmem:[%s4598] sm:$0xf]
      %v4600 = vld [vmem:[%s4598 + $0x4] sm:$0xf]
      %v4601 = vld [vmem:[%s4598 + $0x8] sm:$0xf]
      %v4602 = vld [vmem:[%s4598 + $0xc] sm:$0xf]
      %v4603 = vld [vmem:[%s4598 + $0x10] sm:$0xf]
      %v4604 = vld [vmem:[%s4598 + $0x14] sm:$0xf]
      %v4605 = vld [vmem:[%s4598 + $0x18] sm:$0xf]
      %v4606 = vld [vmem:[%s4598 + $0x1c] sm:$0xf]
      %v4607 = vld [vmem:[%s4598 + $0x20] sm:$0xf]
      %v4608 = vld [vmem:[%s4598 + $0x24] sm:$0xf]
      %v4609 = vld [vmem:[%s4598 + $0x28] sm:$0xf]
      %v4610 = vld [vmem:[%s4598 + $0x2c] sm:$0xf]
      %v4623 = vunpack.c.l.b16 %v4599
      %v4624 = vunpack.c.l.b16 %v4600
      %v4625 = vunpack.c.l.b16 %v4601
      %v4626 = vunpack.c.l.b16 %v4602
      %v4627 = vunpack.c.l.b16 %v4603
      %v4628 = vunpack.c.l.b16 %v4604
      %v4629 = vunpack.c.l.b16 %v4605
      %v4630 = vunpack.c.l.b16 %v4606
      %v4631 = vunpack.c.l.b16 %v4607
      %v4632 = vunpack.c.l.b16 %v4608
      %v4633 = vunpack.c.l.b16 %v4609
      %v4634 = vunpack.c.l.b16 %v4610
      %v4635 = vpack.c.b16 %v4624, %v4623
      %v4636 = vpack.c.b16 %v4626, %v4625
      %v4637 = vpack.c.b16 %v4628, %v4627
      %v4638 = vpack.c.b16 %v4630, %v4629
      %v4639 = vpack.c.b16 %v4632, %v4631
      %v4640 = vpack.c.b16 %v4634, %v4633
      %v4647 = vsel %vm1781, %v1300, 0
      %v4649 = vsel %vm1781, %v1303, 0
      %v4651 = vsel %vm1781, %v1306, 0
      %v4653 = vsel %vm1781, %v1309, 0
      %4655 = vmatprep.subr.bf16.mxu0 0
      %4656 = vmatpush1.bf16.msra.mxu0 %v4635
      %4657 = vmatprep.subr.bf16.mxu0 0
      %4658 = vmatpush1.bf16.msra.mxu0 %v4636
      %4659 = vmatprep.subr.bf16.mxu0 0
      %4660 = vmatpush1.bf16.msra.mxu0 %v4637
      %4661 = vmatprep.subr.bf16.mxu0 0
      %4662 = vmatpush1.bf16.msra.mxu0 %v4638
      %4663 = vmatprep.subr.bf16.mxu0 0
      %4664 = vmatpush1.bf16.msra.mxu0 %v4639
      %4665 = vmatprep.subr.bf16.mxu0 0
      %4666 = vmatpush1.bf16.msra.mxu0 %v4640
      %4667 = vmatprep.subr.bf16.mxu0 0
      %4668 = vmatpush1.bf16.msra.mxu0 0
      %4669 = vmatprep.subr.bf16.mxu0 0
      %4670 = vmatpush1.bf16.msra.mxu0 0
      %4671 = vmatprep.subr.bf16.mxu0 0
      %4672 = vmatpush1.bf16.msra.mxu0 0
      %4673 = vmatprep.subr.bf16.mxu0 0
      %4674 = vmatpush1.bf16.msra.mxu0 0
      %4675 = vmatprep.subr.bf16.mxu0 0
      %4676 = vmatpush1.bf16.msra.mxu0 0
      %4677 = vmatprep.subr.bf16.mxu0 0
      %4678 = vmatpush1.bf16.msra.mxu0 0
      %4679 = vmatprep.subr.bf16.mxu0 0
      %4680 = vmatpush1.bf16.msra.mxu0 0
      %4681 = vmatprep.subr.bf16.mxu0 0
      %4682 = vmatpush1.bf16.msra.mxu0 0
      %4683 = vmatprep.subr.bf16.mxu0 0
      %4684 = vmatpush1.bf16.msra.mxu0 0
      %4685 = vmatprep.subr.bf16.mxu0 0
      %4686 = vmatpush1.bf16.msra.mxu0 0
      %4687 = vmatprep.mubr.bf16.mxu0 0
      %4688 = vmatmul.mubr.bf16.gmra.mrb[0].mxu0 %v4647
      %v4689 = vpop.f32.mrb[0].mxu0
      %v4690 = vadd.f32 0.0, %v4689
      %v4691 = vpop.f32.mrb[0].mxu0
      %v4692 = vpop.f32.mrb[0].mxu0
      %v4693 = vadd.f32 0.0, %v4692
      %v4694 = vpop.f32.mrb[0].mxu0
      %4695 = vmatprep.mubr.bf16.mxu0 0
      %4696 = vmatmul.mubr.bf16.gmra.mrb[0].mxu0 %v4649
      %v4697 = vpop.f32.mrb[0].mxu0
      %v4698 = vadd.f32 0.0, %v4697
      %v4699 = vpop.f32.mrb[0].mxu0
      %v4700 = vpop.f32.mrb[0].mxu0
      %v4701 = vadd.f32 0.0, %v4700
      %v4702 = vpop.f32.mrb[0].mxu0
      %4703 = vmatprep.mubr.bf16.mxu0 0
      %4704 = vmatmul.mubr.bf16.gmra.mrb[0].mxu0 %v4651
      %v4705 = vpop.f32.mrb[0].mxu0
      %v4706 = vadd.f32 0.0, %v4705
      %v4707 = vpop.f32.mrb[0].mxu0
      %v4708 = vpop.f32.mrb[0].mxu0
      %v4709 = vadd.f32 0.0, %v4708
      %v4710 = vpop.f32.mrb[0].mxu0
      %4711 = vmatprep.mubr.bf16.mxu0 0
      %4712 = vmatmul.mubr.bf16.gmra.mrb[0].mxu0 %v4653
      %v4713 = vpop.f32.mrb[0].mxu0
      %v4714 = vadd.f32 0.0, %v4713
      %v4715 = vpop.f32.mrb[0].mxu0
      %v4716 = vpop.f32.mrb[0].mxu0
      %v4717 = vadd.f32 0.0, %v4716
      %v4718 = vpop.f32.mrb[0].mxu0
      %4719 = vdwg.mxu0
      %v4720 = vadd.f32 %v4590, %v4690
      %v4721 = vadd.f32 %v4591, %v4693
      %v4722 = vadd.f32 %v4592, %v4698
      %v4723 = vadd.f32 %v4593, %v4701
      %v4724 = vadd.f32 %v4594, %v4706
      %v4725 = vadd.f32 %v4595, %v4709
      %v4726 = vadd.f32 %v4596, %v4714
      %v4727 = vadd.f32 %v4597, %v4717
      %v4728 = vunpack.i.h.s16 %v3680
      %s4729 = scalar_lea.vmem %s545, 240
      %v4730 = vld [vmem:[%s4729] sm:$0xf]
      %v4731 = vld [vmem:[%s4729 + $0x4] sm:$0xf]
      %v4732 = vld [vmem:[%s4729 + $0x8] sm:$0xf]
      %v4733 = vld [vmem:[%s4729 + $0xc] sm:$0xf]
      %v4734 = vld [vmem:[%s4729 + $0x10] sm:$0xf]
      %v4735 = vld [vmem:[%s4729 + $0x14] sm:$0xf]
      %v4736 = vld [vmem:[%s4729 + $0x18] sm:$0xf]
      %v4737 = vld [vmem:[%s4729 + $0x1c] sm:$0xf]
      %v4738 = vld [vmem:[%s4729 + $0x20] sm:$0xf]
      %v4739 = vld [vmem:[%s4729 + $0x24] sm:$0xf]
      %v4740 = vld [vmem:[%s4729 + $0x28] sm:$0xf]
      %v4741 = vld [vmem:[%s4729 + $0x2c] sm:$0xf]
      %v4742 = vpack.i.b16 %v3682, %v2672
      %v4743 = vpack.i.b16 %v3684, %v3683
      %v4744 = vpack.i.b16 %v3686, %v3685
      %v4745 = vpack.i.b16 %v4728, %v3687
      %v4746 = vcombine.low %v4742, %v4743
      %v4747 = vcombine.low %v4744, %v4745
      %v4749 = vunpack.c.l.s4 1966171168
      %v4750 = vunpack.c.0.s8 %v4749
      %v4751 = vlaneseq
      %v4752 = vshrl.u32 %v4751, 7
      %v4753 = vsub.s32 %v4750, %v4752
      %v4754 = vrot.slane %v4746, %v4753
      %v4756 = vunpack.c.l.s4 1966171168
      %v4757 = vunpack.c.0.s8 %v4756
      %v4758 = vlaneseq
      %v4759 = vshrl.u32 %v4758, 7
      %v4760 = vsub.s32 %v4757, %v4759
      %v4761 = vrot.slane %v4747, %v4760
      %v4762 = vcombine.low %v4754, %v4761
      %v4764 = vunpack.c.l.s4 1966171168
      %v4765 = vunpack.c.0.s8 %v4764
      %v4766 = vlaneseq
      %v4767 = vshrl.u32 %v4766, 7
      %v4768 = vsub.s32 %v4765, %v4767
      %v4769 = vrot.slane %v4762, %v4768
      %v4782 = vunpack.c.l.b16 %v4730
      %v4783 = vunpack.c.l.b16 %v4731
      %v4784 = vunpack.c.l.b16 %v4732
      %v4785 = vunpack.c.l.b16 %v4733
      %v4786 = vunpack.c.l.b16 %v4734
      %v4787 = vunpack.c.l.b16 %v4735
      %v4788 = vunpack.c.l.b16 %v4736
      %v4789 = vunpack.c.l.b16 %v4737
      %v4790 = vunpack.c.l.b16 %v4738
      %v4791 = vunpack.c.l.b16 %v4739
      %v4792 = vunpack.c.l.b16 %v4740
      %v4793 = vunpack.c.l.b16 %v4741
      %v4794 = vpack.c.b16 %v4783, %v4782
      %v4795 = vpack.c.b16 %v4785, %v4784
      %v4796 = vpack.c.b16 %v4787, %v4786
      %v4797 = vpack.c.b16 %v4789, %v4788
      %v4798 = vpack.c.b16 %v4791, %v4790
      %v4799 = vpack.c.b16 %v4793, %v4792
      %v4807 = vsel %vm1781, %v4769, 0
      %4809 = vmatprep.subr.bf16.mxu0 0
      %4810 = vmatpush1.bf16.msra.mxu0 %v4794
      %4811 = vmatprep.subr.bf16.mxu0 0
      %4812 = vmatpush1.bf16.msra.mxu0 %v4795
      %4813 = vmatprep.subr.bf16.mxu0 0
      %4814 = vmatpush1.bf16.msra.mxu0 %v4796
      %4815 = vmatprep.subr.bf16.mxu0 0
      %4816 = vmatpush1.bf16.msra.mxu0 %v4797
      %4817 = vmatprep.subr.bf16.mxu0 0
      %4818 = vmatpush1.bf16.msra.mxu0 %v4798
      %4819 = vmatprep.subr.bf16.mxu0 0
      %4820 = vmatpush1.bf16.msra.mxu0 %v4799
      %4821 = vmatprep.subr.bf16.mxu0 0
      %4822 = vmatpush1.bf16.msra.mxu0 0
      %4823 = vmatprep.subr.bf16.mxu0 0
      %4824 = vmatpush1.bf16.msra.mxu0 0
      %4825 = vmatprep.subr.bf16.mxu0 0
      %4826 = vmatpush1.bf16.msra.mxu0 0
      %4827 = vmatprep.subr.bf16.mxu0 0
      %4828 = vmatpush1.bf16.msra.mxu0 0
      %4829 = vmatprep.subr.bf16.mxu0 0
      %4830 = vmatpush1.bf16.msra.mxu0 0
      %4831 = vmatprep.subr.bf16.mxu0 0
      %4832 = vmatpush1.bf16.msra.mxu0 0
      %4833 = vmatprep.subr.bf16.mxu0 0
      %4834 = vmatpush1.bf16.msra.mxu0 0
      %4835 = vmatprep.subr.bf16.mxu0 0
      %4836 = vmatpush1.bf16.msra.mxu0 0
      %4837 = vmatprep.subr.bf16.mxu0 0
      %4838 = vmatpush1.bf16.msra.mxu0 0
      %4839 = vmatprep.subr.bf16.mxu0 0
      %4840 = vmatpush1.bf16.msra.mxu0 0
      %4841 = vmatprep.mubr.bf16.mxu0 0
      %4842 = vmatmul.mubr.bf16.gmra.mrb[0].mxu0 %v2909
      %v4843 = vpop.f32.mrb[0].mxu0
      %v4844 = vadd.f32 0.0, %v4843
      %v4845 = vpop.f32.mrb[0].mxu0
      %v4846 = vpop.f32.mrb[0].mxu0
      %v4847 = vadd.f32 0.0, %v4846
      %v4848 = vpop.f32.mrb[0].mxu0
      %4849 = vmatprep.mubr.bf16.mxu0 0
      %4850 = vmatmul.mubr.bf16.gmra.mrb[0].mxu0 %v2912
      %v4851 = vpop.f32.mrb[0].mxu0
      %v4852 = vadd.f32 0.0, %v4851
      %v4853 = vpop.f32.mrb[0].mxu0
      %v4854 = vpop.f32.mrb[0].mxu0
      %v4855 = vadd.f32 0.0, %v4854
      %v4856 = vpop.f32.mrb[0].mxu0
      %4857 = vmatprep.mubr.bf16.mxu0 0
      %4858 = vmatmul.mubr.bf16.gmra.mrb[0].mxu0 %v2915
      %v4859 = vpop.f32.mrb[0].mxu0
      %v4860 = vadd.f32 0.0, %v4859
      %v4861 = vpop.f32.mrb[0].mxu0
      %v4862 = vpop.f32.mrb[0].mxu0
      %v4863 = vadd.f32 0.0, %v4862
      %v4864 = vpop.f32.mrb[0].mxu0
      %4865 = vmatprep.mubr.bf16.mxu0 0
      %4866 = vmatmul.mubr.bf16.gmra.mrb[0].mxu0 %v4807
      %v4867 = vpop.f32.mrb[0].mxu0
      %v4868 = vadd.f32 0.0, %v4867
      %v4869 = vpop.f32.mrb[0].mxu0
      %v4870 = vpop.f32.mrb[0].mxu0
      %v4871 = vpop.f32.mrb[0].mxu0
      %4872 = vdwg.mxu0
      %v4880 = vcombine.high %v4844, %v4844
      %v4882 = vunpack.c.l.s4 1966171168
      %v4883 = vunpack.c.0.s8 %v4882
      %v4884 = vlaneseq
      %v4885 = vshrl.u32 %v4884, 7
      %v4886 = vsub.s32 %v4883, %v4885
      %v4887 = vrot.slane %v4844, %v4886
      %v4889 = vunpack.c.l.s4 1966171168
      %v4890 = vunpack.c.0.s8 %v4889
      %v4891 = vlaneseq
      %v4892 = vshrl.u32 %v4891, 7
      %v4893 = vsub.s32 %v4890, %v4892
      %v4894 = vrot.slane %v4880, %v4893
      %v4895 = vcombine.high %v4887, %v4887
      %v4896 = vcombine.high %v4894, %v4894
      %v4898 = vunpack.c.l.s4 1966171168
      %v4899 = vunpack.c.0.s8 %v4898
      %v4900 = vlaneseq
      %v4901 = vshrl.u32 %v4900, 7
      %v4902 = vsub.s32 %v4899, %v4901
      %v4903 = vrot.slane %v4887, %v4902
      %v4905 = vunpack.c.l.s4 1966171168
      %v4906 = vunpack.c.0.s8 %v4905
      %v4907 = vlaneseq
      %v4908 = vshrl.u32 %v4907, 7
      %v4909 = vsub.s32 %v4906, %v4908
      %v4910 = vrot.slane %v4894, %v4909
      %v4912 = vunpack.c.l.s4 1966171168
      %v4913 = vunpack.c.0.s8 %v4912
      %v4914 = vlaneseq
      %v4915 = vshrl.u32 %v4914, 7
      %v4916 = vsub.s32 %v4913, %v4915
      %v4917 = vrot.slane %v4895, %v4916
      %v4919 = vunpack.c.l.s4 1966171168
      %v4920 = vunpack.c.0.s8 %v4919
      %v4921 = vlaneseq
      %v4922 = vshrl.u32 %v4921, 7
      %v4923 = vsub.s32 %v4920, %v4922
      %v4924 = vrot.slane %v4896, %v4923
      %v4925 = vcombine.high %v4903, %v4903
      %v4926 = vcombine.high %v4910, %v4910
      %v4927 = vcombine.high %v4917, %v4917
      %v4928 = vcombine.high %v4924, %v4924
      %v4929 = vcombine.high %v4847, %v4847
      %v4931 = vunpack.c.l.s4 1966171168
      %v4932 = vunpack.c.0.s8 %v4931
      %v4933 = vlaneseq
      %v4934 = vshrl.u32 %v4933, 7
      %v4935 = vsub.s32 %v4932, %v4934
      %v4936 = vrot.slane %v4847, %v4935
      %v4938 = vunpack.c.l.s4 1966171168
      %v4939 = vunpack.c.0.s8 %v4938
      %v4940 = vlaneseq
      %v4941 = vshrl.u32 %v4940, 7
      %v4942 = vsub.s32 %v4939, %v4941
      %v4943 = vrot.slane %v4929, %v4942
      %v4944 = vcombine.high %v4936, %v4936
      %v4945 = vcombine.high %v4943, %v4943
      %v4947 = vunpack.c.l.s4 1966171168
      %v4948 = vunpack.c.0.s8 %v4947
      %v4949 = vlaneseq
      %v4950 = vshrl.u32 %v4949, 7
      %v4951 = vsub.s32 %v4948, %v4950
      %v4952 = vrot.slane %v4936, %v4951
      %v4954 = vunpack.c.l.s4 1966171168
      %v4955 = vunpack.c.0.s8 %v4954
      %v4956 = vlaneseq
      %v4957 = vshrl.u32 %v4956, 7
      %v4958 = vsub.s32 %v4955, %v4957
      %v4959 = vrot.slane %v4943, %v4958
      %v4961 = vunpack.c.l.s4 1966171168
      %v4962 = vunpack.c.0.s8 %v4961
      %v4963 = vlaneseq
      %v4964 = vshrl.u32 %v4963, 7
      %v4965 = vsub.s32 %v4962, %v4964
      %v4966 = vrot.slane %v4944, %v4965
      %v4968 = vunpack.c.l.s4 1966171168
      %v4969 = vunpack.c.0.s8 %v4968
      %v4970 = vlaneseq
      %v4971 = vshrl.u32 %v4970, 7
      %v4972 = vsub.s32 %v4969, %v4971
      %v4973 = vrot.slane %v4945, %v4972
      %v4974 = vcombine.high %v4952, %v4952
      %v4975 = vcombine.high %v4959, %v4959
      %v4976 = vcombine.high %v4966, %v4966
      %v4977 = vcombine.high %v4973, %v4973
      %v4978 = vcombine.high %v4852, %v4852
      %v4980 = vunpack.c.l.s4 1966171168
      %v4981 = vunpack.c.0.s8 %v4980
      %v4982 = vlaneseq
      %v4983 = vshrl.u32 %v4982, 7
      %v4984 = vsub.s32 %v4981, %v4983
      %v4985 = vrot.slane %v4852, %v4984
      %v4987 = vunpack.c.l.s4 1966171168
      %v4988 = vunpack.c.0.s8 %v4987
      %v4989 = vlaneseq
      %v4990 = vshrl.u32 %v4989, 7
      %v4991 = vsub.s32 %v4988, %v4990
      %v4992 = vrot.slane %v4978, %v4991
      %v4993 = vcombine.high %v4985, %v4985
      %v4994 = vcombine.high %v4992, %v4992
      %v4996 = vunpack.c.l.s4 1966171168
      %v4997 = vunpack.c.0.s8 %v4996
      %v4998 = vlaneseq
      %v4999 = vshrl.u32 %v4998, 7
      %v5000 = vsub.s32 %v4997, %v4999
      %v5001 = vrot.slane %v4985, %v5000
      %v5003 = vunpack.c.l.s4 1966171168
      %v5004 = vunpack.c.0.s8 %v5003
      %v5005 = vlaneseq
      %v5006 = vshrl.u32 %v5005, 7
      %v5007 = vsub.s32 %v5004, %v5006
      %v5008 = vrot.slane %v4992, %v5007
      %v5010 = vunpack.c.l.s4 1966171168
      %v5011 = vunpack.c.0.s8 %v5010
      %v5012 = vlaneseq
      %v5013 = vshrl.u32 %v5012, 7
      %v5014 = vsub.s32 %v5011, %v5013
      %v5015 = vrot.slane %v4993, %v5014
      %v5017 = vunpack.c.l.s4 1966171168
      %v5018 = vunpack.c.0.s8 %v5017
      %v5019 = vlaneseq
      %v5020 = vshrl.u32 %v5019, 7
      %v5021 = vsub.s32 %v5018, %v5020
      %v5022 = vrot.slane %v4994, %v5021
      %v5023 = vcombine.high %v5001, %v5001
      %v5024 = vcombine.high %v5008, %v5008
      %v5025 = vcombine.high %v5015, %v5015
      %v5026 = vcombine.high %v5022, %v5022
      %v5027 = vcombine.high %v4855, %v4855
      %v5029 = vunpack.c.l.s4 1966171168
      %v5030 = vunpack.c.0.s8 %v5029
      %v5031 = vlaneseq
      %v5032 = vshrl.u32 %v5031, 7
      %v5033 = vsub.s32 %v5030, %v5032
      %v5034 = vrot.slane %v4855, %v5033
      %v5036 = vunpack.c.l.s4 1966171168
      %v5037 = vunpack.c.0.s8 %v5036
      %v5038 = vlaneseq
      %v5039 = vshrl.u32 %v5038, 7
      %v5040 = vsub.s32 %v5037, %v5039
      %v5041 = vrot.slane %v5027, %v5040
      %v5042 = vcombine.high %v5034, %v5034
      %v5043 = vcombine.high %v5041, %v5041
      %v5045 = vunpack.c.l.s4 1966171168
      %v5046 = vunpack.c.0.s8 %v5045
      %v5047 = vlaneseq
      %v5048 = vshrl.u32 %v5047, 7
      %v5049 = vsub.s32 %v5046, %v5048
      %v5050 = vrot.slane %v5034, %v5049
      %v5052 = vunpack.c.l.s4 1966171168
      %v5053 = vunpack.c.0.s8 %v5052
      %v5054 = vlaneseq
      %v5055 = vshrl.u32 %v5054, 7
      %v5056 = vsub.s32 %v5053, %v5055
      %v5057 = vrot.slane %v5041, %v5056
      %v5059 = vunpack.c.l.s4 1966171168
      %v5060 = vunpack.c.0.s8 %v5059
      %v5061 = vlaneseq
      %v5062 = vshrl.u32 %v5061, 7
      %v5063 = vsub.s32 %v5060, %v5062
      %v5064 = vrot.slane %v5042, %v5063
      %v5066 = vunpack.c.l.s4 1966171168
      %v5067 = vunpack.c.0.s8 %v5066
      %v5068 = vlaneseq
      %v5069 = vshrl.u32 %v5068, 7
      %v5070 = vsub.s32 %v5067, %v5069
      %v5071 = vrot.slane %v5043, %v5070
      %v5072 = vcombine.high %v5050, %v5050
      %v5073 = vcombine.high %v5057, %v5057
      %v5074 = vcombine.high %v5064, %v5064
      %v5075 = vcombine.high %v5071, %v5071
      %v5076 = vcombine.high %v4860, %v4860
      %v5078 = vunpack.c.l.s4 1966171168
      %v5079 = vunpack.c.0.s8 %v5078
      %v5080 = vlaneseq
      %v5081 = vshrl.u32 %v5080, 7
      %v5082 = vsub.s32 %v5079, %v5081
      %v5083 = vrot.slane %v4860, %v5082
      %v5085 = vunpack.c.l.s4 1966171168
      %v5086 = vunpack.c.0.s8 %v5085
      %v5087 = vlaneseq
      %v5088 = vshrl.u32 %v5087, 7
      %v5089 = vsub.s32 %v5086, %v5088
      %v5090 = vrot.slane %v5076, %v5089
      %v5091 = vcombine.high %v5083, %v5083
      %v5092 = vcombine.high %v5090, %v5090
      %v5094 = vunpack.c.l.s4 1966171168
      %v5095 = vunpack.c.0.s8 %v5094
      %v5096 = vlaneseq
      %v5097 = vshrl.u32 %v5096, 7
      %v5098 = vsub.s32 %v5095, %v5097
      %v5099 = vrot.slane %v5083, %v5098
      %v5101 = vunpack.c.l.s4 1966171168
      %v5102 = vunpack.c.0.s8 %v5101
      %v5103 = vlaneseq
      %v5104 = vshrl.u32 %v5103, 7
      %v5105 = vsub.s32 %v5102, %v5104
      %v5106 = vrot.slane %v5090, %v5105
      %v5108 = vunpack.c.l.s4 1966171168
      %v5109 = vunpack.c.0.s8 %v5108
      %v5110 = vlaneseq
      %v5111 = vshrl.u32 %v5110, 7
      %v5112 = vsub.s32 %v5109, %v5111
      %v5113 = vrot.slane %v5091, %v5112
      %v5115 = vunpack.c.l.s4 1966171168
      %v5116 = vunpack.c.0.s8 %v5115
      %v5117 = vlaneseq
      %v5118 = vshrl.u32 %v5117, 7
      %v5119 = vsub.s32 %v5116, %v5118
      %v5120 = vrot.slane %v5092, %v5119
      %v5121 = vcombine.high %v5099, %v5099
      %v5122 = vcombine.high %v5106, %v5106
      %v5123 = vcombine.high %v5113, %v5113
      %v5124 = vcombine.high %v5120, %v5120
      %v5125 = vcombine.high %v4863, %v4863
      %v5127 = vunpack.c.l.s4 1966171168
      %v5128 = vunpack.c.0.s8 %v5127
      %v5129 = vlaneseq
      %v5130 = vshrl.u32 %v5129, 7
      %v5131 = vsub.s32 %v5128, %v5130
      %v5132 = vrot.slane %v4863, %v5131
      %v5134 = vunpack.c.l.s4 1966171168
      %v5135 = vunpack.c.0.s8 %v5134
      %v5136 = vlaneseq
      %v5137 = vshrl.u32 %v5136, 7
      %v5138 = vsub.s32 %v5135, %v5137
      %v5139 = vrot.slane %v5125, %v5138
      %v5140 = vcombine.high %v5132, %v5132
      %v5141 = vcombine.high %v5139, %v5139
      %v5143 = vunpack.c.l.s4 1966171168
      %v5144 = vunpack.c.0.s8 %v5143
      %v5145 = vlaneseq
      %v5146 = vshrl.u32 %v5145, 7
      %v5147 = vsub.s32 %v5144, %v5146
      %v5148 = vrot.slane %v5132, %v5147
      %v5150 = vunpack.c.l.s4 1966171168
      %v5151 = vunpack.c.0.s8 %v5150
      %v5152 = vlaneseq
      %v5153 = vshrl.u32 %v5152, 7
      %v5154 = vsub.s32 %v5151, %v5153
      %v5155 = vrot.slane %v5139, %v5154
      %v5157 = vunpack.c.l.s4 1966171168
      %v5158 = vunpack.c.0.s8 %v5157
      %v5159 = vlaneseq
      %v5160 = vshrl.u32 %v5159, 7
      %v5161 = vsub.s32 %v5158, %v5160
      %v5162 = vrot.slane %v5140, %v5161
      %v5164 = vunpack.c.l.s4 1966171168
      %v5165 = vunpack.c.0.s8 %v5164
      %v5166 = vlaneseq
      %v5167 = vshrl.u32 %v5166, 7
      %v5168 = vsub.s32 %v5165, %v5167
      %v5169 = vrot.slane %v5141, %v5168
      %v5170 = vcombine.high %v5148, %v5148
      %v5171 = vcombine.high %v5155, %v5155
      %v5172 = vcombine.high %v5162, %v5162
      %v5173 = vcombine.high %v5169, %v5169
      %v5174 = vcombine.high %v4868, %v4868
      %v5176 = vunpack.c.l.s4 1966171168
      %v5177 = vunpack.c.0.s8 %v5176
      %v5178 = vlaneseq
      %v5179 = vshrl.u32 %v5178, 7
      %v5180 = vsub.s32 %v5177, %v5179
      %v5181 = vrot.slane %v4868, %v5180
      %v5183 = vunpack.c.l.s4 1966171168
      %v5184 = vunpack.c.0.s8 %v5183
      %v5185 = vlaneseq
      %v5186 = vshrl.u32 %v5185, 7
      %v5187 = vsub.s32 %v5184, %v5186
      %v5188 = vrot.slane %v5174, %v5187
      %v5189 = vcombine.high %v5181, %v5181
      %v5190 = vcombine.high %v5188, %v5188
      %v5192 = vunpack.c.l.s4 1966171168
      %v5193 = vunpack.c.0.s8 %v5192
      %v5194 = vlaneseq
      %v5195 = vshrl.u32 %v5194, 7
      %v5196 = vsub.s32 %v5193, %v5195
      %v5197 = vrot.slane %v5181, %v5196
      %v5199 = vunpack.c.l.s4 1966171168
      %v5200 = vunpack.c.0.s8 %v5199
      %v5201 = vlaneseq
      %v5202 = vshrl.u32 %v5201, 7
      %v5203 = vsub.s32 %v5200, %v5202
      %v5204 = vrot.slane %v5188, %v5203
      %v5206 = vunpack.c.l.s4 1966171168
      %v5207 = vunpack.c.0.s8 %v5206
      %v5208 = vlaneseq
      %v5209 = vshrl.u32 %v5208, 7
      %v5210 = vsub.s32 %v5207, %v5209
      %v5211 = vrot.slane %v5189, %v5210
      %v5213 = vunpack.c.l.s4 1966171168
      %v5214 = vunpack.c.0.s8 %v5213
      %v5215 = vlaneseq
      %v5216 = vshrl.u32 %v5215, 7
      %v5217 = vsub.s32 %v5214, %v5216
      %v5218 = vrot.slane %v5190, %v5217
      %v5219 = vcombine.high %v5197, %v5197
      %v5220 = vcombine.high %v5204, %v5204
      %v5221 = vcombine.high %v5211, %v5211
      %v5222 = vcombine.high %v5218, %v5218
      %v5223 = vcombine.low %v4903, %v4917
      %v5224 = vcombine.low %v4925, %v4927
      %v5225 = vcombine.low %v4910, %v4924
      %v5227 = vunpack.c.l.s4 1966171168
      %v5228 = vunpack.c.0.s8 %v5227
      %v5229 = vlaneseq
      %v5230 = vshrl.u32 %v5229, 7
      %v5231 = vsub.s32 %v5228, %v5230
      %v5232 = vrot.slane %v5223, %v5231
      %v5234 = vunpack.c.l.s4 1966171168
      %v5235 = vunpack.c.0.s8 %v5234
      %v5236 = vlaneseq
      %v5237 = vshrl.u32 %v5236, 7
      %v5238 = vsub.s32 %v5235, %v5237
      %v5239 = vrot.slane %v5224, %v5238
      %v5241 = vunpack.c.l.s4 1966171168
      %v5242 = vunpack.c.0.s8 %v5241
      %v5243 = vlaneseq
      %v5244 = vshrl.u32 %v5243, 7
      %v5245 = vsub.s32 %v5242, %v5244
      %v5246 = vrot.slane %v5225, %v5245
      %v5248 = vunpack.c.l.s4 1966171168
      %v5249 = vunpack.c.0.s8 %v5248
      %v5250 = vlaneseq
      %v5251 = vshrl.u32 %v5250, 7
      %v5252 = vsub.s32 %v5249, %v5251
      %v5253 = vrot.slane %v4926, %v5252
      %v5254 = vcombine.low %v5232, %v5239
      %v5255 = vcombine.low %v5246, %v5253
      %v5257 = vunpack.c.l.s4 1966171168
      %v5258 = vunpack.c.0.s8 %v5257
      %v5259 = vlaneseq
      %v5260 = vshrl.u32 %v5259, 7
      %v5261 = vsub.s32 %v5258, %v5260
      %v5262 = vrot.slane %v5254, %v5261
      %v5264 = vunpack.c.l.s4 1966171168
      %v5265 = vunpack.c.0.s8 %v5264
      %v5266 = vlaneseq
      %v5267 = vshrl.u32 %v5266, 7
      %v5268 = vsub.s32 %v5265, %v5267
      %v5269 = vrot.slane %v5255, %v5268
      %v5270 = vcombine.low %v5262, %v5269
      %v5271 = vcombine.low %v4928, %v4952
      %v5272 = vcombine.low %v4966, %v4974
      %v5273 = vcombine.low %v4976, %v4959
      %v5275 = vunpack.c.l.s4 1966171168
      %v5276 = vunpack.c.0.s8 %v5275
      %v5277 = vlaneseq
      %v5278 = vshrl.u32 %v5277, 7
      %v5279 = vsub.s32 %v5276, %v5278
      %v5280 = vrot.slane %v5271, %v5279
      %v5282 = vunpack.c.l.s4 1966171168
      %v5283 = vunpack.c.0.s8 %v5282
      %v5284 = vlaneseq
      %v5285 = vshrl.u32 %v5284, 7
      %v5286 = vsub.s32 %v5283, %v5285
      %v5287 = vrot.slane %v5272, %v5286
      %v5289 = vunpack.c.l.s4 1966171168
      %v5290 = vunpack.c.0.s8 %v5289
      %v5291 = vlaneseq
      %v5292 = vshrl.u32 %v5291, 7
      %v5293 = vsub.s32 %v5290, %v5292
      %v5294 = vrot.slane %v5273, %v5293
      %v5296 = vunpack.c.l.s4 1966171168
      %v5297 = vunpack.c.0.s8 %v5296
      %v5298 = vlaneseq
      %v5299 = vshrl.u32 %v5298, 7
      %v5300 = vsub.s32 %v5297, %v5299
      %v5301 = vrot.slane %v4973, %v5300
      %v5302 = vcombine.low %v5280, %v5287
      %v5303 = vcombine.low %v5294, %v5301
      %v5305 = vunpack.c.l.s4 1966171168
      %v5306 = vunpack.c.0.s8 %v5305
      %v5307 = vlaneseq
      %v5308 = vshrl.u32 %v5307, 7
      %v5309 = vsub.s32 %v5306, %v5308
      %v5310 = vrot.slane %v5302, %v5309
      %v5312 = vunpack.c.l.s4 1966171168
      %v5313 = vunpack.c.0.s8 %v5312
      %v5314 = vlaneseq
      %v5315 = vshrl.u32 %v5314, 7
      %v5316 = vsub.s32 %v5313, %v5315
      %v5317 = vrot.slane %v5303, %v5316
      %v5318 = vcombine.low %v5310, %v5317
      %v5319 = vcombine.low %v4975, %v4977
      %v5320 = vcombine.low %v5001, %v5015
      %v5321 = vcombine.low %v5023, %v5025
      %v5323 = vunpack.c.l.s4 1966171168
      %v5324 = vunpack.c.0.s8 %v5323
      %v5325 = vlaneseq
      %v5326 = vshrl.u32 %v5325, 7
      %v5327 = vsub.s32 %v5324, %v5326
      %v5328 = vrot.slane %v5319, %v5327
      %v5330 = vunpack.c.l.s4 1966171168
      %v5331 = vunpack.c.0.s8 %v5330
      %v5332 = vlaneseq
      %v5333 = vshrl.u32 %v5332, 7
      %v5334 = vsub.s32 %v5331, %v5333
      %v5335 = vrot.slane %v5320, %v5334
      %v5337 = vunpack.c.l.s4 1966171168
      %v5338 = vunpack.c.0.s8 %v5337
      %v5339 = vlaneseq
      %v5340 = vshrl.u32 %v5339, 7
      %v5341 = vsub.s32 %v5338, %v5340
      %v5342 = vrot.slane %v5321, %v5341
      %v5344 = vunpack.c.l.s4 1966171168
      %v5345 = vunpack.c.0.s8 %v5344
      %v5346 = vlaneseq
      %v5347 = vshrl.u32 %v5346, 7
      %v5348 = vsub.s32 %v5345, %v5347
      %v5349 = vrot.slane %v5008, %v5348
      %v5350 = vcombine.low %v5328, %v5335
      %v5351 = vcombine.low %v5342, %v5349
      %v5353 = vunpack.c.l.s4 1966171168
      %v5354 = vunpack.c.0.s8 %v5353
      %v5355 = vlaneseq
      %v5356 = vshrl.u32 %v5355, 7
      %v5357 = vsub.s32 %v5354, %v5356
      %v5358 = vrot.slane %v5350, %v5357
      %v5360 = vunpack.c.l.s4 1966171168
      %v5361 = vunpack.c.0.s8 %v5360
      %v5362 = vlaneseq
      %v5363 = vshrl.u32 %v5362, 7
      %v5364 = vsub.s32 %v5361, %v5363
      %v5365 = vrot.slane %v5351, %v5364
      %v5366 = vcombine.low %v5358, %v5365
      %v5367 = vcombine.low %v5022, %v5024
      %v5368 = vcombine.low %v5026, %v5050
      %v5369 = vcombine.low %v5064, %v5072
      %v5371 = vunpack.c.l.s4 1966171168
      %v5372 = vunpack.c.0.s8 %v5371
      %v5373 = vlaneseq
      %v5374 = vshrl.u32 %v5373, 7
      %v5375 = vsub.s32 %v5372, %v5374
      %v5376 = vrot.slane %v5367, %v5375
      %v5378 = vunpack.c.l.s4 1966171168
      %v5379 = vunpack.c.0.s8 %v5378
      %v5380 = vlaneseq
      %v5381 = vshrl.u32 %v5380, 7
      %v5382 = vsub.s32 %v5379, %v5381
      %v5383 = vrot.slane %v5368, %v5382
      %v5385 = vunpack.c.l.s4 1966171168
      %v5386 = vunpack.c.0.s8 %v5385
      %v5387 = vlaneseq
      %v5388 = vshrl.u32 %v5387, 7
      %v5389 = vsub.s32 %v5386, %v5388
      %v5390 = vrot.slane %v5369, %v5389
      %v5392 = vunpack.c.l.s4 1966171168
      %v5393 = vunpack.c.0.s8 %v5392
      %v5394 = vlaneseq
      %v5395 = vshrl.u32 %v5394, 7
      %v5396 = vsub.s32 %v5393, %v5395
      %v5397 = vrot.slane %v5074, %v5396
      %v5398 = vcombine.low %v5376, %v5383
      %v5399 = vcombine.low %v5390, %v5397
      %v5401 = vunpack.c.l.s4 1966171168
      %v5402 = vunpack.c.0.s8 %v5401
      %v5403 = vlaneseq
      %v5404 = vshrl.u32 %v5403, 7
      %v5405 = vsub.s32 %v5402, %v5404
      %v5406 = vrot.slane %v5398, %v5405
      %v5408 = vunpack.c.l.s4 1966171168
      %v5409 = vunpack.c.0.s8 %v5408
      %v5410 = vlaneseq
      %v5411 = vshrl.u32 %v5410, 7
      %v5412 = vsub.s32 %v5409, %v5411
      %v5413 = vrot.slane %v5399, %v5412
      %v5414 = vcombine.low %v5406, %v5413
      %v5415 = vcombine.low %v5057, %v5071
      %v5416 = vcombine.low %v5073, %v5075
      %v5417 = vcombine.low %v5099, %v5113
      %v5419 = vunpack.c.l.s4 1966171168
      %v5420 = vunpack.c.0.s8 %v5419
      %v5421 = vlaneseq
      %v5422 = vshrl.u32 %v5421, 7
      %v5423 = vsub.s32 %v5420, %v5422
      %v5424 = vrot.slane %v5415, %v5423
      %v5426 = vunpack.c.l.s4 1966171168
      %v5427 = vunpack.c.0.s8 %v5426
      %v5428 = vlaneseq
      %v5429 = vshrl.u32 %v5428, 7
      %v5430 = vsub.s32 %v5427, %v5429
      %v5431 = vrot.slane %v5416, %v5430
      %v5433 = vunpack.c.l.s4 1966171168
      %v5434 = vunpack.c.0.s8 %v5433
      %v5435 = vlaneseq
      %v5436 = vshrl.u32 %v5435, 7
      %v5437 = vsub.s32 %v5434, %v5436
      %v5438 = vrot.slane %v5417, %v5437
      %v5440 = vunpack.c.l.s4 1966171168
      %v5441 = vunpack.c.0.s8 %v5440
      %v5442 = vlaneseq
      %v5443 = vshrl.u32 %v5442, 7
      %v5444 = vsub.s32 %v5441, %v5443
      %v5445 = vrot.slane %v5121, %v5444
      %v5446 = vcombine.low %v5424, %v5431
      %v5447 = vcombine.low %v5438, %v5445
      %v5449 = vunpack.c.l.s4 1966171168
      %v5450 = vunpack.c.0.s8 %v5449
      %v5451 = vlaneseq
      %v5452 = vshrl.u32 %v5451, 7
      %v5453 = vsub.s32 %v5450, %v5452
      %v5454 = vrot.slane %v5446, %v5453
      %v5456 = vunpack.c.l.s4 1966171168
      %v5457 = vunpack.c.0.s8 %v5456
      %v5458 = vlaneseq
      %v5459 = vshrl.u32 %v5458, 7
      %v5460 = vsub.s32 %v5457, %v5459
      %v5461 = vrot.slane %v5447, %v5460
      %v5462 = vcombine.low %v5454, %v5461
      %v5463 = vcombine.low %v5123, %v5106
      %v5464 = vcombine.low %v5120, %v5122
      %v5465 = vcombine.low %v5124, %v5148
      %v5467 = vunpack.c.l.s4 1966171168
      %v5468 = vunpack.c.0.s8 %v5467
      %v5469 = vlaneseq
      %v5470 = vshrl.u32 %v5469, 7
      %v5471 = vsub.s32 %v5468, %v5470
      %v5472 = vrot.slane %v5463, %v5471
      %v5474 = vunpack.c.l.s4 1966171168
      %v5475 = vunpack.c.0.s8 %v5474
      %v5476 = vlaneseq
      %v5477 = vshrl.u32 %v5476, 7
      %v5478 = vsub.s32 %v5475, %v5477
      %v5479 = vrot.slane %v5464, %v5478
      %v5481 = vunpack.c.l.s4 1966171168
      %v5482 = vunpack.c.0.s8 %v5481
      %v5483 = vlaneseq
      %v5484 = vshrl.u32 %v5483, 7
      %v5485 = vsub.s32 %v5482, %v5484
      %v5486 = vrot.slane %v5465, %v5485
      %v5488 = vunpack.c.l.s4 1966171168
      %v5489 = vunpack.c.0.s8 %v5488
      %v5490 = vlaneseq
      %v5491 = vshrl.u32 %v5490, 7
      %v5492 = vsub.s32 %v5489, %v5491
      %v5493 = vrot.slane %v5162, %v5492
      %v5494 = vcombine.low %v5472, %v5479
      %v5495 = vcombine.low %v5486, %v5493
      %v5497 = vunpack.c.l.s4 1966171168
      %v5498 = vunpack.c.0.s8 %v5497
      %v5499 = vlaneseq
      %v5500 = vshrl.u32 %v5499, 7
      %v5501 = vsub.s32 %v5498, %v5500
      %v5502 = vrot.slane %v5494, %v5501
      %v5504 = vunpack.c.l.s4 1966171168
      %v5505 = vunpack.c.0.s8 %v5504
      %v5506 = vlaneseq
      %v5507 = vshrl.u32 %v5506, 7
      %v5508 = vsub.s32 %v5505, %v5507
      %v5509 = vrot.slane %v5495, %v5508
      %v5510 = vcombine.low %v5502, %v5509
      %v5511 = vcombine.low %v5170, %v5172
      %v5512 = vcombine.low %v5155, %v5169
      %v5513 = vcombine.low %v5171, %v5173
      %v5515 = vunpack.c.l.s4 1966171168
      %v5516 = vunpack.c.0.s8 %v5515
      %v5517 = vlaneseq
      %v5518 = vshrl.u32 %v5517, 7
      %v5519 = vsub.s32 %v5516, %v5518
      %v5520 = vrot.slane %v5511, %v5519
      %v5522 = vunpack.c.l.s4 1966171168
      %v5523 = vunpack.c.0.s8 %v5522
      %v5524 = vlaneseq
      %v5525 = vshrl.u32 %v5524, 7
      %v5526 = vsub.s32 %v5523, %v5525
      %v5527 = vrot.slane %v5512, %v5526
      %v5529 = vunpack.c.l.s4 1966171168
      %v5530 = vunpack.c.0.s8 %v5529
      %v5531 = vlaneseq
      %v5532 = vshrl.u32 %v5531, 7
      %v5533 = vsub.s32 %v5530, %v5532
      %v5534 = vrot.slane %v5513, %v5533
      %v5536 = vunpack.c.l.s4 1966171168
      %v5537 = vunpack.c.0.s8 %v5536
      %v5538 = vlaneseq
      %v5539 = vshrl.u32 %v5538, 7
      %v5540 = vsub.s32 %v5537, %v5539
      %v5541 = vrot.slane %v5197, %v5540
      %v5542 = vcombine.low %v5520, %v5527
      %v5543 = vcombine.low %v5534, %v5541
      %v5545 = vunpack.c.l.s4 1966171168
      %v5546 = vunpack.c.0.s8 %v5545
      %v5547 = vlaneseq
      %v5548 = vshrl.u32 %v5547, 7
      %v5549 = vsub.s32 %v5546, %v5548
      %v5550 = vrot.slane %v5542, %v5549
      %v5552 = vunpack.c.l.s4 1966171168
      %v5553 = vunpack.c.0.s8 %v5552
      %v5554 = vlaneseq
      %v5555 = vshrl.u32 %v5554, 7
      %v5556 = vsub.s32 %v5553, %v5555
      %v5557 = vrot.slane %v5543, %v5556
      %v5558 = vcombine.low %v5550, %v5557
      %v5559 = vcombine.low %v5211, %v5219
      %v5560 = vcombine.low %v5221, %v5204
      %v5561 = vcombine.low %v5218, %v5220
      %v5563 = vunpack.c.l.s4 1966171168
      %v5564 = vunpack.c.0.s8 %v5563
      %v5565 = vlaneseq
      %v5566 = vshrl.u32 %v5565, 7
      %v5567 = vsub.s32 %v5564, %v5566
      %v5568 = vrot.slane %v5559, %v5567
      %v5570 = vunpack.c.l.s4 1966171168
      %v5571 = vunpack.c.0.s8 %v5570
      %v5572 = vlaneseq
      %v5573 = vshrl.u32 %v5572, 7
      %v5574 = vsub.s32 %v5571, %v5573
      %v5575 = vrot.slane %v5560, %v5574
      %v5577 = vunpack.c.l.s4 1966171168
      %v5578 = vunpack.c.0.s8 %v5577
      %v5579 = vlaneseq
      %v5580 = vshrl.u32 %v5579, 7
      %v5581 = vsub.s32 %v5578, %v5580
      %v5582 = vrot.slane %v5561, %v5581
      %v5584 = vunpack.c.l.s4 1966171168
      %v5585 = vunpack.c.0.s8 %v5584
      %v5586 = vlaneseq
      %v5587 = vshrl.u32 %v5586, 7
      %v5588 = vsub.s32 %v5585, %v5587
      %v5589 = vrot.slane %v5222, %v5588
      %v5590 = vcombine.low %v5568, %v5575
      %v5591 = vcombine.low %v5582, %v5589
      %v5593 = vunpack.c.l.s4 1966171168
      %v5594 = vunpack.c.0.s8 %v5593
      %v5595 = vlaneseq
      %v5596 = vshrl.u32 %v5595, 7
      %v5597 = vsub.s32 %v5594, %v5596
      %v5598 = vrot.slane %v5590, %v5597
      %v5600 = vunpack.c.l.s4 1966171168
      %v5601 = vunpack.c.0.s8 %v5600
      %v5602 = vlaneseq
      %v5603 = vshrl.u32 %v5602, 7
      %v5604 = vsub.s32 %v5601, %v5603
      %v5605 = vrot.slane %v5591, %v5604
      %v5606 = vcombine.low %v5598, %v5605
      %v5615 = vsel %vm3642, %v5270, 0.0
      %v5616 = vsel %vm3642, %v5318, 0.0
      %v5617 = vsel %vm3642, %v5366, 0.0
      %v5618 = vsel %vm3642, %v5414, 0.0
      %v5619 = vsel %vm3642, %v5462, 0.0
      %v5620 = vsel %vm3642, %v5510, 0.0
      %v5621 = vsel %vm3642, %v5558, 0.0
      %v5622 = vsel %vm3642, %v5606, 0.0
      %v5623 = vadd.f32 %v4720, %v5615
      %v5624 = vadd.f32 %v4721, %v5616
      %v5625 = vadd.f32 %v4722, %v5617
      %v5626 = vadd.f32 %v4723, %v5618
      %v5627 = vadd.f32 %v4724, %v5619
      %v5628 = vadd.f32 %v4725, %v5620
      %v5629 = vadd.f32 %v4726, %v5621
      %v5630 = vadd.f32 %v4727, %v5622
      %s5631 = scalar_lea.vmem %s545, 288
      %v5632 = vld [vmem:[%s5631] sm:$0xf]
      %v5633 = vld [vmem:[%s5631 + $0x4] sm:$0xf]
      %v5634 = vld [vmem:[%s5631 + $0x8] sm:$0xf]
      %v5635 = vld [vmem:[%s5631 + $0xc] sm:$0xf]
      %v5636 = vld [vmem:[%s5631 + $0x10] sm:$0xf]
      %v5637 = vld [vmem:[%s5631 + $0x14] sm:$0xf]
      %v5638 = vld [vmem:[%s5631 + $0x18] sm:$0xf]
      %v5639 = vld [vmem:[%s5631 + $0x1c] sm:$0xf]
      %v5640 = vld [vmem:[%s5631 + $0x20] sm:$0xf]
      %v5641 = vld [vmem:[%s5631 + $0x24] sm:$0xf]
      %v5642 = vld [vmem:[%s5631 + $0x28] sm:$0xf]
      %v5643 = vld [vmem:[%s5631 + $0x2c] sm:$0xf]
      %v5644 = vpack.i.b16 %v1506, %v1505
      %v5645 = vpack.i.b16 %v1512, %v1511
      %v5646 = vpack.i.b16 %v1520, %v1519
      %v5647 = vpack.i.b16 %v1526, %v1525
      %v5648 = vpack.i.b16 %v1534, %v1533
      %v5649 = vpack.i.b16 %v1540, %v1539
      %v5650 = vpack.i.b16 %v3682, %v3681
      %v5652 = vcombine.low %v5644, %v2690
      %v5653 = vcombine.low %v2691, %v5645
      %v5654 = vcombine.low %v2693, %v2694
      %v5655 = vcombine.low %v2695, %v5646
      %v5657 = vunpack.c.l.s4 1966171168
      %v5658 = vunpack.c.0.s8 %v5657
      %v5659 = vlaneseq
      %v5660 = vshrl.u32 %v5659, 7
      %v5661 = vsub.s32 %v5658, %v5660
      %v5662 = vrot.slane %v5652, %v5661
      %v5664 = vunpack.c.l.s4 1966171168
      %v5665 = vunpack.c.0.s8 %v5664
      %v5666 = vlaneseq
      %v5667 = vshrl.u32 %v5666, 7
      %v5668 = vsub.s32 %v5665, %v5667
      %v5669 = vrot.slane %v5653, %v5668
      %v5671 = vunpack.c.l.s4 1966171168
      %v5672 = vunpack.c.0.s8 %v5671
      %v5673 = vlaneseq
      %v5674 = vshrl.u32 %v5673, 7
      %v5675 = vsub.s32 %v5672, %v5674
      %v5676 = vrot.slane %v5654, %v5675
      %v5678 = vunpack.c.l.s4 1966171168
      %v5679 = vunpack.c.0.s8 %v5678
      %v5680 = vlaneseq
      %v5681 = vshrl.u32 %v5680, 7
      %v5682 = vsub.s32 %v5679, %v5681
      %v5683 = vrot.slane %v5655, %v5682
      %v5684 = vcombine.low %v5662, %v5669
      %v5685 = vcombine.low %v5676, %v5683
      %v5687 = vunpack.c.l.s4 1966171168
      %v5688 = vunpack.c.0.s8 %v5687
      %v5689 = vlaneseq
      %v5690 = vshrl.u32 %v5689, 7
      %v5691 = vsub.s32 %v5688, %v5690
      %v5692 = vrot.slane %v5684, %v5691
      %v5694 = vunpack.c.l.s4 1966171168
      %v5695 = vunpack.c.0.s8 %v5694
      %v5696 = vlaneseq
      %v5697 = vshrl.u32 %v5696, 7
      %v5698 = vsub.s32 %v5695, %v5697
      %v5699 = vrot.slane %v5685, %v5698
      %v5700 = vcombine.low %v5692, %v5699
      %v5701 = vcombine.low %v2697, %v2698
      %v5702 = vcombine.low %v5647, %v2700
      %v5703 = vcombine.low %v2701, %v2702
      %v5704 = vcombine.low %v5648, %v2704
      %v5706 = vunpack.c.l.s4 1966171168
      %v5707 = vunpack.c.0.s8 %v5706
      %v5708 = vlaneseq
      %v5709 = vshrl.u32 %v5708, 7
      %v5710 = vsub.s32 %v5707, %v5709
      %v5711 = vrot.slane %v5701, %v5710
      %v5713 = vunpack.c.l.s4 1966171168
      %v5714 = vunpack.c.0.s8 %v5713
      %v5715 = vlaneseq
      %v5716 = vshrl.u32 %v5715, 7
      %v5717 = vsub.s32 %v5714, %v5716
      %v5718 = vrot.slane %v5702, %v5717
      %v5720 = vunpack.c.l.s4 1966171168
      %v5721 = vunpack.c.0.s8 %v5720
      %v5722 = vlaneseq
      %v5723 = vshrl.u32 %v5722, 7
      %v5724 = vsub.s32 %v5721, %v5723
      %v5725 = vrot.slane %v5703, %v5724
      %v5727 = vunpack.c.l.s4 1966171168
      %v5728 = vunpack.c.0.s8 %v5727
      %v5729 = vlaneseq
      %v5730 = vshrl.u32 %v5729, 7
      %v5731 = vsub.s32 %v5728, %v5730
      %v5732 = vrot.slane %v5704, %v5731
      %v5733 = vcombine.low %v5711, %v5718
      %v5734 = vcombine.low %v5725, %v5732
      %v5736 = vunpack.c.l.s4 1966171168
      %v5737 = vunpack.c.0.s8 %v5736
      %v5738 = vlaneseq
      %v5739 = vshrl.u32 %v5738, 7
      %v5740 = vsub.s32 %v5737, %v5739
      %v5741 = vrot.slane %v5733, %v5740
      %v5743 = vunpack.c.l.s4 1966171168
      %v5744 = vunpack.c.0.s8 %v5743
      %v5745 = vlaneseq
      %v5746 = vshrl.u32 %v5745, 7
      %v5747 = vsub.s32 %v5744, %v5746
      %v5748 = vrot.slane %v5734, %v5747
      %v5749 = vcombine.low %v5741, %v5748
      %v5750 = vcombine.low %v2705, %v5649
      %v5751 = vcombine.low %v2707, %v2708
      %v5752 = vcombine.low %v2709, %v5650
      %v5753 = vcombine.low %v4743, %v4744
      %v5755 = vunpack.c.l.s4 1966171168
      %v5756 = vunpack.c.0.s8 %v5755
      %v5757 = vlaneseq
      %v5758 = vshrl.u32 %v5757, 7
      %v5759 = vsub.s32 %v5756, %v5758
      %v5760 = vrot.slane %v5750, %v5759
      %v5762 = vunpack.c.l.s4 1966171168
      %v5763 = vunpack.c.0.s8 %v5762
      %v5764 = vlaneseq
      %v5765 = vshrl.u32 %v5764, 7
      %v5766 = vsub.s32 %v5763, %v5765
      %v5767 = vrot.slane %v5751, %v5766
      %v5769 = vunpack.c.l.s4 1966171168
      %v5770 = vunpack.c.0.s8 %v5769
      %v5771 = vlaneseq
      %v5772 = vshrl.u32 %v5771, 7
      %v5773 = vsub.s32 %v5770, %v5772
      %v5774 = vrot.slane %v5752, %v5773
      %v5776 = vunpack.c.l.s4 1966171168
      %v5777 = vunpack.c.0.s8 %v5776
      %v5778 = vlaneseq
      %v5779 = vshrl.u32 %v5778, 7
      %v5780 = vsub.s32 %v5777, %v5779
      %v5781 = vrot.slane %v5753, %v5780
      %v5782 = vcombine.low %v5760, %v5767
      %v5783 = vcombine.low %v5774, %v5781
      %v5785 = vunpack.c.l.s4 1966171168
      %v5786 = vunpack.c.0.s8 %v5785
      %v5787 = vlaneseq
      %v5788 = vshrl.u32 %v5787, 7
      %v5789 = vsub.s32 %v5786, %v5788
      %v5790 = vrot.slane %v5782, %v5789
      %v5792 = vunpack.c.l.s4 1966171168
      %v5793 = vunpack.c.0.s8 %v5792
      %v5794 = vlaneseq
      %v5795 = vshrl.u32 %v5794, 7
      %v5796 = vsub.s32 %v5793, %v5795
      %v5797 = vrot.slane %v5783, %v5796
      %v5798 = vcombine.low %v5790, %v5797
      %v5800 = vunpack.c.l.s4 1966171168
      %v5801 = vunpack.c.0.s8 %v5800
      %v5802 = vlaneseq
      %v5803 = vshrl.u32 %v5802, 7
      %v5804 = vsub.s32 %v5801, %v5803
      %v5805 = vrot.slane %v3687, %v5804
      %v5807 = vunpack.c.l.s4 1966171168
      %v5808 = vunpack.c.0.s8 %v5807
      %v5809 = vlaneseq
      %v5810 = vshrl.u32 %v5809, 7
      %v5811 = vsub.s32 %v5808, %v5810
      %v5812 = vrot.slane %v5805, %v5811
      %v5825 = vunpack.c.l.b16 %v5632
      %v5826 = vunpack.c.l.b16 %v5633
      %v5827 = vunpack.c.l.b16 %v5634
      %v5828 = vunpack.c.l.b16 %v5635
      %v5829 = vunpack.c.l.b16 %v5636
      %v5830 = vunpack.c.l.b16 %v5637
      %v5831 = vunpack.c.l.b16 %v5638
      %v5832 = vunpack.c.l.b16 %v5639
      %v5833 = vunpack.c.l.b16 %v5640
      %v5834 = vunpack.c.l.b16 %v5641
      %v5835 = vunpack.c.l.b16 %v5642
      %v5836 = vunpack.c.l.b16 %v5643
      %v5837 = vpack.c.b16 %v5826, %v5825
      %v5838 = vpack.c.b16 %v5828, %v5827
      %v5839 = vpack.c.b16 %v5830, %v5829
      %v5840 = vpack.c.b16 %v5832, %v5831
      %v5841 = vpack.c.b16 %v5834, %v5833
      %v5842 = vpack.c.b16 %v5836, %v5835
      %v5850 = vsel %vm1781, %v5700, 0
      %v5853 = vsel %vm1781, %v5749, 0
      %v5856 = vsel %vm1781, %v5798, 0
      %v5859 = vsel %vm1781, %v5812, 0
      %5861 = vmatprep.subr.bf16.mxu0 0
      %5862 = vmatpush1.bf16.msra.mxu0 %v5837
      %5863 = vmatprep.subr.bf16.mxu0 0
      %5864 = vmatpush1.bf16.msra.mxu0 %v5838
      %5865 = vmatprep.subr.bf16.mxu0 0
      %5866 = vmatpush1.bf16.msra.mxu0 %v5839
      %5867 = vmatprep.subr.bf16.mxu0 0
      %5868 = vmatpush1.bf16.msra.mxu0 %v5840
      %5869 = vmatprep.subr.bf16.mxu0 0
      %5870 = vmatpush1.bf16.msra.mxu0 %v5841
      %5871 = vmatprep.subr.bf16.mxu0 0
      %5872 = vmatpush1.bf16.msra.mxu0 %v5842
      %5873 = vmatprep.subr.bf16.mxu0 0
      %5874 = vmatpush1.bf16.msra.mxu0 0
      %5875 = vmatprep.subr.bf16.mxu0 0
      %5876 = vmatpush1.bf16.msra.mxu0 0
      %5877 = vmatprep.subr.bf16.mxu0 0
      %5878 = vmatpush1.bf16.msra.mxu0 0
      %5879 = vmatprep.subr.bf16.mxu0 0
      %5880 = vmatpush1.bf16.msra.mxu0 0
      %5881 = vmatprep.subr.bf16.mxu0 0
      %5882 = vmatpush1.bf16.msra.mxu0 0
      %5883 = vmatprep.subr.bf16.mxu0 0
      %5884 = vmatpush1.bf16.msra.mxu0 0
      %5885 = vmatprep.subr.bf16.mxu0 0
      %5886 = vmatpush1.bf16.msra.mxu0 0
      %5887 = vmatprep.subr.bf16.mxu0 0
      %5888 = vmatpush1.bf16.msra.mxu0 0
      %5889 = vmatprep.subr.bf16.mxu0 0
      %5890 = vmatpush1.bf16.msra.mxu0 0
      %5891 = vmatprep.subr.bf16.mxu0 0
      %5892 = vmatpush1.bf16.msra.mxu0 0
      %5893 = vmatprep.mubr.bf16.mxu0 0
      %5894 = vmatmul.mubr.bf16.gmra.mrb[0].mxu0 %v5850
      %v5895 = vpop.f32.mrb[0].mxu0
      %v5896 = vadd.f32 0.0, %v5895
      %v5897 = vpop.f32.mrb[0].mxu0
      %v5898 = vpop.f32.mrb[0].mxu0
      %v5899 = vadd.f32 0.0, %v5898
      %v5900 = vpop.f32.mrb[0].mxu0
      %5901 = vmatprep.mubr.bf16.mxu0 0
      %5902 = vmatmul.mubr.bf16.gmra.mrb[0].mxu0 %v5853
      %v5903 = vpop.f32.mrb[0].mxu0
      %v5904 = vadd.f32 0.0, %v5903
      %v5905 = vpop.f32.mrb[0].mxu0
      %v5906 = vpop.f32.mrb[0].mxu0
      %v5907 = vadd.f32 0.0, %v5906
      %v5908 = vpop.f32.mrb[0].mxu0
      %5909 = vmatprep.mubr.bf16.mxu0 0
      %5910 = vmatmul.mubr.bf16.gmra.mrb[0].mxu0 %v5856
      %v5911 = vpop.f32.mrb[0].mxu0
      %v5912 = vadd.f32 0.0, %v5911
      %v5913 = vpop.f32.mrb[0].mxu0
      %v5914 = vpop.f32.mrb[0].mxu0
      %v5915 = vadd.f32 0.0, %v5914
      %v5916 = vpop.f32.mrb[0].mxu0
      %5917 = vmatprep.mubr.bf16.mxu0 0
      %5918 = vmatmul.mubr.bf16.gmra.mrb[0].mxu0 %v5859
      %v5919 = vpop.f32.mrb[0].mxu0
      %v5920 = vadd.f32 0.0, %v5919
      %v5921 = vpop.f32.mrb[0].mxu0
      %v5922 = vpop.f32.mrb[0].mxu0
      %v5923 = vpop.f32.mrb[0].mxu0
      %5924 = vdwg.mxu0
      %v5932 = vcombine.high %v5896, %v5896
      %v5934 = vunpack.c.l.s4 1966171168
      %v5935 = vunpack.c.0.s8 %v5934
      %v5936 = vlaneseq
      %v5937 = vshrl.u32 %v5936, 7
      %v5938 = vsub.s32 %v5935, %v5937
      %v5939 = vrot.slane %v5896, %v5938
      %v5941 = vunpack.c.l.s4 1966171168
      %v5942 = vunpack.c.0.s8 %v5941
      %v5943 = vlaneseq
      %v5944 = vshrl.u32 %v5943, 7
      %v5945 = vsub.s32 %v5942, %v5944
      %v5946 = vrot.slane %v5932, %v5945
      %v5947 = vcombine.high %v5939, %v5939
      %v5948 = vcombine.high %v5946, %v5946
      %v5950 = vunpack.c.l.s4 1966171168
      %v5951 = vunpack.c.0.s8 %v5950
      %v5952 = vlaneseq
      %v5953 = vshrl.u32 %v5952, 7
      %v5954 = vsub.s32 %v5951, %v5953
      %v5955 = vrot.slane %v5939, %v5954
      %v5957 = vunpack.c.l.s4 1966171168
      %v5958 = vunpack.c.0.s8 %v5957
      %v5959 = vlaneseq
      %v5960 = vshrl.u32 %v5959, 7
      %v5961 = vsub.s32 %v5958, %v5960
      %v5962 = vrot.slane %v5946, %v5961
      %v5964 = vunpack.c.l.s4 1966171168
      %v5965 = vunpack.c.0.s8 %v5964
      %v5966 = vlaneseq
      %v5967 = vshrl.u32 %v5966, 7
      %v5968 = vsub.s32 %v5965, %v5967
      %v5969 = vrot.slane %v5947, %v5968
      %v5971 = vunpack.c.l.s4 1966171168
      %v5972 = vunpack.c.0.s8 %v5971
      %v5973 = vlaneseq
      %v5974 = vshrl.u32 %v5973, 7
      %v5975 = vsub.s32 %v5972, %v5974
      %v5976 = vrot.slane %v5948, %v5975
      %v5977 = vcombine.high %v5955, %v5955
      %v5978 = vcombine.high %v5962, %v5962
      %v5979 = vcombine.high %v5969, %v5969
      %v5980 = vcombine.high %v5976, %v5976
      %v5981 = vcombine.high %v5899, %v5899
      %v5983 = vunpack.c.l.s4 1966171168
      %v5984 = vunpack.c.0.s8 %v5983
      %v5985 = vlaneseq
      %v5986 = vshrl.u32 %v5985, 7
      %v5987 = vsub.s32 %v5984, %v5986
      %v5988 = vrot.slane %v5899, %v5987
      %v5990 = vunpack.c.l.s4 1966171168
      %v5991 = vunpack.c.0.s8 %v5990
      %v5992 = vlaneseq
      %v5993 = vshrl.u32 %v5992, 7
      %v5994 = vsub.s32 %v5991, %v5993
      %v5995 = vrot.slane %v5981, %v5994
      %v5996 = vcombine.high %v5988, %v5988
      %v5997 = vcombine.high %v5995, %v5995
      %v5999 = vunpack.c.l.s4 1966171168
      %v6000 = vunpack.c.0.s8 %v5999
      %v6001 = vlaneseq
      %v6002 = vshrl.u32 %v6001, 7
      %v6003 = vsub.s32 %v6000, %v6002
      %v6004 = vrot.slane %v5988, %v6003
      %v6006 = vunpack.c.l.s4 1966171168
      %v6007 = vunpack.c.0.s8 %v6006
      %v6008 = vlaneseq
      %v6009 = vshrl.u32 %v6008, 7
      %v6010 = vsub.s32 %v6007, %v6009
      %v6011 = vrot.slane %v5995, %v6010
      %v6013 = vunpack.c.l.s4 1966171168
      %v6014 = vunpack.c.0.s8 %v6013
      %v6015 = vlaneseq
      %v6016 = vshrl.u32 %v6015, 7
      %v6017 = vsub.s32 %v6014, %v6016
      %v6018 = vrot.slane %v5996, %v6017
      %v6020 = vunpack.c.l.s4 1966171168
      %v6021 = vunpack.c.0.s8 %v6020
      %v6022 = vlaneseq
      %v6023 = vshrl.u32 %v6022, 7
      %v6024 = vsub.s32 %v6021, %v6023
      %v6025 = vrot.slane %v5997, %v6024
      %v6026 = vcombine.high %v6004, %v6004
      %v6027 = vcombine.high %v6011, %v6011
      %v6028 = vcombine.high %v6018, %v6018
      %v6029 = vcombine.high %v6025, %v6025
      %v6030 = vcombine.high %v5904, %v5904
      %v6032 = vunpack.c.l.s4 1966171168
      %v6033 = vunpack.c.0.s8 %v6032
      %v6034 = vlaneseq
      %v6035 = vshrl.u32 %v6034, 7
      %v6036 = vsub.s32 %v6033, %v6035
      %v6037 = vrot.slane %v5904, %v6036
      %v6039 = vunpack.c.l.s4 1966171168
      %v6040 = vunpack.c.0.s8 %v6039
      %v6041 = vlaneseq
      %v6042 = vshrl.u32 %v6041, 7
      %v6043 = vsub.s32 %v6040, %v6042
      %v6044 = vrot.slane %v6030, %v6043
      %v6045 = vcombine.high %v6037, %v6037
      %v6046 = vcombine.high %v6044, %v6044
      %v6048 = vunpack.c.l.s4 1966171168
      %v6049 = vunpack.c.0.s8 %v6048
      %v6050 = vlaneseq
      %v6051 = vshrl.u32 %v6050, 7
      %v6052 = vsub.s32 %v6049, %v6051
      %v6053 = vrot.slane %v6037, %v6052
      %v6055 = vunpack.c.l.s4 1966171168
      %v6056 = vunpack.c.0.s8 %v6055
      %v6057 = vlaneseq
      %v6058 = vshrl.u32 %v6057, 7
      %v6059 = vsub.s32 %v6056, %v6058
      %v6060 = vrot.slane %v6044, %v6059
      %v6062 = vunpack.c.l.s4 1966171168
      %v6063 = vunpack.c.0.s8 %v6062
      %v6064 = vlaneseq
      %v6065 = vshrl.u32 %v6064, 7
      %v6066 = vsub.s32 %v6063, %v6065
      %v6067 = vrot.slane %v6045, %v6066
      %v6069 = vunpack.c.l.s4 1966171168
      %v6070 = vunpack.c.0.s8 %v6069
      %v6071 = vlaneseq
      %v6072 = vshrl.u32 %v6071, 7
      %v6073 = vsub.s32 %v6070, %v6072
      %v6074 = vrot.slane %v6046, %v6073
      %v6075 = vcombine.high %v6053, %v6053
      %v6076 = vcombine.high %v6060, %v6060
      %v6077 = vcombine.high %v6067, %v6067
      %v6078 = vcombine.high %v6074, %v6074
      %v6079 = vcombine.high %v5907, %v5907
      %v6081 = vunpack.c.l.s4 1966171168
      %v6082 = vunpack.c.0.s8 %v6081
      %v6083 = vlaneseq
      %v6084 = vshrl.u32 %v6083, 7
      %v6085 = vsub.s32 %v6082, %v6084
      %v6086 = vrot.slane %v5907, %v6085
      %v6088 = vunpack.c.l.s4 1966171168
      %v6089 = vunpack.c.0.s8 %v6088
      %v6090 = vlaneseq
      %v6091 = vshrl.u32 %v6090, 7
      %v6092 = vsub.s32 %v6089, %v6091
      %v6093 = vrot.slane %v6079, %v6092
      %v6094 = vcombine.high %v6086, %v6086
      %v6095 = vcombine.high %v6093, %v6093
      %v6097 = vunpack.c.l.s4 1966171168
      %v6098 = vunpack.c.0.s8 %v6097
      %v6099 = vlaneseq
      %v6100 = vshrl.u32 %v6099, 7
      %v6101 = vsub.s32 %v6098, %v6100
      %v6102 = vrot.slane %v6086, %v6101
      %v6104 = vunpack.c.l.s4 1966171168
      %v6105 = vunpack.c.0.s8 %v6104
      %v6106 = vlaneseq
      %v6107 = vshrl.u32 %v6106, 7
      %v6108 = vsub.s32 %v6105, %v6107
      %v6109 = vrot.slane %v6093, %v6108
      %v6111 = vunpack.c.l.s4 1966171168
      %v6112 = vunpack.c.0.s8 %v6111
      %v6113 = vlaneseq
      %v6114 = vshrl.u32 %v6113, 7
      %v6115 = vsub.s32 %v6112, %v6114
      %v6116 = vrot.slane %v6094, %v6115
      %v6118 = vunpack.c.l.s4 1966171168
      %v6119 = vunpack.c.0.s8 %v6118
      %v6120 = vlaneseq
      %v6121 = vshrl.u32 %v6120, 7
      %v6122 = vsub.s32 %v6119, %v6121
      %v6123 = vrot.slane %v6095, %v6122
      %v6124 = vcombine.high %v6102, %v6102
      %v6125 = vcombine.high %v6109, %v6109
      %v6126 = vcombine.high %v6116, %v6116
      %v6127 = vcombine.high %v6123, %v6123
      %v6128 = vcombine.high %v5912, %v5912
      %v6130 = vunpack.c.l.s4 1966171168
      %v6131 = vunpack.c.0.s8 %v6130
      %v6132 = vlaneseq
      %v6133 = vshrl.u32 %v6132, 7
      %v6134 = vsub.s32 %v6131, %v6133
      %v6135 = vrot.slane %v5912, %v6134
      %v6137 = vunpack.c.l.s4 1966171168
      %v6138 = vunpack.c.0.s8 %v6137
      %v6139 = vlaneseq
      %v6140 = vshrl.u32 %v6139, 7
      %v6141 = vsub.s32 %v6138, %v6140
      %v6142 = vrot.slane %v6128, %v6141
      %v6143 = vcombine.high %v6135, %v6135
      %v6144 = vcombine.high %v6142, %v6142
      %v6146 = vunpack.c.l.s4 1966171168
      %v6147 = vunpack.c.0.s8 %v6146
      %v6148 = vlaneseq
      %v6149 = vshrl.u32 %v6148, 7
      %v6150 = vsub.s32 %v6147, %v6149
      %v6151 = vrot.slane %v6135, %v6150
      %v6153 = vunpack.c.l.s4 1966171168
      %v6154 = vunpack.c.0.s8 %v6153
      %v6155 = vlaneseq
      %v6156 = vshrl.u32 %v6155, 7
      %v6157 = vsub.s32 %v6154, %v6156
      %v6158 = vrot.slane %v6142, %v6157
      %v6160 = vunpack.c.l.s4 1966171168
      %v6161 = vunpack.c.0.s8 %v6160
      %v6162 = vlaneseq
      %v6163 = vshrl.u32 %v6162, 7
      %v6164 = vsub.s32 %v6161, %v6163
      %v6165 = vrot.slane %v6143, %v6164
      %v6167 = vunpack.c.l.s4 1966171168
      %v6168 = vunpack.c.0.s8 %v6167
      %v6169 = vlaneseq
      %v6170 = vshrl.u32 %v6169, 7
      %v6171 = vsub.s32 %v6168, %v6170
      %v6172 = vrot.slane %v6144, %v6171
      %v6173 = vcombine.high %v6151, %v6151
      %v6174 = vcombine.high %v6158, %v6158
      %v6175 = vcombine.high %v6165, %v6165
      %v6176 = vcombine.high %v6172, %v6172
      %v6177 = vcombine.high %v5915, %v5915
      %v6179 = vunpack.c.l.s4 1966171168
      %v6180 = vunpack.c.0.s8 %v6179
      %v6181 = vlaneseq
      %v6182 = vshrl.u32 %v6181, 7
      %v6183 = vsub.s32 %v6180, %v6182
      %v6184 = vrot.slane %v5915, %v6183
      %v6186 = vunpack.c.l.s4 1966171168
      %v6187 = vunpack.c.0.s8 %v6186
      %v6188 = vlaneseq
      %v6189 = vshrl.u32 %v6188, 7
      %v6190 = vsub.s32 %v6187, %v6189
      %v6191 = vrot.slane %v6177, %v6190
      %v6192 = vcombine.high %v6184, %v6184
      %v6193 = vcombine.high %v6191, %v6191
      %v6195 = vunpack.c.l.s4 1966171168
      %v6196 = vunpack.c.0.s8 %v6195
      %v6197 = vlaneseq
      %v6198 = vshrl.u32 %v6197, 7
      %v6199 = vsub.s32 %v6196, %v6198
      %v6200 = vrot.slane %v6184, %v6199
      %v6202 = vunpack.c.l.s4 1966171168
      %v6203 = vunpack.c.0.s8 %v6202
      %v6204 = vlaneseq
      %v6205 = vshrl.u32 %v6204, 7
      %v6206 = vsub.s32 %v6203, %v6205
      %v6207 = vrot.slane %v6191, %v6206
      %v6209 = vunpack.c.l.s4 1966171168
      %v6210 = vunpack.c.0.s8 %v6209
      %v6211 = vlaneseq
      %v6212 = vshrl.u32 %v6211, 7
      %v6213 = vsub.s32 %v6210, %v6212
      %v6214 = vrot.slane %v6192, %v6213
      %v6216 = vunpack.c.l.s4 1966171168
      %v6217 = vunpack.c.0.s8 %v6216
      %v6218 = vlaneseq
      %v6219 = vshrl.u32 %v6218, 7
      %v6220 = vsub.s32 %v6217, %v6219
      %v6221 = vrot.slane %v6193, %v6220
      %v6222 = vcombine.high %v6200, %v6200
      %v6223 = vcombine.high %v6207, %v6207
      %v6224 = vcombine.high %v6214, %v6214
      %v6225 = vcombine.high %v6221, %v6221
      %v6227 = vunpack.c.l.s4 1966171168
      %v6228 = vunpack.c.0.s8 %v6227
      %v6229 = vlaneseq
      %v6230 = vshrl.u32 %v6229, 7
      %v6231 = vsub.s32 %v6228, %v6230
      %v6232 = vrot.slane %v5920, %v6231
      %v6234 = vunpack.c.l.s4 1966171168
      %v6235 = vunpack.c.0.s8 %v6234
      %v6236 = vlaneseq
      %v6237 = vshrl.u32 %v6236, 7
      %v6238 = vsub.s32 %v6235, %v6237
      %v6239 = vrot.slane %v6232, %v6238
      %v6240 = vcombine.low %v5955, %v5955
      %v6241 = vcombine.low %v5969, %v5977
      %v6242 = vcombine.low %v5979, %v5962
      %v6243 = vcombine.low %v5976, %v5978
      %v6245 = vunpack.c.l.s4 1966171168
      %v6246 = vunpack.c.0.s8 %v6245
      %v6247 = vlaneseq
      %v6248 = vshrl.u32 %v6247, 7
      %v6249 = vsub.s32 %v6246, %v6248
      %v6250 = vrot.slane %v6240, %v6249
      %v6252 = vunpack.c.l.s4 1966171168
      %v6253 = vunpack.c.0.s8 %v6252
      %v6254 = vlaneseq
      %v6255 = vshrl.u32 %v6254, 7
      %v6256 = vsub.s32 %v6253, %v6255
      %v6257 = vrot.slane %v6241, %v6256
      %v6259 = vunpack.c.l.s4 1966171168
      %v6260 = vunpack.c.0.s8 %v6259
      %v6261 = vlaneseq
      %v6262 = vshrl.u32 %v6261, 7
      %v6263 = vsub.s32 %v6260, %v6262
      %v6264 = vrot.slane %v6242, %v6263
      %v6266 = vunpack.c.l.s4 1966171168
      %v6267 = vunpack.c.0.s8 %v6266
      %v6268 = vlaneseq
      %v6269 = vshrl.u32 %v6268, 7
      %v6270 = vsub.s32 %v6267, %v6269
      %v6271 = vrot.slane %v6243, %v6270
      %v6272 = vcombine.low %v6250, %v6257
      %v6273 = vcombine.low %v6264, %v6271
      %v6275 = vunpack.c.l.s4 1966171168
      %v6276 = vunpack.c.0.s8 %v6275
      %v6277 = vlaneseq
      %v6278 = vshrl.u32 %v6277, 7
      %v6279 = vsub.s32 %v6276, %v6278
      %v6280 = vrot.slane %v6272, %v6279
      %v6282 = vunpack.c.l.s4 1966171168
      %v6283 = vunpack.c.0.s8 %v6282
      %v6284 = vlaneseq
      %v6285 = vshrl.u32 %v6284, 7
      %v6286 = vsub.s32 %v6283, %v6285
      %v6287 = vrot.slane %v6273, %v6286
      %v6288 = vcombine.low %v6280, %v6287
      %v6289 = vcombine.low %v5980, %v5980
      %v6290 = vcombine.low %v6004, %v6018
      %v6291 = vcombine.low %v6026, %v6028
      %v6292 = vcombine.low %v6011, %v6025
      %v6294 = vunpack.c.l.s4 1966171168
      %v6295 = vunpack.c.0.s8 %v6294
      %v6296 = vlaneseq
      %v6297 = vshrl.u32 %v6296, 7
      %v6298 = vsub.s32 %v6295, %v6297
      %v6299 = vrot.slane %v6289, %v6298
      %v6301 = vunpack.c.l.s4 1966171168
      %v6302 = vunpack.c.0.s8 %v6301
      %v6303 = vlaneseq
      %v6304 = vshrl.u32 %v6303, 7
      %v6305 = vsub.s32 %v6302, %v6304
      %v6306 = vrot.slane %v6290, %v6305
      %v6308 = vunpack.c.l.s4 1966171168
      %v6309 = vunpack.c.0.s8 %v6308
      %v6310 = vlaneseq
      %v6311 = vshrl.u32 %v6310, 7
      %v6312 = vsub.s32 %v6309, %v6311
      %v6313 = vrot.slane %v6291, %v6312
      %v6315 = vunpack.c.l.s4 1966171168
      %v6316 = vunpack.c.0.s8 %v6315
      %v6317 = vlaneseq
      %v6318 = vshrl.u32 %v6317, 7
      %v6319 = vsub.s32 %v6316, %v6318
      %v6320 = vrot.slane %v6292, %v6319
      %v6321 = vcombine.low %v6299, %v6306
      %v6322 = vcombine.low %v6313, %v6320
      %v6324 = vunpack.c.l.s4 1966171168
      %v6325 = vunpack.c.0.s8 %v6324
      %v6326 = vlaneseq
      %v6327 = vshrl.u32 %v6326, 7
      %v6328 = vsub.s32 %v6325, %v6327
      %v6329 = vrot.slane %v6321, %v6328
      %v6331 = vunpack.c.l.s4 1966171168
      %v6332 = vunpack.c.0.s8 %v6331
      %v6333 = vlaneseq
      %v6334 = vshrl.u32 %v6333, 7
      %v6335 = vsub.s32 %v6332, %v6334
      %v6336 = vrot.slane %v6322, %v6335
      %v6337 = vcombine.low %v6329, %v6336
      %v6338 = vcombine.low %v6027, %v6027
      %v6339 = vcombine.low %v6029, %v6053
      %v6340 = vcombine.low %v6067, %v6075
      %v6341 = vcombine.low %v6077, %v6060
      %v6343 = vunpack.c.l.s4 1966171168
      %v6344 = vunpack.c.0.s8 %v6343
      %v6345 = vlaneseq
      %v6346 = vshrl.u32 %v6345, 7
      %v6347 = vsub.s32 %v6344, %v6346
      %v6348 = vrot.slane %v6338, %v6347
      %v6350 = vunpack.c.l.s4 1966171168
      %v6351 = vunpack.c.0.s8 %v6350
      %v6352 = vlaneseq
      %v6353 = vshrl.u32 %v6352, 7
      %v6354 = vsub.s32 %v6351, %v6353
      %v6355 = vrot.slane %v6339, %v6354
      %v6357 = vunpack.c.l.s4 1966171168
      %v6358 = vunpack.c.0.s8 %v6357
      %v6359 = vlaneseq
      %v6360 = vshrl.u32 %v6359, 7
      %v6361 = vsub.s32 %v6358, %v6360
      %v6362 = vrot.slane %v6340, %v6361
      %v6364 = vunpack.c.l.s4 1966171168
      %v6365 = vunpack.c.0.s8 %v6364
      %v6366 = vlaneseq
      %v6367 = vshrl.u32 %v6366, 7
      %v6368 = vsub.s32 %v6365, %v6367
      %v6369 = vrot.slane %v6341, %v6368
      %v6370 = vcombine.low %v6348, %v6355
      %v6371 = vcombine.low %v6362, %v6369
      %v6373 = vunpack.c.l.s4 1966171168
      %v6374 = vunpack.c.0.s8 %v6373
      %v6375 = vlaneseq
      %v6376 = vshrl.u32 %v6375, 7
      %v6377 = vsub.s32 %v6374, %v6376
      %v6378 = vrot.slane %v6370, %v6377
      %v6380 = vunpack.c.l.s4 1966171168
      %v6381 = vunpack.c.0.s8 %v6380
      %v6382 = vlaneseq
      %v6383 = vshrl.u32 %v6382, 7
      %v6384 = vsub.s32 %v6381, %v6383
      %v6385 = vrot.slane %v6371, %v6384
      %v6386 = vcombine.low %v6378, %v6385
      %v6387 = vcombine.low %v6074, %v6074
      %v6388 = vcombine.low %v6076, %v6078
      %v6389 = vcombine.low %v6102, %v6116
      %v6390 = vcombine.low %v6124, %v6126
      %v6392 = vunpack.c.l.s4 1966171168
      %v6393 = vunpack.c.0.s8 %v6392
      %v6394 = vlaneseq
      %v6395 = vshrl.u32 %v6394, 7
      %v6396 = vsub.s32 %v6393, %v6395
      %v6397 = vrot.slane %v6387, %v6396
      %v6399 = vunpack.c.l.s4 1966171168
      %v6400 = vunpack.c.0.s8 %v6399
      %v6401 = vlaneseq
      %v6402 = vshrl.u32 %v6401, 7
      %v6403 = vsub.s32 %v6400, %v6402
      %v6404 = vrot.slane %v6388, %v6403
      %v6406 = vunpack.c.l.s4 1966171168
      %v6407 = vunpack.c.0.s8 %v6406
      %v6408 = vlaneseq
      %v6409 = vshrl.u32 %v6408, 7
      %v6410 = vsub.s32 %v6407, %v6409
      %v6411 = vrot.slane %v6389, %v6410
      %v6413 = vunpack.c.l.s4 1966171168
      %v6414 = vunpack.c.0.s8 %v6413
      %v6415 = vlaneseq
      %v6416 = vshrl.u32 %v6415, 7
      %v6417 = vsub.s32 %v6414, %v6416
      %v6418 = vrot.slane %v6390, %v6417
      %v6419 = vcombine.low %v6397, %v6404
      %v6420 = vcombine.low %v6411, %v6418
      %v6422 = vunpack.c.l.s4 1966171168
      %v6423 = vunpack.c.0.s8 %v6422
      %v6424 = vlaneseq
      %v6425 = vshrl.u32 %v6424, 7
      %v6426 = vsub.s32 %v6423, %v6425
      %v6427 = vrot.slane %v6419, %v6426
      %v6429 = vunpack.c.l.s4 1966171168
      %v6430 = vunpack.c.0.s8 %v6429
      %v6431 = vlaneseq
      %v6432 = vshrl.u32 %v6431, 7
      %v6433 = vsub.s32 %v6430, %v6432
      %v6434 = vrot.slane %v6420, %v6433
      %v6435 = vcombine.low %v6427, %v6434
      %v6436 = vcombine.low %v6109, %v6109
      %v6437 = vcombine.low %v6123, %v6125
      %v6438 = vcombine.low %v6127, %v6151
      %v6439 = vcombine.low %v6165, %v6173
      %v6441 = vunpack.c.l.s4 1966171168
      %v6442 = vunpack.c.0.s8 %v6441
      %v6443 = vlaneseq
      %v6444 = vshrl.u32 %v6443, 7
      %v6445 = vsub.s32 %v6442, %v6444
      %v6446 = vrot.slane %v6436, %v6445
      %v6448 = vunpack.c.l.s4 1966171168
      %v6449 = vunpack.c.0.s8 %v6448
      %v6450 = vlaneseq
      %v6451 = vshrl.u32 %v6450, 7
      %v6452 = vsub.s32 %v6449, %v6451
      %v6453 = vrot.slane %v6437, %v6452
      %v6455 = vunpack.c.l.s4 1966171168
      %v6456 = vunpack.c.0.s8 %v6455
      %v6457 = vlaneseq
      %v6458 = vshrl.u32 %v6457, 7
      %v6459 = vsub.s32 %v6456, %v6458
      %v6460 = vrot.slane %v6438, %v6459
      %v6462 = vunpack.c.l.s4 1966171168
      %v6463 = vunpack.c.0.s8 %v6462
      %v6464 = vlaneseq
      %v6465 = vshrl.u32 %v6464, 7
      %v6466 = vsub.s32 %v6463, %v6465
      %v6467 = vrot.slane %v6439, %v6466
      %v6468 = vcombine.low %v6446, %v6453
      %v6469 = vcombine.low %v6460, %v6467
      %v6471 = vunpack.c.l.s4 1966171168
      %v6472 = vunpack.c.0.s8 %v6471
      %v6473 = vlaneseq
      %v6474 = vshrl.u32 %v6473, 7
      %v6475 = vsub.s32 %v6472, %v6474
      %v6476 = vrot.slane %v6468, %v6475
      %v6478 = vunpack.c.l.s4 1966171168
      %v6479 = vunpack.c.0.s8 %v6478
      %v6480 = vlaneseq
      %v6481 = vshrl.u32 %v6480, 7
      %v6482 = vsub.s32 %v6479, %v6481
      %v6483 = vrot.slane %v6469, %v6482
      %v6484 = vcombine.low %v6476, %v6483
      %v6485 = vcombine.low %v6175, %v6175
      %v6486 = vcombine.low %v6158, %v6172
      %v6487 = vcombine.low %v6174, %v6176
      %v6488 = vcombine.low %v6200, %v6214
      %v6490 = vunpack.c.l.s4 1966171168
      %v6491 = vunpack.c.0.s8 %v6490
      %v6492 = vlaneseq
      %v6493 = vshrl.u32 %v6492, 7
      %v6494 = vsub.s32 %v6491, %v6493
      %v6495 = vrot.slane %v6485, %v6494
      %v6497 = vunpack.c.l.s4 1966171168
      %v6498 = vunpack.c.0.s8 %v6497
      %v6499 = vlaneseq
      %v6500 = vshrl.u32 %v6499, 7
      %v6501 = vsub.s32 %v6498, %v6500
      %v6502 = vrot.slane %v6486, %v6501
      %v6504 = vunpack.c.l.s4 1966171168
      %v6505 = vunpack.c.0.s8 %v6504
      %v6506 = vlaneseq
      %v6507 = vshrl.u32 %v6506, 7
      %v6508 = vsub.s32 %v6505, %v6507
      %v6509 = vrot.slane %v6487, %v6508
      %v6511 = vunpack.c.l.s4 1966171168
      %v6512 = vunpack.c.0.s8 %v6511
      %v6513 = vlaneseq
      %v6514 = vshrl.u32 %v6513, 7
      %v6515 = vsub.s32 %v6512, %v6514
      %v6516 = vrot.slane %v6488, %v6515
      %v6517 = vcombine.low %v6495, %v6502
      %v6518 = vcombine.low %v6509, %v6516
      %v6520 = vunpack.c.l.s4 1966171168
      %v6521 = vunpack.c.0.s8 %v6520
      %v6522 = vlaneseq
      %v6523 = vshrl.u32 %v6522, 7
      %v6524 = vsub.s32 %v6521, %v6523
      %v6525 = vrot.slane %v6517, %v6524
      %v6527 = vunpack.c.l.s4 1966171168
      %v6528 = vunpack.c.0.s8 %v6527
      %v6529 = vlaneseq
      %v6530 = vshrl.u32 %v6529, 7
      %v6531 = vsub.s32 %v6528, %v6530
      %v6532 = vrot.slane %v6518, %v6531
      %v6533 = vcombine.low %v6525, %v6532
      %v6534 = vcombine.low %v6222, %v6222
      %v6535 = vcombine.low %v6224, %v6207
      %v6536 = vcombine.low %v6221, %v6223
      %v6537 = vcombine.low %v6225, %v6239
      %v6539 = vunpack.c.l.s4 1966171168
      %v6540 = vunpack.c.0.s8 %v6539
      %v6541 = vlaneseq
      %v6542 = vshrl.u32 %v6541, 7
      %v6543 = vsub.s32 %v6540, %v6542
      %v6544 = vrot.slane %v6534, %v6543
      %v6546 = vunpack.c.l.s4 1966171168
      %v6547 = vunpack.c.0.s8 %v6546
      %v6548 = vlaneseq
      %v6549 = vshrl.u32 %v6548, 7
      %v6550 = vsub.s32 %v6547, %v6549
      %v6551 = vrot.slane %v6535, %v6550
      %v6553 = vunpack.c.l.s4 1966171168
      %v6554 = vunpack.c.0.s8 %v6553
      %v6555 = vlaneseq
      %v6556 = vshrl.u32 %v6555, 7
      %v6557 = vsub.s32 %v6554, %v6556
      %v6558 = vrot.slane %v6536, %v6557
      %v6560 = vunpack.c.l.s4 1966171168
      %v6561 = vunpack.c.0.s8 %v6560
      %v6562 = vlaneseq
      %v6563 = vshrl.u32 %v6562, 7
      %v6564 = vsub.s32 %v6561, %v6563
      %v6565 = vrot.slane %v6537, %v6564
      %v6566 = vcombine.low %v6544, %v6551
      %v6567 = vcombine.low %v6558, %v6565
      %v6569 = vunpack.c.l.s4 1966171168
      %v6570 = vunpack.c.0.s8 %v6569
      %v6571 = vlaneseq
      %v6572 = vshrl.u32 %v6571, 7
      %v6573 = vsub.s32 %v6570, %v6572
      %v6574 = vrot.slane %v6566, %v6573
      %v6576 = vunpack.c.l.s4 1966171168
      %v6577 = vunpack.c.0.s8 %v6576
      %v6578 = vlaneseq
      %v6579 = vshrl.u32 %v6578, 7
      %v6580 = vsub.s32 %v6577, %v6579
      %v6581 = vrot.slane %v6567, %v6580
      %v6582 = vcombine.low %v6574, %v6581
      %v6590 = vsel %vm2523, 0.0, %v6288
      %v6591 = vsel %vm2523, 0.0, %v6337
      %v6592 = vsel %vm2523, 0.0, %v6386
      %v6593 = vsel %vm2523, 0.0, %v6435
      %v6594 = vsel %vm2523, 0.0, %v6484
      %v6595 = vsel %vm2523, 0.0, %v6533
      %v6596 = vsel %vm2523, 0.0, %v6582
      %v6597 = vadd.f32 %v5623, %v6590
      %v6598 = vadd.f32 %v5624, %v6591
      %v6599 = vadd.f32 %v5625, %v6592
      %v6600 = vadd.f32 %v5626, %v6593
      %v6601 = vadd.f32 %v5627, %v6594
      %v6602 = vadd.f32 %v5628, %v6595
      %v6603 = vadd.f32 %v5629, %v6596
      %v6604 = vadd.f32 %v5630, 0.0
      %s6605 = scalar_lea.vmem %s545, 336
      %v6606 = vld [vmem:[%s6605] sm:$0xf]
      %v6607 = vld [vmem:[%s6605 + $0x4] sm:$0xf]
      %v6608 = vld [vmem:[%s6605 + $0x8] sm:$0xf]
      %v6609 = vld [vmem:[%s6605 + $0xc] sm:$0xf]
      %v6610 = vld [vmem:[%s6605 + $0x10] sm:$0xf]
      %v6611 = vld [vmem:[%s6605 + $0x14] sm:$0xf]
      %v6612 = vld [vmem:[%s6605 + $0x18] sm:$0xf]
      %v6613 = vld [vmem:[%s6605 + $0x1c] sm:$0xf]
      %v6614 = vld [vmem:[%s6605 + $0x20] sm:$0xf]
      %v6615 = vld [vmem:[%s6605 + $0x24] sm:$0xf]
      %v6616 = vld [vmem:[%s6605 + $0x28] sm:$0xf]
      %v6617 = vld [vmem:[%s6605 + $0x2c] sm:$0xf]
      %v6618 = vpack.c.b16 %v1316, %v1315
      %v6619 = vpack.c.b16 %v1318, %v1317
      %v6620 = vpack.c.b16 %v1320, %v1319
      %v6633 = vunpack.c.l.b16 %v6606
      %v6634 = vunpack.c.l.b16 %v6607
      %v6635 = vunpack.c.l.b16 %v6608
      %v6636 = vunpack.c.l.b16 %v6609
      %v6637 = vunpack.c.l.b16 %v6610
      %v6638 = vunpack.c.l.b16 %v6611
      %v6639 = vunpack.c.l.b16 %v6612
      %v6640 = vunpack.c.l.b16 %v6613
      %v6641 = vunpack.c.l.b16 %v6614
      %v6642 = vunpack.c.l.b16 %v6615
      %v6643 = vunpack.c.l.b16 %v6616
      %v6644 = vunpack.c.l.b16 %v6617
      %v6645 = vpack.c.b16 %v6634, %v6633
      %v6646 = vpack.c.b16 %v6636, %v6635
      %v6647 = vpack.c.b16 %v6638, %v6637
      %v6648 = vpack.c.b16 %v6640, %v6639
      %v6649 = vpack.c.b16 %v6642, %v6641
      %v6650 = vpack.c.b16 %v6644, %v6643
      %v6658 = vsel %vm1781, %v6618, 0
      %v6661 = vsel %vm1781, %v6619, 0
      %v6664 = vsel %vm1781, %v6620, 0
      %v6667 = vsel %vm1781, %v1329, 0
      %6669 = vmatprep.subr.bf16.mxu0 0
      %6670 = vmatpush1.bf16.msra.mxu0 %v6645
      %6671 = vmatprep.subr.bf16.mxu0 0
      %6672 = vmatpush1.bf16.msra.mxu0 %v6646
      %6673 = vmatprep.subr.bf16.mxu0 0
      %6674 = vmatpush1.bf16.msra.mxu0 %v6647
      %6675 = vmatprep.subr.bf16.mxu0 0
      %6676 = vmatpush1.bf16.msra.mxu0 %v6648
      %6677 = vmatprep.subr.bf16.mxu0 0
      %6678 = vmatpush1.bf16.msra.mxu0 %v6649
      %6679 = vmatprep.subr.bf16.mxu0 0
      %6680 = vmatpush1.bf16.msra.mxu0 %v6650
      %6681 = vmatprep.subr.bf16.mxu0 0
      %6682 = vmatpush1.bf16.msra.mxu0 0
      %6683 = vmatprep.subr.bf16.mxu0 0
      %6684 = vmatpush1.bf16.msra.mxu0 0
      %6685 = vmatprep.subr.bf16.mxu0 0
      %6686 = vmatpush1.bf16.msra.mxu0 0
      %6687 = vmatprep.subr.bf16.mxu0 0
      %6688 = vmatpush1.bf16.msra.mxu0 0
      %6689 = vmatprep.subr.bf16.mxu0 0
      %6690 = vmatpush1.bf16.msra.mxu0 0
      %6691 = vmatprep.subr.bf16.mxu0 0
      %6692 = vmatpush1.bf16.msra.mxu0 0
      %6693 = vmatprep.subr.bf16.mxu0 0
      %6694 = vmatpush1.bf16.msra.mxu0 0
      %6695 = vmatprep.subr.bf16.mxu0 0
      %6696 = vmatpush1.bf16.msra.mxu0 0
      %6697 = vmatprep.subr.bf16.mxu0 0
      %6698 = vmatpush1.bf16.msra.mxu0 0
      %6699 = vmatprep.subr.bf16.mxu0 0
      %6700 = vmatpush1.bf16.msra.mxu0 0
      %6701 = vmatprep.mubr.bf16.mxu0 0
      %6702 = vmatmul.mubr.bf16.gmra.mrb[0].mxu0 %v6658
      %v6703 = vpop.f32.mrb[0].mxu0
      %v6704 = vadd.f32 0.0, %v6703
      %v6705 = vpop.f32.mrb[0].mxu0
      %v6706 = vpop.f32.mrb[0].mxu0
      %v6707 = vadd.f32 0.0, %v6706
      %v6708 = vpop.f32.mrb[0].mxu0
      %6709 = vmatprep.mubr.bf16.mxu0 0
      %6710 = vmatmul.mubr.bf16.gmra.mrb[0].mxu0 %v6661
      %v6711 = vpop.f32.mrb[0].mxu0
      %v6712 = vadd.f32 0.0, %v6711
      %v6713 = vpop.f32.mrb[0].mxu0
      %v6714 = vpop.f32.mrb[0].mxu0
      %v6715 = vadd.f32 0.0, %v6714
      %v6716 = vpop.f32.mrb[0].mxu0
      %6717 = vmatprep.mubr.bf16.mxu0 0
      %6718 = vmatmul.mubr.bf16.gmra.mrb[0].mxu0 %v6664
      %v6719 = vpop.f32.mrb[0].mxu0
      %v6720 = vadd.f32 0.0, %v6719
      %v6721 = vpop.f32.mrb[0].mxu0
      %v6722 = vpop.f32.mrb[0].mxu0
      %v6723 = vadd.f32 0.0, %v6722
      %v6724 = vpop.f32.mrb[0].mxu0
      %6725 = vmatprep.mubr.bf16.mxu0 0
      %6726 = vmatmul.mubr.bf16.gmra.mrb[0].mxu0 %v6667
      %v6727 = vpop.f32.mrb[0].mxu0
      %v6728 = vadd.f32 0.0, %v6727
      %v6729 = vpop.f32.mrb[0].mxu0
      %v6730 = vpop.f32.mrb[0].mxu0
      %v6731 = vpop.f32.mrb[0].mxu0
      %6732 = vdwg.mxu0
      %v6733 = vadd.f32 %v6597, %v6704
      %v6734 = vadd.f32 %v6598, %v6707
      %v6735 = vadd.f32 %v6599, %v6712
      %v6736 = vadd.f32 %v6600, %v6715
      %v6737 = vadd.f32 %v6601, %v6720
      %v6738 = vadd.f32 %v6602, %v6723
      %v6739 = vadd.f32 %v6603, %v6728
      %v6740 = vadd.f32 %v6604, 0.0
      %s6741 = scalar_lea.vmem %s545, 384
      %v6742 = vld [vmem:[%s6741] sm:$0xf]
      %v6743 = vld [vmem:[%s6741 + $0x4] sm:$0xf]
      %v6744 = vld [vmem:[%s6741 + $0x8] sm:$0xf]
      %v6745 = vld [vmem:[%s6741 + $0xc] sm:$0xf]
      %v6746 = vld [vmem:[%s6741 + $0x10] sm:$0xf]
      %v6747 = vld [vmem:[%s6741 + $0x14] sm:$0xf]
      %v6748 = vld [vmem:[%s6741 + $0x18] sm:$0xf]
      %v6749 = vld [vmem:[%s6741 + $0x1c] sm:$0xf]
      %v6750 = vld [vmem:[%s6741 + $0x20] sm:$0xf]
      %v6751 = vld [vmem:[%s6741 + $0x24] sm:$0xf]
      %v6752 = vld [vmem:[%s6741 + $0x28] sm:$0xf]
      %v6753 = vld [vmem:[%s6741 + $0x2c] sm:$0xf]
      %v6754 = vpack.i.b16 %v1513, %v2667
      %v6755 = vpack.i.b16 %v2668, %v1518
      %v6756 = vpack.i.b16 %v1527, %v2669
      %v6757 = vpack.i.b16 %v2670, %v1532
      %v6758 = vpack.i.b16 %v1541, %v2671
      %v6759 = vpack.i.b16 %v2672, %v1546
      %v6761 = vcombine.low %v1565, %v6754
      %v6762 = vcombine.low %v6755, %v1570
      %v6764 = vunpack.c.l.s4 1966171168
      %v6765 = vunpack.c.0.s8 %v6764
      %v6766 = vlaneseq
      %v6767 = vshrl.u32 %v6766, 7
      %v6768 = vsub.s32 %v6765, %v6767
      %v6769 = vrot.slane %v6761, %v6768
      %v6771 = vunpack.c.l.s4 1966171168
      %v6772 = vunpack.c.0.s8 %v6771
      %v6773 = vlaneseq
      %v6774 = vshrl.u32 %v6773, 7
      %v6775 = vsub.s32 %v6772, %v6774
      %v6776 = vrot.slane %v6762, %v6775
      %v6777 = vcombine.low %v1608, %v6769
      %v6778 = vcombine.low %v1643, %v6776
      %v6780 = vunpack.c.l.s4 1966171168
      %v6781 = vunpack.c.0.s8 %v6780
      %v6782 = vlaneseq
      %v6783 = vshrl.u32 %v6782, 7
      %v6784 = vsub.s32 %v6781, %v6783
      %v6785 = vrot.slane %v6777, %v6784
      %v6787 = vunpack.c.l.s4 1966171168
      %v6788 = vunpack.c.0.s8 %v6787
      %v6789 = vlaneseq
      %v6790 = vshrl.u32 %v6789, 7
      %v6791 = vsub.s32 %v6788, %v6790
      %v6792 = vrot.slane %v6778, %v6791
      %v6793 = vcombine.low %v6785, %v6792
      %v6794 = vcombine.low %v6756, %v1574
      %v6795 = vcombine.low %v1575, %v6757
      %v6797 = vunpack.c.l.s4 1966171168
      %v6798 = vunpack.c.0.s8 %v6797
      %v6799 = vlaneseq
      %v6800 = vshrl.u32 %v6799, 7
      %v6801 = vsub.s32 %v6798, %v6800
      %v6802 = vrot.slane %v6794, %v6801
      %v6804 = vunpack.c.l.s4 1966171168
      %v6805 = vunpack.c.0.s8 %v6804
      %v6806 = vlaneseq
      %v6807 = vshrl.u32 %v6806, 7
      %v6808 = vsub.s32 %v6805, %v6807
      %v6809 = vrot.slane %v6795, %v6808
      %v6810 = vcombine.low %v1657, %v6802
      %v6811 = vcombine.low %v6809, %v1699
      %v6813 = vunpack.c.l.s4 1966171168
      %v6814 = vunpack.c.0.s8 %v6813
      %v6815 = vlaneseq
      %v6816 = vshrl.u32 %v6815, 7
      %v6817 = vsub.s32 %v6814, %v6816
      %v6818 = vrot.slane %v6810, %v6817
      %v6820 = vunpack.c.l.s4 1966171168
      %v6821 = vunpack.c.0.s8 %v6820
      %v6822 = vlaneseq
      %v6823 = vshrl.u32 %v6822, 7
      %v6824 = vsub.s32 %v6821, %v6823
      %v6825 = vrot.slane %v6811, %v6824
      %v6826 = vcombine.low %v6818, %v6825
      %v6827 = vcombine.low %v1579, %v6758
      %v6828 = vcombine.low %v6759, %v3702
      %v6830 = vunpack.c.l.s4 1966171168
      %v6831 = vunpack.c.0.s8 %v6830
      %v6832 = vlaneseq
      %v6833 = vshrl.u32 %v6832, 7
      %v6834 = vsub.s32 %v6831, %v6833
      %v6835 = vrot.slane %v6827, %v6834
      %v6837 = vunpack.c.l.s4 1966171168
      %v6838 = vunpack.c.0.s8 %v6837
      %v6839 = vlaneseq
      %v6840 = vshrl.u32 %v6839, 7
      %v6841 = vsub.s32 %v6838, %v6840
      %v6842 = vrot.slane %v6828, %v6841
      %v6843 = vcombine.low %v6835, %v1713
      %v6844 = vcombine.low %v6842, %v3720
      %v6846 = vunpack.c.l.s4 1966171168
      %v6847 = vunpack.c.0.s8 %v6846
      %v6848 = vlaneseq
      %v6849 = vshrl.u32 %v6848, 7
      %v6850 = vsub.s32 %v6847, %v6849
      %v6851 = vrot.slane %v6843, %v6850
      %v6853 = vunpack.c.l.s4 1966171168
      %v6854 = vunpack.c.0.s8 %v6853
      %v6855 = vlaneseq
      %v6856 = vshrl.u32 %v6855, 7
      %v6857 = vsub.s32 %v6854, %v6856
      %v6858 = vrot.slane %v6844, %v6857
      %v6859 = vcombine.low %v6851, %v6858
      %v6861 = vunpack.c.l.s4 1966171168
      %v6862 = vunpack.c.0.s8 %v6861
      %v6863 = vlaneseq
      %v6864 = vshrl.u32 %v6863, 7
      %v6865 = vsub.s32 %v6862, %v6864
      %v6866 = vrot.slane %v4728, %v6865
      %v6868 = vunpack.c.l.s4 1966171168
      %v6869 = vunpack.c.0.s8 %v6868
      %v6870 = vlaneseq
      %v6871 = vshrl.u32 %v6870, 7
      %v6872 = vsub.s32 %v6869, %v6871
      %v6873 = vrot.slane %v6866, %v6872
      %v6886 = vunpack.c.l.b16 %v6742
      %v6887 = vunpack.c.l.b16 %v6743
      %v6888 = vunpack.c.l.b16 %v6744
      %v6889 = vunpack.c.l.b16 %v6745
      %v6890 = vunpack.c.l.b16 %v6746
      %v6891 = vunpack.c.l.b16 %v6747
      %v6892 = vunpack.c.l.b16 %v6748
      %v6893 = vunpack.c.l.b16 %v6749
      %v6894 = vunpack.c.l.b16 %v6750
      %v6895 = vunpack.c.l.b16 %v6751
      %v6896 = vunpack.c.l.b16 %v6752
      %v6897 = vunpack.c.l.b16 %v6753
      %v6898 = vpack.c.b16 %v6887, %v6886
      %v6899 = vpack.c.b16 %v6889, %v6888
      %v6900 = vpack.c.b16 %v6891, %v6890
      %v6901 = vpack.c.b16 %v6893, %v6892
      %v6902 = vpack.c.b16 %v6895, %v6894
      %v6903 = vpack.c.b16 %v6897, %v6896
      %v6911 = vsel %vm1781, %v6793, 0
      %v6914 = vsel %vm1781, %v6826, 0
      %v6917 = vsel %vm1781, %v6859, 0
      %v6920 = vsel %vm1781, %v6873, 0
      %6922 = vmatprep.subr.bf16.mxu0 0
      %6923 = vmatpush1.bf16.msra.mxu0 %v6898
      %6924 = vmatprep.subr.bf16.mxu0 0
      %6925 = vmatpush1.bf16.msra.mxu0 %v6899
      %6926 = vmatprep.subr.bf16.mxu0 0
      %6927 = vmatpush1.bf16.msra.mxu0 %v6900
      %6928 = vmatprep.subr.bf16.mxu0 0
      %6929 = vmatpush1.bf16.msra.mxu0 %v6901
      %6930 = vmatprep.subr.bf16.mxu0 0
      %6931 = vmatpush1.bf16.msra.mxu0 %v6902
      %6932 = vmatprep.subr.bf16.mxu0 0
      %6933 = vmatpush1.bf16.msra.mxu0 %v6903
      %6934 = vmatprep.subr.bf16.mxu0 0
      %6935 = vmatpush1.bf16.msra.mxu0 0
      %6936 = vmatprep.subr.bf16.mxu0 0
      %6937 = vmatpush1.bf16.msra.mxu0 0
      %6938 = vmatprep.subr.bf16.mxu0 0
      %6939 = vmatpush1.bf16.msra.mxu0 0
      %6940 = vmatprep.subr.bf16.mxu0 0
      %6941 = vmatpush1.bf16.msra.mxu0 0
      %6942 = vmatprep.subr.bf16.mxu0 0
      %6943 = vmatpush1.bf16.msra.mxu0 0
      %6944 = vmatprep.subr.bf16.mxu0 0
      %6945 = vmatpush1.bf16.msra.mxu0 0
      %6946 = vmatprep.subr.bf16.mxu0 0
      %6947 = vmatpush1.bf16.msra.mxu0 0
      %6948 = vmatprep.subr.bf16.mxu0 0
      %6949 = vmatpush1.bf16.msra.mxu0 0
      %6950 = vmatprep.subr.bf16.mxu0 0
      %6951 = vmatpush1.bf16.msra.mxu0 0
      %6952 = vmatprep.subr.bf16.mxu0 0
      %6953 = vmatpush1.bf16.msra.mxu0 0
      %6954 = vmatprep.mubr.bf16.mxu0 0
      %6955 = vmatmul.mubr.bf16.gmra.mrb[0].mxu0 %v6911
      %v6956 = vpop.f32.mrb[0].mxu0
      %v6957 = vadd.f32 0.0, %v6956
      %v6958 = vpop.f32.mrb[0].mxu0
      %v6959 = vpop.f32.mrb[0].mxu0
      %v6960 = vadd.f32 0.0, %v6959
      %v6961 = vpop.f32.mrb[0].mxu0
      %6962 = vmatprep.mubr.bf16.mxu0 0
      %6963 = vmatmul.mubr.bf16.gmra.mrb[0].mxu0 %v6914
      %v6964 = vpop.f32.mrb[0].mxu0
      %v6965 = vadd.f32 0.0, %v6964
      %v6966 = vpop.f32.mrb[0].mxu0
      %v6967 = vpop.f32.mrb[0].mxu0
      %v6968 = vadd.f32 0.0, %v6967
      %v6969 = vpop.f32.mrb[0].mxu0
      %6970 = vmatprep.mubr.bf16.mxu0 0
      %6971 = vmatmul.mubr.bf16.gmra.mrb[0].mxu0 %v6917
      %v6972 = vpop.f32.mrb[0].mxu0
      %v6973 = vadd.f32 0.0, %v6972
      %v6974 = vpop.f32.mrb[0].mxu0
      %v6975 = vpop.f32.mrb[0].mxu0
      %v6976 = vadd.f32 0.0, %v6975
      %v6977 = vpop.f32.mrb[0].mxu0
      %6978 = vmatprep.mubr.bf16.mxu0 0
      %6979 = vmatmul.mubr.bf16.gmra.mrb[0].mxu0 %v6920
      %v6980 = vpop.f32.mrb[0].mxu0
      %v6981 = vadd.f32 0.0, %v6980
      %v6982 = vpop.f32.mrb[0].mxu0
      %v6983 = vpop.f32.mrb[0].mxu0
      %v6984 = vpop.f32.mrb[0].mxu0
      %6985 = vdwg.mxu0
      %v6993 = vcombine.high %v6957, %v6957
      %v6995 = vunpack.c.l.s4 1966171168
      %v6996 = vunpack.c.0.s8 %v6995
      %v6997 = vlaneseq
      %v6998 = vshrl.u32 %v6997, 7
      %v6999 = vsub.s32 %v6996, %v6998
      %v7000 = vrot.slane %v6957, %v6999
      %v7002 = vunpack.c.l.s4 1966171168
      %v7003 = vunpack.c.0.s8 %v7002
      %v7004 = vlaneseq
      %v7005 = vshrl.u32 %v7004, 7
      %v7006 = vsub.s32 %v7003, %v7005
      %v7007 = vrot.slane %v6993, %v7006
      %v7008 = vcombine.high %v7000, %v7000
      %v7009 = vcombine.high %v7007, %v7007
      %v7011 = vunpack.c.l.s4 1966171168
      %v7012 = vunpack.c.0.s8 %v7011
      %v7013 = vlaneseq
      %v7014 = vshrl.u32 %v7013, 7
      %v7015 = vsub.s32 %v7012, %v7014
      %v7016 = vrot.slane %v7000, %v7015
      %v7018 = vunpack.c.l.s4 1966171168
      %v7019 = vunpack.c.0.s8 %v7018
      %v7020 = vlaneseq
      %v7021 = vshrl.u32 %v7020, 7
      %v7022 = vsub.s32 %v7019, %v7021
      %v7023 = vrot.slane %v7007, %v7022
      %v7025 = vunpack.c.l.s4 1966171168
      %v7026 = vunpack.c.0.s8 %v7025
      %v7027 = vlaneseq
      %v7028 = vshrl.u32 %v7027, 7
      %v7029 = vsub.s32 %v7026, %v7028
      %v7030 = vrot.slane %v7008, %v7029
      %v7032 = vunpack.c.l.s4 1966171168
      %v7033 = vunpack.c.0.s8 %v7032
      %v7034 = vlaneseq
      %v7035 = vshrl.u32 %v7034, 7
      %v7036 = vsub.s32 %v7033, %v7035
      %v7037 = vrot.slane %v7009, %v7036
      %v7038 = vcombine.high %v7016, %v7016
      %v7039 = vcombine.high %v7023, %v7023
      %v7040 = vcombine.high %v7030, %v7030
      %v7041 = vcombine.high %v7037, %v7037
      %v7042 = vcombine.high %v6960, %v6960
      %v7044 = vunpack.c.l.s4 1966171168
      %v7045 = vunpack.c.0.s8 %v7044
      %v7046 = vlaneseq
      %v7047 = vshrl.u32 %v7046, 7
      %v7048 = vsub.s32 %v7045, %v7047
      %v7049 = vrot.slane %v6960, %v7048
      %v7051 = vunpack.c.l.s4 1966171168
      %v7052 = vunpack.c.0.s8 %v7051
      %v7053 = vlaneseq
      %v7054 = vshrl.u32 %v7053, 7
      %v7055 = vsub.s32 %v7052, %v7054
      %v7056 = vrot.slane %v7042, %v7055
      %v7057 = vcombine.high %v7049, %v7049
      %v7058 = vcombine.high %v7056, %v7056
      %v7060 = vunpack.c.l.s4 1966171168
      %v7061 = vunpack.c.0.s8 %v7060
      %v7062 = vlaneseq
      %v7063 = vshrl.u32 %v7062, 7
      %v7064 = vsub.s32 %v7061, %v7063
      %v7065 = vrot.slane %v7049, %v7064
      %v7067 = vunpack.c.l.s4 1966171168
      %v7068 = vunpack.c.0.s8 %v7067
      %v7069 = vlaneseq
      %v7070 = vshrl.u32 %v7069, 7
      %v7071 = vsub.s32 %v7068, %v7070
      %v7072 = vrot.slane %v7056, %v7071
      %v7074 = vunpack.c.l.s4 1966171168
      %v7075 = vunpack.c.0.s8 %v7074
      %v7076 = vlaneseq
      %v7077 = vshrl.u32 %v7076, 7
      %v7078 = vsub.s32 %v7075, %v7077
      %v7079 = vrot.slane %v7057, %v7078
      %v7081 = vunpack.c.l.s4 1966171168
      %v7082 = vunpack.c.0.s8 %v7081
      %v7083 = vlaneseq
      %v7084 = vshrl.u32 %v7083, 7
      %v7085 = vsub.s32 %v7082, %v7084
      %v7086 = vrot.slane %v7058, %v7085
      %v7087 = vcombine.high %v7065, %v7065
      %v7088 = vcombine.high %v7072, %v7072
      %v7089 = vcombine.high %v7079, %v7079
      %v7090 = vcombine.high %v7086, %v7086
      %v7091 = vcombine.high %v6965, %v6965
      %v7093 = vunpack.c.l.s4 1966171168
      %v7094 = vunpack.c.0.s8 %v7093
      %v7095 = vlaneseq
      %v7096 = vshrl.u32 %v7095, 7
      %v7097 = vsub.s32 %v7094, %v7096
      %v7098 = vrot.slane %v6965, %v7097
      %v7100 = vunpack.c.l.s4 1966171168
      %v7101 = vunpack.c.0.s8 %v7100
      %v7102 = vlaneseq
      %v7103 = vshrl.u32 %v7102, 7
      %v7104 = vsub.s32 %v7101, %v7103
      %v7105 = vrot.slane %v7091, %v7104
      %v7106 = vcombine.high %v7098, %v7098
      %v7107 = vcombine.high %v7105, %v7105
      %v7109 = vunpack.c.l.s4 1966171168
      %v7110 = vunpack.c.0.s8 %v7109
      %v7111 = vlaneseq
      %v7112 = vshrl.u32 %v7111, 7
      %v7113 = vsub.s32 %v7110, %v7112
      %v7114 = vrot.slane %v7098, %v7113
      %v7116 = vunpack.c.l.s4 1966171168
      %v7117 = vunpack.c.0.s8 %v7116
      %v7118 = vlaneseq
      %v7119 = vshrl.u32 %v7118, 7
      %v7120 = vsub.s32 %v7117, %v7119
      %v7121 = vrot.slane %v7105, %v7120
      %v7123 = vunpack.c.l.s4 1966171168
      %v7124 = vunpack.c.0.s8 %v7123
      %v7125 = vlaneseq
      %v7126 = vshrl.u32 %v7125, 7
      %v7127 = vsub.s32 %v7124, %v7126
      %v7128 = vrot.slane %v7106, %v7127
      %v7130 = vunpack.c.l.s4 1966171168
      %v7131 = vunpack.c.0.s8 %v7130
      %v7132 = vlaneseq
      %v7133 = vshrl.u32 %v7132, 7
      %v7134 = vsub.s32 %v7131, %v7133
      %v7135 = vrot.slane %v7107, %v7134
      %v7136 = vcombine.high %v7114, %v7114
      %v7137 = vcombine.high %v7121, %v7121
      %v7138 = vcombine.high %v7128, %v7128
      %v7139 = vcombine.high %v7135, %v7135
      %v7140 = vcombine.high %v6968, %v6968
      %v7142 = vunpack.c.l.s4 1966171168
      %v7143 = vunpack.c.0.s8 %v7142
      %v7144 = vlaneseq
      %v7145 = vshrl.u32 %v7144, 7
      %v7146 = vsub.s32 %v7143, %v7145
      %v7147 = vrot.slane %v6968, %v7146
      %v7149 = vunpack.c.l.s4 1966171168
      %v7150 = vunpack.c.0.s8 %v7149
      %v7151 = vlaneseq
      %v7152 = vshrl.u32 %v7151, 7
      %v7153 = vsub.s32 %v7150, %v7152
      %v7154 = vrot.slane %v7140, %v7153
      %v7155 = vcombine.high %v7147, %v7147
      %v7156 = vcombine.high %v7154, %v7154
      %v7158 = vunpack.c.l.s4 1966171168
      %v7159 = vunpack.c.0.s8 %v7158
      %v7160 = vlaneseq
      %v7161 = vshrl.u32 %v7160, 7
      %v7162 = vsub.s32 %v7159, %v7161
      %v7163 = vrot.slane %v7147, %v7162
      %v7165 = vunpack.c.l.s4 1966171168
      %v7166 = vunpack.c.0.s8 %v7165
      %v7167 = vlaneseq
      %v7168 = vshrl.u32 %v7167, 7
      %v7169 = vsub.s32 %v7166, %v7168
      %v7170 = vrot.slane %v7154, %v7169
      %v7172 = vunpack.c.l.s4 1966171168
      %v7173 = vunpack.c.0.s8 %v7172
      %v7174 = vlaneseq
      %v7175 = vshrl.u32 %v7174, 7
      %v7176 = vsub.s32 %v7173, %v7175
      %v7177 = vrot.slane %v7155, %v7176
      %v7179 = vunpack.c.l.s4 1966171168
      %v7180 = vunpack.c.0.s8 %v7179
      %v7181 = vlaneseq
      %v7182 = vshrl.u32 %v7181, 7
      %v7183 = vsub.s32 %v7180, %v7182
      %v7184 = vrot.slane %v7156, %v7183
      %v7185 = vcombine.high %v7163, %v7163
      %v7186 = vcombine.high %v7170, %v7170
      %v7187 = vcombine.high %v7177, %v7177
      %v7188 = vcombine.high %v7184, %v7184
      %v7189 = vcombine.high %v6973, %v6973
      %v7191 = vunpack.c.l.s4 1966171168
      %v7192 = vunpack.c.0.s8 %v7191
      %v7193 = vlaneseq
      %v7194 = vshrl.u32 %v7193, 7
      %v7195 = vsub.s32 %v7192, %v7194
      %v7196 = vrot.slane %v6973, %v7195
      %v7198 = vunpack.c.l.s4 1966171168
      %v7199 = vunpack.c.0.s8 %v7198
      %v7200 = vlaneseq
      %v7201 = vshrl.u32 %v7200, 7
      %v7202 = vsub.s32 %v7199, %v7201
      %v7203 = vrot.slane %v7189, %v7202
      %v7204 = vcombine.high %v7196, %v7196
      %v7205 = vcombine.high %v7203, %v7203
      %v7207 = vunpack.c.l.s4 1966171168
      %v7208 = vunpack.c.0.s8 %v7207
      %v7209 = vlaneseq
      %v7210 = vshrl.u32 %v7209, 7
      %v7211 = vsub.s32 %v7208, %v7210
      %v7212 = vrot.slane %v7196, %v7211
      %v7214 = vunpack.c.l.s4 1966171168
      %v7215 = vunpack.c.0.s8 %v7214
      %v7216 = vlaneseq
      %v7217 = vshrl.u32 %v7216, 7
      %v7218 = vsub.s32 %v7215, %v7217
      %v7219 = vrot.slane %v7203, %v7218
      %v7221 = vunpack.c.l.s4 1966171168
      %v7222 = vunpack.c.0.s8 %v7221
      %v7223 = vlaneseq
      %v7224 = vshrl.u32 %v7223, 7
      %v7225 = vsub.s32 %v7222, %v7224
      %v7226 = vrot.slane %v7204, %v7225
      %v7228 = vunpack.c.l.s4 1966171168
      %v7229 = vunpack.c.0.s8 %v7228
      %v7230 = vlaneseq
      %v7231 = vshrl.u32 %v7230, 7
      %v7232 = vsub.s32 %v7229, %v7231
      %v7233 = vrot.slane %v7205, %v7232
      %v7234 = vcombine.high %v7212, %v7212
      %v7235 = vcombine.high %v7219, %v7219
      %v7236 = vcombine.high %v7226, %v7226
      %v7237 = vcombine.high %v7233, %v7233
      %v7238 = vcombine.high %v6976, %v6976
      %v7240 = vunpack.c.l.s4 1966171168
      %v7241 = vunpack.c.0.s8 %v7240
      %v7242 = vlaneseq
      %v7243 = vshrl.u32 %v7242, 7
      %v7244 = vsub.s32 %v7241, %v7243
      %v7245 = vrot.slane %v6976, %v7244
      %v7247 = vunpack.c.l.s4 1966171168
      %v7248 = vunpack.c.0.s8 %v7247
      %v7249 = vlaneseq
      %v7250 = vshrl.u32 %v7249, 7
      %v7251 = vsub.s32 %v7248, %v7250
      %v7252 = vrot.slane %v7238, %v7251
      %v7253 = vcombine.high %v7245, %v7245
      %v7254 = vcombine.high %v7252, %v7252
      %v7256 = vunpack.c.l.s4 1966171168
      %v7257 = vunpack.c.0.s8 %v7256
      %v7258 = vlaneseq
      %v7259 = vshrl.u32 %v7258, 7
      %v7260 = vsub.s32 %v7257, %v7259
      %v7261 = vrot.slane %v7245, %v7260
      %v7263 = vunpack.c.l.s4 1966171168
      %v7264 = vunpack.c.0.s8 %v7263
      %v7265 = vlaneseq
      %v7266 = vshrl.u32 %v7265, 7
      %v7267 = vsub.s32 %v7264, %v7266
      %v7268 = vrot.slane %v7252, %v7267
      %v7270 = vunpack.c.l.s4 1966171168
      %v7271 = vunpack.c.0.s8 %v7270
      %v7272 = vlaneseq
      %v7273 = vshrl.u32 %v7272, 7
      %v7274 = vsub.s32 %v7271, %v7273
      %v7275 = vrot.slane %v7253, %v7274
      %v7277 = vunpack.c.l.s4 1966171168
      %v7278 = vunpack.c.0.s8 %v7277
      %v7279 = vlaneseq
      %v7280 = vshrl.u32 %v7279, 7
      %v7281 = vsub.s32 %v7278, %v7280
      %v7282 = vrot.slane %v7254, %v7281
      %v7283 = vcombine.high %v7261, %v7261
      %v7284 = vcombine.high %v7268, %v7268
      %v7285 = vcombine.high %v7275, %v7275
      %v7286 = vcombine.high %v7282, %v7282
      %v7288 = vunpack.c.l.s4 1966171168
      %v7289 = vunpack.c.0.s8 %v7288
      %v7290 = vlaneseq
      %v7291 = vshrl.u32 %v7290, 7
      %v7292 = vsub.s32 %v7289, %v7291
      %v7293 = vrot.slane %v6981, %v7292
      %v7295 = vunpack.c.l.s4 1966171168
      %v7296 = vunpack.c.0.s8 %v7295
      %v7297 = vlaneseq
      %v7298 = vshrl.u32 %v7297, 7
      %v7299 = vsub.s32 %v7296, %v7298
      %v7300 = vrot.slane %v7293, %v7299
      %v7301 = vcombine.low %v7016, %v7030
      %v7302 = vcombine.low %v7038, %v7040
      %v7303 = vcombine.low %v7023, %v7037
      %v7305 = vunpack.c.l.s4 1966171168
      %v7306 = vunpack.c.0.s8 %v7305
      %v7307 = vlaneseq
      %v7308 = vshrl.u32 %v7307, 7
      %v7309 = vsub.s32 %v7306, %v7308
      %v7310 = vrot.slane %v7301, %v7309
      %v7312 = vunpack.c.l.s4 1966171168
      %v7313 = vunpack.c.0.s8 %v7312
      %v7314 = vlaneseq
      %v7315 = vshrl.u32 %v7314, 7
      %v7316 = vsub.s32 %v7313, %v7315
      %v7317 = vrot.slane %v7302, %v7316
      %v7319 = vunpack.c.l.s4 1966171168
      %v7320 = vunpack.c.0.s8 %v7319
      %v7321 = vlaneseq
      %v7322 = vshrl.u32 %v7321, 7
      %v7323 = vsub.s32 %v7320, %v7322
      %v7324 = vrot.slane %v7303, %v7323
      %v7326 = vunpack.c.l.s4 1966171168
      %v7327 = vunpack.c.0.s8 %v7326
      %v7328 = vlaneseq
      %v7329 = vshrl.u32 %v7328, 7
      %v7330 = vsub.s32 %v7327, %v7329
      %v7331 = vrot.slane %v7039, %v7330
      %v7332 = vcombine.low %v7310, %v7317
      %v7333 = vcombine.low %v7324, %v7331
      %v7335 = vunpack.c.l.s4 1966171168
      %v7336 = vunpack.c.0.s8 %v7335
      %v7337 = vlaneseq
      %v7338 = vshrl.u32 %v7337, 7
      %v7339 = vsub.s32 %v7336, %v7338
      %v7340 = vrot.slane %v7332, %v7339
      %v7342 = vunpack.c.l.s4 1966171168
      %v7343 = vunpack.c.0.s8 %v7342
      %v7344 = vlaneseq
      %v7345 = vshrl.u32 %v7344, 7
      %v7346 = vsub.s32 %v7343, %v7345
      %v7347 = vrot.slane %v7333, %v7346
      %v7348 = vcombine.low %v7340, %v7347
      %v7349 = vcombine.low %v7041, %v7065
      %v7350 = vcombine.low %v7079, %v7087
      %v7351 = vcombine.low %v7089, %v7072
      %v7353 = vunpack.c.l.s4 1966171168
      %v7354 = vunpack.c.0.s8 %v7353
      %v7355 = vlaneseq
      %v7356 = vshrl.u32 %v7355, 7
      %v7357 = vsub.s32 %v7354, %v7356
      %v7358 = vrot.slane %v7349, %v7357
      %v7360 = vunpack.c.l.s4 1966171168
      %v7361 = vunpack.c.0.s8 %v7360
      %v7362 = vlaneseq
      %v7363 = vshrl.u32 %v7362, 7
      %v7364 = vsub.s32 %v7361, %v7363
      %v7365 = vrot.slane %v7350, %v7364
      %v7367 = vunpack.c.l.s4 1966171168
      %v7368 = vunpack.c.0.s8 %v7367
      %v7369 = vlaneseq
      %v7370 = vshrl.u32 %v7369, 7
      %v7371 = vsub.s32 %v7368, %v7370
      %v7372 = vrot.slane %v7351, %v7371
      %v7374 = vunpack.c.l.s4 1966171168
      %v7375 = vunpack.c.0.s8 %v7374
      %v7376 = vlaneseq
      %v7377 = vshrl.u32 %v7376, 7
      %v7378 = vsub.s32 %v7375, %v7377
      %v7379 = vrot.slane %v7086, %v7378
      %v7380 = vcombine.low %v7358, %v7365
      %v7381 = vcombine.low %v7372, %v7379
      %v7383 = vunpack.c.l.s4 1966171168
      %v7384 = vunpack.c.0.s8 %v7383
      %v7385 = vlaneseq
      %v7386 = vshrl.u32 %v7385, 7
      %v7387 = vsub.s32 %v7384, %v7386
      %v7388 = vrot.slane %v7380, %v7387
      %v7390 = vunpack.c.l.s4 1966171168
      %v7391 = vunpack.c.0.s8 %v7390
      %v7392 = vlaneseq
      %v7393 = vshrl.u32 %v7392, 7
      %v7394 = vsub.s32 %v7391, %v7393
      %v7395 = vrot.slane %v7381, %v7394
      %v7396 = vcombine.low %v7388, %v7395
      %v7397 = vcombine.low %v7088, %v7090
      %v7398 = vcombine.low %v7114, %v7128
      %v7399 = vcombine.low %v7136, %v7138
      %v7401 = vunpack.c.l.s4 1966171168
      %v7402 = vunpack.c.0.s8 %v7401
      %v7403 = vlaneseq
      %v7404 = vshrl.u32 %v7403, 7
      %v7405 = vsub.s32 %v7402, %v7404
      %v7406 = vrot.slane %v7397, %v7405
      %v7408 = vunpack.c.l.s4 1966171168
      %v7409 = vunpack.c.0.s8 %v7408
      %v7410 = vlaneseq
      %v7411 = vshrl.u32 %v7410, 7
      %v7412 = vsub.s32 %v7409, %v7411
      %v7413 = vrot.slane %v7398, %v7412
      %v7415 = vunpack.c.l.s4 1966171168
      %v7416 = vunpack.c.0.s8 %v7415
      %v7417 = vlaneseq
      %v7418 = vshrl.u32 %v7417, 7
      %v7419 = vsub.s32 %v7416, %v7418
      %v7420 = vrot.slane %v7399, %v7419
      %v7422 = vunpack.c.l.s4 1966171168
      %v7423 = vunpack.c.0.s8 %v7422
      %v7424 = vlaneseq
      %v7425 = vshrl.u32 %v7424, 7
      %v7426 = vsub.s32 %v7423, %v7425
      %v7427 = vrot.slane %v7121, %v7426
      %v7428 = vcombine.low %v7406, %v7413
      %v7429 = vcombine.low %v7420, %v7427
      %v7431 = vunpack.c.l.s4 1966171168
      %v7432 = vunpack.c.0.s8 %v7431
      %v7433 = vlaneseq
      %v7434 = vshrl.u32 %v7433, 7
      %v7435 = vsub.s32 %v7432, %v7434
      %v7436 = vrot.slane %v7428, %v7435
      %v7438 = vunpack.c.l.s4 1966171168
      %v7439 = vunpack.c.0.s8 %v7438
      %v7440 = vlaneseq
      %v7441 = vshrl.u32 %v7440, 7
      %v7442 = vsub.s32 %v7439, %v7441
      %v7443 = vrot.slane %v7429, %v7442
      %v7444 = vcombine.low %v7436, %v7443
      %v7445 = vcombine.low %v7135, %v7137
      %v7446 = vcombine.low %v7139, %v7163
      %v7447 = vcombine.low %v7177, %v7185
      %v7449 = vunpack.c.l.s4 1966171168
      %v7450 = vunpack.c.0.s8 %v7449
      %v7451 = vlaneseq
      %v7452 = vshrl.u32 %v7451, 7
      %v7453 = vsub.s32 %v7450, %v7452
      %v7454 = vrot.slane %v7445, %v7453
      %v7456 = vunpack.c.l.s4 1966171168
      %v7457 = vunpack.c.0.s8 %v7456
      %v7458 = vlaneseq
      %v7459 = vshrl.u32 %v7458, 7
      %v7460 = vsub.s32 %v7457, %v7459
      %v7461 = vrot.slane %v7446, %v7460
      %v7463 = vunpack.c.l.s4 1966171168
      %v7464 = vunpack.c.0.s8 %v7463
      %v7465 = vlaneseq
      %v7466 = vshrl.u32 %v7465, 7
      %v7467 = vsub.s32 %v7464, %v7466
      %v7468 = vrot.slane %v7447, %v7467
      %v7470 = vunpack.c.l.s4 1966171168
      %v7471 = vunpack.c.0.s8 %v7470
      %v7472 = vlaneseq
      %v7473 = vshrl.u32 %v7472, 7
      %v7474 = vsub.s32 %v7471, %v7473
      %v7475 = vrot.slane %v7187, %v7474
      %v7476 = vcombine.low %v7454, %v7461
      %v7477 = vcombine.low %v7468, %v7475
      %v7479 = vunpack.c.l.s4 1966171168
      %v7480 = vunpack.c.0.s8 %v7479
      %v7481 = vlaneseq
      %v7482 = vshrl.u32 %v7481, 7
      %v7483 = vsub.s32 %v7480, %v7482
      %v7484 = vrot.slane %v7476, %v7483
      %v7486 = vunpack.c.l.s4 1966171168
      %v7487 = vunpack.c.0.s8 %v7486
      %v7488 = vlaneseq
      %v7489 = vshrl.u32 %v7488, 7
      %v7490 = vsub.s32 %v7487, %v7489
      %v7491 = vrot.slane %v7477, %v7490
      %v7492 = vcombine.low %v7484, %v7491
      %v7493 = vcombine.low %v7170, %v7184
      %v7494 = vcombine.low %v7186, %v7188
      %v7495 = vcombine.low %v7212, %v7226
      %v7497 = vunpack.c.l.s4 1966171168
      %v7498 = vunpack.c.0.s8 %v7497
      %v7499 = vlaneseq
      %v7500 = vshrl.u32 %v7499, 7
      %v7501 = vsub.s32 %v7498, %v7500
      %v7502 = vrot.slane %v7493, %v7501
      %v7504 = vunpack.c.l.s4 1966171168
      %v7505 = vunpack.c.0.s8 %v7504
      %v7506 = vlaneseq
      %v7507 = vshrl.u32 %v7506, 7
      %v7508 = vsub.s32 %v7505, %v7507
      %v7509 = vrot.slane %v7494, %v7508
      %v7511 = vunpack.c.l.s4 1966171168
      %v7512 = vunpack.c.0.s8 %v7511
      %v7513 = vlaneseq
      %v7514 = vshrl.u32 %v7513, 7
      %v7515 = vsub.s32 %v7512, %v7514
      %v7516 = vrot.slane %v7495, %v7515
      %v7518 = vunpack.c.l.s4 1966171168
      %v7519 = vunpack.c.0.s8 %v7518
      %v7520 = vlaneseq
      %v7521 = vshrl.u32 %v7520, 7
      %v7522 = vsub.s32 %v7519, %v7521
      %v7523 = vrot.slane %v7234, %v7522
      %v7524 = vcombine.low %v7502, %v7509
      %v7525 = vcombine.low %v7516, %v7523
      %v7527 = vunpack.c.l.s4 1966171168
      %v7528 = vunpack.c.0.s8 %v7527
      %v7529 = vlaneseq
      %v7530 = vshrl.u32 %v7529, 7
      %v7531 = vsub.s32 %v7528, %v7530
      %v7532 = vrot.slane %v7524, %v7531
      %v7534 = vunpack.c.l.s4 1966171168
      %v7535 = vunpack.c.0.s8 %v7534
      %v7536 = vlaneseq
      %v7537 = vshrl.u32 %v7536, 7
      %v7538 = vsub.s32 %v7535, %v7537
      %v7539 = vrot.slane %v7525, %v7538
      %v7540 = vcombine.low %v7532, %v7539
      %v7541 = vcombine.low %v7236, %v7219
      %v7542 = vcombine.low %v7233, %v7235
      %v7543 = vcombine.low %v7237, %v7261
      %v7545 = vunpack.c.l.s4 1966171168
      %v7546 = vunpack.c.0.s8 %v7545
      %v7547 = vlaneseq
      %v7548 = vshrl.u32 %v7547, 7
      %v7549 = vsub.s32 %v7546, %v7548
      %v7550 = vrot.slane %v7541, %v7549
      %v7552 = vunpack.c.l.s4 1966171168
      %v7553 = vunpack.c.0.s8 %v7552
      %v7554 = vlaneseq
      %v7555 = vshrl.u32 %v7554, 7
      %v7556 = vsub.s32 %v7553, %v7555
      %v7557 = vrot.slane %v7542, %v7556
      %v7559 = vunpack.c.l.s4 1966171168
      %v7560 = vunpack.c.0.s8 %v7559
      %v7561 = vlaneseq
      %v7562 = vshrl.u32 %v7561, 7
      %v7563 = vsub.s32 %v7560, %v7562
      %v7564 = vrot.slane %v7543, %v7563
      %v7566 = vunpack.c.l.s4 1966171168
      %v7567 = vunpack.c.0.s8 %v7566
      %v7568 = vlaneseq
      %v7569 = vshrl.u32 %v7568, 7
      %v7570 = vsub.s32 %v7567, %v7569
      %v7571 = vrot.slane %v7275, %v7570
      %v7572 = vcombine.low %v7550, %v7557
      %v7573 = vcombine.low %v7564, %v7571
      %v7575 = vunpack.c.l.s4 1966171168
      %v7576 = vunpack.c.0.s8 %v7575
      %v7577 = vlaneseq
      %v7578 = vshrl.u32 %v7577, 7
      %v7579 = vsub.s32 %v7576, %v7578
      %v7580 = vrot.slane %v7572, %v7579
      %v7582 = vunpack.c.l.s4 1966171168
      %v7583 = vunpack.c.0.s8 %v7582
      %v7584 = vlaneseq
      %v7585 = vshrl.u32 %v7584, 7
      %v7586 = vsub.s32 %v7583, %v7585
      %v7587 = vrot.slane %v7573, %v7586
      %v7588 = vcombine.low %v7580, %v7587
      %v7589 = vcombine.low %v7283, %v7285
      %v7590 = vcombine.low %v7268, %v7282
      %v7591 = vcombine.low %v7284, %v7286
      %v7593 = vunpack.c.l.s4 1966171168
      %v7594 = vunpack.c.0.s8 %v7593
      %v7595 = vlaneseq
      %v7596 = vshrl.u32 %v7595, 7
      %v7597 = vsub.s32 %v7594, %v7596
      %v7598 = vrot.slane %v7589, %v7597
      %v7600 = vunpack.c.l.s4 1966171168
      %v7601 = vunpack.c.0.s8 %v7600
      %v7602 = vlaneseq
      %v7603 = vshrl.u32 %v7602, 7
      %v7604 = vsub.s32 %v7601, %v7603
      %v7605 = vrot.slane %v7590, %v7604
      %v7607 = vunpack.c.l.s4 1966171168
      %v7608 = vunpack.c.0.s8 %v7607
      %v7609 = vlaneseq
      %v7610 = vshrl.u32 %v7609, 7
      %v7611 = vsub.s32 %v7608, %v7610
      %v7612 = vrot.slane %v7591, %v7611
      %v7614 = vunpack.c.l.s4 1966171168
      %v7615 = vunpack.c.0.s8 %v7614
      %v7616 = vlaneseq
      %v7617 = vshrl.u32 %v7616, 7
      %v7618 = vsub.s32 %v7615, %v7617
      %v7619 = vrot.slane %v7300, %v7618
      %v7620 = vcombine.low %v7598, %v7605
      %v7621 = vcombine.low %v7612, %v7619
      %v7623 = vunpack.c.l.s4 1966171168
      %v7624 = vunpack.c.0.s8 %v7623
      %v7625 = vlaneseq
      %v7626 = vshrl.u32 %v7625, 7
      %v7627 = vsub.s32 %v7624, %v7626
      %v7628 = vrot.slane %v7620, %v7627
      %v7630 = vunpack.c.l.s4 1966171168
      %v7631 = vunpack.c.0.s8 %v7630
      %v7632 = vlaneseq
      %v7633 = vshrl.u32 %v7632, 7
      %v7634 = vsub.s32 %v7631, %v7633
      %v7635 = vrot.slane %v7621, %v7634
      %v7636 = vcombine.low %v7628, %v7635
      %v7644 = vsel %vm3642, %v7348, 0.0
      %v7645 = vsel %vm3642, %v7396, 0.0
      %v7646 = vsel %vm3642, %v7444, 0.0
      %v7647 = vsel %vm3642, %v7492, 0.0
      %v7648 = vsel %vm3642, %v7540, 0.0
      %v7649 = vsel %vm3642, %v7588, 0.0
      %v7650 = vsel %vm3642, %v7636, 0.0
      %v7651 = vadd.f32 %v6733, %v7644
      %v7652 = vadd.f32 %v6734, %v7645
      %v7653 = vadd.f32 %v6735, %v7646
      %v7654 = vadd.f32 %v6736, %v7647
      %v7655 = vadd.f32 %v6737, %v7648
      %v7656 = vadd.f32 %v6738, %v7649
      %v7657 = vadd.f32 %v6739, %v7650
      %v7658 = vadd.f32 %v6740, 0.0
      %v7659 = vmax.f32 %v7651, 0.0
      %v7660 = vmax.f32 %v7652, 0.0
      %v7661 = vmax.f32 %v7653, 0.0
      %v7662 = vmax.f32 %v7654, 0.0
      %v7663 = vmax.f32 %v7655, 0.0
      %v7664 = vmax.f32 %v7656, 0.0
      %v7665 = vmax.f32 %v7657, 0.0
      %v7666 = vmax.f32 %v7658, 0.0
      %v7667 = vpack.c.bf16 %v7659, %v7659
      %v7668 = vpack.c.bf16 %v7660, %v7660
      %v7669 = vpack.c.bf16 %v7661, %v7661
      %v7670 = vpack.c.bf16 %v7662, %v7662
      %v7671 = vpack.c.bf16 %v7663, %v7663
      %v7672 = vpack.c.bf16 %v7664, %v7664
      %v7673 = vpack.c.bf16 %v7665, %v7665
      %v7674 = vpack.c.bf16 %v7666, %v7666
      %v7675 = vld [vmem:[%s550] sm:$0xf]
      %v7676 = vld [vmem:[%s550 + $0x4] sm:$0xf]
      %v7677 = vld [vmem:[%s550 + $0x8] sm:$0xf]
      %v7678 = vld [vmem:[%s550 + $0xc] sm:$0xf]
      %v7679 = vld [vmem:[%s550 + $0x10] sm:$0xf]
      %v7680 = vld [vmem:[%s550 + $0x14] sm:$0xf]
      %v7681 = vld [vmem:[%s550 + $0x18] sm:$0xf]
      %v7682 = vld [vmem:[%s550 + $0x1c] sm:$0xf]
      %v7683 = vld [vmem:[%s553] sm:$0x1]
      %v7685 = vlaneseq
      %v7686 = vshrl.u32 %v7685, 7
      %v7687 = vsub.s32 0, %v7686
      %v7688 = vrot.slane %v7683, %v7687
      %v7698 = vunpack.c.l.b16 %v7667
      %v7699 = vunpack.c.l.b16 %v7668
      %v7700 = vunpack.c.l.b16 %v7669
      %v7701 = vunpack.c.l.b16 %v7670
      %v7702 = vunpack.c.l.b16 %v7671
      %v7703 = vunpack.c.l.b16 %v7672
      %v7704 = vunpack.c.l.b16 %v7673
      %v7705 = vunpack.c.l.b16 %v7674
      %v7706 = vpack.c.b16 %v7699, %v7698
      %v7707 = vpack.c.b16 %v7701, %v7700
      %v7708 = vpack.c.b16 %v7703, %v7702
      %v7709 = vpack.c.b16 %v7705, %v7704
      %v7718 = vunpack.c.l.b16 %v7675
      %v7719 = vunpack.c.l.b16 %v7676
      %v7720 = vunpack.c.l.b16 %v7677
      %v7721 = vunpack.c.l.b16 %v7678
      %v7722 = vunpack.c.l.b16 %v7679
      %v7723 = vunpack.c.l.b16 %v7680
      %v7724 = vunpack.c.l.b16 %v7681
      %v7725 = vunpack.c.l.b16 %v7682
      %v7726 = vpack.c.b16 %v7719, %v7718
      %v7727 = vpack.c.b16 %v7721, %v7720
      %v7728 = vpack.c.b16 %v7723, %v7722
      %v7729 = vpack.c.b16 %v7725, %v7724
      %v7735 = vsel %vm771, %v7706, 0
      %v7738 = vsel %vm771, %v7707, 0
      %v7741 = vsel %vm771, %v7708, 0
      %v7744 = vsel %vm771, %v7709, 0
      %7746 = vmatprep.subr.bf16.mxu0 0
      %7747 = vmatpush1.bf16.msra.mxu0 %v7726
      %7748 = vmatprep.subr.bf16.mxu0 0
      %7749 = vmatpush1.bf16.msra.mxu0 %v7727
      %7750 = vmatprep.subr.bf16.mxu0 0
      %7751 = vmatpush1.bf16.msra.mxu0 %v7728
      %7752 = vmatprep.subr.bf16.mxu0 0
      %7753 = vmatpush1.bf16.msra.mxu0 %v7729
      %7754 = vmatprep.subr.bf16.mxu0 0
      %7755 = vmatpush1.bf16.msra.mxu0 0
      %7756 = vmatprep.subr.bf16.mxu0 0
      %7757 = vmatpush1.bf16.msra.mxu0 0
      %7758 = vmatprep.subr.bf16.mxu0 0
      %7759 = vmatpush1.bf16.msra.mxu0 0
      %7760 = vmatprep.subr.bf16.mxu0 0
      %7761 = vmatpush1.bf16.msra.mxu0 0
      %7762 = vmatprep.subr.bf16.mxu0 0
      %7763 = vmatpush1.bf16.msra.mxu0 0
      %7764 = vmatprep.subr.bf16.mxu0 0
      %7765 = vmatpush1.bf16.msra.mxu0 0
      %7766 = vmatprep.subr.bf16.mxu0 0
      %7767 = vmatpush1.bf16.msra.mxu0 0
      %7768 = vmatprep.subr.bf16.mxu0 0
      %7769 = vmatpush1.bf16.msra.mxu0 0
      %7770 = vmatprep.subr.bf16.mxu0 0
      %7771 = vmatpush1.bf16.msra.mxu0 0
      %7772 = vmatprep.subr.bf16.mxu0 0
      %7773 = vmatpush1.bf16.msra.mxu0 0
      %7774 = vmatprep.subr.bf16.mxu0 0
      %7775 = vmatpush1.bf16.msra.mxu0 0
      %7776 = vmatprep.subr.bf16.mxu0 0
      %7777 = vmatpush1.bf16.msra.mxu0 0
      %7778 = vmatprep.mubr.bf16.mxu0 0
      %7779 = vmatmul.mubr.bf16.gmra.mrb[0].mxu0 %v7735
      %v7780 = vpop.f32.mrb[0].mxu0
      %v7781 = vadd.f32 %v7688, %v7780
      %v7782 = vpop.f32.mrb[0].mxu0
      %v7783 = vpop.f32.mrb[0].mxu0
      %v7784 = vadd.f32 %v7688, %v7783
      %v7785 = vpop.f32.mrb[0].mxu0
      %7786 = vmatprep.mubr.bf16.mxu0 0
      %7787 = vmatmul.mubr.bf16.gmra.mrb[0].mxu0 %v7738
      %v7788 = vpop.f32.mrb[0].mxu0
      %v7789 = vadd.f32 %v7688, %v7788
      %v7790 = vpop.f32.mrb[0].mxu0
      %v7791 = vpop.f32.mrb[0].mxu0
      %v7792 = vadd.f32 %v7688, %v7791
      %v7793 = vpop.f32.mrb[0].mxu0
      %7794 = vmatprep.mubr.bf16.mxu0 0
      %7795 = vmatmul.mubr.bf16.gmra.mrb[0].mxu0 %v7741
      %v7796 = vpop.f32.mrb[0].mxu0
      %v7797 = vadd.f32 %v7688, %v7796
      %v7798 = vpop.f32.mrb[0].mxu0
      %v7799 = vpop.f32.mrb[0].mxu0
      %v7800 = vadd.f32 %v7688, %v7799
      %v7801 = vpop.f32.mrb[0].mxu0
      %7802 = vmatprep.mubr.bf16.mxu0 0
      %7803 = vmatmul.mubr.bf16.gmra.mrb[0].mxu0 %v7744
      %v7804 = vpop.f32.mrb[0].mxu0
      %v7805 = vadd.f32 %v7688, %v7804
      %v7806 = vpop.f32.mrb[0].mxu0
      %v7807 = vpop.f32.mrb[0].mxu0
      %v7808 = vadd.f32 %v7688, %v7807
      %v7809 = vpop.f32.mrb[0].mxu0
      %7810 = vdwg.mxu0
      %p7811 = scmp.eq.s32.totalorder %s26, 2
      %s7812 = scalar_select %p7811, 1, 0
      %s7813 = scvt.s32.f32 %s7812
      %v7814 = vmul.f32 %v7781, %v7781
      %v7815 = vmul.f32 %v7784, %v7784
      %v7816 = vmul.f32 %v7789, %v7789
      %v7817 = vmul.f32 %v7792, %v7792
      %v7818 = vmul.f32 %v7797, %v7797
      %v7819 = vmul.f32 %v7800, %v7800
      %v7820 = vmul.f32 %v7805, %v7805
      %v7821 = vmul.f32 %v7808, %v7808
      %7822 = vadd.xlane.f32.xlu0 %v7814
      %v7823 = vpop.xlane.xlu0 %7822
      %7824 = vadd.xlane.f32.xlu0 %v7815
      %v7825 = vpop.xlane.xlu0 %7824
      %7826 = vadd.xlane.f32.xlu0 %v7816
      %v7827 = vpop.xlane.xlu0 %7826
      %7828 = vadd.xlane.f32.xlu0 %v7817
      %v7829 = vpop.xlane.xlu0 %7828
      %7830 = vadd.xlane.f32.xlu0 %v7818
      %v7831 = vpop.xlane.xlu0 %7830
      %7832 = vadd.xlane.f32.xlu0 %v7819
      %v7833 = vpop.xlane.xlu0 %7832
      %7834 = vadd.xlane.f32.xlu0 %v7820
      %v7835 = vpop.xlane.xlu0 %7834
      %7836 = vadd.xlane.f32.xlu0 %v7821
      %v7837 = vpop.xlane.xlu0 %7836
      %v7838 = vadd.f32 %v7823, 1e-12
      %v7839 = vadd.f32 %v7825, 1e-12
      %v7840 = vadd.f32 %v7827, 1e-12
      %v7841 = vadd.f32 %v7829, 1e-12
      %v7842 = vadd.f32 %v7831, 1e-12
      %v7843 = vadd.f32 %v7833, 1e-12
      %v7844 = vadd.f32 %v7835, 1e-12
      %v7845 = vadd.f32 %v7837, 1e-12
      %v7846 = vrsqrt.pop %v7838
      %v7847 = vrsqrt.pop %v7839
      %v7848 = vrsqrt.pop %v7840
      %v7849 = vrsqrt.pop %v7841
      %v7850 = vrsqrt.pop %v7842
      %v7851 = vrsqrt.pop %v7843
      %v7852 = vrsqrt.pop %v7844
      %v7853 = vrsqrt.pop %v7845
      %v7854 = vstv %s7813
      %v7855 = vmul.f32 %v7854, %v7846
      %v7856 = vmul.f32 %v7854, %v7847
      %v7857 = vmul.f32 %v7854, %v7848
      %v7858 = vmul.f32 %v7854, %v7849
      %v7859 = vmul.f32 %v7854, %v7850
      %v7860 = vmul.f32 %v7854, %v7851
      %v7861 = vmul.f32 %v7854, %v7852
      %v7862 = vmul.f32 %v7854, %v7853
      %s7863 = ssub.f32 1.0, %s7813
      %v7864 = vstv %s7863
      %v7865 = vadd.f32 %v7855, %v7864
      %v7866 = vadd.f32 %v7856, %v7864
      %v7867 = vadd.f32 %v7857, %v7864
      %v7868 = vadd.f32 %v7858, %v7864
      %v7869 = vadd.f32 %v7859, %v7864
      %v7870 = vadd.f32 %v7860, %v7864
      %v7871 = vadd.f32 %v7861, %v7864
      %v7872 = vadd.f32 %v7862, %v7864
      %v7873 = vmul.f32 %v7781, %v7865
      %v7874 = vmul.f32 %v7784, %v7866
      %v7875 = vmul.f32 %v7789, %v7867
      %v7876 = vmul.f32 %v7792, %v7868
      %v7877 = vmul.f32 %v7797, %v7869
      %v7878 = vmul.f32 %v7800, %v7870
      %v7879 = vmul.f32 %v7805, %v7871
      %v7880 = vmul.f32 %v7808, %v7872
      %v7881 = vld [vmem:[%s10] sm:$0xf]
      %v7882 = vld [vmem:[%s10 + $0x4] sm:$0xf]
      %v7883 = vld [vmem:[%s10 + $0x8] sm:$0xf]
      %v7884 = vld [vmem:[%s10 + $0xc] sm:$0xf]
      %v7885 = vld [vmem:[%s10 + $0x10] sm:$0xf]
      %v7886 = vld [vmem:[%s10 + $0x14] sm:$0xf]
      %v7887 = vld [vmem:[%s10 + $0x18] sm:$0xf]
      %v7888 = vld [vmem:[%s10 + $0x1c] sm:$0xf]
      %v7889 = vld [vmem:[%s10 + $0x20] sm:$0xf]
      %v7890 = vld [vmem:[%s10 + $0x24] sm:$0xf]
      %v7891 = vld [vmem:[%s10 + $0x28] sm:$0xf]
      %v7892 = vld [vmem:[%s10 + $0x2c] sm:$0xf]
      %v7893 = vld [vmem:[%s10 + $0x30] sm:$0xf]
      %v7894 = vld [vmem:[%s10 + $0x34] sm:$0xf]
      %v7895 = vld [vmem:[%s10 + $0x38] sm:$0xf]
      %v7896 = vld [vmem:[%s10 + $0x3c] sm:$0xf]
      %v7897 = vld [vmem:[%s10 + $0x40] sm:$0xf]
      %v7898 = vld [vmem:[%s10 + $0x44] sm:$0xf]
      %v7899 = vld [vmem:[%s10 + $0x48] sm:$0xf]
      %v7900 = vld [vmem:[%s10 + $0x4c] sm:$0xf]
      %v7901 = vld [vmem:[%s10 + $0x50] sm:$0xf]
      %v7902 = vld [vmem:[%s10 + $0x54] sm:$0xf]
      %v7903 = vld [vmem:[%s10 + $0x58] sm:$0xf]
      %v7904 = vld [vmem:[%s10 + $0x5c] sm:$0xf]
      %v7905 = vld [vmem:[%s10 + $0x60] sm:$0xf]
      %v7906 = vld [vmem:[%s10 + $0x64] sm:$0xf]
      %v7907 = vld [vmem:[%s10 + $0x68] sm:$0xf]
      %v7908 = vld [vmem:[%s10 + $0x6c] sm:$0xf]
      %v7909 = vld [vmem:[%s10 + $0x70] sm:$0xf]
      %v7910 = vld [vmem:[%s10 + $0x74] sm:$0xf]
      %v7911 = vld [vmem:[%s10 + $0x78] sm:$0xf]
      %v7912 = vld [vmem:[%s10 + $0x7c] sm:$0xf]
      %v7913 = vld [vmem:[%s10 + $0x80] sm:$0xf]
      %v7914 = vld [vmem:[%s10 + $0x84] sm:$0xf]
      %v7915 = vld [vmem:[%s10 + $0x88] sm:$0xf]
      %v7916 = vld [vmem:[%s10 + $0x8c] sm:$0xf]
      %v7917 = vld [vmem:[%s10 + $0x90] sm:$0xf]
      %v7918 = vld [vmem:[%s10 + $0x94] sm:$0xf]
      %v7919 = vld [vmem:[%s10 + $0x98] sm:$0xf]
      %v7920 = vld [vmem:[%s10 + $0x9c] sm:$0xf]
      %v7921 = vld [vmem:[%s10 + $0xa0] sm:$0xf]
      %v7922 = vld [vmem:[%s10 + $0xa4] sm:$0xf]
      %v7923 = vld [vmem:[%s10 + $0xa8] sm:$0xf]
      %v7924 = vld [vmem:[%s10 + $0xac] sm:$0xf]
      %v7925 = vld [vmem:[%s10 + $0xb0] sm:$0xf]
      %v7926 = vld [vmem:[%s10 + $0xb4] sm:$0xf]
      %v7927 = vld [vmem:[%s10 + $0xb8] sm:$0xf]
      %v7928 = vld [vmem:[%s10 + $0xbc] sm:$0xf]
      %v7929 = vld [vmem:[%s10 + $0xc0] sm:$0xf]
      %v7930 = vld [vmem:[%s10 + $0xc4] sm:$0xf]
      %v7931 = vld [vmem:[%s10 + $0xc8] sm:$0xf]
      %v7932 = vld [vmem:[%s10 + $0xcc] sm:$0xf]
      %v7933 = vld [vmem:[%s10 + $0xd0] sm:$0xf]
      %v7934 = vld [vmem:[%s10 + $0xd4] sm:$0xf]
      %v7935 = vld [vmem:[%s10 + $0xd8] sm:$0xf]
      %v7936 = vld [vmem:[%s10 + $0xdc] sm:$0xf]
      %v7937 = vld [vmem:[%s10 + $0xe0] sm:$0xf]
      %v7938 = vld [vmem:[%s10 + $0xe4] sm:$0xf]
      %v7939 = vld [vmem:[%s10 + $0xe8] sm:$0xf]
      %v7940 = vld [vmem:[%s10 + $0xec] sm:$0xf]
      %v7941 = vld [vmem:[%s10 + $0xf0] sm:$0xf]
      %v7942 = vld [vmem:[%s10 + $0xf4] sm:$0xf]
      %v7943 = vld [vmem:[%s10 + $0xf8] sm:$0xf]
      %v7944 = vld [vmem:[%s10 + $0xfc] sm:$0xf]
      %v7945 = vld [vmem:[%s10 + $0x100] sm:$0xf]
      %v7946 = vld [vmem:[%s10 + $0x104] sm:$0xf]
      %v7947 = vld [vmem:[%s10 + $0x108] sm:$0xf]
      %v7948 = vld [vmem:[%s10 + $0x10c] sm:$0xf]
      %v7949 = vld [vmem:[%s10 + $0x110] sm:$0xf]
      %v7950 = vld [vmem:[%s10 + $0x114] sm:$0xf]
      %v7951 = vld [vmem:[%s10 + $0x118] sm:$0xf]
      %v7952 = vld [vmem:[%s10 + $0x11c] sm:$0xf]
      %v7953 = vld [vmem:[%s10 + $0x120] sm:$0xf]
      %v7954 = vld [vmem:[%s10 + $0x124] sm:$0xf]
      %v7955 = vld [vmem:[%s10 + $0x128] sm:$0xf]
      %v7956 = vld [vmem:[%s10 + $0x12c] sm:$0xf]
      %v7957 = vld [vmem:[%s10 + $0x130] sm:$0xf]
      %v7958 = vld [vmem:[%s10 + $0x134] sm:$0xf]
      %v7959 = vld [vmem:[%s10 + $0x138] sm:$0xf]
      %v7960 = vld [vmem:[%s10 + $0x13c] sm:$0xf]
      %v7961 = vld [vmem:[%s10 + $0x140] sm:$0xf]
      %v7962 = vld [vmem:[%s10 + $0x144] sm:$0xf]
      %v7963 = vld [vmem:[%s10 + $0x148] sm:$0xf]
      %v7964 = vld [vmem:[%s10 + $0x14c] sm:$0xf]
      %v7965 = vld [vmem:[%s10 + $0x150] sm:$0xf]
      %v7966 = vld [vmem:[%s10 + $0x154] sm:$0xf]
      %v7967 = vld [vmem:[%s10 + $0x158] sm:$0xf]
      %v7968 = vld [vmem:[%s10 + $0x15c] sm:$0xf]
      %v7969 = vld [vmem:[%s10 + $0x160] sm:$0xf]
      %v7970 = vld [vmem:[%s10 + $0x164] sm:$0xf]
      %v7971 = vld [vmem:[%s10 + $0x168] sm:$0xf]
      %v7972 = vld [vmem:[%s10 + $0x16c] sm:$0xf]
      %v7973 = vld [vmem:[%s10 + $0x170] sm:$0xf]
      %v7974 = vld [vmem:[%s10 + $0x174] sm:$0xf]
      %v7975 = vld [vmem:[%s10 + $0x178] sm:$0xf]
      %v7976 = vld [vmem:[%s10 + $0x17c] sm:$0xf]
      %v7977 = vld [vmem:[%s10 + $0x180] sm:$0xf]
      %v7978 = vld [vmem:[%s10 + $0x184] sm:$0xf]
      %v7979 = vld [vmem:[%s10 + $0x188] sm:$0xf]
      %v7980 = vld [vmem:[%s10 + $0x18c] sm:$0xf]
      %v7981 = vld [vmem:[%s10 + $0x190] sm:$0xf]
      %v7982 = vld [vmem:[%s10 + $0x194] sm:$0xf]
      %v7983 = vld [vmem:[%s10 + $0x198] sm:$0xf]
      %v7984 = vld [vmem:[%s10 + $0x19c] sm:$0xf]
      %v7985 = vld [vmem:[%s10 + $0x1a0] sm:$0xf]
      %v7986 = vld [vmem:[%s10 + $0x1a4] sm:$0xf]
      %v7987 = vld [vmem:[%s10 + $0x1a8] sm:$0xf]
      %v7988 = vld [vmem:[%s10 + $0x1ac] sm:$0xf]
      %v7989 = vld [vmem:[%s10 + $0x1b0] sm:$0xf]
      %v7990 = vld [vmem:[%s10 + $0x1b4] sm:$0xf]
      %v7991 = vld [vmem:[%s10 + $0x1b8] sm:$0xf]
      %v7992 = vld [vmem:[%s10 + $0x1bc] sm:$0xf]
      %v7993 = vld [vmem:[%s10 + $0x1c0] sm:$0xf]
      %v7994 = vld [vmem:[%s10 + $0x1c4] sm:$0xf]
      %v7995 = vld [vmem:[%s10 + $0x1c8] sm:$0xf]
      %v7996 = vld [vmem:[%s10 + $0x1cc] sm:$0xf]
      %v7997 = vld [vmem:[%s10 + $0x1d0] sm:$0xf]
      %v7998 = vld [vmem:[%s10 + $0x1d4] sm:$0xf]
      %v7999 = vld [vmem:[%s10 + $0x1d8] sm:$0xf]
      %v8000 = vld [vmem:[%s10 + $0x1dc] sm:$0xf]
      %v8001 = vld [vmem:[%s10 + $0x1e0] sm:$0xf]
      %v8002 = vld [vmem:[%s10 + $0x1e4] sm:$0xf]
      %v8003 = vld [vmem:[%s10 + $0x1e8] sm:$0xf]
      %v8004 = vld [vmem:[%s10 + $0x1ec] sm:$0xf]
      %v8005 = vld [vmem:[%s10 + $0x1f0] sm:$0xf]
      %v8006 = vld [vmem:[%s10 + $0x1f4] sm:$0xf]
      %v8007 = vld [vmem:[%s10 + $0x1f8] sm:$0xf]
      %v8008 = vld [vmem:[%s10 + $0x1fc] sm:$0xf]
      %v8009 = vpack.c.bf16 %v7874, %v7873
      %v8010 = vpack.c.bf16 %v7876, %v7875
      %v8011 = vpack.c.bf16 %v7878, %v7877
      %v8012 = vpack.c.bf16 %v7880, %v7879
      %v8141 = vunpack.c.l.b16 %v7881
      %v8142 = vunpack.c.l.b16 %v7882
      %v8143 = vunpack.c.l.b16 %v7883
      %v8144 = vunpack.c.l.b16 %v7884
      %v8145 = vunpack.c.l.b16 %v7885
      %v8146 = vunpack.c.l.b16 %v7886
      %v8147 = vunpack.c.l.b16 %v7887
      %v8148 = vunpack.c.l.b16 %v7888
      %v8149 = vunpack.c.l.b16 %v7889
      %v8150 = vunpack.c.l.b16 %v7890
      %v8151 = vunpack.c.l.b16 %v7891
      %v8152 = vunpack.c.l.b16 %v7892
      %v8153 = vunpack.c.l.b16 %v7893
      %v8154 = vunpack.c.l.b16 %v7894
      %v8155 = vunpack.c.l.b16 %v7895
      %v8156 = vunpack.c.l.b16 %v7896
      %v8157 = vunpack.c.l.b16 %v7897
      %v8158 = vunpack.c.l.b16 %v7898
      %v8159 = vunpack.c.l.b16 %v7899
      %v8160 = vunpack.c.l.b16 %v7900
      %v8161 = vunpack.c.l.b16 %v7901
      %v8162 = vunpack.c.l.b16 %v7902
      %v8163 = vunpack.c.l.b16 %v7903
      %v8164 = vunpack.c.l.b16 %v7904
      %v8165 = vunpack.c.l.b16 %v7905
      %v8166 = vunpack.c.l.b16 %v7906
      %v8167 = vunpack.c.l.b16 %v7907
      %v8168 = vunpack.c.l.b16 %v7908
      %v8169 = vunpack.c.l.b16 %v7909
      %v8170 = vunpack.c.l.b16 %v7910
      %v8171 = vunpack.c.l.b16 %v7911
      %v8172 = vunpack.c.l.b16 %v7912
      %v8173 = vunpack.c.l.b16 %v7913
      %v8174 = vunpack.c.l.b16 %v7914
      %v8175 = vunpack.c.l.b16 %v7915
      %v8176 = vunpack.c.l.b16 %v7916
      %v8177 = vunpack.c.l.b16 %v7917
      %v8178 = vunpack.c.l.b16 %v7918
      %v8179 = vunpack.c.l.b16 %v7919
      %v8180 = vunpack.c.l.b16 %v7920
      %v8181 = vunpack.c.l.b16 %v7921
      %v8182 = vunpack.c.l.b16 %v7922
      %v8183 = vunpack.c.l.b16 %v7923
      %v8184 = vunpack.c.l.b16 %v7924
      %v8185 = vunpack.c.l.b16 %v7925
      %v8186 = vunpack.c.l.b16 %v7926
      %v8187 = vunpack.c.l.b16 %v7927
      %v8188 = vunpack.c.l.b16 %v7928
      %v8189 = vunpack.c.l.b16 %v7929
      %v8190 = vunpack.c.l.b16 %v7930
      %v8191 = vunpack.c.l.b16 %v7931
      %v8192 = vunpack.c.l.b16 %v7932
      %v8193 = vunpack.c.l.b16 %v7933
      %v8194 = vunpack.c.l.b16 %v7934
      %v8195 = vunpack.c.l.b16 %v7935
      %v8196 = vunpack.c.l.b16 %v7936
      %v8197 = vunpack.c.l.b16 %v7937
      %v8198 = vunpack.c.l.b16 %v7938
      %v8199 = vunpack.c.l.b16 %v7939
      %v8200 = vunpack.c.l.b16 %v7940
      %v8201 = vunpack.c.l.b16 %v7941
      %v8202 = vunpack.c.l.b16 %v7942
      %v8203 = vunpack.c.l.b16 %v7943
      %v8204 = vunpack.c.l.b16 %v7944
      %v8205 = vunpack.c.l.b16 %v7945
      %v8206 = vunpack.c.l.b16 %v7946
      %v8207 = vunpack.c.l.b16 %v7947
      %v8208 = vunpack.c.l.b16 %v7948
      %v8209 = vunpack.c.l.b16 %v7949
      %v8210 = vunpack.c.l.b16 %v7950
      %v8211 = vunpack.c.l.b16 %v7951
      %v8212 = vunpack.c.l.b16 %v7952
      %v8213 = vunpack.c.l.b16 %v7953
      %v8214 = vunpack.c.l.b16 %v7954
      %v8215 = vunpack.c.l.b16 %v7955
      %v8216 = vunpack.c.l.b16 %v7956
      %v8217 = vunpack.c.l.b16 %v7957
      %v8218 = vunpack.c.l.b16 %v7958
      %v8219 = vunpack.c.l.b16 %v7959
      %v8220 = vunpack.c.l.b16 %v7960
      %v8221 = vunpack.c.l.b16 %v7961
      %v8222 = vunpack.c.l.b16 %v7962
      %v8223 = vunpack.c.l.b16 %v7963
      %v8224 = vunpack.c.l.b16 %v7964
      %v8225 = vunpack.c.l.b16 %v7965
      %v8226 = vunpack.c.l.b16 %v7966
      %v8227 = vunpack.c.l.b16 %v7967
      %v8228 = vunpack.c.l.b16 %v7968
      %v8229 = vunpack.c.l.b16 %v7969
      %v8230 = vunpack.c.l.b16 %v7970
      %v8231 = vunpack.c.l.b16 %v7971
      %v8232 = vunpack.c.l.b16 %v7972
      %v8233 = vunpack.c.l.b16 %v7973
      %v8234 = vunpack.c.l.b16 %v7974
      %v8235 = vunpack.c.l.b16 %v7975
      %v8236 = vunpack.c.l.b16 %v7976
      %v8237 = vunpack.c.l.b16 %v7977
      %v8238 = vunpack.c.l.b16 %v7978
      %v8239 = vunpack.c.l.b16 %v7979
      %v8240 = vunpack.c.l.b16 %v7980
      %v8241 = vunpack.c.l.b16 %v7981
      %v8242 = vunpack.c.l.b16 %v7982
      %v8243 = vunpack.c.l.b16 %v7983
      %v8244 = vunpack.c.l.b16 %v7984
      %v8245 = vunpack.c.l.b16 %v7985
      %v8246 = vunpack.c.l.b16 %v7986
      %v8247 = vunpack.c.l.b16 %v7987
      %v8248 = vunpack.c.l.b16 %v7988
      %v8249 = vunpack.c.l.b16 %v7989
      %v8250 = vunpack.c.l.b16 %v7990
      %v8251 = vunpack.c.l.b16 %v7991
      %v8252 = vunpack.c.l.b16 %v7992
      %v8253 = vunpack.c.l.b16 %v7993
      %v8254 = vunpack.c.l.b16 %v7994
      %v8255 = vunpack.c.l.b16 %v7995
      %v8256 = vunpack.c.l.b16 %v7996
      %v8257 = vunpack.c.l.b16 %v7997
      %v8258 = vunpack.c.l.b16 %v7998
      %v8259 = vunpack.c.l.b16 %v7999
      %v8260 = vunpack.c.l.b16 %v8000
      %v8261 = vunpack.c.l.b16 %v8001
      %v8262 = vunpack.c.l.b16 %v8002
      %v8263 = vunpack.c.l.b16 %v8003
      %v8264 = vunpack.c.l.b16 %v8004
      %v8265 = vunpack.c.l.b16 %v8005
      %v8266 = vunpack.c.l.b16 %v8006
      %v8267 = vunpack.c.l.b16 %v8007
      %v8268 = vunpack.c.l.b16 %v8008
      %v8269 = vpack.c.b16 %v8142, %v8141
      %v8270 = vpack.c.b16 %v8144, %v8143
      %v8271 = vpack.c.b16 %v8146, %v8145
      %v8272 = vpack.c.b16 %v8148, %v8147
      %v8273 = vpack.c.b16 %v8150, %v8149
      %v8274 = vpack.c.b16 %v8152, %v8151
      %v8275 = vpack.c.b16 %v8154, %v8153
      %v8276 = vpack.c.b16 %v8156, %v8155
      %v8277 = vpack.c.b16 %v8158, %v8157
      %v8278 = vpack.c.b16 %v8160, %v8159
      %v8279 = vpack.c.b16 %v8162, %v8161
      %v8280 = vpack.c.b16 %v8164, %v8163
      %v8281 = vpack.c.b16 %v8166, %v8165
      %v8282 = vpack.c.b16 %v8168, %v8167
      %v8283 = vpack.c.b16 %v8170, %v8169
      %v8284 = vpack.c.b16 %v8172, %v8171
      %v8285 = vpack.c.b16 %v8174, %v8173
      %v8286 = vpack.c.b16 %v8176, %v8175
      %v8287 = vpack.c.b16 %v8178, %v8177
      %v8288 = vpack.c.b16 %v8180, %v8179
      %v8289 = vpack.c.b16 %v8182, %v8181
      %v8290 = vpack.c.b16 %v8184, %v8183
      %v8291 = vpack.c.b16 %v8186, %v8185
      %v8292 = vpack.c.b16 %v8188, %v8187
      %v8293 = vpack.c.b16 %v8190, %v8189
      %v8294 = vpack.c.b16 %v8192, %v8191
      %v8295 = vpack.c.b16 %v8194, %v8193
      %v8296 = vpack.c.b16 %v8196, %v8195
      %v8297 = vpack.c.b16 %v8198, %v8197
      %v8298 = vpack.c.b16 %v8200, %v8199
      %v8299 = vpack.c.b16 %v8202, %v8201
      %v8300 = vpack.c.b16 %v8204, %v8203
      %v8301 = vpack.c.b16 %v8206, %v8205
      %v8302 = vpack.c.b16 %v8208, %v8207
      %v8303 = vpack.c.b16 %v8210, %v8209
      %v8304 = vpack.c.b16 %v8212, %v8211
      %v8305 = vpack.c.b16 %v8214, %v8213
      %v8306 = vpack.c.b16 %v8216, %v8215
      %v8307 = vpack.c.b16 %v8218, %v8217
      %v8308 = vpack.c.b16 %v8220, %v8219
      %v8309 = vpack.c.b16 %v8222, %v8221
      %v8310 = vpack.c.b16 %v8224, %v8223
      %v8311 = vpack.c.b16 %v8226, %v8225
      %v8312 = vpack.c.b16 %v8228, %v8227
      %v8313 = vpack.c.b16 %v8230, %v8229
      %v8314 = vpack.c.b16 %v8232, %v8231
      %v8315 = vpack.c.b16 %v8234, %v8233
      %v8316 = vpack.c.b16 %v8236, %v8235
      %v8317 = vpack.c.b16 %v8238, %v8237
      %v8318 = vpack.c.b16 %v8240, %v8239
      %v8319 = vpack.c.b16 %v8242, %v8241
      %v8320 = vpack.c.b16 %v8244, %v8243
      %v8321 = vpack.c.b16 %v8246, %v8245
      %v8322 = vpack.c.b16 %v8248, %v8247
      %v8323 = vpack.c.b16 %v8250, %v8249
      %v8324 = vpack.c.b16 %v8252, %v8251
      %v8325 = vpack.c.b16 %v8254, %v8253
      %v8326 = vpack.c.b16 %v8256, %v8255
      %v8327 = vpack.c.b16 %v8258, %v8257
      %v8328 = vpack.c.b16 %v8260, %v8259
      %v8329 = vpack.c.b16 %v8262, %v8261
      %v8330 = vpack.c.b16 %v8264, %v8263
      %v8331 = vpack.c.b16 %v8266, %v8265
      %v8332 = vpack.c.b16 %v8268, %v8267
      %v8334 = vsel %vm771, %v8269, 0
      %v8337 = vsel %vm771, %v8270, 0
      %v8340 = vsel %vm771, %v8271, 0
      %v8343 = vsel %vm771, %v8272, 0
      %v8346 = vsel %vm771, %v8273, 0
      %v8349 = vsel %vm771, %v8274, 0
      %v8352 = vsel %vm771, %v8275, 0
      %v8355 = vsel %vm771, %v8276, 0
      %v8358 = vsel %vm771, %v8277, 0
      %v8361 = vsel %vm771, %v8278, 0
      %v8364 = vsel %vm771, %v8279, 0
      %v8367 = vsel %vm771, %v8280, 0
      %v8370 = vsel %vm771, %v8281, 0
      %v8373 = vsel %vm771, %v8282, 0
      %v8376 = vsel %vm771, %v8283, 0
      %v8379 = vsel %vm771, %v8284, 0
      %v8382 = vsel %vm771, %v8285, 0
      %v8385 = vsel %vm771, %v8286, 0
      %v8388 = vsel %vm771, %v8287, 0
      %v8391 = vsel %vm771, %v8288, 0
      %v8394 = vsel %vm771, %v8289, 0
      %v8397 = vsel %vm771, %v8290, 0
      %v8400 = vsel %vm771, %v8291, 0
      %v8403 = vsel %vm771, %v8292, 0
      %v8406 = vsel %vm771, %v8293, 0
      %v8409 = vsel %vm771, %v8294, 0
      %v8412 = vsel %vm771, %v8295, 0
      %v8415 = vsel %vm771, %v8296, 0
      %v8418 = vsel %vm771, %v8297, 0
      %v8421 = vsel %vm771, %v8298, 0
      %v8424 = vsel %vm771, %v8299, 0
      %v8427 = vsel %vm771, %v8300, 0
      %v8430 = vsel %vm771, %v8301, 0
      %v8433 = vsel %vm771, %v8302, 0
      %v8436 = vsel %vm771, %v8303, 0
      %v8439 = vsel %vm771, %v8304, 0
      %v8442 = vsel %vm771, %v8305, 0
      %v8445 = vsel %vm771, %v8306, 0
      %v8448 = vsel %vm771, %v8307, 0
      %v8451 = vsel %vm771, %v8308, 0
      %v8454 = vsel %vm771, %v8309, 0
      %v8457 = vsel %vm771, %v8310, 0
      %v8460 = vsel %vm771, %v8311, 0
      %v8463 = vsel %vm771, %v8312, 0
      %v8466 = vsel %vm771, %v8313, 0
      %v8469 = vsel %vm771, %v8314, 0
      %v8472 = vsel %vm771, %v8315, 0
      %v8475 = vsel %vm771, %v8316, 0
      %v8478 = vsel %vm771, %v8317, 0
      %v8481 = vsel %vm771, %v8318, 0
      %v8484 = vsel %vm771, %v8319, 0
      %v8487 = vsel %vm771, %v8320, 0
      %v8490 = vsel %vm771, %v8321, 0
      %v8493 = vsel %vm771, %v8322, 0
      %v8496 = vsel %vm771, %v8323, 0
      %v8499 = vsel %vm771, %v8324, 0
      %v8502 = vsel %vm771, %v8325, 0
      %v8505 = vsel %vm771, %v8326, 0
      %v8508 = vsel %vm771, %v8327, 0
      %v8511 = vsel %vm771, %v8328, 0
      %v8514 = vsel %vm771, %v8329, 0
      %v8517 = vsel %vm771, %v8330, 0
      %v8520 = vsel %vm771, %v8331, 0
      %v8523 = vsel %vm771, %v8332, 0
      %8525 = vmatprep.subr.bf16.mxu0 0
      %8526 = vmatpush1.bf16.msra.mxu0 %v8009
      %8527 = vmatprep.subr.bf16.mxu0 0
      %8528 = vmatpush1.bf16.msra.mxu0 %v8010
      %8529 = vmatprep.subr.bf16.mxu0 0
      %8530 = vmatpush1.bf16.msra.mxu0 %v8011
      %8531 = vmatprep.subr.bf16.mxu0 0
      %8532 = vmatpush1.bf16.msra.mxu0 %v8012
      %8533 = vmatprep.subr.bf16.mxu0 0
      %8534 = vmatpush1.bf16.msra.mxu0 0
      %8535 = vmatprep.subr.bf16.mxu0 0
      %8536 = vmatpush1.bf16.msra.mxu0 0
      %8537 = vmatprep.subr.bf16.mxu0 0
      %8538 = vmatpush1.bf16.msra.mxu0 0
      %8539 = vmatprep.subr.bf16.mxu0 0
      %8540 = vmatpush1.bf16.msra.mxu0 0
      %8541 = vmatprep.subr.bf16.mxu0 0
      %8542 = vmatpush1.bf16.msra.mxu0 0
      %8543 = vmatprep.subr.bf16.mxu0 0
      %8544 = vmatpush1.bf16.msra.mxu0 0
      %8545 = vmatprep.subr.bf16.mxu0 0
      %8546 = vmatpush1.bf16.msra.mxu0 0
      %8547 = vmatprep.subr.bf16.mxu0 0
      %8548 = vmatpush1.bf16.msra.mxu0 0
      %8549 = vmatprep.subr.bf16.mxu0 0
      %8550 = vmatpush1.bf16.msra.mxu0 0
      %8551 = vmatprep.subr.bf16.mxu0 0
      %8552 = vmatpush1.bf16.msra.mxu0 0
      %8553 = vmatprep.subr.bf16.mxu0 0
      %8554 = vmatpush1.bf16.msra.mxu0 0
      %8555 = vmatprep.subr.bf16.mxu0 0
      %8556 = vmatpush1.bf16.msra.mxu0 0
      %8557 = vmatprep.mubr.bf16.mxu0 0
      %8558 = vmatmul.mubr.bf16.gmra.mrb[0].mxu0 %v8334
      %v8559 = vpop.f32.mrb[0].mxu0
      %v8560 = vadd.f32 0.0, %v8559
      %v8561 = vpop.f32.mrb[0].mxu0
      %v8562 = vpop.f32.mrb[0].mxu0
      %v8563 = vadd.f32 0.0, %v8562
      %v8564 = vpop.f32.mrb[0].mxu0
      %8565 = vmatprep.mubr.bf16.mxu0 0
      %8566 = vmatmul.mubr.bf16.gmra.mrb[0].mxu0 %v8337
      %v8567 = vpop.f32.mrb[0].mxu0
      %v8568 = vadd.f32 0.0, %v8567
      %v8569 = vpop.f32.mrb[0].mxu0
      %v8570 = vpop.f32.mrb[0].mxu0
      %v8571 = vadd.f32 0.0, %v8570
      %v8572 = vpop.f32.mrb[0].mxu0
      %8573 = vmatprep.mubr.bf16.mxu0 0
      %8574 = vmatmul.mubr.bf16.gmra.mrb[0].mxu0 %v8340
      %v8575 = vpop.f32.mrb[0].mxu0
      %v8576 = vadd.f32 0.0, %v8575
      %v8577 = vpop.f32.mrb[0].mxu0
      %v8578 = vpop.f32.mrb[0].mxu0
      %v8579 = vadd.f32 0.0, %v8578
      %v8580 = vpop.f32.mrb[0].mxu0
      %8581 = vmatprep.mubr.bf16.mxu0 0
      %8582 = vmatmul.mubr.bf16.gmra.mrb[0].mxu0 %v8343
      %v8583 = vpop.f32.mrb[0].mxu0
      %v8584 = vadd.f32 0.0, %v8583
      %v8585 = vpop.f32.mrb[0].mxu0
      %v8586 = vpop.f32.mrb[0].mxu0
      %v8587 = vadd.f32 0.0, %v8586
      %v8588 = vpop.f32.mrb[0].mxu0
      %8589 = vmatprep.mubr.bf16.mxu0 0
      %8590 = vmatmul.mubr.bf16.gmra.mrb[0].mxu0 %v8346
      %v8591 = vpop.f32.mrb[0].mxu0
      %v8592 = vadd.f32 0.0, %v8591
      %v8593 = vpop.f32.mrb[0].mxu0
      %v8594 = vpop.f32.mrb[0].mxu0
      %v8595 = vadd.f32 0.0, %v8594
      %v8596 = vpop.f32.mrb[0].mxu0
      %8597 = vmatprep.mubr.bf16.mxu0 0
      %8598 = vmatmul.mubr.bf16.gmra.mrb[0].mxu0 %v8349
      %v8599 = vpop.f32.mrb[0].mxu0
      %v8600 = vadd.f32 0.0, %v8599
      %v8601 = vpop.f32.mrb[0].mxu0
      %v8602 = vpop.f32.mrb[0].mxu0
      %v8603 = vadd.f32 0.0, %v8602
      %v8604 = vpop.f32.mrb[0].mxu0
      %8605 = vmatprep.mubr.bf16.mxu0 0
      %8606 = vmatmul.mubr.bf16.gmra.mrb[0].mxu0 %v8352
      %v8607 = vpop.f32.mrb[0].mxu0
      %v8608 = vadd.f32 0.0, %v8607
      %v8609 = vpop.f32.mrb[0].mxu0
      %v8610 = vpop.f32.mrb[0].mxu0
      %v8611 = vadd.f32 0.0, %v8610
      %v8612 = vpop.f32.mrb[0].mxu0
      %8613 = vmatprep.mubr.bf16.mxu0 0
      %8614 = vmatmul.mubr.bf16.gmra.mrb[0].mxu0 %v8355
      %v8615 = vpop.f32.mrb[0].mxu0
      %v8616 = vadd.f32 0.0, %v8615
      %v8617 = vpop.f32.mrb[0].mxu0
      %v8618 = vpop.f32.mrb[0].mxu0
      %v8619 = vadd.f32 0.0, %v8618
      %v8620 = vpop.f32.mrb[0].mxu0
      %8621 = vmatprep.mubr.bf16.mxu0 0
      %8622 = vmatmul.mubr.bf16.gmra.mrb[0].mxu0 %v8358
      %v8623 = vpop.f32.mrb[0].mxu0
      %v8624 = vadd.f32 0.0, %v8623
      %v8625 = vpop.f32.mrb[0].mxu0
      %v8626 = vpop.f32.mrb[0].mxu0
      %v8627 = vadd.f32 0.0, %v8626
      %v8628 = vpop.f32.mrb[0].mxu0
      %8629 = vmatprep.mubr.bf16.mxu0 0
      %8630 = vmatmul.mubr.bf16.gmra.mrb[0].mxu0 %v8361
      %v8631 = vpop.f32.mrb[0].mxu0
      %v8632 = vadd.f32 0.0, %v8631
      %v8633 = vpop.f32.mrb[0].mxu0
      %v8634 = vpop.f32.mrb[0].mxu0
      %v8635 = vadd.f32 0.0, %v8634
      %v8636 = vpop.f32.mrb[0].mxu0
      %8637 = vmatprep.mubr.bf16.mxu0 0
      %8638 = vmatmul.mubr.bf16.gmra.mrb[0].mxu0 %v8364
      %v8639 = vpop.f32.mrb[0].mxu0
      %v8640 = vadd.f32 0.0, %v8639
      %v8641 = vpop.f32.mrb[0].mxu0
      %v8642 = vpop.f32.mrb[0].mxu0
      %v8643 = vadd.f32 0.0, %v8642
      %v8644 = vpop.f32.mrb[0].mxu0
      %8645 = vmatprep.mubr.bf16.mxu0 0
      %8646 = vmatmul.mubr.bf16.gmra.mrb[0].mxu0 %v8367
      %v8647 = vpop.f32.mrb[0].mxu0
      %v8648 = vadd.f32 0.0, %v8647
      %v8649 = vpop.f32.mrb[0].mxu0
      %v8650 = vpop.f32.mrb[0].mxu0
      %v8651 = vadd.f32 0.0, %v8650
      %v8652 = vpop.f32.mrb[0].mxu0
      %8653 = vmatprep.mubr.bf16.mxu0 0
      %8654 = vmatmul.mubr.bf16.gmra.mrb[0].mxu0 %v8370
      %v8655 = vpop.f32.mrb[0].mxu0
      %v8656 = vadd.f32 0.0, %v8655
      %v8657 = vpop.f32.mrb[0].mxu0
      %v8658 = vpop.f32.mrb[0].mxu0
      %v8659 = vadd.f32 0.0, %v8658
      %v8660 = vpop.f32.mrb[0].mxu0
      %8661 = vmatprep.mubr.bf16.mxu0 0
      %8662 = vmatmul.mubr.bf16.gmra.mrb[0].mxu0 %v8373
      %v8663 = vpop.f32.mrb[0].mxu0
      %v8664 = vadd.f32 0.0, %v8663
      %v8665 = vpop.f32.mrb[0].mxu0
      %v8666 = vpop.f32.mrb[0].mxu0
      %v8667 = vadd.f32 0.0, %v8666
      %v8668 = vpop.f32.mrb[0].mxu0
      %8669 = vmatprep.mubr.bf16.mxu0 0
      %8670 = vmatmul.mubr.bf16.gmra.mrb[0].mxu0 %v8376
      %v8671 = vpop.f32.mrb[0].mxu0
      %v8672 = vadd.f32 0.0, %v8671
      %v8673 = vpop.f32.mrb[0].mxu0
      %v8674 = vpop.f32.mrb[0].mxu0
      %v8675 = vadd.f32 0.0, %v8674
      %v8676 = vpop.f32.mrb[0].mxu0
      %8677 = vmatprep.mubr.bf16.mxu0 0
      %8678 = vmatmul.mubr.bf16.gmra.mrb[0].mxu0 %v8379
      %v8679 = vpop.f32.mrb[0].mxu0
      %v8680 = vadd.f32 0.0, %v8679
      %v8681 = vpop.f32.mrb[0].mxu0
      %v8682 = vpop.f32.mrb[0].mxu0
      %v8683 = vadd.f32 0.0, %v8682
      %v8684 = vpop.f32.mrb[0].mxu0
      %8685 = vmatprep.mubr.bf16.mxu0 0
      %8686 = vmatmul.mubr.bf16.gmra.mrb[0].mxu0 %v8382
      %v8687 = vpop.f32.mrb[0].mxu0
      %v8688 = vadd.f32 0.0, %v8687
      %v8689 = vpop.f32.mrb[0].mxu0
      %v8690 = vpop.f32.mrb[0].mxu0
      %v8691 = vadd.f32 0.0, %v8690
      %v8692 = vpop.f32.mrb[0].mxu0
      %8693 = vmatprep.mubr.bf16.mxu0 0
      %8694 = vmatmul.mubr.bf16.gmra.mrb[0].mxu0 %v8385
      %v8695 = vpop.f32.mrb[0].mxu0
      %v8696 = vadd.f32 0.0, %v8695
      %v8697 = vpop.f32.mrb[0].mxu0
      %v8698 = vpop.f32.mrb[0].mxu0
      %v8699 = vadd.f32 0.0, %v8698
      %v8700 = vpop.f32.mrb[0].mxu0
      %8701 = vmatprep.mubr.bf16.mxu0 0
      %8702 = vmatmul.mubr.bf16.gmra.mrb[0].mxu0 %v8388
      %v8703 = vpop.f32.mrb[0].mxu0
      %v8704 = vadd.f32 0.0, %v8703
      %v8705 = vpop.f32.mrb[0].mxu0
      %v8706 = vpop.f32.mrb[0].mxu0
      %v8707 = vadd.f32 0.0, %v8706
      %v8708 = vpop.f32.mrb[0].mxu0
      %8709 = vmatprep.mubr.bf16.mxu0 0
      %8710 = vmatmul.mubr.bf16.gmra.mrb[0].mxu0 %v8391
      %v8711 = vpop.f32.mrb[0].mxu0
      %v8712 = vadd.f32 0.0, %v8711
      %v8713 = vpop.f32.mrb[0].mxu0
      %v8714 = vpop.f32.mrb[0].mxu0
      %v8715 = vadd.f32 0.0, %v8714
      %v8716 = vpop.f32.mrb[0].mxu0
      %8717 = vmatprep.mubr.bf16.mxu0 0
      %8718 = vmatmul.mubr.bf16.gmra.mrb[0].mxu0 %v8394
      %v8719 = vpop.f32.mrb[0].mxu0
      %v8720 = vadd.f32 0.0, %v8719
      %v8721 = vpop.f32.mrb[0].mxu0
      %v8722 = vpop.f32.mrb[0].mxu0
      %v8723 = vadd.f32 0.0, %v8722
      %v8724 = vpop.f32.mrb[0].mxu0
      %8725 = vmatprep.mubr.bf16.mxu0 0
      %8726 = vmatmul.mubr.bf16.gmra.mrb[0].mxu0 %v8397
      %v8727 = vpop.f32.mrb[0].mxu0
      %v8728 = vadd.f32 0.0, %v8727
      %v8729 = vpop.f32.mrb[0].mxu0
      %v8730 = vpop.f32.mrb[0].mxu0
      %v8731 = vadd.f32 0.0, %v8730
      %v8732 = vpop.f32.mrb[0].mxu0
      %8733 = vmatprep.mubr.bf16.mxu0 0
      %8734 = vmatmul.mubr.bf16.gmra.mrb[0].mxu0 %v8400
      %v8735 = vpop.f32.mrb[0].mxu0
      %v8736 = vadd.f32 0.0, %v8735
      %v8737 = vpop.f32.mrb[0].mxu0
      %v8738 = vpop.f32.mrb[0].mxu0
      %v8739 = vadd.f32 0.0, %v8738
      %v8740 = vpop.f32.mrb[0].mxu0
      %8741 = vmatprep.mubr.bf16.mxu0 0
      %8742 = vmatmul.mubr.bf16.gmra.mrb[0].mxu0 %v8403
      %v8743 = vpop.f32.mrb[0].mxu0
      %v8744 = vadd.f32 0.0, %v8743
      %v8745 = vpop.f32.mrb[0].mxu0
      %v8746 = vpop.f32.mrb[0].mxu0
      %v8747 = vadd.f32 0.0, %v8746
      %v8748 = vpop.f32.mrb[0].mxu0
      %8749 = vmatprep.mubr.bf16.mxu0 0
      %8750 = vmatmul.mubr.bf16.gmra.mrb[0].mxu0 %v8406
      %v8751 = vpop.f32.mrb[0].mxu0
      %v8752 = vadd.f32 0.0, %v8751
      %v8753 = vpop.f32.mrb[0].mxu0
      %v8754 = vpop.f32.mrb[0].mxu0
      %v8755 = vadd.f32 0.0, %v8754
      %v8756 = vpop.f32.mrb[0].mxu0
      %8757 = vmatprep.mubr.bf16.mxu0 0
      %8758 = vmatmul.mubr.bf16.gmra.mrb[0].mxu0 %v8409
      %v8759 = vpop.f32.mrb[0].mxu0
      %v8760 = vadd.f32 0.0, %v8759
      %v8761 = vpop.f32.mrb[0].mxu0
      %v8762 = vpop.f32.mrb[0].mxu0
      %v8763 = vadd.f32 0.0, %v8762
      %v8764 = vpop.f32.mrb[0].mxu0
      %8765 = vmatprep.mubr.bf16.mxu0 0
      %8766 = vmatmul.mubr.bf16.gmra.mrb[0].mxu0 %v8412
      %v8767 = vpop.f32.mrb[0].mxu0
      %v8768 = vadd.f32 0.0, %v8767
      %v8769 = vpop.f32.mrb[0].mxu0
      %v8770 = vpop.f32.mrb[0].mxu0
      %v8771 = vadd.f32 0.0, %v8770
      %v8772 = vpop.f32.mrb[0].mxu0
      %8773 = vmatprep.mubr.bf16.mxu0 0
      %8774 = vmatmul.mubr.bf16.gmra.mrb[0].mxu0 %v8415
      %v8775 = vpop.f32.mrb[0].mxu0
      %v8776 = vadd.f32 0.0, %v8775
      %v8777 = vpop.f32.mrb[0].mxu0
      %v8778 = vpop.f32.mrb[0].mxu0
      %v8779 = vadd.f32 0.0, %v8778
      %v8780 = vpop.f32.mrb[0].mxu0
      %8781 = vmatprep.mubr.bf16.mxu0 0
      %8782 = vmatmul.mubr.bf16.gmra.mrb[0].mxu0 %v8418
      %v8783 = vpop.f32.mrb[0].mxu0
      %v8784 = vadd.f32 0.0, %v8783
      %v8785 = vpop.f32.mrb[0].mxu0
      %v8786 = vpop.f32.mrb[0].mxu0
      %v8787 = vadd.f32 0.0, %v8786
      %v8788 = vpop.f32.mrb[0].mxu0
      %8789 = vmatprep.mubr.bf16.mxu0 0
      %8790 = vmatmul.mubr.bf16.gmra.mrb[0].mxu0 %v8421
      %v8791 = vpop.f32.mrb[0].mxu0
      %v8792 = vadd.f32 0.0, %v8791
      %v8793 = vpop.f32.mrb[0].mxu0
      %v8794 = vpop.f32.mrb[0].mxu0
      %v8795 = vadd.f32 0.0, %v8794
      %v8796 = vpop.f32.mrb[0].mxu0
      %8797 = vmatprep.mubr.bf16.mxu0 0
      %8798 = vmatmul.mubr.bf16.gmra.mrb[0].mxu0 %v8424
      %v8799 = vpop.f32.mrb[0].mxu0
      %v8800 = vadd.f32 0.0, %v8799
      %v8801 = vpop.f32.mrb[0].mxu0
      %v8802 = vpop.f32.mrb[0].mxu0
      %v8803 = vadd.f32 0.0, %v8802
      %v8804 = vpop.f32.mrb[0].mxu0
      %8805 = vmatprep.mubr.bf16.mxu0 0
      %8806 = vmatmul.mubr.bf16.gmra.mrb[0].mxu0 %v8427
      %v8807 = vpop.f32.mrb[0].mxu0
      %v8808 = vadd.f32 0.0, %v8807
      %v8809 = vpop.f32.mrb[0].mxu0
      %v8810 = vpop.f32.mrb[0].mxu0
      %v8811 = vadd.f32 0.0, %v8810
      %v8812 = vpop.f32.mrb[0].mxu0
      %8813 = vmatprep.mubr.bf16.mxu0 0
      %8814 = vmatmul.mubr.bf16.gmra.mrb[0].mxu0 %v8430
      %v8815 = vpop.f32.mrb[0].mxu0
      %v8816 = vadd.f32 0.0, %v8815
      %v8817 = vpop.f32.mrb[0].mxu0
      %v8818 = vpop.f32.mrb[0].mxu0
      %v8819 = vadd.f32 0.0, %v8818
      %v8820 = vpop.f32.mrb[0].mxu0
      %8821 = vmatprep.mubr.bf16.mxu0 0
      %8822 = vmatmul.mubr.bf16.gmra.mrb[0].mxu0 %v8433
      %v8823 = vpop.f32.mrb[0].mxu0
      %v8824 = vadd.f32 0.0, %v8823
      %v8825 = vpop.f32.mrb[0].mxu0
      %v8826 = vpop.f32.mrb[0].mxu0
      %v8827 = vadd.f32 0.0, %v8826
      %v8828 = vpop.f32.mrb[0].mxu0
      %8829 = vmatprep.mubr.bf16.mxu0 0
      %8830 = vmatmul.mubr.bf16.gmra.mrb[0].mxu0 %v8436
      %v8831 = vpop.f32.mrb[0].mxu0
      %v8832 = vadd.f32 0.0, %v8831
      %v8833 = vpop.f32.mrb[0].mxu0
      %v8834 = vpop.f32.mrb[0].mxu0
      %v8835 = vadd.f32 0.0, %v8834
      %v8836 = vpop.f32.mrb[0].mxu0
      %8837 = vmatprep.mubr.bf16.mxu0 0
      %8838 = vmatmul.mubr.bf16.gmra.mrb[0].mxu0 %v8439
      %v8839 = vpop.f32.mrb[0].mxu0
      %v8840 = vadd.f32 0.0, %v8839
      %v8841 = vpop.f32.mrb[0].mxu0
      %v8842 = vpop.f32.mrb[0].mxu0
      %v8843 = vadd.f32 0.0, %v8842
      %v8844 = vpop.f32.mrb[0].mxu0
      %8845 = vmatprep.mubr.bf16.mxu0 0
      %8846 = vmatmul.mubr.bf16.gmra.mrb[0].mxu0 %v8442
      %v8847 = vpop.f32.mrb[0].mxu0
      %v8848 = vadd.f32 0.0, %v8847
      %v8849 = vpop.f32.mrb[0].mxu0
      %v8850 = vpop.f32.mrb[0].mxu0
      %v8851 = vadd.f32 0.0, %v8850
      %v8852 = vpop.f32.mrb[0].mxu0
      %8853 = vmatprep.mubr.bf16.mxu0 0
      %8854 = vmatmul.mubr.bf16.gmra.mrb[0].mxu0 %v8445
      %v8855 = vpop.f32.mrb[0].mxu0
      %v8856 = vadd.f32 0.0, %v8855
      %v8857 = vpop.f32.mrb[0].mxu0
      %v8858 = vpop.f32.mrb[0].mxu0
      %v8859 = vadd.f32 0.0, %v8858
      %v8860 = vpop.f32.mrb[0].mxu0
      %8861 = vmatprep.mubr.bf16.mxu0 0
      %8862 = vmatmul.mubr.bf16.gmra.mrb[0].mxu0 %v8448
      %v8863 = vpop.f32.mrb[0].mxu0
      %v8864 = vadd.f32 0.0, %v8863
      %v8865 = vpop.f32.mrb[0].mxu0
      %v8866 = vpop.f32.mrb[0].mxu0
      %v8867 = vadd.f32 0.0, %v8866
      %v8868 = vpop.f32.mrb[0].mxu0
      %8869 = vmatprep.mubr.bf16.mxu0 0
      %8870 = vmatmul.mubr.bf16.gmra.mrb[0].mxu0 %v8451
      %v8871 = vpop.f32.mrb[0].mxu0
      %v8872 = vadd.f32 0.0, %v8871
      %v8873 = vpop.f32.mrb[0].mxu0
      %v8874 = vpop.f32.mrb[0].mxu0
      %v8875 = vadd.f32 0.0, %v8874
      %v8876 = vpop.f32.mrb[0].mxu0
      %8877 = vmatprep.mubr.bf16.mxu0 0
      %8878 = vmatmul.mubr.bf16.gmra.mrb[0].mxu0 %v8454
      %v8879 = vpop.f32.mrb[0].mxu0
      %v8880 = vadd.f32 0.0, %v8879
      %v8881 = vpop.f32.mrb[0].mxu0
      %v8882 = vpop.f32.mrb[0].mxu0
      %v8883 = vadd.f32 0.0, %v8882
      %v8884 = vpop.f32.mrb[0].mxu0
      %8885 = vmatprep.mubr.bf16.mxu0 0
      %8886 = vmatmul.mubr.bf16.gmra.mrb[0].mxu0 %v8457
      %v8887 = vpop.f32.mrb[0].mxu0
      %v8888 = vadd.f32 0.0, %v8887
      %v8889 = vpop.f32.mrb[0].mxu0
      %v8890 = vpop.f32.mrb[0].mxu0
      %v8891 = vadd.f32 0.0, %v8890
      %v8892 = vpop.f32.mrb[0].mxu0
      %8893 = vmatprep.mubr.bf16.mxu0 0
      %8894 = vmatmul.mubr.bf16.gmra.mrb[0].mxu0 %v8460
      %v8895 = vpop.f32.mrb[0].mxu0
      %v8896 = vadd.f32 0.0, %v8895
      %v8897 = vpop.f32.mrb[0].mxu0
      %v8898 = vpop.f32.mrb[0].mxu0
      %v8899 = vadd.f32 0.0, %v8898
      %v8900 = vpop.f32.mrb[0].mxu0
      %8901 = vmatprep.mubr.bf16.mxu0 0
      %8902 = vmatmul.mubr.bf16.gmra.mrb[0].mxu0 %v8463
      %v8903 = vpop.f32.mrb[0].mxu0
      %v8904 = vadd.f32 0.0, %v8903
      %v8905 = vpop.f32.mrb[0].mxu0
      %v8906 = vpop.f32.mrb[0].mxu0
      %v8907 = vadd.f32 0.0, %v8906
      %v8908 = vpop.f32.mrb[0].mxu0
      %8909 = vmatprep.mubr.bf16.mxu0 0
      %8910 = vmatmul.mubr.bf16.gmra.mrb[0].mxu0 %v8466
      %v8911 = vpop.f32.mrb[0].mxu0
      %v8912 = vadd.f32 0.0, %v8911
      %v8913 = vpop.f32.mrb[0].mxu0
      %v8914 = vpop.f32.mrb[0].mxu0
      %v8915 = vadd.f32 0.0, %v8914
      %v8916 = vpop.f32.mrb[0].mxu0
      %8917 = vmatprep.mubr.bf16.mxu0 0
      %8918 = vmatmul.mubr.bf16.gmra.mrb[0].mxu0 %v8469
      %v8919 = vpop.f32.mrb[0].mxu0
      %v8920 = vadd.f32 0.0, %v8919
      %v8921 = vpop.f32.mrb[0].mxu0
      %v8922 = vpop.f32.mrb[0].mxu0
      %v8923 = vadd.f32 0.0, %v8922
      %v8924 = vpop.f32.mrb[0].mxu0
      %8925 = vmatprep.mubr.bf16.mxu0 0
      %8926 = vmatmul.mubr.bf16.gmra.mrb[0].mxu0 %v8472
      %v8927 = vpop.f32.mrb[0].mxu0
      %v8928 = vadd.f32 0.0, %v8927
      %v8929 = vpop.f32.mrb[0].mxu0
      %v8930 = vpop.f32.mrb[0].mxu0
      %v8931 = vadd.f32 0.0, %v8930
      %v8932 = vpop.f32.mrb[0].mxu0
      %8933 = vmatprep.mubr.bf16.mxu0 0
      %8934 = vmatmul.mubr.bf16.gmra.mrb[0].mxu0 %v8475
      %v8935 = vpop.f32.mrb[0].mxu0
      %v8936 = vadd.f32 0.0, %v8935
      %v8937 = vpop.f32.mrb[0].mxu0
      %v8938 = vpop.f32.mrb[0].mxu0
      %v8939 = vadd.f32 0.0, %v8938
      %v8940 = vpop.f32.mrb[0].mxu0
      %8941 = vmatprep.mubr.bf16.mxu0 0
      %8942 = vmatmul.mubr.bf16.gmra.mrb[0].mxu0 %v8478
      %v8943 = vpop.f32.mrb[0].mxu0
      %v8944 = vadd.f32 0.0, %v8943
      %v8945 = vpop.f32.mrb[0].mxu0
      %v8946 = vpop.f32.mrb[0].mxu0
      %v8947 = vadd.f32 0.0, %v8946
      %v8948 = vpop.f32.mrb[0].mxu0
      %8949 = vmatprep.mubr.bf16.mxu0 0
      %8950 = vmatmul.mubr.bf16.gmra.mrb[0].mxu0 %v8481
      %v8951 = vpop.f32.mrb[0].mxu0
      %v8952 = vadd.f32 0.0, %v8951
      %v8953 = vpop.f32.mrb[0].mxu0
      %v8954 = vpop.f32.mrb[0].mxu0
      %v8955 = vadd.f32 0.0, %v8954
      %v8956 = vpop.f32.mrb[0].mxu0
      %8957 = vmatprep.mubr.bf16.mxu0 0
      %8958 = vmatmul.mubr.bf16.gmra.mrb[0].mxu0 %v8484
      %v8959 = vpop.f32.mrb[0].mxu0
      %v8960 = vadd.f32 0.0, %v8959
      %v8961 = vpop.f32.mrb[0].mxu0
      %v8962 = vpop.f32.mrb[0].mxu0
      %v8963 = vadd.f32 0.0, %v8962
      %v8964 = vpop.f32.mrb[0].mxu0
      %8965 = vmatprep.mubr.bf16.mxu0 0
      %8966 = vmatmul.mubr.bf16.gmra.mrb[0].mxu0 %v8487
      %v8967 = vpop.f32.mrb[0].mxu0
      %v8968 = vadd.f32 0.0, %v8967
      %v8969 = vpop.f32.mrb[0].mxu0
      %v8970 = vpop.f32.mrb[0].mxu0
      %v8971 = vadd.f32 0.0, %v8970
      %v8972 = vpop.f32.mrb[0].mxu0
      %8973 = vmatprep.mubr.bf16.mxu0 0
      %8974 = vmatmul.mubr.bf16.gmra.mrb[0].mxu0 %v8490
      %v8975 = vpop.f32.mrb[0].mxu0
      %v8976 = vadd.f32 0.0, %v8975
      %v8977 = vpop.f32.mrb[0].mxu0
      %v8978 = vpop.f32.mrb[0].mxu0
      %v8979 = vadd.f32 0.0, %v8978
      %v8980 = vpop.f32.mrb[0].mxu0
      %8981 = vmatprep.mubr.bf16.mxu0 0
      %8982 = vmatmul.mubr.bf16.gmra.mrb[0].mxu0 %v8493
      %v8983 = vpop.f32.mrb[0].mxu0
      %v8984 = vadd.f32 0.0, %v8983
      %v8985 = vpop.f32.mrb[0].mxu0
      %v8986 = vpop.f32.mrb[0].mxu0
      %v8987 = vadd.f32 0.0, %v8986
      %v8988 = vpop.f32.mrb[0].mxu0
      %8989 = vmatprep.mubr.bf16.mxu0 0
      %8990 = vmatmul.mubr.bf16.gmra.mrb[0].mxu0 %v8496
      %v8991 = vpop.f32.mrb[0].mxu0
      %v8992 = vadd.f32 0.0, %v8991
      %v8993 = vpop.f32.mrb[0].mxu0
      %v8994 = vpop.f32.mrb[0].mxu0
      %v8995 = vadd.f32 0.0, %v8994
      %v8996 = vpop.f32.mrb[0].mxu0
      %8997 = vmatprep.mubr.bf16.mxu0 0
      %8998 = vmatmul.mubr.bf16.gmra.mrb[0].mxu0 %v8499
      %v8999 = vpop.f32.mrb[0].mxu0
      %v9000 = vadd.f32 0.0, %v8999
      %v9001 = vpop.f32.mrb[0].mxu0
      %v9002 = vpop.f32.mrb[0].mxu0
      %v9003 = vadd.f32 0.0, %v9002
      %v9004 = vpop.f32.mrb[0].mxu0
      %9005 = vmatprep.mubr.bf16.mxu0 0
      %9006 = vmatmul.mubr.bf16.gmra.mrb[0].mxu0 %v8502
      %v9007 = vpop.f32.mrb[0].mxu0
      %v9008 = vadd.f32 0.0, %v9007
      %v9009 = vpop.f32.mrb[0].mxu0
      %v9010 = vpop.f32.mrb[0].mxu0
      %v9011 = vadd.f32 0.0, %v9010
      %v9012 = vpop.f32.mrb[0].mxu0
      %9013 = vmatprep.mubr.bf16.mxu0 0
      %9014 = vmatmul.mubr.bf16.gmra.mrb[0].mxu0 %v8505
      %v9015 = vpop.f32.mrb[0].mxu0
      %v9016 = vadd.f32 0.0, %v9015
      %v9017 = vpop.f32.mrb[0].mxu0
      %v9018 = vpop.f32.mrb[0].mxu0
      %v9019 = vadd.f32 0.0, %v9018
      %v9020 = vpop.f32.mrb[0].mxu0
      %9021 = vmatprep.mubr.bf16.mxu0 0
      %9022 = vmatmul.mubr.bf16.gmra.mrb[0].mxu0 %v8508
      %v9023 = vpop.f32.mrb[0].mxu0
      %v9024 = vadd.f32 0.0, %v9023
      %v9025 = vpop.f32.mrb[0].mxu0
      %v9026 = vpop.f32.mrb[0].mxu0
      %v9027 = vadd.f32 0.0, %v9026
      %v9028 = vpop.f32.mrb[0].mxu0
      %9029 = vmatprep.mubr.bf16.mxu0 0
      %9030 = vmatmul.mubr.bf16.gmra.mrb[0].mxu0 %v8511
      %v9031 = vpop.f32.mrb[0].mxu0
      %v9032 = vadd.f32 0.0, %v9031
      %v9033 = vpop.f32.mrb[0].mxu0
      %v9034 = vpop.f32.mrb[0].mxu0
      %v9035 = vadd.f32 0.0, %v9034
      %v9036 = vpop.f32.mrb[0].mxu0
      %9037 = vmatprep.mubr.bf16.mxu0 0
      %9038 = vmatmul.mubr.bf16.gmra.mrb[0].mxu0 %v8514
      %v9039 = vpop.f32.mrb[0].mxu0
      %v9040 = vadd.f32 0.0, %v9039
      %v9041 = vpop.f32.mrb[0].mxu0
      %v9042 = vpop.f32.mrb[0].mxu0
      %v9043 = vadd.f32 0.0, %v9042
      %v9044 = vpop.f32.mrb[0].mxu0
      %9045 = vmatprep.mubr.bf16.mxu0 0
      %9046 = vmatmul.mubr.bf16.gmra.mrb[0].mxu0 %v8517
      %v9047 = vpop.f32.mrb[0].mxu0
      %v9048 = vadd.f32 0.0, %v9047
      %v9049 = vpop.f32.mrb[0].mxu0
      %v9050 = vpop.f32.mrb[0].mxu0
      %v9051 = vadd.f32 0.0, %v9050
      %v9052 = vpop.f32.mrb[0].mxu0
      %9053 = vmatprep.mubr.bf16.mxu0 0
      %9054 = vmatmul.mubr.bf16.gmra.mrb[0].mxu0 %v8520
      %v9055 = vpop.f32.mrb[0].mxu0
      %v9056 = vadd.f32 0.0, %v9055
      %v9057 = vpop.f32.mrb[0].mxu0
      %v9058 = vpop.f32.mrb[0].mxu0
      %v9059 = vadd.f32 0.0, %v9058
      %v9060 = vpop.f32.mrb[0].mxu0
      %9061 = vmatprep.mubr.bf16.mxu0 0
      %9062 = vmatmul.mubr.bf16.gmra.mrb[0].mxu0 %v8523
      %v9063 = vpop.f32.mrb[0].mxu0
      %v9064 = vadd.f32 0.0, %v9063
      %v9065 = vpop.f32.mrb[0].mxu0
      %v9066 = vpop.f32.mrb[0].mxu0
      %v9067 = vadd.f32 0.0, %v9066
      %v9068 = vpop.f32.mrb[0].mxu0
      %9069 = vdwg.mxu0
      %v9070 = vpack.c.bf16 %v8563, %v8560
      %v9071 = vpack.c.bf16 %v8571, %v8568
      %v9072 = vpack.c.bf16 %v8579, %v8576
      %v9073 = vpack.c.bf16 %v8587, %v8584
      %v9074 = vpack.c.bf16 %v8595, %v8592
      %v9075 = vpack.c.bf16 %v8603, %v8600
      %v9076 = vpack.c.bf16 %v8611, %v8608
      %v9077 = vpack.c.bf16 %v8619, %v8616
      %v9078 = vpack.c.bf16 %v8627, %v8624
      %v9079 = vpack.c.bf16 %v8635, %v8632
      %v9080 = vpack.c.bf16 %v8643, %v8640
      %v9081 = vpack.c.bf16 %v8651, %v8648
      %v9082 = vpack.c.bf16 %v8659, %v8656
      %v9083 = vpack.c.bf16 %v8667, %v8664
      %v9084 = vpack.c.bf16 %v8675, %v8672
      %v9085 = vpack.c.bf16 %v8683, %v8680
      %v9086 = vpack.c.bf16 %v8691, %v8688
      %v9087 = vpack.c.bf16 %v8699, %v8696
      %v9088 = vpack.c.bf16 %v8707, %v8704
      %v9089 = vpack.c.bf16 %v8715, %v8712
      %v9090 = vpack.c.bf16 %v8723, %v8720
      %v9091 = vpack.c.bf16 %v8731, %v8728
      %v9092 = vpack.c.bf16 %v8739, %v8736
      %v9093 = vpack.c.bf16 %v8747, %v8744
      %v9094 = vpack.c.bf16 %v8755, %v8752
      %v9095 = vpack.c.bf16 %v8763, %v8760
      %v9096 = vpack.c.bf16 %v8771, %v8768
      %v9097 = vpack.c.bf16 %v8779, %v8776
      %v9098 = vpack.c.bf16 %v8787, %v8784
      %v9099 = vpack.c.bf16 %v8795, %v8792
      %v9100 = vpack.c.bf16 %v8803, %v8800
      %v9101 = vpack.c.bf16 %v8811, %v8808
      %v9102 = vpack.c.bf16 %v8819, %v8816
      %v9103 = vpack.c.bf16 %v8827, %v8824
      %v9104 = vpack.c.bf16 %v8835, %v8832
      %v9105 = vpack.c.bf16 %v8843, %v8840
      %v9106 = vpack.c.bf16 %v8851, %v8848
      %v9107 = vpack.c.bf16 %v8859, %v8856
      %v9108 = vpack.c.bf16 %v8867, %v8864
      %v9109 = vpack.c.bf16 %v8875, %v8872
      %v9110 = vpack.c.bf16 %v8883, %v8880
      %v9111 = vpack.c.bf16 %v8891, %v8888
      %v9112 = vpack.c.bf16 %v8899, %v8896
      %v9113 = vpack.c.bf16 %v8907, %v8904
      %v9114 = vpack.c.bf16 %v8915, %v8912
      %v9115 = vpack.c.bf16 %v8923, %v8920
      %v9116 = vpack.c.bf16 %v8931, %v8928
      %v9117 = vpack.c.bf16 %v8939, %v8936
      %v9118 = vpack.c.bf16 %v8947, %v8944
      %v9119 = vpack.c.bf16 %v8955, %v8952
      %v9120 = vpack.c.bf16 %v8963, %v8960
      %v9121 = vpack.c.bf16 %v8971, %v8968
      %v9122 = vpack.c.bf16 %v8979, %v8976
      %v9123 = vpack.c.bf16 %v8987, %v8984
      %v9124 = vpack.c.bf16 %v8995, %v8992
      %v9125 = vpack.c.bf16 %v9003, %v9000
      %v9126 = vpack.c.bf16 %v9011, %v9008
      %v9127 = vpack.c.bf16 %v9019, %v9016
      %v9128 = vpack.c.bf16 %v9027, %v9024
      %v9129 = vpack.c.bf16 %v9035, %v9032
      %v9130 = vpack.c.bf16 %v9043, %v9040
      %v9131 = vpack.c.bf16 %v9051, %v9048
      %v9132 = vpack.c.bf16 %v9059, %v9056
      %v9133 = vpack.c.bf16 %v9067, %v9064
      %v9198 = vunpack.c.l.b16 %v9070
      %v9199 = vunpack.c.h.b16 %v9070
      %v9200 = vunpack.c.l.b16 %v9071
      %v9201 = vunpack.c.h.b16 %v9071
      %v9202 = vunpack.c.l.b16 %v9072
      %v9203 = vunpack.c.h.b16 %v9072
      %v9204 = vunpack.c.l.b16 %v9073
      %v9205 = vunpack.c.h.b16 %v9073
      %v9206 = vunpack.c.l.b16 %v9074
      %v9207 = vunpack.c.h.b16 %v9074
      %v9208 = vunpack.c.l.b16 %v9075
      %v9209 = vunpack.c.h.b16 %v9075
      %v9210 = vunpack.c.l.b16 %v9076
      %v9211 = vunpack.c.h.b16 %v9076
      %v9212 = vunpack.c.l.b16 %v9077
      %v9213 = vunpack.c.h.b16 %v9077
      %v9214 = vunpack.c.l.b16 %v9078
      %v9215 = vunpack.c.h.b16 %v9078
      %v9216 = vunpack.c.l.b16 %v9079
      %v9217 = vunpack.c.h.b16 %v9079
      %v9218 = vunpack.c.l.b16 %v9080
      %v9219 = vunpack.c.h.b16 %v9080
      %v9220 = vunpack.c.l.b16 %v9081
      %v9221 = vunpack.c.h.b16 %v9081
      %v9222 = vunpack.c.l.b16 %v9082
      %v9223 = vunpack.c.h.b16 %v9082
      %v9224 = vunpack.c.l.b16 %v9083
      %v9225 = vunpack.c.h.b16 %v9083
      %v9226 = vunpack.c.l.b16 %v9084
      %v9227 = vunpack.c.h.b16 %v9084
      %v9228 = vunpack.c.l.b16 %v9085
      %v9229 = vunpack.c.h.b16 %v9085
      %v9230 = vunpack.c.l.b16 %v9086
      %v9231 = vunpack.c.h.b16 %v9086
      %v9232 = vunpack.c.l.b16 %v9087
      %v9233 = vunpack.c.h.b16 %v9087
      %v9234 = vunpack.c.l.b16 %v9088
      %v9235 = vunpack.c.h.b16 %v9088
      %v9236 = vunpack.c.l.b16 %v9089
      %v9237 = vunpack.c.h.b16 %v9089
      %v9238 = vunpack.c.l.b16 %v9090
      %v9239 = vunpack.c.h.b16 %v9090
      %v9240 = vunpack.c.l.b16 %v9091
      %v9241 = vunpack.c.h.b16 %v9091
      %v9242 = vunpack.c.l.b16 %v9092
      %v9243 = vunpack.c.h.b16 %v9092
      %v9244 = vunpack.c.l.b16 %v9093
      %v9245 = vunpack.c.h.b16 %v9093
      %v9246 = vunpack.c.l.b16 %v9094
      %v9247 = vunpack.c.h.b16 %v9094
      %v9248 = vunpack.c.l.b16 %v9095
      %v9249 = vunpack.c.h.b16 %v9095
      %v9250 = vunpack.c.l.b16 %v9096
      %v9251 = vunpack.c.h.b16 %v9096
      %v9252 = vunpack.c.l.b16 %v9097
      %v9253 = vunpack.c.h.b16 %v9097
      %v9254 = vunpack.c.l.b16 %v9098
      %v9255 = vunpack.c.h.b16 %v9098
      %v9256 = vunpack.c.l.b16 %v9099
      %v9257 = vunpack.c.h.b16 %v9099
      %v9258 = vunpack.c.l.b16 %v9100
      %v9259 = vunpack.c.h.b16 %v9100
      %v9260 = vunpack.c.l.b16 %v9101
      %v9261 = vunpack.c.h.b16 %v9101
      %v9262 = vunpack.c.l.b16 %v9102
      %v9263 = vunpack.c.h.b16 %v9102
      %v9264 = vunpack.c.l.b16 %v9103
      %v9265 = vunpack.c.h.b16 %v9103
      %v9266 = vunpack.c.l.b16 %v9104
      %v9267 = vunpack.c.h.b16 %v9104
      %v9268 = vunpack.c.l.b16 %v9105
      %v9269 = vunpack.c.h.b16 %v9105
      %v9270 = vunpack.c.l.b16 %v9106
      %v9271 = vunpack.c.h.b16 %v9106
      %v9272 = vunpack.c.l.b16 %v9107
      %v9273 = vunpack.c.h.b16 %v9107
      %v9274 = vunpack.c.l.b16 %v9108
      %v9275 = vunpack.c.h.b16 %v9108
      %v9276 = vunpack.c.l.b16 %v9109
      %v9277 = vunpack.c.h.b16 %v9109
      %v9278 = vunpack.c.l.b16 %v9110
      %v9279 = vunpack.c.h.b16 %v9110
      %v9280 = vunpack.c.l.b16 %v9111
      %v9281 = vunpack.c.h.b16 %v9111
      %v9282 = vunpack.c.l.b16 %v9112
      %v9283 = vunpack.c.h.b16 %v9112
      %v9284 = vunpack.c.l.b16 %v9113
      %v9285 = vunpack.c.h.b16 %v9113
      %v9286 = vunpack.c.l.b16 %v9114
      %v9287 = vunpack.c.h.b16 %v9114
      %v9288 = vunpack.c.l.b16 %v9115
      %v9289 = vunpack.c.h.b16 %v9115
      %v9290 = vunpack.c.l.b16 %v9116
      %v9291 = vunpack.c.h.b16 %v9116
      %v9292 = vunpack.c.l.b16 %v9117
      %v9293 = vunpack.c.h.b16 %v9117
      %v9294 = vunpack.c.l.b16 %v9118
      %v9295 = vunpack.c.h.b16 %v9118
      %v9296 = vunpack.c.l.b16 %v9119
      %v9297 = vunpack.c.h.b16 %v9119
      %v9298 = vunpack.c.l.b16 %v9120
      %v9299 = vunpack.c.h.b16 %v9120
      %v9300 = vunpack.c.l.b16 %v9121
      %v9301 = vunpack.c.h.b16 %v9121
      %v9302 = vunpack.c.l.b16 %v9122
      %v9303 = vunpack.c.h.b16 %v9122
      %v9304 = vunpack.c.l.b16 %v9123
      %v9305 = vunpack.c.h.b16 %v9123
      %v9306 = vunpack.c.l.b16 %v9124
      %v9307 = vunpack.c.h.b16 %v9124
      %v9308 = vunpack.c.l.b16 %v9125
      %v9309 = vunpack.c.h.b16 %v9125
      %v9310 = vunpack.c.l.b16 %v9126
      %v9311 = vunpack.c.h.b16 %v9126
      %v9312 = vunpack.c.l.b16 %v9127
      %v9313 = vunpack.c.h.b16 %v9127
      %v9314 = vunpack.c.l.b16 %v9128
      %v9315 = vunpack.c.h.b16 %v9128
      %v9316 = vunpack.c.l.b16 %v9129
      %v9317 = vunpack.c.h.b16 %v9129
      %v9318 = vunpack.c.l.b16 %v9130
      %v9319 = vunpack.c.h.b16 %v9130
      %v9320 = vunpack.c.l.b16 %v9131
      %v9321 = vunpack.c.h.b16 %v9131
      %v9322 = vunpack.c.l.b16 %v9132
      %v9323 = vunpack.c.h.b16 %v9132
      %v9324 = vunpack.c.l.b16 %v9133
      %v9325 = vunpack.c.h.b16 %v9133
      %v9326 = vpack.c.b16 %v9198, %v9198
      %v9327 = vpack.c.b16 %v9199, %v9199
      %v9328 = vpack.c.b16 %v9200, %v9200
      %v9329 = vpack.c.b16 %v9201, %v9201
      %v9330 = vpack.c.b16 %v9202, %v9202
      %v9331 = vpack.c.b16 %v9203, %v9203
      %v9332 = vpack.c.b16 %v9204, %v9204
      %v9333 = vpack.c.b16 %v9205, %v9205
      %v9334 = vpack.c.b16 %v9206, %v9206
      %v9335 = vpack.c.b16 %v9207, %v9207
      %v9336 = vpack.c.b16 %v9208, %v9208
      %v9337 = vpack.c.b16 %v9209, %v9209
      %v9338 = vpack.c.b16 %v9210, %v9210
      %v9339 = vpack.c.b16 %v9211, %v9211
      %v9340 = vpack.c.b16 %v9212, %v9212
      %v9341 = vpack.c.b16 %v9213, %v9213
      %v9342 = vpack.c.b16 %v9214, %v9214
      %v9343 = vpack.c.b16 %v9215, %v9215
      %v9344 = vpack.c.b16 %v9216, %v9216
      %v9345 = vpack.c.b16 %v9217, %v9217
      %v9346 = vpack.c.b16 %v9218, %v9218
      %v9347 = vpack.c.b16 %v9219, %v9219
      %v9348 = vpack.c.b16 %v9220, %v9220
      %v9349 = vpack.c.b16 %v9221, %v9221
      %v9350 = vpack.c.b16 %v9222, %v9222
      %v9351 = vpack.c.b16 %v9223, %v9223
      %v9352 = vpack.c.b16 %v9224, %v9224
      %v9353 = vpack.c.b16 %v9225, %v9225
      %v9354 = vpack.c.b16 %v9226, %v9226
      %v9355 = vpack.c.b16 %v9227, %v9227
      %v9356 = vpack.c.b16 %v9228, %v9228
      %v9357 = vpack.c.b16 %v9229, %v9229
      %v9358 = vpack.c.b16 %v9230, %v9230
      %v9359 = vpack.c.b16 %v9231, %v9231
      %v9360 = vpack.c.b16 %v9232, %v9232
      %v9361 = vpack.c.b16 %v9233, %v9233
      %v9362 = vpack.c.b16 %v9234, %v9234
      %v9363 = vpack.c.b16 %v9235, %v9235
      %v9364 = vpack.c.b16 %v9236, %v9236
      %v9365 = vpack.c.b16 %v9237, %v9237
      %v9366 = vpack.c.b16 %v9238, %v9238
      %v9367 = vpack.c.b16 %v9239, %v9239
      %v9368 = vpack.c.b16 %v9240, %v9240
      %v9369 = vpack.c.b16 %v9241, %v9241
      %v9370 = vpack.c.b16 %v9242, %v9242
      %v9371 = vpack.c.b16 %v9243, %v9243
      %v9372 = vpack.c.b16 %v9244, %v9244
      %v9373 = vpack.c.b16 %v9245, %v9245
      %v9374 = vpack.c.b16 %v9246, %v9246
      %v9375 = vpack.c.b16 %v9247, %v9247
      %v9376 = vpack.c.b16 %v9248, %v9248
      %v9377 = vpack.c.b16 %v9249, %v9249
      %v9378 = vpack.c.b16 %v9250, %v9250
      %v9379 = vpack.c.b16 %v9251, %v9251
      %v9380 = vpack.c.b16 %v9252, %v9252
      %v9381 = vpack.c.b16 %v9253, %v9253
      %v9382 = vpack.c.b16 %v9254, %v9254
      %v9383 = vpack.c.b16 %v9255, %v9255
      %v9384 = vpack.c.b16 %v9256, %v9256
      %v9385 = vpack.c.b16 %v9257, %v9257
      %v9386 = vpack.c.b16 %v9258, %v9258
      %v9387 = vpack.c.b16 %v9259, %v9259
      %v9388 = vpack.c.b16 %v9260, %v9260
      %v9389 = vpack.c.b16 %v9261, %v9261
      %v9390 = vpack.c.b16 %v9262, %v9262
      %v9391 = vpack.c.b16 %v9263, %v9263
      %v9392 = vpack.c.b16 %v9264, %v9264
      %v9393 = vpack.c.b16 %v9265, %v9265
      %v9394 = vpack.c.b16 %v9266, %v9266
      %v9395 = vpack.c.b16 %v9267, %v9267
      %v9396 = vpack.c.b16 %v9268, %v9268
      %v9397 = vpack.c.b16 %v9269, %v9269
      %v9398 = vpack.c.b16 %v9270, %v9270
      %v9399 = vpack.c.b16 %v9271, %v9271
      %v9400 = vpack.c.b16 %v9272, %v9272
      %v9401 = vpack.c.b16 %v9273, %v9273
      %v9402 = vpack.c.b16 %v9274, %v9274
      %v9403 = vpack.c.b16 %v9275, %v9275
      %v9404 = vpack.c.b16 %v9276, %v9276
      %v9405 = vpack.c.b16 %v9277, %v9277
      %v9406 = vpack.c.b16 %v9278, %v9278
      %v9407 = vpack.c.b16 %v9279, %v9279
      %v9408 = vpack.c.b16 %v9280, %v9280
      %v9409 = vpack.c.b16 %v9281, %v9281
      %v9410 = vpack.c.b16 %v9282, %v9282
      %v9411 = vpack.c.b16 %v9283, %v9283
      %v9412 = vpack.c.b16 %v9284, %v9284
      %v9413 = vpack.c.b16 %v9285, %v9285
      %v9414 = vpack.c.b16 %v9286, %v9286
      %v9415 = vpack.c.b16 %v9287, %v9287
      %v9416 = vpack.c.b16 %v9288, %v9288
      %v9417 = vpack.c.b16 %v9289, %v9289
      %v9418 = vpack.c.b16 %v9290, %v9290
      %v9419 = vpack.c.b16 %v9291, %v9291
      %v9420 = vpack.c.b16 %v9292, %v9292
      %v9421 = vpack.c.b16 %v9293, %v9293
      %v9422 = vpack.c.b16 %v9294, %v9294
      %v9423 = vpack.c.b16 %v9295, %v9295
      %v9424 = vpack.c.b16 %v9296, %v9296
      %v9425 = vpack.c.b16 %v9297, %v9297
      %v9426 = vpack.c.b16 %v9298, %v9298
      %v9427 = vpack.c.b16 %v9299, %v9299
      %v9428 = vpack.c.b16 %v9300, %v9300
      %v9429 = vpack.c.b16 %v9301, %v9301
      %v9430 = vpack.c.b16 %v9302, %v9302
      %v9431 = vpack.c.b16 %v9303, %v9303
      %v9432 = vpack.c.b16 %v9304, %v9304
      %v9433 = vpack.c.b16 %v9305, %v9305
      %v9434 = vpack.c.b16 %v9306, %v9306
      %v9435 = vpack.c.b16 %v9307, %v9307
      %v9436 = vpack.c.b16 %v9308, %v9308
      %v9437 = vpack.c.b16 %v9309, %v9309
      %v9438 = vpack.c.b16 %v9310, %v9310
      %v9439 = vpack.c.b16 %v9311, %v9311
      %v9440 = vpack.c.b16 %v9312, %v9312
      %v9441 = vpack.c.b16 %v9313, %v9313
      %v9442 = vpack.c.b16 %v9314, %v9314
      %v9443 = vpack.c.b16 %v9315, %v9315
      %v9444 = vpack.c.b16 %v9316, %v9316
      %v9445 = vpack.c.b16 %v9317, %v9317
      %v9446 = vpack.c.b16 %v9318, %v9318
      %v9447 = vpack.c.b16 %v9319, %v9319
      %v9448 = vpack.c.b16 %v9320, %v9320
      %v9449 = vpack.c.b16 %v9321, %v9321
      %v9450 = vpack.c.b16 %v9322, %v9322
      %v9451 = vpack.c.b16 %v9323, %v9323
      %v9452 = vpack.c.b16 %v9324, %v9324
      %v9453 = vpack.c.b16 %v9325, %v9325
      %9582 = vst [vmem:[%s562] sm:$0xf] %v9326
      %9583 = vst [vmem:[%s562 + $0x4] sm:$0xf] %v9327
      %9584 = vst [vmem:[%s562 + $0x8] sm:$0xf] %v9328
      %9585 = vst [vmem:[%s562 + $0xc] sm:$0xf] %v9329
      %9586 = vst [vmem:[%s562 + $0x10] sm:$0xf] %v9330
      %9587 = vst [vmem:[%s562 + $0x14] sm:$0xf] %v9331
      %9588 = vst [vmem:[%s562 + $0x18] sm:$0xf] %v9332
      %9589 = vst [vmem:[%s562 + $0x1c] sm:$0xf] %v9333
      %9590 = vst [vmem:[%s562 + $0x20] sm:$0xf] %v9334
      %9591 = vst [vmem:[%s562 + $0x24] sm:$0xf] %v9335
      %9592 = vst [vmem:[%s562 + $0x28] sm:$0xf] %v9336
      %9593 = vst [vmem:[%s562 + $0x2c] sm:$0xf] %v9337
      %9594 = vst [vmem:[%s562 + $0x30] sm:$0xf] %v9338
      %9595 = vst [vmem:[%s562 + $0x34] sm:$0xf] %v9339
      %9596 = vst [vmem:[%s562 + $0x38] sm:$0xf] %v9340
      %9597 = vst [vmem:[%s562 + $0x3c] sm:$0xf] %v9341
      %9598 = vst [vmem:[%s562 + $0x40] sm:$0xf] %v9342
      %9599 = vst [vmem:[%s562 + $0x44] sm:$0xf] %v9343
      %9600 = vst [vmem:[%s562 + $0x48] sm:$0xf] %v9344
      %9601 = vst [vmem:[%s562 + $0x4c] sm:$0xf] %v9345
      %9602 = vst [vmem:[%s562 + $0x50] sm:$0xf] %v9346
      %9603 = vst [vmem:[%s562 + $0x54] sm:$0xf] %v9347
      %9604 = vst [vmem:[%s562 + $0x58] sm:$0xf] %v9348
      %9605 = vst [vmem:[%s562 + $0x5c] sm:$0xf] %v9349
      %9606 = vst [vmem:[%s562 + $0x60] sm:$0xf] %v9350
      %9607 = vst [vmem:[%s562 + $0x64] sm:$0xf] %v9351
      %9608 = vst [vmem:[%s562 + $0x68] sm:$0xf] %v9352
      %9609 = vst [vmem:[%s562 + $0x6c] sm:$0xf] %v9353
      %9610 = vst [vmem:[%s562 + $0x70] sm:$0xf] %v9354
      %9611 = vst [vmem:[%s562 + $0x74] sm:$0xf] %v9355
      %9612 = vst [vmem:[%s562 + $0x78] sm:$0xf] %v9356
      %9613 = vst [vmem:[%s562 + $0x7c] sm:$0xf] %v9357
      %9614 = vst [vmem:[%s562 + $0x80] sm:$0xf] %v9358
      %9615 = vst [vmem:[%s562 + $0x84] sm:$0xf] %v9359
      %9616 = vst [vmem:[%s562 + $0x88] sm:$0xf] %v9360
      %9617 = vst [vmem:[%s562 + $0x8c] sm:$0xf] %v9361
      %9618 = vst [vmem:[%s562 + $0x90] sm:$0xf] %v9362
      %9619 = vst [vmem:[%s562 + $0x94] sm:$0xf] %v9363
      %9620 = vst [vmem:[%s562 + $0x98] sm:$0xf] %v9364
      %9621 = vst [vmem:[%s562 + $0x9c] sm:$0xf] %v9365
      %9622 = vst [vmem:[%s562 + $0xa0] sm:$0xf] %v9366
      %9623 = vst [vmem:[%s562 + $0xa4] sm:$0xf] %v9367
      %9624 = vst [vmem:[%s562 + $0xa8] sm:$0xf] %v9368
      %9625 = vst [vmem:[%s562 + $0xac] sm:$0xf] %v9369
      %9626 = vst [vmem:[%s562 + $0xb0] sm:$0xf] %v9370
      %9627 = vst [vmem:[%s562 + $0xb4] sm:$0xf] %v9371
      %9628 = vst [vmem:[%s562 + $0xb8] sm:$0xf] %v9372
      %9629 = vst [vmem:[%s562 + $0xbc] sm:$0xf] %v9373
      %9630 = vst [vmem:[%s562 + $0xc0] sm:$0xf] %v9374
      %9631 = vst [vmem:[%s562 + $0xc4] sm:$0xf] %v9375
      %9632 = vst [vmem:[%s562 + $0xc8] sm:$0xf] %v9376
      %9633 = vst [vmem:[%s562 + $0xcc] sm:$0xf] %v9377
      %9634 = vst [vmem:[%s562 + $0xd0] sm:$0xf] %v9378
      %9635 = vst [vmem:[%s562 + $0xd4] sm:$0xf] %v9379
      %9636 = vst [vmem:[%s562 + $0xd8] sm:$0xf] %v9380
      %9637 = vst [vmem:[%s562 + $0xdc] sm:$0xf] %v9381
      %9638 = vst [vmem:[%s562 + $0xe0] sm:$0xf] %v9382
      %9639 = vst [vmem:[%s562 + $0xe4] sm:$0xf] %v9383
      %9640 = vst [vmem:[%s562 + $0xe8] sm:$0xf] %v9384
      %9641 = vst [vmem:[%s562 + $0xec] sm:$0xf] %v9385
      %9642 = vst [vmem:[%s562 + $0xf0] sm:$0xf] %v9386
      %9643 = vst [vmem:[%s562 + $0xf4] sm:$0xf] %v9387
      %9644 = vst [vmem:[%s562 + $0xf8] sm:$0xf] %v9388
      %9645 = vst [vmem:[%s562 + $0xfc] sm:$0xf] %v9389
      %9646 = vst [vmem:[%s562 + $0x100] sm:$0xf] %v9390
      %9647 = vst [vmem:[%s562 + $0x104] sm:$0xf] %v9391
      %9648 = vst [vmem:[%s562 + $0x108] sm:$0xf] %v9392
      %9649 = vst [vmem:[%s562 + $0x10c] sm:$0xf] %v9393
      %9650 = vst [vmem:[%s562 + $0x110] sm:$0xf] %v9394
      %9651 = vst [vmem:[%s562 + $0x114] sm:$0xf] %v9395
      %9652 = vst [vmem:[%s562 + $0x118] sm:$0xf] %v9396
      %9653 = vst [vmem:[%s562 + $0x11c] sm:$0xf] %v9397
      %9654 = vst [vmem:[%s562 + $0x120] sm:$0xf] %v9398
      %9655 = vst [vmem:[%s562 + $0x124] sm:$0xf] %v9399
      %9656 = vst [vmem:[%s562 + $0x128] sm:$0xf] %v9400
      %9657 = vst [vmem:[%s562 + $0x12c] sm:$0xf] %v9401
      %9658 = vst [vmem:[%s562 + $0x130] sm:$0xf] %v9402
      %9659 = vst [vmem:[%s562 + $0x134] sm:$0xf] %v9403
      %9660 = vst [vmem:[%s562 + $0x138] sm:$0xf] %v9404
      %9661 = vst [vmem:[%s562 + $0x13c] sm:$0xf] %v9405
      %9662 = vst [vmem:[%s562 + $0x140] sm:$0xf] %v9406
      %9663 = vst [vmem:[%s562 + $0x144] sm:$0xf] %v9407
      %9664 = vst [vmem:[%s562 + $0x148] sm:$0xf] %v9408
      %9665 = vst [vmem:[%s562 + $0x14c] sm:$0xf] %v9409
      %9666 = vst [vmem:[%s562 + $0x150] sm:$0xf] %v9410
      %9667 = vst [vmem:[%s562 + $0x154] sm:$0xf] %v9411
      %9668 = vst [vmem:[%s562 + $0x158] sm:$0xf] %v9412
      %9669 = vst [vmem:[%s562 + $0x15c] sm:$0xf] %v9413
      %9670 = vst [vmem:[%s562 + $0x160] sm:$0xf] %v9414
      %9671 = vst [vmem:[%s562 + $0x164] sm:$0xf] %v9415
      %9672 = vst [vmem:[%s562 + $0x168] sm:$0xf] %v9416
      %9673 = vst [vmem:[%s562 + $0x16c] sm:$0xf] %v9417
      %9674 = vst [vmem:[%s562 + $0x170] sm:$0xf] %v9418
      %9675 = vst [vmem:[%s562 + $0x174] sm:$0xf] %v9419
      %9676 = vst [vmem:[%s562 + $0x178] sm:$0xf] %v9420
      %9677 = vst [vmem:[%s562 + $0x17c] sm:$0xf] %v9421
      %9678 = vst [vmem:[%s562 + $0x180] sm:$0xf] %v9422
      %9679 = vst [vmem:[%s562 + $0x184] sm:$0xf] %v9423
      %9680 = vst [vmem:[%s562 + $0x188] sm:$0xf] %v9424
      %9681 = vst [vmem:[%s562 + $0x18c] sm:$0xf] %v9425
      %9682 = vst [vmem:[%s562 + $0x190] sm:$0xf] %v9426
      %9683 = vst [vmem:[%s562 + $0x194] sm:$0xf] %v9427
      %9684 = vst [vmem:[%s562 + $0x198] sm:$0xf] %v9428
      %9685 = vst [vmem:[%s562 + $0x19c] sm:$0xf] %v9429
      %9686 = vst [vmem:[%s562 + $0x1a0] sm:$0xf] %v9430
      %9687 = vst [vmem:[%s562 + $0x1a4] sm:$0xf] %v9431
      %9688 = vst [vmem:[%s562 + $0x1a8] sm:$0xf] %v9432
      %9689 = vst [vmem:[%s562 + $0x1ac] sm:$0xf] %v9433
      %9690 = vst [vmem:[%s562 + $0x1b0] sm:$0xf] %v9434
      %9691 = vst [vmem:[%s562 + $0x1b4] sm:$0xf] %v9435
      %9692 = vst [vmem:[%s562 + $0x1b8] sm:$0xf] %v9436
      %9693 = vst [vmem:[%s562 + $0x1bc] sm:$0xf] %v9437
      %9694 = vst [vmem:[%s562 + $0x1c0] sm:$0xf] %v9438
      %9695 = vst [vmem:[%s562 + $0x1c4] sm:$0xf] %v9439
      %9696 = vst [vmem:[%s562 + $0x1c8] sm:$0xf] %v9440
      %9697 = vst [vmem:[%s562 + $0x1cc] sm:$0xf] %v9441
      %9698 = vst [vmem:[%s562 + $0x1d0] sm:$0xf] %v9442
      %9699 = vst [vmem:[%s562 + $0x1d4] sm:$0xf] %v9443
      %9700 = vst [vmem:[%s562 + $0x1d8] sm:$0xf] %v9444
      %9701 = vst [vmem:[%s562 + $0x1dc] sm:$0xf] %v9445
      %9702 = vst [vmem:[%s562 + $0x1e0] sm:$0xf] %v9446
      %9703 = vst [vmem:[%s562 + $0x1e4] sm:$0xf] %v9447
      %9704 = vst [vmem:[%s562 + $0x1e8] sm:$0xf] %v9448
      %9705 = vst [vmem:[%s562 + $0x1ec] sm:$0xf] %v9449
      %9706 = vst [vmem:[%s562 + $0x1f0] sm:$0xf] %v9450
      %9707 = vst [vmem:[%s562 + $0x1f4] sm:$0xf] %v9451
      %9708 = vst [vmem:[%s562 + $0x1f8] sm:$0xf] %v9452
      %9709 = vst [vmem:[%s562 + $0x1fc] sm:$0xf] %v9453
      %p9710 = scmp.lt.s32.totalorder %s26, 2
      %s9711 = scalar_select %p9710, %s26, 2
      %p9712 = scmp.lt.s32.totalorder %s27, 1
      %s9713 = scalar_select %p9712, %s27, 1
      %s9714 = smul.addr %s9713, 128
      %s9715 = smul.addr %s9711, 256
      %s9716 = sadd.s32 %s9714, %s9715
      %s9717 = smul.addr %s9716, 4
      %s9718 = scalar_lea.vmem %s11, %s9717
      // Predicated region
      $region65: #{deeplabv3_forward.3} parent=63 // pred_check
        %p9719 = pneg %p330
      $region66: #{deeplabv3_forward.3} parent=63 // pred_check_branch
        %9721 = sbr.rel (%p9719) target = $region68
      $region67: #{deeplabv3_forward.3} parent=63 // pred_region
        _
      $region68: #{deeplabv3_forward.3} parent=63 // pred_fallthru
        _
    $region64: #{deeplabv3_forward.3} parent=5 // pred_fallthru
      _
    %p9722 = scmp.le.s32.totalorder 2, %s17
    // Predicated region
    $region69: #{deeplabv3_forward.3} parent=5 // pred_check
      %p9723 = pneg %p9722
    $region70: #{deeplabv3_forward.3} parent=5 // pred_check_branch
      %9725 = sbr.rel (%p9723) target = $region72
    $region71: #{deeplabv3_forward.3} parent=5 // pred_region
      %s9726 = ssub.s32 %s17, 2
      // Predicated region
      $region73: #{deeplabv3_forward.3} parent=71 // pred_check
        %p9727 = pneg %p336
      $region74: #{deeplabv3_forward.3} parent=71 // pred_check_branch
        %9729 = sbr.rel (%p9727) target = $region76
      $region75: #{deeplabv3_forward.3} parent=71 // pred_region
        %p9730 = scmp.lt.s32.totalorder %s28, 2
        %s9731 = scalar_select %p9730, %s28, 2
        %p9732 = scmp.lt.s32.totalorder %s29, 1
        %s9733 = scalar_select %p9732, %s29, 1
        %s9734 = smul.addr %s9733, 128
        %s9735 = smul.addr %s9731, 256
        %s9736 = sadd.s32 %s9734, %s9735
        %s9737 = smul.addr %s9736, 4
        %s9738 = scalar_lea.vmem %s11, %s9737
      $region76: #{deeplabv3_forward.3} parent=71 // pred_fallthru
        _
    $region72: #{deeplabv3_forward.3} parent=5 // pred_fallthru
      _
  $region6: #{deeplabv3_forward.3} parent=0 // loop_footer
    %s21 = sadd.s32 1, %s17
  $region7: #{deeplabv3_forward.3} parent=0 // loop_footer_branch
    %16 = sbr.rel target = $region3
  $region8: #{deeplabv3_forward.3} parent=0 // loop_exit
    _

</llo_original>
